<compile_context>
chip_gen: v6e
topology: v6e:2x2x1
jax: 0.10.0
libtpu: 0.0.40
codegen_flags: <defaults>
</compile_context>

<pallas_src>
import functools

import numpy as np
import jax
import jax.numpy as jnp
from jax import lax
from jax.experimental import pallas as pl
from jax.experimental.pallas import tpu as pltpu

EPS = 1e-6

# Depthwise-conv catalogue: name -> (kind, kernel_size, dilation)
#   kind 'w'  : kernel (1, k) along W
#   kind 'h'  : kernel (k, 1) along H
#   kind '2d' : kernel (k, k), dilation 1
DW_CONVS = {
    'l3_0': ('w', 3, 1), 'l3_1': ('h', 3, 1), 'l3_2': ('w', 5, 2), 'l3_3': ('h', 5, 2),
    'l5_0': ('w', 5, 1), 'l5_1': ('h', 5, 1), 'l5_2': ('w', 7, 3), 'l5_3': ('h', 7, 3),
    'l7_0': ('w', 7, 1), 'l7_1': ('h', 7, 1), 'l7_2': ('w', 9, 4), 'l7_3': ('h', 9, 4),
    'dw2': ('2d', 3, 1), 'dw3': ('2d', 5, 1), 'dw4': ('2d', 7, 1),
}


def _tap_offsets(kind, k, d):
    """List of (dh, dw) tap offsets (PyTorch cross-correlation convention)."""
    p = (k // 2) * d
    if kind == 'w':
        return [(0, t * d - p) for t in range(k)]
    if kind == 'h':
        return [(t * d - p, 0) for t in range(k)]
    p = k // 2
    return [(i - p, j - p) for i in range(k) for j in range(k)]


# ----------------------------------------------------------------------------
# Parameter construction (deterministic, shapes match the PyTorch __init__).
# ----------------------------------------------------------------------------
def init_params(key, C):
    Cg = C // 3
    C2 = 2 * C
    keys = iter(jax.random.split(key, 64))

    def rnd(shape, s=0.2):
        return jax.random.normal(next(keys), shape, jnp.float32) * s

    p = {}
    p['ln_w'] = jnp.ones((C,), jnp.float32)     # LayerNorm weight init (torch: ones)
    p['ln_b'] = jnp.zeros((C,), jnp.float32)    # LayerNorm bias   init (torch: zeros)
    # NOTE: torch inits `scale` to zeros; use random values so the whole
    # attention branch is actually exercised by the numerical check.
    p['scale'] = rnd((C,))
    p['pf_w'] = rnd((C2, C)); p['pf_b'] = rnd((C2,))     # proj_first 1x1: C -> 2C
    p['pl_w'] = rnd((C, C));  p['pl_b'] = rnd((C,))      # proj_last  1x1: C -> C

    def lska(prefix, k1, k2):
        p[prefix + '_w0'] = rnd((Cg, k1)); p[prefix + '_b0'] = rnd((Cg,))   # (1,k1)
        p[prefix + '_w1'] = rnd((Cg, k1)); p[prefix + '_b1'] = rnd((Cg,))   # (k1,1)
        p[prefix + '_w2'] = rnd((Cg, k2)); p[prefix + '_b2'] = rnd((Cg,))   # (1,k2) dilated
        p[prefix + '_w3'] = rnd((Cg, k2)); p[prefix + '_b3'] = rnd((Cg,))   # (k2,1) dilated
        p[prefix + '_pw'] = rnd((Cg, Cg)); p[prefix + '_pb'] = rnd((Cg,))   # 1x1

    lska('l3', 3, 5)
    lska('l5', 5, 7)
    lska('l7', 7, 9)
    p['dw2_w'] = rnd((Cg, 3, 3)); p['dw2_b'] = rnd((Cg,))
    p['dw3_w'] = rnd((Cg, 5, 5)); p['dw3_b'] = rnd((Cg,))
    p['dw4_w'] = rnd((Cg, 7, 7)); p['dw4_b'] = rnd((Cg,))
    return p


def _dw_raw(p, cn):
    if cn.startswith('dw'):
        return p[cn + '_w'], p[cn + '_b']
    pre, idx = cn.split('_')
    return p[pre + '_w' + idx], p[pre + '_b' + idx]


def prepare_kernel_params(p, C, H, W):
    """Convert raw (PyTorch-layout) params into kernel-ready VMEM operands.

    - 1x1 weights are pre-split into the row/column blocks the kernel needs.
    - Depthwise weights become per-tap (T, Cg, H*W) planes with the zero-pad
      masks baked in (so the in-kernel tap is a pure full-lane FMA).
    Must be called outside jit (uses numpy on concrete arrays).
    """
    Cg = C // 3
    HW = H * W
    kp = {}
    kp['ln_w'] = p['ln_w'].reshape(C, 1)
    kp['ln_b'] = p['ln_b'].reshape(C, 1)
    kp['scale'] = p['scale'].reshape(C, 1)

    pf_w, pf_b = p['pf_w'], p['pf_b']          # (2C, C), (2C,)
    row_chunks = {'a1': (0, Cg), 'a2': (Cg, 2 * Cg), 'a3': (2 * Cg, C),
                  'x1': (C, C + Cg), 'x2': (C + Cg, C + 2 * Cg), 'x3': (C + 2 * Cg, 2 * C)}
    for nm, (lo, hi) in row_chunks.items():
        kp['pf_w_' + nm] = pf_w[lo:hi, :]
        kp['pf_b_' + nm] = pf_b[lo:hi].reshape(-1, 1)

    pl_w, pl_b = p['pl_w'], p['pl_b']          # (C, C), (C,)
    kp['pl_w_1'] = pl_w[:, 0:Cg]
    kp['pl_w_2'] = pl_w[:, Cg:2 * Cg]
    kp['pl_w_3'] = pl_w[:, 2 * Cg:C]
    kp['pl_b'] = pl_b.reshape(C, 1)

    for pre in ('l3', 'l5', 'l7'):
        kp[pre + '_pw'] = p[pre + '_pw']
        kp[pre + '_pb'] = p[pre + '_pb'].reshape(Cg, 1)

    hh = np.arange(HW) // W
    ww = np.arange(HW) % W
    for cn, (kind, k, d) in DW_CONVS.items():
        w_raw, b_raw = _dw_raw(p, cn)
        wf = np.asarray(w_raw, np.float32).reshape(Cg, -1)   # (Cg, T)
        planes = []
        for t, (dh, dw) in enumerate(_tap_offsets(kind, k, d)):
            m = ((hh + dh >= 0) & (hh + dh < H) &
                 (ww + dw >= 0) & (ww + dw < W)).astype(np.float32)
            planes.append(wf[:, t][:, None] * m[None, :])     # (Cg, HW)
        kp[cn + '_planes'] = np.stack(planes, 0)              # (T, Cg, HW)
        kp[cn + '_bias'] = np.asarray(b_raw, np.float32).reshape(Cg, 1)

    return {name: jnp.asarray(v, jnp.float32) for name, v in kp.items()}


# ----------------------------------------------------------------------------
# Pallas kernel.
# ----------------------------------------------------------------------------
def make_mlda_kernel(names, C, H, W):
    Cg = C // 3
    HW = H * W
    n_par = len(names)

    flat_offs = {cn: tuple(dh * W + dw for (dh, dw) in _tap_offsets(kind, k, d))
                 for cn, (kind, k, d) in DW_CONVS.items()}

    def kernel(*refs):
        x_ref = refs[0]
        prm = dict(zip(names, refs[1:1 + n_par]))
        out_ref = refs[1 + n_par]
        slab_ref = refs[2 + n_par]          # (Cg, 3*HW) zero-bordered shift slab

        # Zero the slab once; only the middle third is overwritten below, so
        # the borders stay zero for the whole grid step.
        slab_ref[...] = jnp.zeros((Cg, 3 * HW), jnp.float32)

        x = x_ref[...]                                      # (C, HW) lane-dense

        # ---- LayerNorm over the channel axis (per spatial location) ----
        mean = jnp.mean(x, axis=0, keepdims=True)           # (1, HW)
        xc = x - mean
        var = jnp.mean(xc * xc, axis=0, keepdims=True)
        normed = prm['ln_w'][...] * (xc * lax.rsqrt(var + EPS)) + prm['ln_b'][...]

        # ---- 1x1 convs on the MXU: (rows, C_in) @ (C_in, HW) ----
        def mm(wname, bname, act):
            return (jnp.dot(prm[wname][...], act, preferred_element_type=jnp.float32)
                    + prm[bname][...])

        a1 = mm('pf_w_a1', 'pf_b_a1', normed)               # (Cg, HW)
        a2 = mm('pf_w_a2', 'pf_b_a2', normed)
        a3 = mm('pf_w_a3', 'pf_b_a3', normed)
        xg1 = mm('pf_w_x1', 'pf_b_x1', normed)
        xg2 = mm('pf_w_x2', 'pf_b_x2', normed)
        xg3 = mm('pf_w_x3', 'pf_b_x3', normed)

        # ---- depthwise conv in flat layout (all Cg channels at once) ----
        def dwconv(val, cn):
            slab_ref[:, HW:2 * HW] = val                    # one slab store / conv
            wpl = prm[cn + '_planes']                       # (T, Cg, HW) mask-baked
            acc = prm[cn + '_bias'][...]                    # (Cg, 1) -> broadcast
            for t, off in enumerate(flat_offs[cn]):
                acc = acc + wpl[t] * slab_ref[:, HW + off:2 * HW + off]
            return acc                                      # (Cg, HW)

        def lska(val, pre):
            t = dwconv(val, pre + '_0')                     # (1,k1)
            t = dwconv(t, pre + '_1')                       # (k1,1)
            t = dwconv(t, pre + '_2')                       # (1,k2) dilated
            t = dwconv(t, pre + '_3')                       # (k2,1) dilated
            return mm(pre + '_pw', pre + '_pb', t)          # 1x1 on MXU

        lda3 = lska(a1, 'l3') * dwconv(a1, 'dw2')
        lda5 = lska(a1, 'l5') * dwconv(a2, 'dw3')
        lda7 = lska(a1, 'l7') * dwconv(a3, 'dw4')

        out = (prm['pl_b'][...]
               + jnp.dot(prm['pl_w_1'][...], xg1 * lda3, preferred_element_type=jnp.float32)
               + jnp.dot(prm['pl_w_2'][...], xg2 * lda5, preferred_element_type=jnp.float32)
               + jnp.dot(prm['pl_w_3'][...], xg3 * lda7, preferred_element_type=jnp.float32))

        # residual re-read at the store (no long live range for x)
        out_ref[...] = out * prm['scale'][...] + x_ref[...]

    return kernel


def _const_spec(shape):
    n = len(shape)
    return pl.BlockSpec(shape, lambda b, _n=n: (0,) * _n)


def mlda_pallas(x, kparams, H, W):
    B, C = x.shape[0], x.shape[1]
    Cg = C // 3
    HW = H * W
    names = tuple(sorted(kparams.keys()))
    args = [kparams[n] for n in names]
    x2 = x.reshape(B, C, HW)

    in_specs = [pl.BlockSpec((None, C, HW), lambda b: (b, 0, 0))]
    in_specs += [_const_spec(tuple(a.shape)) for a in args]

    kernel = make_mlda_kernel(names, C, H, W)
    out = pl.pallas_call(
        kernel,
        out_shape=jax.ShapeDtypeStruct((B, C, HW), jnp.float32),
        grid=(B,),
        in_specs=in_specs,
        out_specs=pl.BlockSpec((None, C, HW), lambda b: (b, 0, 0)),
        scratch_shapes=[pltpu.VMEM((Cg, 3 * HW), jnp.float32)],
        compiler_params=pltpu.CompilerParams(
            dimension_semantics=("parallel",),   # independent batch steps (2 TCs on v7x)
        ),
    )(x2, *args)
    return out.reshape(B, C, H, W)


# ----------------------------------------------------------------------------
# Pure-JAX reference (for numerical verification).
# ----------------------------------------------------------------------------
def mlda_reference(x, p):
    C = x.shape[1]
    Cg = C // 3
    dn = ('NCHW', 'OIHW', 'NCHW')
    prec = lax.Precision.HIGHEST

    shortcut = x
    mean = x.mean(axis=1, keepdims=True)
    var = ((x - mean) ** 2).mean(axis=1, keepdims=True)
    xn = (x - mean) / jnp.sqrt(var + EPS)
    xn = p['ln_w'][None, :, None, None] * xn + p['ln_b'][None, :, None, None]

    def conv1x1(v, w, b):
        out = lax.conv_general_dilated(v, w[:, :, None, None], (1, 1), 'VALID',
                                       dimension_numbers=dn, precision=prec)
        return out + b[None, :, None, None]

    def dwconv(v, w, b, kh, kw, dil=(1, 1)):
        wr = w.reshape(Cg, 1, kh, kw)
        ph = (kh // 2) * dil[0]
        pw_ = (kw // 2) * dil[1]
        out = lax.conv_general_dilated(v, wr, (1, 1), [(ph, ph), (pw_, pw_)],
                                       rhs_dilation=dil, feature_group_count=Cg,
                                       dimension_numbers=dn, precision=prec)
        return out + b[None, :, None, None]

    y = conv1x1(xn, p['pf_w'], p['pf_b'])
    a, xg = y[:, :C], y[:, C:]
    a1, a2, a3 = a[:, :Cg], a[:, Cg:2 * Cg], a[:, 2 * Cg:]

    def lska(v, pre, k1, k2, d2):
        t = dwconv(v, p[pre + '_w0'], p[pre + '_b0'], 1, k1)
        t = dwconv(t, p[pre + '_w1'], p[pre + '_b1'], k1, 1)
        t = dwconv(t, p[pre + '_w2'], p[pre + '_b2'], 1, k2, (1, d2))
        t = dwconv(t, p[pre + '_w3'], p[pre + '_b3'], k2, 1, (d2, 1))
        return conv1x1(t, p[pre + '_pw'], p[pre + '_pb'])

    LDA3 = lska(a1, 'l3', 3, 5, 2) * dwconv(a1, p['dw2_w'], p['dw2_b'], 3, 3)
    LDA5 = lska(a1, 'l5', 5, 7, 3) * dwconv(a2, p['dw3_w'], p['dw3_b'], 5, 5)
    LDA7 = lska(a1, 'l7', 7, 9, 4) * dwconv(a3, p['dw4_w'], p['dw4_b'], 7, 7)
    a_cat = jnp.concatenate([LDA3, LDA5, LDA7], axis=1)
    out = conv1x1(xg * a_cat, p['pl_w'], p['pl_b'])
    return out * p['scale'][None, :, None, None] + shortcut


# ----------------------------------------------------------------------------
if __name__ == "__main__":
    key = jax.random.PRNGKey(0)
    B, C, H, W = 2, 12, 16, 16          # num_features must be divisible by 3
    kx, kp = jax.random.split(key)
    x = jax.random.normal(kx, (B, C, H, W), jnp.float32)

    params = init_params(kp, C)
    kparams = prepare_kernel_params(params, C, H, W)

    run = jax.jit(functools.partial(mlda_pallas, H=H, W=W))
    out = jax.block_until_ready(run(x, kparams))

    ref = jax.block_until_ready(mlda_reference(x, params))
    err = float(jnp.max(jnp.abs(out - ref)))
    assert out.shape == x.shape
    assert err < 1e-3, f"max abs error vs reference: {err}"
    print("KERNEL_OK")
</pallas_src>

<mosaic_0001>
module attributes {stable_mosaic.version = 11 : i64} {
  func.func @kernel(%arg0: i32, %arg1: memref<1x12x256xf32, #tpu.memory_space<vmem>>, %arg2: memref<4x1xf32, #tpu.memory_space<vmem>>, %arg3: memref<9x4x256xf32, #tpu.memory_space<vmem>>, %arg4: memref<4x1xf32, #tpu.memory_space<vmem>>, %arg5: memref<25x4x256xf32, #tpu.memory_space<vmem>>, %arg6: memref<4x1xf32, #tpu.memory_space<vmem>>, %arg7: memref<49x4x256xf32, #tpu.memory_space<vmem>>, %arg8: memref<4x1xf32, #tpu.memory_space<vmem>>, %arg9: memref<3x4x256xf32, #tpu.memory_space<vmem>>, %arg10: memref<4x1xf32, #tpu.memory_space<vmem>>, %arg11: memref<3x4x256xf32, #tpu.memory_space<vmem>>, %arg12: memref<4x1xf32, #tpu.memory_space<vmem>>, %arg13: memref<5x4x256xf32, #tpu.memory_space<vmem>>, %arg14: memref<4x1xf32, #tpu.memory_space<vmem>>, %arg15: memref<5x4x256xf32, #tpu.memory_space<vmem>>, %arg16: memref<4x1xf32, #tpu.memory_space<vmem>>, %arg17: memref<4x4xf32, #tpu.memory_space<vmem>>, %arg18: memref<4x1xf32, #tpu.memory_space<vmem>>, %arg19: memref<5x4x256xf32, #tpu.memory_space<vmem>>, %arg20: memref<4x1xf32, #tpu.memory_space<vmem>>, %arg21: memref<5x4x256xf32, #tpu.memory_space<vmem>>, %arg22: memref<4x1xf32, #tpu.memory_space<vmem>>, %arg23: memref<7x4x256xf32, #tpu.memory_space<vmem>>, %arg24: memref<4x1xf32, #tpu.memory_space<vmem>>, %arg25: memref<7x4x256xf32, #tpu.memory_space<vmem>>, %arg26: memref<4x1xf32, #tpu.memory_space<vmem>>, %arg27: memref<4x4xf32, #tpu.memory_space<vmem>>, %arg28: memref<4x1xf32, #tpu.memory_space<vmem>>, %arg29: memref<7x4x256xf32, #tpu.memory_space<vmem>>, %arg30: memref<4x1xf32, #tpu.memory_space<vmem>>, %arg31: memref<7x4x256xf32, #tpu.memory_space<vmem>>, %arg32: memref<4x1xf32, #tpu.memory_space<vmem>>, %arg33: memref<9x4x256xf32, #tpu.memory_space<vmem>>, %arg34: memref<4x1xf32, #tpu.memory_space<vmem>>, %arg35: memref<9x4x256xf32, #tpu.memory_space<vmem>>, %arg36: memref<4x1xf32, #tpu.memory_space<vmem>>, %arg37: memref<4x4xf32, #tpu.memory_space<vmem>>, %arg38: memref<12x1xf32, #tpu.memory_space<vmem>>, %arg39: memref<12x1xf32, #tpu.memory_space<vmem>>, %arg40: memref<4x1xf32, #tpu.memory_space<vmem>>, %arg41: memref<4x1xf32, #tpu.memory_space<vmem>>, %arg42: memref<4x1xf32, #tpu.memory_space<vmem>>, %arg43: memref<4x1xf32, #tpu.memory_space<vmem>>, %arg44: memref<4x1xf32, #tpu.memory_space<vmem>>, %arg45: memref<4x1xf32, #tpu.memory_space<vmem>>, %arg46: memref<4x12xf32, #tpu.memory_space<vmem>>, %arg47: memref<4x12xf32, #tpu.memory_space<vmem>>, %arg48: memref<4x12xf32, #tpu.memory_space<vmem>>, %arg49: memref<4x12xf32, #tpu.memory_space<vmem>>, %arg50: memref<4x12xf32, #tpu.memory_space<vmem>>, %arg51: memref<4x12xf32, #tpu.memory_space<vmem>>, %arg52: memref<12x1xf32, #tpu.memory_space<vmem>>, %arg53: memref<12x4xf32, #tpu.memory_space<vmem>>, %arg54: memref<12x4xf32, #tpu.memory_space<vmem>>, %arg55: memref<12x4xf32, #tpu.memory_space<vmem>>, %arg56: memref<12x1xf32, #tpu.memory_space<vmem>>, %arg57: memref<1x12x256xf32, #tpu.memory_space<vmem>>, %arg58: memref<4x768xf32, #tpu.memory_space<vmem>>) attributes {dimension_semantics = [#tpu.dimension_semantics<parallel>], iteration_bounds = array<i64: 2>, scalar_prefetch = 0 : i64, scratch_operands = 1 : i64, tpu.core_type = #tpu.core_type<tc>, window_params = [{transform_indices = @transform_0, window_bounds = array<i64: 1, 12, 256>}, {pipeline_mode = #tpu.pipeline_mode<synchronous>, transform_indices = @transform_1, window_bounds = array<i64: 4, 1>}, {pipeline_mode = #tpu.pipeline_mode<synchronous>, transform_indices = @transform_2, window_bounds = array<i64: 9, 4, 256>}, {pipeline_mode = #tpu.pipeline_mode<synchronous>, transform_indices = @transform_3, window_bounds = array<i64: 4, 1>}, {pipeline_mode = #tpu.pipeline_mode<synchronous>, transform_indices = @transform_4, window_bounds = array<i64: 25, 4, 256>}, {pipeline_mode = #tpu.pipeline_mode<synchronous>, transform_indices = @transform_5, window_bounds = array<i64: 4, 1>}, {pipeline_mode = #tpu.pipeline_mode<synchronous>, transform_indices = @transform_6, window_bounds = array<i64: 49, 4, 256>}, {pipeline_mode = #tpu.pipeline_mode<synchronous>, transform_indices = @transform_7, window_bounds = array<i64: 4, 1>}, {pipeline_mode = #tpu.pipeline_mode<synchronous>, transform_indices = @transform_8, window_bounds = array<i64: 3, 4, 256>}, {pipeline_mode = #tpu.pipeline_mode<synchronous>, transform_indices = @transform_9, window_bounds = array<i64: 4, 1>}, {pipeline_mode = #tpu.pipeline_mode<synchronous>, transform_indices = @transform_10, window_bounds = array<i64: 3, 4, 256>}, {pipeline_mode = #tpu.pipeline_mode<synchronous>, transform_indices = @transform_11, window_bounds = array<i64: 4, 1>}, {pipeline_mode = #tpu.pipeline_mode<synchronous>, transform_indices = @transform_12, window_bounds = array<i64: 5, 4, 256>}, {pipeline_mode = #tpu.pipeline_mode<synchronous>, transform_indices = @transform_13, window_bounds = array<i64: 4, 1>}, {pipeline_mode = #tpu.pipeline_mode<synchronous>, transform_indices = @transform_14, window_bounds = array<i64: 5, 4, 256>}, {pipeline_mode = #tpu.pipeline_mode<synchronous>, transform_indices = @transform_15, window_bounds = array<i64: 4, 1>}, {pipeline_mode = #tpu.pipeline_mode<synchronous>, transform_indices = @transform_16, window_bounds = array<i64: 4, 4>}, {pipeline_mode = #tpu.pipeline_mode<synchronous>, transform_indices = @transform_17, window_bounds = array<i64: 4, 1>}, {pipeline_mode = #tpu.pipeline_mode<synchronous>, transform_indices = @transform_18, window_bounds = array<i64: 5, 4, 256>}, {pipeline_mode = #tpu.pipeline_mode<synchronous>, transform_indices = @transform_19, window_bounds = array<i64: 4, 1>}, {pipeline_mode = #tpu.pipeline_mode<synchronous>, transform_indices = @transform_20, window_bounds = array<i64: 5, 4, 256>}, {pipeline_mode = #tpu.pipeline_mode<synchronous>, transform_indices = @transform_21, window_bounds = array<i64: 4, 1>}, {pipeline_mode = #tpu.pipeline_mode<synchronous>, transform_indices = @transform_22, window_bounds = array<i64: 7, 4, 256>}, {pipeline_mode = #tpu.pipeline_mode<synchronous>, transform_indices = @transform_23, window_bounds = array<i64: 4, 1>}, {pipeline_mode = #tpu.pipeline_mode<synchronous>, transform_indices = @transform_24, window_bounds = array<i64: 7, 4, 256>}, {pipeline_mode = #tpu.pipeline_mode<synchronous>, transform_indices = @transform_25, window_bounds = array<i64: 4, 1>}, {pipeline_mode = #tpu.pipeline_mode<synchronous>, transform_indices = @transform_26, window_bounds = array<i64: 4, 4>}, {pipeline_mode = #tpu.pipeline_mode<synchronous>, transform_indices = @transform_27, window_bounds = array<i64: 4, 1>}, {pipeline_mode = #tpu.pipeline_mode<synchronous>, transform_indices = @transform_28, window_bounds = array<i64: 7, 4, 256>}, {pipeline_mode = #tpu.pipeline_mode<synchronous>, transform_indices = @transform_29, window_bounds = array<i64: 4, 1>}, {pipeline_mode = #tpu.pipeline_mode<synchronous>, transform_indices = @transform_30, window_bounds = array<i64: 7, 4, 256>}, {pipeline_mode = #tpu.pipeline_mode<synchronous>, transform_indices = @transform_31, window_bounds = array<i64: 4, 1>}, {pipeline_mode = #tpu.pipeline_mode<synchronous>, transform_indices = @transform_32, window_bounds = array<i64: 9, 4, 256>}, {pipeline_mode = #tpu.pipeline_mode<synchronous>, transform_indices = @transform_33, window_bounds = array<i64: 4, 1>}, {pipeline_mode = #tpu.pipeline_mode<synchronous>, transform_indices = @transform_34, window_bounds = array<i64: 9, 4, 256>}, {pipeline_mode = #tpu.pipeline_mode<synchronous>, transform_indices = @transform_35, window_bounds = array<i64: 4, 1>}, {pipeline_mode = #tpu.pipeline_mode<synchronous>, transform_indices = @transform_36, window_bounds = array<i64: 4, 4>}, {pipeline_mode = #tpu.pipeline_mode<synchronous>, transform_indices = @transform_37, window_bounds = array<i64: 12, 1>}, {pipeline_mode = #tpu.pipeline_mode<synchronous>, transform_indices = @transform_38, window_bounds = array<i64: 12, 1>}, {pipeline_mode = #tpu.pipeline_mode<synchronous>, transform_indices = @transform_39, window_bounds = array<i64: 4, 1>}, {pipeline_mode = #tpu.pipeline_mode<synchronous>, transform_indices = @transform_40, window_bounds = array<i64: 4, 1>}, {pipeline_mode = #tpu.pipeline_mode<synchronous>, transform_indices = @transform_41, window_bounds = array<i64: 4, 1>}, {pipeline_mode = #tpu.pipeline_mode<synchronous>, transform_indices = @transform_42, window_bounds = array<i64: 4, 1>}, {pipeline_mode = #tpu.pipeline_mode<synchronous>, transform_indices = @transform_43, window_bounds = array<i64: 4, 1>}, {pipeline_mode = #tpu.pipeline_mode<synchronous>, transform_indices = @transform_44, window_bounds = array<i64: 4, 1>}, {pipeline_mode = #tpu.pipeline_mode<synchronous>, transform_indices = @transform_45, window_bounds = array<i64: 4, 12>}, {pipeline_mode = #tpu.pipeline_mode<synchronous>, transform_indices = @transform_46, window_bounds = array<i64: 4, 12>}, {pipeline_mode = #tpu.pipeline_mode<synchronous>, transform_indices = @transform_47, window_bounds = array<i64: 4, 12>}, {pipeline_mode = #tpu.pipeline_mode<synchronous>, transform_indices = @transform_48, window_bounds = array<i64: 4, 12>}, {pipeline_mode = #tpu.pipeline_mode<synchronous>, transform_indices = @transform_49, window_bounds = array<i64: 4, 12>}, {pipeline_mode = #tpu.pipeline_mode<synchronous>, transform_indices = @transform_50, window_bounds = array<i64: 4, 12>}, {pipeline_mode = #tpu.pipeline_mode<synchronous>, transform_indices = @transform_51, window_bounds = array<i64: 12, 1>}, {pipeline_mode = #tpu.pipeline_mode<synchronous>, transform_indices = @transform_52, window_bounds = array<i64: 12, 4>}, {pipeline_mode = #tpu.pipeline_mode<synchronous>, transform_indices = @transform_53, window_bounds = array<i64: 12, 4>}, {pipeline_mode = #tpu.pipeline_mode<synchronous>, transform_indices = @transform_54, window_bounds = array<i64: 12, 4>}, {pipeline_mode = #tpu.pipeline_mode<synchronous>, transform_indices = @transform_55, window_bounds = array<i64: 12, 1>}, {transform_indices = @transform_56, window_bounds = array<i64: 1, 12, 256>}]} {
    %cst = arith.constant 0.000000e+00 : f32
    %0 = vector.broadcast %cst : f32 to vector<4x768xf32>
    %c0 = arith.constant 0 : index
    %c0_0 = arith.constant 0 : index
    %1 = vector.load %arg58[%c0, %c0_0] : memref<4x768xf32, #tpu.memory_space<vmem>>, vector<4x768xf32>
    tpu.vector_store %arg58[%c0, %c0_0], %0 {strides = array<i32>} : memref<4x768xf32, #tpu.memory_space<vmem>>, vector<4x768xf32>,
    %c0_1 = arith.constant 0 : index
    %c0_2 = arith.constant 0 : index
    %c0_3 = arith.constant 0 : index
    %2 = vector.load %arg1[%c0_1, %c0_2, %c0_3] : memref<1x12x256xf32, #tpu.memory_space<vmem>>, vector<1x12x256xf32>
    %3 = vector.shape_cast %2 : vector<1x12x256xf32> to vector<12x256xf32>
    %cst_4 = arith.constant dense<0.000000e+00> : vector<256xf32>
    %4 = vector.multi_reduction <add>, %3, %cst_4 [0] : vector<12x256xf32> to vector<256xf32>
    %5 = vector.shape_cast %4 : vector<256xf32> to vector<1x256xf32>
    %cst_5 = arith.constant 1.200000e+01 : f32
    %6 = vector.broadcast %cst_5 : f32 to vector<1x256xf32>
    %7 = arith.divf %5, %6 : vector<1x256xf32>
    %8 = vector.broadcast %7 : vector<1x256xf32> to vector<12x256xf32>
    %9 = arith.subf %3, %8 : vector<12x256xf32>
    %10 = arith.mulf %9, %9 : vector<12x256xf32>
    %cst_6 = arith.constant dense<0.000000e+00> : vector<256xf32>
    %11 = vector.multi_reduction <add>, %10, %cst_6 [0] : vector<12x256xf32> to vector<256xf32>
    %12 = vector.shape_cast %11 : vector<256xf32> to vector<1x256xf32>
    %cst_7 = arith.constant 1.200000e+01 : f32
    %13 = vector.broadcast %cst_7 : f32 to vector<1x256xf32>
    %14 = arith.divf %12, %13 : vector<1x256xf32>
    %c0_8 = arith.constant 0 : index
    %c0_9 = arith.constant 0 : index
    %15 = vector.load %arg39[%c0_8, %c0_9] : memref<12x1xf32, #tpu.memory_space<vmem>>, vector<12x1xf32>
    %cst_10 = arith.constant 9.99999997E-7 : f32
    %16 = vector.broadcast %cst_10 : f32 to vector<1x256xf32>
    %17 = arith.addf %14, %16 : vector<1x256xf32>
    %18 = math.rsqrt %17 : vector<1x256xf32>
    %19 = vector.broadcast %18 : vector<1x256xf32> to vector<12x256xf32>
    %20 = arith.mulf %9, %19 : vector<12x256xf32>
    %21 = vector.broadcast %15 : vector<12x1xf32> to vector<12x256xf32>
    %22 = arith.mulf %21, %20 : vector<12x256xf32>
    %c0_11 = arith.constant 0 : index
    %c0_12 = arith.constant 0 : index
    %23 = vector.load %arg38[%c0_11, %c0_12] : memref<12x1xf32, #tpu.memory_space<vmem>>, vector<12x1xf32>
    %24 = vector.broadcast %23 : vector<12x1xf32> to vector<12x256xf32>
    %25 = arith.addf %22, %24 : vector<12x256xf32>
    %c0_13 = arith.constant 0 : index
    %c0_14 = arith.constant 0 : index
    %26 = vector.load %arg46[%c0_13, %c0_14] : memref<4x12xf32, #tpu.memory_space<vmem>>, vector<4x12xf32>
    %cst_15 = arith.constant dense<0.000000e+00> : vector<4x256xf32>
    %27 = tpu.matmul %26, %25, %cst_15 {dimension_numbers = #tpu.dot_dimension_numbers<[1], [0], [0], [1], [0, 0, 1, 1], [], []>} : vector<4x12xf32>, vector<12x256xf32>, vector<4x256xf32> -> vector<4x256xf32>
    %c0_16 = arith.constant 0 : index
    %c0_17 = arith.constant 0 : index
    %28 = vector.load %arg40[%c0_16, %c0_17] : memref<4x1xf32, #tpu.memory_space<vmem>>, vector<4x1xf32>
    %29 = vector.broadcast %28 : vector<4x1xf32> to vector<4x256xf32>
    %30 = arith.addf %27, %29 : vector<4x256xf32>
    %c0_18 = arith.constant 0 : index
    %c0_19 = arith.constant 0 : index
    %31 = vector.load %arg47[%c0_18, %c0_19] : memref<4x12xf32, #tpu.memory_space<vmem>>, vector<4x12xf32>
    %cst_20 = arith.constant dense<0.000000e+00> : vector<4x256xf32>
    %32 = tpu.matmul %31, %25, %cst_20 {dimension_numbers = #tpu.dot_dimension_numbers<[1], [0], [0], [1], [0, 0, 1, 1], [], []>} : vector<4x12xf32>, vector<12x256xf32>, vector<4x256xf32> -> vector<4x256xf32>
    %c0_21 = arith.constant 0 : index
    %c0_22 = arith.constant 0 : index
    %33 = vector.load %arg41[%c0_21, %c0_22] : memref<4x1xf32, #tpu.memory_space<vmem>>, vector<4x1xf32>
    %34 = vector.broadcast %33 : vector<4x1xf32> to vector<4x256xf32>
    %35 = arith.addf %32, %34 : vector<4x256xf32>
    %c0_23 = arith.constant 0 : index
    %c0_24 = arith.constant 0 : index
    %36 = vector.load %arg48[%c0_23, %c0_24] : memref<4x12xf32, #tpu.memory_space<vmem>>, vector<4x12xf32>
    %cst_25 = arith.constant dense<0.000000e+00> : vector<4x256xf32>
    %37 = tpu.matmul %36, %25, %cst_25 {dimension_numbers = #tpu.dot_dimension_numbers<[1], [0], [0], [1], [0, 0, 1, 1], [], []>} : vector<4x12xf32>, vector<12x256xf32>, vector<4x256xf32> -> vector<4x256xf32>
    %c0_26 = arith.constant 0 : index
    %c0_27 = arith.constant 0 : index
    %38 = vector.load %arg42[%c0_26, %c0_27] : memref<4x1xf32, #tpu.memory_space<vmem>>, vector<4x1xf32>
    %39 = vector.broadcast %38 : vector<4x1xf32> to vector<4x256xf32>
    %40 = arith.addf %37, %39 : vector<4x256xf32>
    %c0_28 = arith.constant 0 : index
    %c0_29 = arith.constant 0 : index
    %41 = vector.load %arg49[%c0_28, %c0_29] : memref<4x12xf32, #tpu.memory_space<vmem>>, vector<4x12xf32>
    %cst_30 = arith.constant dense<0.000000e+00> : vector<4x256xf32>
    %42 = tpu.matmul %41, %25, %cst_30 {dimension_numbers = #tpu.dot_dimension_numbers<[1], [0], [0], [1], [0, 0, 1, 1], [], []>} : vector<4x12xf32>, vector<12x256xf32>, vector<4x256xf32> -> vector<4x256xf32>
    %c0_31 = arith.constant 0 : index
    %c0_32 = arith.constant 0 : index
    %43 = vector.load %arg43[%c0_31, %c0_32] : memref<4x1xf32, #tpu.memory_space<vmem>>, vector<4x1xf32>
    %44 = vector.broadcast %43 : vector<4x1xf32> to vector<4x256xf32>
    %45 = arith.addf %42, %44 : vector<4x256xf32>
    %c0_33 = arith.constant 0 : index
    %c0_34 = arith.constant 0 : index
    %46 = vector.load %arg50[%c0_33, %c0_34] : memref<4x12xf32, #tpu.memory_space<vmem>>, vector<4x12xf32>
    %cst_35 = arith.constant dense<0.000000e+00> : vector<4x256xf32>
    %47 = tpu.matmul %46, %25, %cst_35 {dimension_numbers = #tpu.dot_dimension_numbers<[1], [0], [0], [1], [0, 0, 1, 1], [], []>} : vector<4x12xf32>, vector<12x256xf32>, vector<4x256xf32> -> vector<4x256xf32>
    %c0_36 = arith.constant 0 : index
    %c0_37 = arith.constant 0 : index
    %48 = vector.load %arg44[%c0_36, %c0_37] : memref<4x1xf32, #tpu.memory_space<vmem>>, vector<4x1xf32>
    %49 = vector.broadcast %48 : vector<4x1xf32> to vector<4x256xf32>
    %50 = arith.addf %47, %49 : vector<4x256xf32>
    %c0_38 = arith.constant 0 : index
    %c0_39 = arith.constant 0 : index
    %51 = vector.load %arg51[%c0_38, %c0_39] : memref<4x12xf32, #tpu.memory_space<vmem>>, vector<4x12xf32>
    %cst_40 = arith.constant dense<0.000000e+00> : vector<4x256xf32>
    %52 = tpu.matmul %51, %25, %cst_40 {dimension_numbers = #tpu.dot_dimension_numbers<[1], [0], [0], [1], [0, 0, 1, 1], [], []>} : vector<4x12xf32>, vector<12x256xf32>, vector<4x256xf32> -> vector<4x256xf32>
    %c0_41 = arith.constant 0 : index
    %c0_42 = arith.constant 0 : index
    %53 = vector.load %arg45[%c0_41, %c0_42] : memref<4x1xf32, #tpu.memory_space<vmem>>, vector<4x1xf32>
    %54 = vector.broadcast %53 : vector<4x1xf32> to vector<4x256xf32>
    %55 = arith.addf %52, %54 : vector<4x256xf32>
    %c0_43 = arith.constant 0 : index
    %c256 = arith.constant 256 : index
    %56 = vector.load %arg58[%c0_43, %c256] : memref<4x768xf32, #tpu.memory_space<vmem>>, vector<4x256xf32>
    tpu.vector_store %arg58[%c0_43, %c256], %30 {strides = array<i32>} : memref<4x768xf32, #tpu.memory_space<vmem>>, vector<4x256xf32>,
    %c0_44 = arith.constant 0 : index
    %c0_45 = arith.constant 0 : index
    %57 = vector.load %arg8[%c0_44, %c0_45] : memref<4x1xf32, #tpu.memory_space<vmem>>, vector<4x1xf32>
    %c0_46 = arith.constant 0 : index
    %c0_47 = arith.constant 0 : index
    %c0_48 = arith.constant 0 : index
    %58 = vector.load %arg9[%c0_46, %c0_47, %c0_48] : memref<3x4x256xf32, #tpu.memory_space<vmem>>, vector<1x4x256xf32>
    %59 = vector.shape_cast %58 : vector<1x4x256xf32> to vector<4x256xf32>
    %c0_49 = arith.constant 0 : index
    %c255 = arith.constant 255 : index
    %60 = vector.load %arg58[%c0_49, %c255] : memref<4x768xf32, #tpu.memory_space<vmem>>, vector<4x256xf32>
    %61 = arith.mulf %59, %60 : vector<4x256xf32>
    %62 = vector.broadcast %57 : vector<4x1xf32> to vector<4x256xf32>
    %63 = arith.addf %62, %61 : vector<4x256xf32>
    %c1 = arith.constant 1 : index
    %c0_50 = arith.constant 0 : index
    %c0_51 = arith.constant 0 : index
    %64 = vector.load %arg9[%c1, %c0_50, %c0_51] : memref<3x4x256xf32, #tpu.memory_space<vmem>>, vector<1x4x256xf32>
    %65 = vector.shape_cast %64 : vector<1x4x256xf32> to vector<4x256xf32>
    %c0_52 = arith.constant 0 : index
    %c256_53 = arith.constant 256 : index
    %66 = vector.load %arg58[%c0_52, %c256_53] : memref<4x768xf32, #tpu.memory_space<vmem>>, vector<4x256xf32>
    %67 = arith.mulf %65, %66 : vector<4x256xf32>
    %68 = arith.addf %63, %67 : vector<4x256xf32>
    %c2 = arith.constant 2 : index
    %c0_54 = arith.constant 0 : index
    %c0_55 = arith.constant 0 : index
    %69 = vector.load %arg9[%c2, %c0_54, %c0_55] : memref<3x4x256xf32, #tpu.memory_space<vmem>>, vector<1x4x256xf32>
    %70 = vector.shape_cast %69 : vector<1x4x256xf32> to vector<4x256xf32>
    %c0_56 = arith.constant 0 : index
    %c257 = arith.constant 257 : index
    %71 = vector.load %arg58[%c0_56, %c257] : memref<4x768xf32, #tpu.memory_space<vmem>>, vector<4x256xf32>
    %72 = arith.mulf %70, %71 : vector<4x256xf32>
    %73 = arith.addf %68, %72 : vector<4x256xf32>
    %c0_57 = arith.constant 0 : index
    %c256_58 = arith.constant 256 : index
    %74 = vector.load %arg58[%c0_57, %c256_58] : memref<4x768xf32, #tpu.memory_space<vmem>>, vector<4x256xf32>
    tpu.vector_store %arg58[%c0_57, %c256_58], %73 {strides = array<i32>} : memref<4x768xf32, #tpu.memory_space<vmem>>, vector<4x256xf32>,
    %c0_59 = arith.constant 0 : index
    %c0_60 = arith.constant 0 : index
    %75 = vector.load %arg10[%c0_59, %c0_60] : memref<4x1xf32, #tpu.memory_space<vmem>>, vector<4x1xf32>
    %c0_61 = arith.constant 0 : index
    %c0_62 = arith.constant 0 : index
    %c0_63 = arith.constant 0 : index
    %76 = vector.load %arg11[%c0_61, %c0_62, %c0_63] : memref<3x4x256xf32, #tpu.memory_space<vmem>>, vector<1x4x256xf32>
    %77 = vector.shape_cast %76 : vector<1x4x256xf32> to vector<4x256xf32>
    %c0_64 = arith.constant 0 : index
    %c240 = arith.constant 240 : index
    %78 = vector.load %arg58[%c0_64, %c240] : memref<4x768xf32, #tpu.memory_space<vmem>>, vector<4x256xf32>
    %79 = arith.mulf %77, %78 : vector<4x256xf32>
    %80 = vector.broadcast %75 : vector<4x1xf32> to vector<4x256xf32>
    %81 = arith.addf %80, %79 : vector<4x256xf32>
    %c1_65 = arith.constant 1 : index
    %c0_66 = arith.constant 0 : index
    %c0_67 = arith.constant 0 : index
    %82 = vector.load %arg11[%c1_65, %c0_66, %c0_67] : memref<3x4x256xf32, #tpu.memory_space<vmem>>, vector<1x4x256xf32>
    %83 = vector.shape_cast %82 : vector<1x4x256xf32> to vector<4x256xf32>
    %c0_68 = arith.constant 0 : index
    %c256_69 = arith.constant 256 : index
    %84 = vector.load %arg58[%c0_68, %c256_69] : memref<4x768xf32, #tpu.memory_space<vmem>>, vector<4x256xf32>
    %85 = arith.mulf %83, %84 : vector<4x256xf32>
    %86 = arith.addf %81, %85 : vector<4x256xf32>
    %c2_70 = arith.constant 2 : index
    %c0_71 = arith.constant 0 : index
    %c0_72 = arith.constant 0 : index
    %87 = vector.load %arg11[%c2_70, %c0_71, %c0_72] : memref<3x4x256xf32, #tpu.memory_space<vmem>>, vector<1x4x256xf32>
    %88 = vector.shape_cast %87 : vector<1x4x256xf32> to vector<4x256xf32>
    %c0_73 = arith.constant 0 : index
    %c272 = arith.constant 272 : index
    %89 = vector.load %arg58[%c0_73, %c272] : memref<4x768xf32, #tpu.memory_space<vmem>>, vector<4x256xf32>
    %90 = arith.mulf %88, %89 : vector<4x256xf32>
    %91 = arith.addf %86, %90 : vector<4x256xf32>
    %c0_74 = arith.constant 0 : index
    %c256_75 = arith.constant 256 : index
    %92 = vector.load %arg58[%c0_74, %c256_75] : memref<4x768xf32, #tpu.memory_space<vmem>>, vector<4x256xf32>
    tpu.vector_store %arg58[%c0_74, %c256_75], %91 {strides = array<i32>} : memref<4x768xf32, #tpu.memory_space<vmem>>, vector<4x256xf32>,
    %c0_76 = arith.constant 0 : index
    %c0_77 = arith.constant 0 : index
    %93 = vector.load %arg12[%c0_76, %c0_77] : memref<4x1xf32, #tpu.memory_space<vmem>>, vector<4x1xf32>
    %c0_78 = arith.constant 0 : index
    %c0_79 = arith.constant 0 : index
    %c0_80 = arith.constant 0 : index
    %94 = vector.load %arg13[%c0_78, %c0_79, %c0_80] : memref<5x4x256xf32, #tpu.memory_space<vmem>>, vector<1x4x256xf32>
    %95 = vector.shape_cast %94 : vector<1x4x256xf32> to vector<4x256xf32>
    %c0_81 = arith.constant 0 : index
    %c252 = arith.constant 252 : index
    %96 = vector.load %arg58[%c0_81, %c252] : memref<4x768xf32, #tpu.memory_space<vmem>>, vector<4x256xf32>
    %97 = arith.mulf %95, %96 : vector<4x256xf32>
    %98 = vector.broadcast %93 : vector<4x1xf32> to vector<4x256xf32>
    %99 = arith.addf %98, %97 : vector<4x256xf32>
    %c1_82 = arith.constant 1 : index
    %c0_83 = arith.constant 0 : index
    %c0_84 = arith.constant 0 : index
    %100 = vector.load %arg13[%c1_82, %c0_83, %c0_84] : memref<5x4x256xf32, #tpu.memory_space<vmem>>, vector<1x4x256xf32>
    %101 = vector.shape_cast %100 : vector<1x4x256xf32> to vector<4x256xf32>
    %c0_85 = arith.constant 0 : index
    %c254 = arith.constant 254 : index
    %102 = vector.load %arg58[%c0_85, %c254] : memref<4x768xf32, #tpu.memory_space<vmem>>, vector<4x256xf32>
    %103 = arith.mulf %101, %102 : vector<4x256xf32>
    %104 = arith.addf %99, %103 : vector<4x256xf32>
    %c2_86 = arith.constant 2 : index
    %c0_87 = arith.constant 0 : index
    %c0_88 = arith.constant 0 : index
    %105 = vector.load %arg13[%c2_86, %c0_87, %c0_88] : memref<5x4x256xf32, #tpu.memory_space<vmem>>, vector<1x4x256xf32>
    %106 = vector.shape_cast %105 : vector<1x4x256xf32> to vector<4x256xf32>
    %c0_89 = arith.constant 0 : index
    %c256_90 = arith.constant 256 : index
    %107 = vector.load %arg58[%c0_89, %c256_90] : memref<4x768xf32, #tpu.memory_space<vmem>>, vector<4x256xf32>
    %108 = arith.mulf %106, %107 : vector<4x256xf32>
    %109 = arith.addf %104, %108 : vector<4x256xf32>
    %c3 = arith.constant 3 : index
    %c0_91 = arith.constant 0 : index
    %c0_92 = arith.constant 0 : index
    %110 = vector.load %arg13[%c3, %c0_91, %c0_92] : memref<5x4x256xf32, #tpu.memory_space<vmem>>, vector<1x4x256xf32>
    %111 = vector.shape_cast %110 : vector<1x4x256xf32> to vector<4x256xf32>
    %c0_93 = arith.constant 0 : index
    %c258 = arith.constant 258 : index
    %112 = vector.load %arg58[%c0_93, %c258] : memref<4x768xf32, #tpu.memory_space<vmem>>, vector<4x256xf32>
    %113 = arith.mulf %111, %112 : vector<4x256xf32>
    %114 = arith.addf %109, %113 : vector<4x256xf32>
    %c4 = arith.constant 4 : index
    %c0_94 = arith.constant 0 : index
    %c0_95 = arith.constant 0 : index
    %115 = vector.load %arg13[%c4, %c0_94, %c0_95] : memref<5x4x256xf32, #tpu.memory_space<vmem>>, vector<1x4x256xf32>
    %116 = vector.shape_cast %115 : vector<1x4x256xf32> to vector<4x256xf32>
    %c0_96 = arith.constant 0 : index
    %c260 = arith.constant 260 : index
    %117 = vector.load %arg58[%c0_96, %c260] : memref<4x768xf32, #tpu.memory_space<vmem>>, vector<4x256xf32>
    %118 = arith.mulf %116, %117 : vector<4x256xf32>
    %119 = arith.addf %114, %118 : vector<4x256xf32>
    %c0_97 = arith.constant 0 : index
    %c256_98 = arith.constant 256 : index
    %120 = vector.load %arg58[%c0_97, %c256_98] : memref<4x768xf32, #tpu.memory_space<vmem>>, vector<4x256xf32>
    tpu.vector_store %arg58[%c0_97, %c256_98], %119 {strides = array<i32>} : memref<4x768xf32, #tpu.memory_space<vmem>>, vector<4x256xf32>,
    %c0_99 = arith.constant 0 : index
    %c0_100 = arith.constant 0 : index
    %121 = vector.load %arg14[%c0_99, %c0_100] : memref<4x1xf32, #tpu.memory_space<vmem>>, vector<4x1xf32>
    %c0_101 = arith.constant 0 : index
    %c0_102 = arith.constant 0 : index
    %c0_103 = arith.constant 0 : index
    %122 = vector.load %arg15[%c0_101, %c0_102, %c0_103] : memref<5x4x256xf32, #tpu.memory_space<vmem>>, vector<1x4x256xf32>
    %123 = vector.shape_cast %122 : vector<1x4x256xf32> to vector<4x256xf32>
    %c0_104 = arith.constant 0 : index
    %c192 = arith.constant 192 : index
    %124 = vector.load %arg58[%c0_104, %c192] : memref<4x768xf32, #tpu.memory_space<vmem>>, vector<4x256xf32>
    %125 = arith.mulf %123, %124 : vector<4x256xf32>
    %126 = vector.broadcast %121 : vector<4x1xf32> to vector<4x256xf32>
    %127 = arith.addf %126, %125 : vector<4x256xf32>
    %c1_105 = arith.constant 1 : index
    %c0_106 = arith.constant 0 : index
    %c0_107 = arith.constant 0 : index
    %128 = vector.load %arg15[%c1_105, %c0_106, %c0_107] : memref<5x4x256xf32, #tpu.memory_space<vmem>>, vector<1x4x256xf32>
    %129 = vector.shape_cast %128 : vector<1x4x256xf32> to vector<4x256xf32>
    %c0_108 = arith.constant 0 : index
    %c224 = arith.constant 224 : index
    %130 = vector.load %arg58[%c0_108, %c224] : memref<4x768xf32, #tpu.memory_space<vmem>>, vector<4x256xf32>
    %131 = arith.mulf %129, %130 : vector<4x256xf32>
    %132 = arith.addf %127, %131 : vector<4x256xf32>
    %c2_109 = arith.constant 2 : index
    %c0_110 = arith.constant 0 : index
    %c0_111 = arith.constant 0 : index
    %133 = vector.load %arg15[%c2_109, %c0_110, %c0_111] : memref<5x4x256xf32, #tpu.memory_space<vmem>>, vector<1x4x256xf32>
    %134 = vector.shape_cast %133 : vector<1x4x256xf32> to vector<4x256xf32>
    %c0_112 = arith.constant 0 : index
    %c256_113 = arith.constant 256 : index
    %135 = vector.load %arg58[%c0_112, %c256_113] : memref<4x768xf32, #tpu.memory_space<vmem>>, vector<4x256xf32>
    %136 = arith.mulf %134, %135 : vector<4x256xf32>
    %137 = arith.addf %132, %136 : vector<4x256xf32>
    %c3_114 = arith.constant 3 : index
    %c0_115 = arith.constant 0 : index
    %c0_116 = arith.constant 0 : index
    %138 = vector.load %arg15[%c3_114, %c0_115, %c0_116] : memref<5x4x256xf32, #tpu.memory_space<vmem>>, vector<1x4x256xf32>
    %139 = vector.shape_cast %138 : vector<1x4x256xf32> to vector<4x256xf32>
    %c0_117 = arith.constant 0 : index
    %c288 = arith.constant 288 : index
    %140 = vector.load %arg58[%c0_117, %c288] : memref<4x768xf32, #tpu.memory_space<vmem>>, vector<4x256xf32>
    %141 = arith.mulf %139, %140 : vector<4x256xf32>
    %142 = arith.addf %137, %141 : vector<4x256xf32>
    %c4_118 = arith.constant 4 : index
    %c0_119 = arith.constant 0 : index
    %c0_120 = arith.constant 0 : index
    %143 = vector.load %arg15[%c4_118, %c0_119, %c0_120] : memref<5x4x256xf32, #tpu.memory_space<vmem>>, vector<1x4x256xf32>
    %144 = vector.shape_cast %143 : vector<1x4x256xf32> to vector<4x256xf32>
    %c0_121 = arith.constant 0 : index
    %c320 = arith.constant 320 : index
    %145 = vector.load %arg58[%c0_121, %c320] : memref<4x768xf32, #tpu.memory_space<vmem>>, vector<4x256xf32>
    %146 = arith.mulf %144, %145 : vector<4x256xf32>
    %147 = arith.addf %142, %146 : vector<4x256xf32>
    %c0_122 = arith.constant 0 : index
    %c0_123 = arith.constant 0 : index
    %148 = vector.load %arg17[%c0_122, %c0_123] : memref<4x4xf32, #tpu.memory_space<vmem>>, vector<4x4xf32>
    %cst_124 = arith.constant dense<0.000000e+00> : vector<4x256xf32>
    %149 = tpu.matmul %148, %147, %cst_124 {dimension_numbers = #tpu.dot_dimension_numbers<[1], [0], [0], [1], [0, 0, 1, 1], [], []>} : vector<4x4xf32>, vector<4x256xf32>, vector<4x256xf32> -> vector<4x256xf32>
    %c0_125 = arith.constant 0 : index
    %c0_126 = arith.constant 0 : index
    %150 = vector.load %arg16[%c0_125, %c0_126] : memref<4x1xf32, #tpu.memory_space<vmem>>, vector<4x1xf32>
    %151 = vector.broadcast %150 : vector<4x1xf32> to vector<4x256xf32>
    %152 = arith.addf %149, %151 : vector<4x256xf32>
    %c0_127 = arith.constant 0 : index
    %c256_128 = arith.constant 256 : index
    %153 = vector.load %arg58[%c0_127, %c256_128] : memref<4x768xf32, #tpu.memory_space<vmem>>, vector<4x256xf32>
    tpu.vector_store %arg58[%c0_127, %c256_128], %30 {strides = array<i32>} : memref<4x768xf32, #tpu.memory_space<vmem>>, vector<4x256xf32>,
    %c0_129 = arith.constant 0 : index
    %c0_130 = arith.constant 0 : index
    %154 = vector.load %arg2[%c0_129, %c0_130] : memref<4x1xf32, #tpu.memory_space<vmem>>, vector<4x1xf32>
    %c0_131 = arith.constant 0 : index
    %c0_132 = arith.constant 0 : index
    %c0_133 = arith.constant 0 : index
    %155 = vector.load %arg3[%c0_131, %c0_132, %c0_133] : memref<9x4x256xf32, #tpu.memory_space<vmem>>, vector<1x4x256xf32>
    %156 = vector.shape_cast %155 : vector<1x4x256xf32> to vector<4x256xf32>
    %c0_134 = arith.constant 0 : index
    %c239 = arith.constant 239 : index
    %157 = vector.load %arg58[%c0_134, %c239] : memref<4x768xf32, #tpu.memory_space<vmem>>, vector<4x256xf32>
    %158 = arith.mulf %156, %157 : vector<4x256xf32>
    %159 = vector.broadcast %154 : vector<4x1xf32> to vector<4x256xf32>
    %160 = arith.addf %159, %158 : vector<4x256xf32>
    %c1_135 = arith.constant 1 : index
    %c0_136 = arith.constant 0 : index
    %c0_137 = arith.constant 0 : index
    %161 = vector.load %arg3[%c1_135, %c0_136, %c0_137] : memref<9x4x256xf32, #tpu.memory_space<vmem>>, vector<1x4x256xf32>
    %162 = vector.shape_cast %161 : vector<1x4x256xf32> to vector<4x256xf32>
    %c0_138 = arith.constant 0 : index
    %c240_139 = arith.constant 240 : index
    %163 = vector.load %arg58[%c0_138, %c240_139] : memref<4x768xf32, #tpu.memory_space<vmem>>, vector<4x256xf32>
    %164 = arith.mulf %162, %163 : vector<4x256xf32>
    %165 = arith.addf %160, %164 : vector<4x256xf32>
    %c2_140 = arith.constant 2 : index
    %c0_141 = arith.constant 0 : index
    %c0_142 = arith.constant 0 : index
    %166 = vector.load %arg3[%c2_140, %c0_141, %c0_142] : memref<9x4x256xf32, #tpu.memory_space<vmem>>, vector<1x4x256xf32>
    %167 = vector.shape_cast %166 : vector<1x4x256xf32> to vector<4x256xf32>
    %c0_143 = arith.constant 0 : index
    %c241 = arith.constant 241 : index
    %168 = vector.load %arg58[%c0_143, %c241] : memref<4x768xf32, #tpu.memory_space<vmem>>, vector<4x256xf32>
    %169 = arith.mulf %167, %168 : vector<4x256xf32>
    %170 = arith.addf %165, %169 : vector<4x256xf32>
    %c3_144 = arith.constant 3 : index
    %c0_145 = arith.constant 0 : index
    %c0_146 = arith.constant 0 : index
    %171 = vector.load %arg3[%c3_144, %c0_145, %c0_146] : memref<9x4x256xf32, #tpu.memory_space<vmem>>, vector<1x4x256xf32>
    %172 = vector.shape_cast %171 : vector<1x4x256xf32> to vector<4x256xf32>
    %c0_147 = arith.constant 0 : index
    %c255_148 = arith.constant 255 : index
    %173 = vector.load %arg58[%c0_147, %c255_148] : memref<4x768xf32, #tpu.memory_space<vmem>>, vector<4x256xf32>
    %174 = arith.mulf %172, %173 : vector<4x256xf32>
    %175 = arith.addf %170, %174 : vector<4x256xf32>
    %c4_149 = arith.constant 4 : index
    %c0_150 = arith.constant 0 : index
    %c0_151 = arith.constant 0 : index
    %176 = vector.load %arg3[%c4_149, %c0_150, %c0_151] : memref<9x4x256xf32, #tpu.memory_space<vmem>>, vector<1x4x256xf32>
    %177 = vector.shape_cast %176 : vector<1x4x256xf32> to vector<4x256xf32>
    %c0_152 = arith.constant 0 : index
    %c256_153 = arith.constant 256 : index
    %178 = vector.load %arg58[%c0_152, %c256_153] : memref<4x768xf32, #tpu.memory_space<vmem>>, vector<4x256xf32>
    %179 = arith.mulf %177, %178 : vector<4x256xf32>
    %180 = arith.addf %175, %179 : vector<4x256xf32>
    %c5 = arith.constant 5 : index
    %c0_154 = arith.constant 0 : index
    %c0_155 = arith.constant 0 : index
    %181 = vector.load %arg3[%c5, %c0_154, %c0_155] : memref<9x4x256xf32, #tpu.memory_space<vmem>>, vector<1x4x256xf32>
    %182 = vector.shape_cast %181 : vector<1x4x256xf32> to vector<4x256xf32>
    %c0_156 = arith.constant 0 : index
    %c257_157 = arith.constant 257 : index
    %183 = vector.load %arg58[%c0_156, %c257_157] : memref<4x768xf32, #tpu.memory_space<vmem>>, vector<4x256xf32>
    %184 = arith.mulf %182, %183 : vector<4x256xf32>
    %185 = arith.addf %180, %184 : vector<4x256xf32>
    %c6 = arith.constant 6 : index
    %c0_158 = arith.constant 0 : index
    %c0_159 = arith.constant 0 : index
    %186 = vector.load %arg3[%c6, %c0_158, %c0_159] : memref<9x4x256xf32, #tpu.memory_space<vmem>>, vector<1x4x256xf32>
    %187 = vector.shape_cast %186 : vector<1x4x256xf32> to vector<4x256xf32>
    %c0_160 = arith.constant 0 : index
    %c271 = arith.constant 271 : index
    %188 = vector.load %arg58[%c0_160, %c271] : memref<4x768xf32, #tpu.memory_space<vmem>>, vector<4x256xf32>
    %189 = arith.mulf %187, %188 : vector<4x256xf32>
    %190 = arith.addf %185, %189 : vector<4x256xf32>
    %c7 = arith.constant 7 : index
    %c0_161 = arith.constant 0 : index
    %c0_162 = arith.constant 0 : index
    %191 = vector.load %arg3[%c7, %c0_161, %c0_162] : memref<9x4x256xf32, #tpu.memory_space<vmem>>, vector<1x4x256xf32>
    %192 = vector.shape_cast %191 : vector<1x4x256xf32> to vector<4x256xf32>
    %c0_163 = arith.constant 0 : index
    %c272_164 = arith.constant 272 : index
    %193 = vector.load %arg58[%c0_163, %c272_164] : memref<4x768xf32, #tpu.memory_space<vmem>>, vector<4x256xf32>
    %194 = arith.mulf %192, %193 : vector<4x256xf32>
    %195 = arith.addf %190, %194 : vector<4x256xf32>
    %c8 = arith.constant 8 : index
    %c0_165 = arith.constant 0 : index
    %c0_166 = arith.constant 0 : index
    %196 = vector.load %arg3[%c8, %c0_165, %c0_166] : memref<9x4x256xf32, #tpu.memory_space<vmem>>, vector<1x4x256xf32>
    %197 = vector.shape_cast %196 : vector<1x4x256xf32> to vector<4x256xf32>
    %c0_167 = arith.constant 0 : index
    %c273 = arith.constant 273 : index
    %198 = vector.load %arg58[%c0_167, %c273] : memref<4x768xf32, #tpu.memory_space<vmem>>, vector<4x256xf32>
    %199 = arith.mulf %197, %198 : vector<4x256xf32>
    %200 = arith.addf %195, %199 : vector<4x256xf32>
    %201 = arith.mulf %152, %200 : vector<4x256xf32>
    %c0_168 = arith.constant 0 : index
    %c256_169 = arith.constant 256 : index
    %202 = vector.load %arg58[%c0_168, %c256_169] : memref<4x768xf32, #tpu.memory_space<vmem>>, vector<4x256xf32>
    tpu.vector_store %arg58[%c0_168, %c256_169], %30 {strides = array<i32>} : memref<4x768xf32, #tpu.memory_space<vmem>>, vector<4x256xf32>,
    %c0_170 = arith.constant 0 : index
    %c0_171 = arith.constant 0 : index
    %203 = vector.load %arg18[%c0_170, %c0_171] : memref<4x1xf32, #tpu.memory_space<vmem>>, vector<4x1xf32>
    %c0_172 = arith.constant 0 : index
    %c0_173 = arith.constant 0 : index
    %c0_174 = arith.constant 0 : index
    %204 = vector.load %arg19[%c0_172, %c0_173, %c0_174] : memref<5x4x256xf32, #tpu.memory_space<vmem>>, vector<1x4x256xf32>
    %205 = vector.shape_cast %204 : vector<1x4x256xf32> to vector<4x256xf32>
    %c0_175 = arith.constant 0 : index
    %c254_176 = arith.constant 254 : index
    %206 = vector.load %arg58[%c0_175, %c254_176] : memref<4x768xf32, #tpu.memory_space<vmem>>, vector<4x256xf32>
    %207 = arith.mulf %205, %206 : vector<4x256xf32>
    %208 = vector.broadcast %203 : vector<4x1xf32> to vector<4x256xf32>
    %209 = arith.addf %208, %207 : vector<4x256xf32>
    %c1_177 = arith.constant 1 : index
    %c0_178 = arith.constant 0 : index
    %c0_179 = arith.constant 0 : index
    %210 = vector.load %arg19[%c1_177, %c0_178, %c0_179] : memref<5x4x256xf32, #tpu.memory_space<vmem>>, vector<1x4x256xf32>
    %211 = vector.shape_cast %210 : vector<1x4x256xf32> to vector<4x256xf32>
    %c0_180 = arith.constant 0 : index
    %c255_181 = arith.constant 255 : index
    %212 = vector.load %arg58[%c0_180, %c255_181] : memref<4x768xf32, #tpu.memory_space<vmem>>, vector<4x256xf32>
    %213 = arith.mulf %211, %212 : vector<4x256xf32>
    %214 = arith.addf %209, %213 : vector<4x256xf32>
    %c2_182 = arith.constant 2 : index
    %c0_183 = arith.constant 0 : index
    %c0_184 = arith.constant 0 : index
    %215 = vector.load %arg19[%c2_182, %c0_183, %c0_184] : memref<5x4x256xf32, #tpu.memory_space<vmem>>, vector<1x4x256xf32>
    %216 = vector.shape_cast %215 : vector<1x4x256xf32> to vector<4x256xf32>
    %c0_185 = arith.constant 0 : index
    %c256_186 = arith.constant 256 : index
    %217 = vector.load %arg58[%c0_185, %c256_186] : memref<4x768xf32, #tpu.memory_space<vmem>>, vector<4x256xf32>
    %218 = arith.mulf %216, %217 : vector<4x256xf32>
    %219 = arith.addf %214, %218 : vector<4x256xf32>
    %c3_187 = arith.constant 3 : index
    %c0_188 = arith.constant 0 : index
    %c0_189 = arith.constant 0 : index
    %220 = vector.load %arg19[%c3_187, %c0_188, %c0_189] : memref<5x4x256xf32, #tpu.memory_space<vmem>>, vector<1x4x256xf32>
    %221 = vector.shape_cast %220 : vector<1x4x256xf32> to vector<4x256xf32>
    %c0_190 = arith.constant 0 : index
    %c257_191 = arith.constant 257 : index
    %222 = vector.load %arg58[%c0_190, %c257_191] : memref<4x768xf32, #tpu.memory_space<vmem>>, vector<4x256xf32>
    %223 = arith.mulf %221, %222 : vector<4x256xf32>
    %224 = arith.addf %219, %223 : vector<4x256xf32>
    %c4_192 = arith.constant 4 : index
    %c0_193 = arith.constant 0 : index
    %c0_194 = arith.constant 0 : index
    %225 = vector.load %arg19[%c4_192, %c0_193, %c0_194] : memref<5x4x256xf32, #tpu.memory_space<vmem>>, vector<1x4x256xf32>
    %226 = vector.shape_cast %225 : vector<1x4x256xf32> to vector<4x256xf32>
    %c0_195 = arith.constant 0 : index
    %c258_196 = arith.constant 258 : index
    %227 = vector.load %arg58[%c0_195, %c258_196] : memref<4x768xf32, #tpu.memory_space<vmem>>, vector<4x256xf32>
    %228 = arith.mulf %226, %227 : vector<4x256xf32>
    %229 = arith.addf %224, %228 : vector<4x256xf32>
    %c0_197 = arith.constant 0 : index
    %c256_198 = arith.constant 256 : index
    %230 = vector.load %arg58[%c0_197, %c256_198] : memref<4x768xf32, #tpu.memory_space<vmem>>, vector<4x256xf32>
    tpu.vector_store %arg58[%c0_197, %c256_198], %229 {strides = array<i32>} : memref<4x768xf32, #tpu.memory_space<vmem>>, vector<4x256xf32>,
    %c0_199 = arith.constant 0 : index
    %c0_200 = arith.constant 0 : index
    %231 = vector.load %arg20[%c0_199, %c0_200] : memref<4x1xf32, #tpu.memory_space<vmem>>, vector<4x1xf32>
    %c0_201 = arith.constant 0 : index
    %c0_202 = arith.constant 0 : index
    %c0_203 = arith.constant 0 : index
    %232 = vector.load %arg21[%c0_201, %c0_202, %c0_203] : memref<5x4x256xf32, #tpu.memory_space<vmem>>, vector<1x4x256xf32>
    %233 = vector.shape_cast %232 : vector<1x4x256xf32> to vector<4x256xf32>
    %c0_204 = arith.constant 0 : index
    %c224_205 = arith.constant 224 : index
    %234 = vector.load %arg58[%c0_204, %c224_205] : memref<4x768xf32, #tpu.memory_space<vmem>>, vector<4x256xf32>
    %235 = arith.mulf %233, %234 : vector<4x256xf32>
    %236 = vector.broadcast %231 : vector<4x1xf32> to vector<4x256xf32>
    %237 = arith.addf %236, %235 : vector<4x256xf32>
    %c1_206 = arith.constant 1 : index
    %c0_207 = arith.constant 0 : index
    %c0_208 = arith.constant 0 : index
    %238 = vector.load %arg21[%c1_206, %c0_207, %c0_208] : memref<5x4x256xf32, #tpu.memory_space<vmem>>, vector<1x4x256xf32>
    %239 = vector.shape_cast %238 : vector<1x4x256xf32> to vector<4x256xf32>
    %c0_209 = arith.constant 0 : index
    %c240_210 = arith.constant 240 : index
    %240 = vector.load %arg58[%c0_209, %c240_210] : memref<4x768xf32, #tpu.memory_space<vmem>>, vector<4x256xf32>
    %241 = arith.mulf %239, %240 : vector<4x256xf32>
    %242 = arith.addf %237, %241 : vector<4x256xf32>
    %c2_211 = arith.constant 2 : index
    %c0_212 = arith.constant 0 : index
    %c0_213 = arith.constant 0 : index
    %243 = vector.load %arg21[%c2_211, %c0_212, %c0_213] : memref<5x4x256xf32, #tpu.memory_space<vmem>>, vector<1x4x256xf32>
    %244 = vector.shape_cast %243 : vector<1x4x256xf32> to vector<4x256xf32>
    %c0_214 = arith.constant 0 : index
    %c256_215 = arith.constant 256 : index
    %245 = vector.load %arg58[%c0_214, %c256_215] : memref<4x768xf32, #tpu.memory_space<vmem>>, vector<4x256xf32>
    %246 = arith.mulf %244, %245 : vector<4x256xf32>
    %247 = arith.addf %242, %246 : vector<4x256xf32>
    %c3_216 = arith.constant 3 : index
    %c0_217 = arith.constant 0 : index
    %c0_218 = arith.constant 0 : index
    %248 = vector.load %arg21[%c3_216, %c0_217, %c0_218] : memref<5x4x256xf32, #tpu.memory_space<vmem>>, vector<1x4x256xf32>
    %249 = vector.shape_cast %248 : vector<1x4x256xf32> to vector<4x256xf32>
    %c0_219 = arith.constant 0 : index
    %c272_220 = arith.constant 272 : index
    %250 = vector.load %arg58[%c0_219, %c272_220] : memref<4x768xf32, #tpu.memory_space<vmem>>, vector<4x256xf32>
    %251 = arith.mulf %249, %250 : vector<4x256xf32>
    %252 = arith.addf %247, %251 : vector<4x256xf32>
    %c4_221 = arith.constant 4 : index
    %c0_222 = arith.constant 0 : index
    %c0_223 = arith.constant 0 : index
    %253 = vector.load %arg21[%c4_221, %c0_222, %c0_223] : memref<5x4x256xf32, #tpu.memory_space<vmem>>, vector<1x4x256xf32>
    %254 = vector.shape_cast %253 : vector<1x4x256xf32> to vector<4x256xf32>
    %c0_224 = arith.constant 0 : index
    %c288_225 = arith.constant 288 : index
    %255 = vector.load %arg58[%c0_224, %c288_225] : memref<4x768xf32, #tpu.memory_space<vmem>>, vector<4x256xf32>
    %256 = arith.mulf %254, %255 : vector<4x256xf32>
    %257 = arith.addf %252, %256 : vector<4x256xf32>
    %c0_226 = arith.constant 0 : index
    %c256_227 = arith.constant 256 : index
    %258 = vector.load %arg58[%c0_226, %c256_227] : memref<4x768xf32, #tpu.memory_space<vmem>>, vector<4x256xf32>
    tpu.vector_store %arg58[%c0_226, %c256_227], %257 {strides = array<i32>} : memref<4x768xf32, #tpu.memory_space<vmem>>, vector<4x256xf32>,
    %c0_228 = arith.constant 0 : index
    %c0_229 = arith.constant 0 : index
    %259 = vector.load %arg22[%c0_228, %c0_229] : memref<4x1xf32, #tpu.memory_space<vmem>>, vector<4x1xf32>
    %c0_230 = arith.constant 0 : index
    %c0_231 = arith.constant 0 : index
    %c0_232 = arith.constant 0 : index
    %260 = vector.load %arg23[%c0_230, %c0_231, %c0_232] : memref<7x4x256xf32, #tpu.memory_space<vmem>>, vector<1x4x256xf32>
    %261 = vector.shape_cast %260 : vector<1x4x256xf32> to vector<4x256xf32>
    %c0_233 = arith.constant 0 : index
    %c247 = arith.constant 247 : index
    %262 = vector.load %arg58[%c0_233, %c247] : memref<4x768xf32, #tpu.memory_space<vmem>>, vector<4x256xf32>
    %263 = arith.mulf %261, %262 : vector<4x256xf32>
    %264 = vector.broadcast %259 : vector<4x1xf32> to vector<4x256xf32>
    %265 = arith.addf %264, %263 : vector<4x256xf32>
    %c1_234 = arith.constant 1 : index
    %c0_235 = arith.constant 0 : index
    %c0_236 = arith.constant 0 : index
    %266 = vector.load %arg23[%c1_234, %c0_235, %c0_236] : memref<7x4x256xf32, #tpu.memory_space<vmem>>, vector<1x4x256xf32>
    %267 = vector.shape_cast %266 : vector<1x4x256xf32> to vector<4x256xf32>
    %c0_237 = arith.constant 0 : index
    %c250 = arith.constant 250 : index
    %268 = vector.load %arg58[%c0_237, %c250] : memref<4x768xf32, #tpu.memory_space<vmem>>, vector<4x256xf32>
    %269 = arith.mulf %267, %268 : vector<4x256xf32>
    %270 = arith.addf %265, %269 : vector<4x256xf32>
    %c2_238 = arith.constant 2 : index
    %c0_239 = arith.constant 0 : index
    %c0_240 = arith.constant 0 : index
    %271 = vector.load %arg23[%c2_238, %c0_239, %c0_240] : memref<7x4x256xf32, #tpu.memory_space<vmem>>, vector<1x4x256xf32>
    %272 = vector.shape_cast %271 : vector<1x4x256xf32> to vector<4x256xf32>
    %c0_241 = arith.constant 0 : index
    %c253 = arith.constant 253 : index
    %273 = vector.load %arg58[%c0_241, %c253] : memref<4x768xf32, #tpu.memory_space<vmem>>, vector<4x256xf32>
    %274 = arith.mulf %272, %273 : vector<4x256xf32>
    %275 = arith.addf %270, %274 : vector<4x256xf32>
    %c3_242 = arith.constant 3 : index
    %c0_243 = arith.constant 0 : index
    %c0_244 = arith.constant 0 : index
    %276 = vector.load %arg23[%c3_242, %c0_243, %c0_244] : memref<7x4x256xf32, #tpu.memory_space<vmem>>, vector<1x4x256xf32>
    %277 = vector.shape_cast %276 : vector<1x4x256xf32> to vector<4x256xf32>
    %c0_245 = arith.constant 0 : index
    %c256_246 = arith.constant 256 : index
    %278 = vector.load %arg58[%c0_245, %c256_246] : memref<4x768xf32, #tpu.memory_space<vmem>>, vector<4x256xf32>
    %279 = arith.mulf %277, %278 : vector<4x256xf32>
    %280 = arith.addf %275, %279 : vector<4x256xf32>
    %c4_247 = arith.constant 4 : index
    %c0_248 = arith.constant 0 : index
    %c0_249 = arith.constant 0 : index
    %281 = vector.load %arg23[%c4_247, %c0_248, %c0_249] : memref<7x4x256xf32, #tpu.memory_space<vmem>>, vector<1x4x256xf32>
    %282 = vector.shape_cast %281 : vector<1x4x256xf32> to vector<4x256xf32>
    %c0_250 = arith.constant 0 : index
    %c259 = arith.constant 259 : index
    %283 = vector.load %arg58[%c0_250, %c259] : memref<4x768xf32, #tpu.memory_space<vmem>>, vector<4x256xf32>
    %284 = arith.mulf %282, %283 : vector<4x256xf32>
    %285 = arith.addf %280, %284 : vector<4x256xf32>
    %c5_251 = arith.constant 5 : index
    %c0_252 = arith.constant 0 : index
    %c0_253 = arith.constant 0 : index
    %286 = vector.load %arg23[%c5_251, %c0_252, %c0_253] : memref<7x4x256xf32, #tpu.memory_space<vmem>>, vector<1x4x256xf32>
    %287 = vector.shape_cast %286 : vector<1x4x256xf32> to vector<4x256xf32>
    %c0_254 = arith.constant 0 : index
    %c262 = arith.constant 262 : index
    %288 = vector.load %arg58[%c0_254, %c262] : memref<4x768xf32, #tpu.memory_space<vmem>>, vector<4x256xf32>
    %289 = arith.mulf %287, %288 : vector<4x256xf32>
    %290 = arith.addf %285, %289 : vector<4x256xf32>
    %c6_255 = arith.constant 6 : index
    %c0_256 = arith.constant 0 : index
    %c0_257 = arith.constant 0 : index
    %291 = vector.load %arg23[%c6_255, %c0_256, %c0_257] : memref<7x4x256xf32, #tpu.memory_space<vmem>>, vector<1x4x256xf32>
    %292 = vector.shape_cast %291 : vector<1x4x256xf32> to vector<4x256xf32>
    %c0_258 = arith.constant 0 : index
    %c265 = arith.constant 265 : index
    %293 = vector.load %arg58[%c0_258, %c265] : memref<4x768xf32, #tpu.memory_space<vmem>>, vector<4x256xf32>
    %294 = arith.mulf %292, %293 : vector<4x256xf32>
    %295 = arith.addf %290, %294 : vector<4x256xf32>
    %c0_259 = arith.constant 0 : index
    %c256_260 = arith.constant 256 : index
    %296 = vector.load %arg58[%c0_259, %c256_260] : memref<4x768xf32, #tpu.memory_space<vmem>>, vector<4x256xf32>
    tpu.vector_store %arg58[%c0_259, %c256_260], %295 {strides = array<i32>} : memref<4x768xf32, #tpu.memory_space<vmem>>, vector<4x256xf32>,
    %c0_261 = arith.constant 0 : index
    %c0_262 = arith.constant 0 : index
    %297 = vector.load %arg24[%c0_261, %c0_262] : memref<4x1xf32, #tpu.memory_space<vmem>>, vector<4x1xf32>
    %c0_263 = arith.constant 0 : index
    %c0_264 = arith.constant 0 : index
    %c0_265 = arith.constant 0 : index
    %298 = vector.load %arg25[%c0_263, %c0_264, %c0_265] : memref<7x4x256xf32, #tpu.memory_space<vmem>>, vector<1x4x256xf32>
    %299 = vector.shape_cast %298 : vector<1x4x256xf32> to vector<4x256xf32>
    %c0_266 = arith.constant 0 : index
    %c112 = arith.constant 112 : index
    %300 = vector.load %arg58[%c0_266, %c112] : memref<4x768xf32, #tpu.memory_space<vmem>>, vector<4x256xf32>
    %301 = arith.mulf %299, %300 : vector<4x256xf32>
    %302 = vector.broadcast %297 : vector<4x1xf32> to vector<4x256xf32>
    %303 = arith.addf %302, %301 : vector<4x256xf32>
    %c1_267 = arith.constant 1 : index
    %c0_268 = arith.constant 0 : index
    %c0_269 = arith.constant 0 : index
    %304 = vector.load %arg25[%c1_267, %c0_268, %c0_269] : memref<7x4x256xf32, #tpu.memory_space<vmem>>, vector<1x4x256xf32>
    %305 = vector.shape_cast %304 : vector<1x4x256xf32> to vector<4x256xf32>
    %c0_270 = arith.constant 0 : index
    %c160 = arith.constant 160 : index
    %306 = vector.load %arg58[%c0_270, %c160] : memref<4x768xf32, #tpu.memory_space<vmem>>, vector<4x256xf32>
    %307 = arith.mulf %305, %306 : vector<4x256xf32>
    %308 = arith.addf %303, %307 : vector<4x256xf32>
    %c2_271 = arith.constant 2 : index
    %c0_272 = arith.constant 0 : index
    %c0_273 = arith.constant 0 : index
    %309 = vector.load %arg25[%c2_271, %c0_272, %c0_273] : memref<7x4x256xf32, #tpu.memory_space<vmem>>, vector<1x4x256xf32>
    %310 = vector.shape_cast %309 : vector<1x4x256xf32> to vector<4x256xf32>
    %c0_274 = arith.constant 0 : index
    %c208 = arith.constant 208 : index
    %311 = vector.load %arg58[%c0_274, %c208] : memref<4x768xf32, #tpu.memory_space<vmem>>, vector<4x256xf32>
    %312 = arith.mulf %310, %311 : vector<4x256xf32>
    %313 = arith.addf %308, %312 : vector<4x256xf32>
    %c3_275 = arith.constant 3 : index
    %c0_276 = arith.constant 0 : index
    %c0_277 = arith.constant 0 : index
    %314 = vector.load %arg25[%c3_275, %c0_276, %c0_277] : memref<7x4x256xf32, #tpu.memory_space<vmem>>, vector<1x4x256xf32>
    %315 = vector.shape_cast %314 : vector<1x4x256xf32> to vector<4x256xf32>
    %c0_278 = arith.constant 0 : index
    %c256_279 = arith.constant 256 : index
    %316 = vector.load %arg58[%c0_278, %c256_279] : memref<4x768xf32, #tpu.memory_space<vmem>>, vector<4x256xf32>
    %317 = arith.mulf %315, %316 : vector<4x256xf32>
    %318 = arith.addf %313, %317 : vector<4x256xf32>
    %c4_280 = arith.constant 4 : index
    %c0_281 = arith.constant 0 : index
    %c0_282 = arith.constant 0 : index
    %319 = vector.load %arg25[%c4_280, %c0_281, %c0_282] : memref<7x4x256xf32, #tpu.memory_space<vmem>>, vector<1x4x256xf32>
    %320 = vector.shape_cast %319 : vector<1x4x256xf32> to vector<4x256xf32>
    %c0_283 = arith.constant 0 : index
    %c304 = arith.constant 304 : index
    %321 = vector.load %arg58[%c0_283, %c304] : memref<4x768xf32, #tpu.memory_space<vmem>>, vector<4x256xf32>
    %322 = arith.mulf %320, %321 : vector<4x256xf32>
    %323 = arith.addf %318, %322 : vector<4x256xf32>
    %c5_284 = arith.constant 5 : index
    %c0_285 = arith.constant 0 : index
    %c0_286 = arith.constant 0 : index
    %324 = vector.load %arg25[%c5_284, %c0_285, %c0_286] : memref<7x4x256xf32, #tpu.memory_space<vmem>>, vector<1x4x256xf32>
    %325 = vector.shape_cast %324 : vector<1x4x256xf32> to vector<4x256xf32>
    %c0_287 = arith.constant 0 : index
    %c352 = arith.constant 352 : index
    %326 = vector.load %arg58[%c0_287, %c352] : memref<4x768xf32, #tpu.memory_space<vmem>>, vector<4x256xf32>
    %327 = arith.mulf %325, %326 : vector<4x256xf32>
    %328 = arith.addf %323, %327 : vector<4x256xf32>
    %c6_288 = arith.constant 6 : index
    %c0_289 = arith.constant 0 : index
    %c0_290 = arith.constant 0 : index
    %329 = vector.load %arg25[%c6_288, %c0_289, %c0_290] : memref<7x4x256xf32, #tpu.memory_space<vmem>>, vector<1x4x256xf32>
    %330 = vector.shape_cast %329 : vector<1x4x256xf32> to vector<4x256xf32>
    %c0_291 = arith.constant 0 : index
    %c400 = arith.constant 400 : index
    %331 = vector.load %arg58[%c0_291, %c400] : memref<4x768xf32, #tpu.memory_space<vmem>>, vector<4x256xf32>
    %332 = arith.mulf %330, %331 : vector<4x256xf32>
    %333 = arith.addf %328, %332 : vector<4x256xf32>
    %c0_292 = arith.constant 0 : index
    %c0_293 = arith.constant 0 : index
    %334 = vector.load %arg27[%c0_292, %c0_293] : memref<4x4xf32, #tpu.memory_space<vmem>>, vector<4x4xf32>
    %cst_294 = arith.constant dense<0.000000e+00> : vector<4x256xf32>
    %335 = tpu.matmul %334, %333, %cst_294 {dimension_numbers = #tpu.dot_dimension_numbers<[1], [0], [0], [1], [0, 0, 1, 1], [], []>} : vector<4x4xf32>, vector<4x256xf32>, vector<4x256xf32> -> vector<4x256xf32>
    %c0_295 = arith.constant 0 : index
    %c0_296 = arith.constant 0 : index
    %336 = vector.load %arg26[%c0_295, %c0_296] : memref<4x1xf32, #tpu.memory_space<vmem>>, vector<4x1xf32>
    %337 = vector.broadcast %336 : vector<4x1xf32> to vector<4x256xf32>
    %338 = arith.addf %335, %337 : vector<4x256xf32>
    %c0_297 = arith.constant 0 : index
    %c256_298 = arith.constant 256 : index
    %339 = vector.load %arg58[%c0_297, %c256_298] : memref<4x768xf32, #tpu.memory_space<vmem>>, vector<4x256xf32>
    tpu.vector_store %arg58[%c0_297, %c256_298], %35 {strides = array<i32>} : memref<4x768xf32, #tpu.memory_space<vmem>>, vector<4x256xf32>,
    %c0_299 = arith.constant 0 : index
    %c0_300 = arith.constant 0 : index
    %340 = vector.load %arg4[%c0_299, %c0_300] : memref<4x1xf32, #tpu.memory_space<vmem>>, vector<4x1xf32>
    %c0_301 = arith.constant 0 : index
    %c0_302 = arith.constant 0 : index
    %c0_303 = arith.constant 0 : index
    %341 = vector.load %arg5[%c0_301, %c0_302, %c0_303] : memref<25x4x256xf32, #tpu.memory_space<vmem>>, vector<1x4x256xf32>
    %342 = vector.shape_cast %341 : vector<1x4x256xf32> to vector<4x256xf32>
    %c0_304 = arith.constant 0 : index
    %c222 = arith.constant 222 : index
    %343 = vector.load %arg58[%c0_304, %c222] : memref<4x768xf32, #tpu.memory_space<vmem>>, vector<4x256xf32>
    %344 = arith.mulf %342, %343 : vector<4x256xf32>
    %345 = vector.broadcast %340 : vector<4x1xf32> to vector<4x256xf32>
    %346 = arith.addf %345, %344 : vector<4x256xf32>
    %c1_305 = arith.constant 1 : index
    %c0_306 = arith.constant 0 : index
    %c0_307 = arith.constant 0 : index
    %347 = vector.load %arg5[%c1_305, %c0_306, %c0_307] : memref<25x4x256xf32, #tpu.memory_space<vmem>>, vector<1x4x256xf32>
    %348 = vector.shape_cast %347 : vector<1x4x256xf32> to vector<4x256xf32>
    %c0_308 = arith.constant 0 : index
    %c223 = arith.constant 223 : index
    %349 = vector.load %arg58[%c0_308, %c223] : memref<4x768xf32, #tpu.memory_space<vmem>>, vector<4x256xf32>
    %350 = arith.mulf %348, %349 : vector<4x256xf32>
    %351 = arith.addf %346, %350 : vector<4x256xf32>
    %c2_309 = arith.constant 2 : index
    %c0_310 = arith.constant 0 : index
    %c0_311 = arith.constant 0 : index
    %352 = vector.load %arg5[%c2_309, %c0_310, %c0_311] : memref<25x4x256xf32, #tpu.memory_space<vmem>>, vector<1x4x256xf32>
    %353 = vector.shape_cast %352 : vector<1x4x256xf32> to vector<4x256xf32>
    %c0_312 = arith.constant 0 : index
    %c224_313 = arith.constant 224 : index
    %354 = vector.load %arg58[%c0_312, %c224_313] : memref<4x768xf32, #tpu.memory_space<vmem>>, vector<4x256xf32>
    %355 = arith.mulf %353, %354 : vector<4x256xf32>
    %356 = arith.addf %351, %355 : vector<4x256xf32>
    %c3_314 = arith.constant 3 : index
    %c0_315 = arith.constant 0 : index
    %c0_316 = arith.constant 0 : index
    %357 = vector.load %arg5[%c3_314, %c0_315, %c0_316] : memref<25x4x256xf32, #tpu.memory_space<vmem>>, vector<1x4x256xf32>
    %358 = vector.shape_cast %357 : vector<1x4x256xf32> to vector<4x256xf32>
    %c0_317 = arith.constant 0 : index
    %c225 = arith.constant 225 : index
    %359 = vector.load %arg58[%c0_317, %c225] : memref<4x768xf32, #tpu.memory_space<vmem>>, vector<4x256xf32>
    %360 = arith.mulf %358, %359 : vector<4x256xf32>
    %361 = arith.addf %356, %360 : vector<4x256xf32>
    %c4_318 = arith.constant 4 : index
    %c0_319 = arith.constant 0 : index
    %c0_320 = arith.constant 0 : index
    %362 = vector.load %arg5[%c4_318, %c0_319, %c0_320] : memref<25x4x256xf32, #tpu.memory_space<vmem>>, vector<1x4x256xf32>
    %363 = vector.shape_cast %362 : vector<1x4x256xf32> to vector<4x256xf32>
    %c0_321 = arith.constant 0 : index
    %c226 = arith.constant 226 : index
    %364 = vector.load %arg58[%c0_321, %c226] : memref<4x768xf32, #tpu.memory_space<vmem>>, vector<4x256xf32>
    %365 = arith.mulf %363, %364 : vector<4x256xf32>
    %366 = arith.addf %361, %365 : vector<4x256xf32>
    %c5_322 = arith.constant 5 : index
    %c0_323 = arith.constant 0 : index
    %c0_324 = arith.constant 0 : index
    %367 = vector.load %arg5[%c5_322, %c0_323, %c0_324] : memref<25x4x256xf32, #tpu.memory_space<vmem>>, vector<1x4x256xf32>
    %368 = vector.shape_cast %367 : vector<1x4x256xf32> to vector<4x256xf32>
    %c0_325 = arith.constant 0 : index
    %c238 = arith.constant 238 : index
    %369 = vector.load %arg58[%c0_325, %c238] : memref<4x768xf32, #tpu.memory_space<vmem>>, vector<4x256xf32>
    %370 = arith.mulf %368, %369 : vector<4x256xf32>
    %371 = arith.addf %366, %370 : vector<4x256xf32>
    %c6_326 = arith.constant 6 : index
    %c0_327 = arith.constant 0 : index
    %c0_328 = arith.constant 0 : index
    %372 = vector.load %arg5[%c6_326, %c0_327, %c0_328] : memref<25x4x256xf32, #tpu.memory_space<vmem>>, vector<1x4x256xf32>
    %373 = vector.shape_cast %372 : vector<1x4x256xf32> to vector<4x256xf32>
    %c0_329 = arith.constant 0 : index
    %c239_330 = arith.constant 239 : index
    %374 = vector.load %arg58[%c0_329, %c239_330] : memref<4x768xf32, #tpu.memory_space<vmem>>, vector<4x256xf32>
    %375 = arith.mulf %373, %374 : vector<4x256xf32>
    %376 = arith.addf %371, %375 : vector<4x256xf32>
    %c7_331 = arith.constant 7 : index
    %c0_332 = arith.constant 0 : index
    %c0_333 = arith.constant 0 : index
    %377 = vector.load %arg5[%c7_331, %c0_332, %c0_333] : memref<25x4x256xf32, #tpu.memory_space<vmem>>, vector<1x4x256xf32>
    %378 = vector.shape_cast %377 : vector<1x4x256xf32> to vector<4x256xf32>
    %c0_334 = arith.constant 0 : index
    %c240_335 = arith.constant 240 : index
    %379 = vector.load %arg58[%c0_334, %c240_335] : memref<4x768xf32, #tpu.memory_space<vmem>>, vector<4x256xf32>
    %380 = arith.mulf %378, %379 : vector<4x256xf32>
    %381 = arith.addf %376, %380 : vector<4x256xf32>
    %c8_336 = arith.constant 8 : index
    %c0_337 = arith.constant 0 : index
    %c0_338 = arith.constant 0 : index
    %382 = vector.load %arg5[%c8_336, %c0_337, %c0_338] : memref<25x4x256xf32, #tpu.memory_space<vmem>>, vector<1x4x256xf32>
    %383 = vector.shape_cast %382 : vector<1x4x256xf32> to vector<4x256xf32>
    %c0_339 = arith.constant 0 : index
    %c241_340 = arith.constant 241 : index
    %384 = vector.load %arg58[%c0_339, %c241_340] : memref<4x768xf32, #tpu.memory_space<vmem>>, vector<4x256xf32>
    %385 = arith.mulf %383, %384 : vector<4x256xf32>
    %386 = arith.addf %381, %385 : vector<4x256xf32>
    %c9 = arith.constant 9 : index
    %c0_341 = arith.constant 0 : index
    %c0_342 = arith.constant 0 : index
    %387 = vector.load %arg5[%c9, %c0_341, %c0_342] : memref<25x4x256xf32, #tpu.memory_space<vmem>>, vector<1x4x256xf32>
    %388 = vector.shape_cast %387 : vector<1x4x256xf32> to vector<4x256xf32>
    %c0_343 = arith.constant 0 : index
    %c242 = arith.constant 242 : index
    %389 = vector.load %arg58[%c0_343, %c242] : memref<4x768xf32, #tpu.memory_space<vmem>>, vector<4x256xf32>
    %390 = arith.mulf %388, %389 : vector<4x256xf32>
    %391 = arith.addf %386, %390 : vector<4x256xf32>
    %c10 = arith.constant 10 : index
    %c0_344 = arith.constant 0 : index
    %c0_345 = arith.constant 0 : index
    %392 = vector.load %arg5[%c10, %c0_344, %c0_345] : memref<25x4x256xf32, #tpu.memory_space<vmem>>, vector<1x4x256xf32>
    %393 = vector.shape_cast %392 : vector<1x4x256xf32> to vector<4x256xf32>
    %c0_346 = arith.constant 0 : index
    %c254_347 = arith.constant 254 : index
    %394 = vector.load %arg58[%c0_346, %c254_347] : memref<4x768xf32, #tpu.memory_space<vmem>>, vector<4x256xf32>
    %395 = arith.mulf %393, %394 : vector<4x256xf32>
    %396 = arith.addf %391, %395 : vector<4x256xf32>
    %c11 = arith.constant 11 : index
    %c0_348 = arith.constant 0 : index
    %c0_349 = arith.constant 0 : index
    %397 = vector.load %arg5[%c11, %c0_348, %c0_349] : memref<25x4x256xf32, #tpu.memory_space<vmem>>, vector<1x4x256xf32>
    %398 = vector.shape_cast %397 : vector<1x4x256xf32> to vector<4x256xf32>
    %c0_350 = arith.constant 0 : index
    %c255_351 = arith.constant 255 : index
    %399 = vector.load %arg58[%c0_350, %c255_351] : memref<4x768xf32, #tpu.memory_space<vmem>>, vector<4x256xf32>
    %400 = arith.mulf %398, %399 : vector<4x256xf32>
    %401 = arith.addf %396, %400 : vector<4x256xf32>
    %c12 = arith.constant 12 : index
    %c0_352 = arith.constant 0 : index
    %c0_353 = arith.constant 0 : index
    %402 = vector.load %arg5[%c12, %c0_352, %c0_353] : memref<25x4x256xf32, #tpu.memory_space<vmem>>, vector<1x4x256xf32>
    %403 = vector.shape_cast %402 : vector<1x4x256xf32> to vector<4x256xf32>
    %c0_354 = arith.constant 0 : index
    %c256_355 = arith.constant 256 : index
    %404 = vector.load %arg58[%c0_354, %c256_355] : memref<4x768xf32, #tpu.memory_space<vmem>>, vector<4x256xf32>
    %405 = arith.mulf %403, %404 : vector<4x256xf32>
    %406 = arith.addf %401, %405 : vector<4x256xf32>
    %c13 = arith.constant 13 : index
    %c0_356 = arith.constant 0 : index
    %c0_357 = arith.constant 0 : index
    %407 = vector.load %arg5[%c13, %c0_356, %c0_357] : memref<25x4x256xf32, #tpu.memory_space<vmem>>, vector<1x4x256xf32>
    %408 = vector.shape_cast %407 : vector<1x4x256xf32> to vector<4x256xf32>
    %c0_358 = arith.constant 0 : index
    %c257_359 = arith.constant 257 : index
    %409 = vector.load %arg58[%c0_358, %c257_359] : memref<4x768xf32, #tpu.memory_space<vmem>>, vector<4x256xf32>
    %410 = arith.mulf %408, %409 : vector<4x256xf32>
    %411 = arith.addf %406, %410 : vector<4x256xf32>
    %c14 = arith.constant 14 : index
    %c0_360 = arith.constant 0 : index
    %c0_361 = arith.constant 0 : index
    %412 = vector.load %arg5[%c14, %c0_360, %c0_361] : memref<25x4x256xf32, #tpu.memory_space<vmem>>, vector<1x4x256xf32>
    %413 = vector.shape_cast %412 : vector<1x4x256xf32> to vector<4x256xf32>
    %c0_362 = arith.constant 0 : index
    %c258_363 = arith.constant 258 : index
    %414 = vector.load %arg58[%c0_362, %c258_363] : memref<4x768xf32, #tpu.memory_space<vmem>>, vector<4x256xf32>
    %415 = arith.mulf %413, %414 : vector<4x256xf32>
    %416 = arith.addf %411, %415 : vector<4x256xf32>
    %c15 = arith.constant 15 : index
    %c0_364 = arith.constant 0 : index
    %c0_365 = arith.constant 0 : index
    %417 = vector.load %arg5[%c15, %c0_364, %c0_365] : memref<25x4x256xf32, #tpu.memory_space<vmem>>, vector<1x4x256xf32>
    %418 = vector.shape_cast %417 : vector<1x4x256xf32> to vector<4x256xf32>
    %c0_366 = arith.constant 0 : index
    %c270 = arith.constant 270 : index
    %419 = vector.load %arg58[%c0_366, %c270] : memref<4x768xf32, #tpu.memory_space<vmem>>, vector<4x256xf32>
    %420 = arith.mulf %418, %419 : vector<4x256xf32>
    %421 = arith.addf %416, %420 : vector<4x256xf32>
    %c16 = arith.constant 16 : index
    %c0_367 = arith.constant 0 : index
    %c0_368 = arith.constant 0 : index
    %422 = vector.load %arg5[%c16, %c0_367, %c0_368] : memref<25x4x256xf32, #tpu.memory_space<vmem>>, vector<1x4x256xf32>
    %423 = vector.shape_cast %422 : vector<1x4x256xf32> to vector<4x256xf32>
    %c0_369 = arith.constant 0 : index
    %c271_370 = arith.constant 271 : index
    %424 = vector.load %arg58[%c0_369, %c271_370] : memref<4x768xf32, #tpu.memory_space<vmem>>, vector<4x256xf32>
    %425 = arith.mulf %423, %424 : vector<4x256xf32>
    %426 = arith.addf %421, %425 : vector<4x256xf32>
    %c17 = arith.constant 17 : index
    %c0_371 = arith.constant 0 : index
    %c0_372 = arith.constant 0 : index
    %427 = vector.load %arg5[%c17, %c0_371, %c0_372] : memref<25x4x256xf32, #tpu.memory_space<vmem>>, vector<1x4x256xf32>
    %428 = vector.shape_cast %427 : vector<1x4x256xf32> to vector<4x256xf32>
    %c0_373 = arith.constant 0 : index
    %c272_374 = arith.constant 272 : index
    %429 = vector.load %arg58[%c0_373, %c272_374] : memref<4x768xf32, #tpu.memory_space<vmem>>, vector<4x256xf32>
    %430 = arith.mulf %428, %429 : vector<4x256xf32>
    %431 = arith.addf %426, %430 : vector<4x256xf32>
    %c18 = arith.constant 18 : index
    %c0_375 = arith.constant 0 : index
    %c0_376 = arith.constant 0 : index
    %432 = vector.load %arg5[%c18, %c0_375, %c0_376] : memref<25x4x256xf32, #tpu.memory_space<vmem>>, vector<1x4x256xf32>
    %433 = vector.shape_cast %432 : vector<1x4x256xf32> to vector<4x256xf32>
    %c0_377 = arith.constant 0 : index
    %c273_378 = arith.constant 273 : index
    %434 = vector.load %arg58[%c0_377, %c273_378] : memref<4x768xf32, #tpu.memory_space<vmem>>, vector<4x256xf32>
    %435 = arith.mulf %433, %434 : vector<4x256xf32>
    %436 = arith.addf %431, %435 : vector<4x256xf32>
    %c19 = arith.constant 19 : index
    %c0_379 = arith.constant 0 : index
    %c0_380 = arith.constant 0 : index
    %437 = vector.load %arg5[%c19, %c0_379, %c0_380] : memref<25x4x256xf32, #tpu.memory_space<vmem>>, vector<1x4x256xf32>
    %438 = vector.shape_cast %437 : vector<1x4x256xf32> to vector<4x256xf32>
    %c0_381 = arith.constant 0 : index
    %c274 = arith.constant 274 : index
    %439 = vector.load %arg58[%c0_381, %c274] : memref<4x768xf32, #tpu.memory_space<vmem>>, vector<4x256xf32>
    %440 = arith.mulf %438, %439 : vector<4x256xf32>
    %441 = arith.addf %436, %440 : vector<4x256xf32>
    %c20 = arith.constant 20 : index
    %c0_382 = arith.constant 0 : index
    %c0_383 = arith.constant 0 : index
    %442 = vector.load %arg5[%c20, %c0_382, %c0_383] : memref<25x4x256xf32, #tpu.memory_space<vmem>>, vector<1x4x256xf32>
    %443 = vector.shape_cast %442 : vector<1x4x256xf32> to vector<4x256xf32>
    %c0_384 = arith.constant 0 : index
    %c286 = arith.constant 286 : index
    %444 = vector.load %arg58[%c0_384, %c286] : memref<4x768xf32, #tpu.memory_space<vmem>>, vector<4x256xf32>
    %445 = arith.mulf %443, %444 : vector<4x256xf32>
    %446 = arith.addf %441, %445 : vector<4x256xf32>
    %c21 = arith.constant 21 : index
    %c0_385 = arith.constant 0 : index
    %c0_386 = arith.constant 0 : index
    %447 = vector.load %arg5[%c21, %c0_385, %c0_386] : memref<25x4x256xf32, #tpu.memory_space<vmem>>, vector<1x4x256xf32>
    %448 = vector.shape_cast %447 : vector<1x4x256xf32> to vector<4x256xf32>
    %c0_387 = arith.constant 0 : index
    %c287 = arith.constant 287 : index
    %449 = vector.load %arg58[%c0_387, %c287] : memref<4x768xf32, #tpu.memory_space<vmem>>, vector<4x256xf32>
    %450 = arith.mulf %448, %449 : vector<4x256xf32>
    %451 = arith.addf %446, %450 : vector<4x256xf32>
    %c22 = arith.constant 22 : index
    %c0_388 = arith.constant 0 : index
    %c0_389 = arith.constant 0 : index
    %452 = vector.load %arg5[%c22, %c0_388, %c0_389] : memref<25x4x256xf32, #tpu.memory_space<vmem>>, vector<1x4x256xf32>
    %453 = vector.shape_cast %452 : vector<1x4x256xf32> to vector<4x256xf32>
    %c0_390 = arith.constant 0 : index
    %c288_391 = arith.constant 288 : index
    %454 = vector.load %arg58[%c0_390, %c288_391] : memref<4x768xf32, #tpu.memory_space<vmem>>, vector<4x256xf32>
    %455 = arith.mulf %453, %454 : vector<4x256xf32>
    %456 = arith.addf %451, %455 : vector<4x256xf32>
    %c23 = arith.constant 23 : index
    %c0_392 = arith.constant 0 : index
    %c0_393 = arith.constant 0 : index
    %457 = vector.load %arg5[%c23, %c0_392, %c0_393] : memref<25x4x256xf32, #tpu.memory_space<vmem>>, vector<1x4x256xf32>
    %458 = vector.shape_cast %457 : vector<1x4x256xf32> to vector<4x256xf32>
    %c0_394 = arith.constant 0 : index
    %c289 = arith.constant 289 : index
    %459 = vector.load %arg58[%c0_394, %c289] : memref<4x768xf32, #tpu.memory_space<vmem>>, vector<4x256xf32>
    %460 = arith.mulf %458, %459 : vector<4x256xf32>
    %461 = arith.addf %456, %460 : vector<4x256xf32>
    %c24 = arith.constant 24 : index
    %c0_395 = arith.constant 0 : index
    %c0_396 = arith.constant 0 : index
    %462 = vector.load %arg5[%c24, %c0_395, %c0_396] : memref<25x4x256xf32, #tpu.memory_space<vmem>>, vector<1x4x256xf32>
    %463 = vector.shape_cast %462 : vector<1x4x256xf32> to vector<4x256xf32>
    %c0_397 = arith.constant 0 : index
    %c290 = arith.constant 290 : index
    %464 = vector.load %arg58[%c0_397, %c290] : memref<4x768xf32, #tpu.memory_space<vmem>>, vector<4x256xf32>
    %465 = arith.mulf %463, %464 : vector<4x256xf32>
    %466 = arith.addf %461, %465 : vector<4x256xf32>
    %467 = arith.mulf %338, %466 : vector<4x256xf32>
    %c0_398 = arith.constant 0 : index
    %c256_399 = arith.constant 256 : index
    %468 = vector.load %arg58[%c0_398, %c256_399] : memref<4x768xf32, #tpu.memory_space<vmem>>, vector<4x256xf32>
    tpu.vector_store %arg58[%c0_398, %c256_399], %30 {strides = array<i32>} : memref<4x768xf32, #tpu.memory_space<vmem>>, vector<4x256xf32>,
    %c0_400 = arith.constant 0 : index
    %c0_401 = arith.constant 0 : index
    %469 = vector.load %arg28[%c0_400, %c0_401] : memref<4x1xf32, #tpu.memory_space<vmem>>, vector<4x1xf32>
    %c0_402 = arith.constant 0 : index
    %c0_403 = arith.constant 0 : index
    %c0_404 = arith.constant 0 : index
    %470 = vector.load %arg29[%c0_402, %c0_403, %c0_404] : memref<7x4x256xf32, #tpu.memory_space<vmem>>, vector<1x4x256xf32>
    %471 = vector.shape_cast %470 : vector<1x4x256xf32> to vector<4x256xf32>
    %c0_405 = arith.constant 0 : index
    %c253_406 = arith.constant 253 : index
    %472 = vector.load %arg58[%c0_405, %c253_406] : memref<4x768xf32, #tpu.memory_space<vmem>>, vector<4x256xf32>
    %473 = arith.mulf %471, %472 : vector<4x256xf32>
    %474 = vector.broadcast %469 : vector<4x1xf32> to vector<4x256xf32>
    %475 = arith.addf %474, %473 : vector<4x256xf32>
    %c1_407 = arith.constant 1 : index
    %c0_408 = arith.constant 0 : index
    %c0_409 = arith.constant 0 : index
    %476 = vector.load %arg29[%c1_407, %c0_408, %c0_409] : memref<7x4x256xf32, #tpu.memory_space<vmem>>, vector<1x4x256xf32>
    %477 = vector.shape_cast %476 : vector<1x4x256xf32> to vector<4x256xf32>
    %c0_410 = arith.constant 0 : index
    %c254_411 = arith.constant 254 : index
    %478 = vector.load %arg58[%c0_410, %c254_411] : memref<4x768xf32, #tpu.memory_space<vmem>>, vector<4x256xf32>
    %479 = arith.mulf %477, %478 : vector<4x256xf32>
    %480 = arith.addf %475, %479 : vector<4x256xf32>
    %c2_412 = arith.constant 2 : index
    %c0_413 = arith.constant 0 : index
    %c0_414 = arith.constant 0 : index
    %481 = vector.load %arg29[%c2_412, %c0_413, %c0_414] : memref<7x4x256xf32, #tpu.memory_space<vmem>>, vector<1x4x256xf32>
    %482 = vector.shape_cast %481 : vector<1x4x256xf32> to vector<4x256xf32>
    %c0_415 = arith.constant 0 : index
    %c255_416 = arith.constant 255 : index
    %483 = vector.load %arg58[%c0_415, %c255_416] : memref<4x768xf32, #tpu.memory_space<vmem>>, vector<4x256xf32>
    %484 = arith.mulf %482, %483 : vector<4x256xf32>
    %485 = arith.addf %480, %484 : vector<4x256xf32>
    %c3_417 = arith.constant 3 : index
    %c0_418 = arith.constant 0 : index
    %c0_419 = arith.constant 0 : index
    %486 = vector.load %arg29[%c3_417, %c0_418, %c0_419] : memref<7x4x256xf32, #tpu.memory_space<vmem>>, vector<1x4x256xf32>
    %487 = vector.shape_cast %486 : vector<1x4x256xf32> to vector<4x256xf32>
    %c0_420 = arith.constant 0 : index
    %c256_421 = arith.constant 256 : index
    %488 = vector.load %arg58[%c0_420, %c256_421] : memref<4x768xf32, #tpu.memory_space<vmem>>, vector<4x256xf32>
    %489 = arith.mulf %487, %488 : vector<4x256xf32>
    %490 = arith.addf %485, %489 : vector<4x256xf32>
    %c4_422 = arith.constant 4 : index
    %c0_423 = arith.constant 0 : index
    %c0_424 = arith.constant 0 : index
    %491 = vector.load %arg29[%c4_422, %c0_423, %c0_424] : memref<7x4x256xf32, #tpu.memory_space<vmem>>, vector<1x4x256xf32>
    %492 = vector.shape_cast %491 : vector<1x4x256xf32> to vector<4x256xf32>
    %c0_425 = arith.constant 0 : index
    %c257_426 = arith.constant 257 : index
    %493 = vector.load %arg58[%c0_425, %c257_426] : memref<4x768xf32, #tpu.memory_space<vmem>>, vector<4x256xf32>
    %494 = arith.mulf %492, %493 : vector<4x256xf32>
    %495 = arith.addf %490, %494 : vector<4x256xf32>
    %c5_427 = arith.constant 5 : index
    %c0_428 = arith.constant 0 : index
    %c0_429 = arith.constant 0 : index
    %496 = vector.load %arg29[%c5_427, %c0_428, %c0_429] : memref<7x4x256xf32, #tpu.memory_space<vmem>>, vector<1x4x256xf32>
    %497 = vector.shape_cast %496 : vector<1x4x256xf32> to vector<4x256xf32>
    %c0_430 = arith.constant 0 : index
    %c258_431 = arith.constant 258 : index
    %498 = vector.load %arg58[%c0_430, %c258_431] : memref<4x768xf32, #tpu.memory_space<vmem>>, vector<4x256xf32>
    %499 = arith.mulf %497, %498 : vector<4x256xf32>
    %500 = arith.addf %495, %499 : vector<4x256xf32>
    %c6_432 = arith.constant 6 : index
    %c0_433 = arith.constant 0 : index
    %c0_434 = arith.constant 0 : index
    %501 = vector.load %arg29[%c6_432, %c0_433, %c0_434] : memref<7x4x256xf32, #tpu.memory_space<vmem>>, vector<1x4x256xf32>
    %502 = vector.shape_cast %501 : vector<1x4x256xf32> to vector<4x256xf32>
    %c0_435 = arith.constant 0 : index
    %c259_436 = arith.constant 259 : index
    %503 = vector.load %arg58[%c0_435, %c259_436] : memref<4x768xf32, #tpu.memory_space<vmem>>, vector<4x256xf32>
    %504 = arith.mulf %502, %503 : vector<4x256xf32>
    %505 = arith.addf %500, %504 : vector<4x256xf32>
    %c0_437 = arith.constant 0 : index
    %c256_438 = arith.constant 256 : index
    %506 = vector.load %arg58[%c0_437, %c256_438] : memref<4x768xf32, #tpu.memory_space<vmem>>, vector<4x256xf32>
    tpu.vector_store %arg58[%c0_437, %c256_438], %505 {strides = array<i32>} : memref<4x768xf32, #tpu.memory_space<vmem>>, vector<4x256xf32>,
    %c0_439 = arith.constant 0 : index
    %c0_440 = arith.constant 0 : index
    %507 = vector.load %arg30[%c0_439, %c0_440] : memref<4x1xf32, #tpu.memory_space<vmem>>, vector<4x1xf32>
    %c0_441 = arith.constant 0 : index
    %c0_442 = arith.constant 0 : index
    %c0_443 = arith.constant 0 : index
    %508 = vector.load %arg31[%c0_441, %c0_442, %c0_443] : memref<7x4x256xf32, #tpu.memory_space<vmem>>, vector<1x4x256xf32>
    %509 = vector.shape_cast %508 : vector<1x4x256xf32> to vector<4x256xf32>
    %c0_444 = arith.constant 0 : index
    %c208_445 = arith.constant 208 : index
    %510 = vector.load %arg58[%c0_444, %c208_445] : memref<4x768xf32, #tpu.memory_space<vmem>>, vector<4x256xf32>
    %511 = arith.mulf %509, %510 : vector<4x256xf32>
    %512 = vector.broadcast %507 : vector<4x1xf32> to vector<4x256xf32>
    %513 = arith.addf %512, %511 : vector<4x256xf32>
    %c1_446 = arith.constant 1 : index
    %c0_447 = arith.constant 0 : index
    %c0_448 = arith.constant 0 : index
    %514 = vector.load %arg31[%c1_446, %c0_447, %c0_448] : memref<7x4x256xf32, #tpu.memory_space<vmem>>, vector<1x4x256xf32>
    %515 = vector.shape_cast %514 : vector<1x4x256xf32> to vector<4x256xf32>
    %c0_449 = arith.constant 0 : index
    %c224_450 = arith.constant 224 : index
    %516 = vector.load %arg58[%c0_449, %c224_450] : memref<4x768xf32, #tpu.memory_space<vmem>>, vector<4x256xf32>
    %517 = arith.mulf %515, %516 : vector<4x256xf32>
    %518 = arith.addf %513, %517 : vector<4x256xf32>
    %c2_451 = arith.constant 2 : index
    %c0_452 = arith.constant 0 : index
    %c0_453 = arith.constant 0 : index
    %519 = vector.load %arg31[%c2_451, %c0_452, %c0_453] : memref<7x4x256xf32, #tpu.memory_space<vmem>>, vector<1x4x256xf32>
    %520 = vector.shape_cast %519 : vector<1x4x256xf32> to vector<4x256xf32>
    %c0_454 = arith.constant 0 : index
    %c240_455 = arith.constant 240 : index
    %521 = vector.load %arg58[%c0_454, %c240_455] : memref<4x768xf32, #tpu.memory_space<vmem>>, vector<4x256xf32>
    %522 = arith.mulf %520, %521 : vector<4x256xf32>
    %523 = arith.addf %518, %522 : vector<4x256xf32>
    %c3_456 = arith.constant 3 : index
    %c0_457 = arith.constant 0 : index
    %c0_458 = arith.constant 0 : index
    %524 = vector.load %arg31[%c3_456, %c0_457, %c0_458] : memref<7x4x256xf32, #tpu.memory_space<vmem>>, vector<1x4x256xf32>
    %525 = vector.shape_cast %524 : vector<1x4x256xf32> to vector<4x256xf32>
    %c0_459 = arith.constant 0 : index
    %c256_460 = arith.constant 256 : index
    %526 = vector.load %arg58[%c0_459, %c256_460] : memref<4x768xf32, #tpu.memory_space<vmem>>, vector<4x256xf32>
    %527 = arith.mulf %525, %526 : vector<4x256xf32>
    %528 = arith.addf %523, %527 : vector<4x256xf32>
    %c4_461 = arith.constant 4 : index
    %c0_462 = arith.constant 0 : index
    %c0_463 = arith.constant 0 : index
    %529 = vector.load %arg31[%c4_461, %c0_462, %c0_463] : memref<7x4x256xf32, #tpu.memory_space<vmem>>, vector<1x4x256xf32>
    %530 = vector.shape_cast %529 : vector<1x4x256xf32> to vector<4x256xf32>
    %c0_464 = arith.constant 0 : index
    %c272_465 = arith.constant 272 : index
    %531 = vector.load %arg58[%c0_464, %c272_465] : memref<4x768xf32, #tpu.memory_space<vmem>>, vector<4x256xf32>
    %532 = arith.mulf %530, %531 : vector<4x256xf32>
    %533 = arith.addf %528, %532 : vector<4x256xf32>
    %c5_466 = arith.constant 5 : index
    %c0_467 = arith.constant 0 : index
    %c0_468 = arith.constant 0 : index
    %534 = vector.load %arg31[%c5_466, %c0_467, %c0_468] : memref<7x4x256xf32, #tpu.memory_space<vmem>>, vector<1x4x256xf32>
    %535 = vector.shape_cast %534 : vector<1x4x256xf32> to vector<4x256xf32>
    %c0_469 = arith.constant 0 : index
    %c288_470 = arith.constant 288 : index
    %536 = vector.load %arg58[%c0_469, %c288_470] : memref<4x768xf32, #tpu.memory_space<vmem>>, vector<4x256xf32>
    %537 = arith.mulf %535, %536 : vector<4x256xf32>
    %538 = arith.addf %533, %537 : vector<4x256xf32>
    %c6_471 = arith.constant 6 : index
    %c0_472 = arith.constant 0 : index
    %c0_473 = arith.constant 0 : index
    %539 = vector.load %arg31[%c6_471, %c0_472, %c0_473] : memref<7x4x256xf32, #tpu.memory_space<vmem>>, vector<1x4x256xf32>
    %540 = vector.shape_cast %539 : vector<1x4x256xf32> to vector<4x256xf32>
    %c0_474 = arith.constant 0 : index
    %c304_475 = arith.constant 304 : index
    %541 = vector.load %arg58[%c0_474, %c304_475] : memref<4x768xf32, #tpu.memory_space<vmem>>, vector<4x256xf32>
    %542 = arith.mulf %540, %541 : vector<4x256xf32>
    %543 = arith.addf %538, %542 : vector<4x256xf32>
    %c0_476 = arith.constant 0 : index
    %c256_477 = arith.constant 256 : index
    %544 = vector.load %arg58[%c0_476, %c256_477] : memref<4x768xf32, #tpu.memory_space<vmem>>, vector<4x256xf32>
    tpu.vector_store %arg58[%c0_476, %c256_477], %543 {strides = array<i32>} : memref<4x768xf32, #tpu.memory_space<vmem>>, vector<4x256xf32>,
    %c0_478 = arith.constant 0 : index
    %c0_479 = arith.constant 0 : index
    %545 = vector.load %arg32[%c0_478, %c0_479] : memref<4x1xf32, #tpu.memory_space<vmem>>, vector<4x1xf32>
    %c0_480 = arith.constant 0 : index
    %c0_481 = arith.constant 0 : index
    %c0_482 = arith.constant 0 : index
    %546 = vector.load %arg33[%c0_480, %c0_481, %c0_482] : memref<9x4x256xf32, #tpu.memory_space<vmem>>, vector<1x4x256xf32>
    %547 = vector.shape_cast %546 : vector<1x4x256xf32> to vector<4x256xf32>
    %c0_483 = arith.constant 0 : index
    %c240_484 = arith.constant 240 : index
    %548 = vector.load %arg58[%c0_483, %c240_484] : memref<4x768xf32, #tpu.memory_space<vmem>>, vector<4x256xf32>
    %549 = arith.mulf %547, %548 : vector<4x256xf32>
    %550 = vector.broadcast %545 : vector<4x1xf32> to vector<4x256xf32>
    %551 = arith.addf %550, %549 : vector<4x256xf32>
    %c1_485 = arith.constant 1 : index
    %c0_486 = arith.constant 0 : index
    %c0_487 = arith.constant 0 : index
    %552 = vector.load %arg33[%c1_485, %c0_486, %c0_487] : memref<9x4x256xf32, #tpu.memory_space<vmem>>, vector<1x4x256xf32>
    %553 = vector.shape_cast %552 : vector<1x4x256xf32> to vector<4x256xf32>
    %c0_488 = arith.constant 0 : index
    %c244 = arith.constant 244 : index
    %554 = vector.load %arg58[%c0_488, %c244] : memref<4x768xf32, #tpu.memory_space<vmem>>, vector<4x256xf32>
    %555 = arith.mulf %553, %554 : vector<4x256xf32>
    %556 = arith.addf %551, %555 : vector<4x256xf32>
    %c2_489 = arith.constant 2 : index
    %c0_490 = arith.constant 0 : index
    %c0_491 = arith.constant 0 : index
    %557 = vector.load %arg33[%c2_489, %c0_490, %c0_491] : memref<9x4x256xf32, #tpu.memory_space<vmem>>, vector<1x4x256xf32>
    %558 = vector.shape_cast %557 : vector<1x4x256xf32> to vector<4x256xf32>
    %c0_492 = arith.constant 0 : index
    %c248 = arith.constant 248 : index
    %559 = vector.load %arg58[%c0_492, %c248] : memref<4x768xf32, #tpu.memory_space<vmem>>, vector<4x256xf32>
    %560 = arith.mulf %558, %559 : vector<4x256xf32>
    %561 = arith.addf %556, %560 : vector<4x256xf32>
    %c3_493 = arith.constant 3 : index
    %c0_494 = arith.constant 0 : index
    %c0_495 = arith.constant 0 : index
    %562 = vector.load %arg33[%c3_493, %c0_494, %c0_495] : memref<9x4x256xf32, #tpu.memory_space<vmem>>, vector<1x4x256xf32>
    %563 = vector.shape_cast %562 : vector<1x4x256xf32> to vector<4x256xf32>
    %c0_496 = arith.constant 0 : index
    %c252_497 = arith.constant 252 : index
    %564 = vector.load %arg58[%c0_496, %c252_497] : memref<4x768xf32, #tpu.memory_space<vmem>>, vector<4x256xf32>
    %565 = arith.mulf %563, %564 : vector<4x256xf32>
    %566 = arith.addf %561, %565 : vector<4x256xf32>
    %c4_498 = arith.constant 4 : index
    %c0_499 = arith.constant 0 : index
    %c0_500 = arith.constant 0 : index
    %567 = vector.load %arg33[%c4_498, %c0_499, %c0_500] : memref<9x4x256xf32, #tpu.memory_space<vmem>>, vector<1x4x256xf32>
    %568 = vector.shape_cast %567 : vector<1x4x256xf32> to vector<4x256xf32>
    %c0_501 = arith.constant 0 : index
    %c256_502 = arith.constant 256 : index
    %569 = vector.load %arg58[%c0_501, %c256_502] : memref<4x768xf32, #tpu.memory_space<vmem>>, vector<4x256xf32>
    %570 = arith.mulf %568, %569 : vector<4x256xf32>
    %571 = arith.addf %566, %570 : vector<4x256xf32>
    %c5_503 = arith.constant 5 : index
    %c0_504 = arith.constant 0 : index
    %c0_505 = arith.constant 0 : index
    %572 = vector.load %arg33[%c5_503, %c0_504, %c0_505] : memref<9x4x256xf32, #tpu.memory_space<vmem>>, vector<1x4x256xf32>
    %573 = vector.shape_cast %572 : vector<1x4x256xf32> to vector<4x256xf32>
    %c0_506 = arith.constant 0 : index
    %c260_507 = arith.constant 260 : index
    %574 = vector.load %arg58[%c0_506, %c260_507] : memref<4x768xf32, #tpu.memory_space<vmem>>, vector<4x256xf32>
    %575 = arith.mulf %573, %574 : vector<4x256xf32>
    %576 = arith.addf %571, %575 : vector<4x256xf32>
    %c6_508 = arith.constant 6 : index
    %c0_509 = arith.constant 0 : index
    %c0_510 = arith.constant 0 : index
    %577 = vector.load %arg33[%c6_508, %c0_509, %c0_510] : memref<9x4x256xf32, #tpu.memory_space<vmem>>, vector<1x4x256xf32>
    %578 = vector.shape_cast %577 : vector<1x4x256xf32> to vector<4x256xf32>
    %c0_511 = arith.constant 0 : index
    %c264 = arith.constant 264 : index
    %579 = vector.load %arg58[%c0_511, %c264] : memref<4x768xf32, #tpu.memory_space<vmem>>, vector<4x256xf32>
    %580 = arith.mulf %578, %579 : vector<4x256xf32>
    %581 = arith.addf %576, %580 : vector<4x256xf32>
    %c7_512 = arith.constant 7 : index
    %c0_513 = arith.constant 0 : index
    %c0_514 = arith.constant 0 : index
    %582 = vector.load %arg33[%c7_512, %c0_513, %c0_514] : memref<9x4x256xf32, #tpu.memory_space<vmem>>, vector<1x4x256xf32>
    %583 = vector.shape_cast %582 : vector<1x4x256xf32> to vector<4x256xf32>
    %c0_515 = arith.constant 0 : index
    %c268 = arith.constant 268 : index
    %584 = vector.load %arg58[%c0_515, %c268] : memref<4x768xf32, #tpu.memory_space<vmem>>, vector<4x256xf32>
    %585 = arith.mulf %583, %584 : vector<4x256xf32>
    %586 = arith.addf %581, %585 : vector<4x256xf32>
    %c8_516 = arith.constant 8 : index
    %c0_517 = arith.constant 0 : index
    %c0_518 = arith.constant 0 : index
    %587 = vector.load %arg33[%c8_516, %c0_517, %c0_518] : memref<9x4x256xf32, #tpu.memory_space<vmem>>, vector<1x4x256xf32>
    %588 = vector.shape_cast %587 : vector<1x4x256xf32> to vector<4x256xf32>
    %c0_519 = arith.constant 0 : index
    %c272_520 = arith.constant 272 : index
    %589 = vector.load %arg58[%c0_519, %c272_520] : memref<4x768xf32, #tpu.memory_space<vmem>>, vector<4x256xf32>
    %590 = arith.mulf %588, %589 : vector<4x256xf32>
    %591 = arith.addf %586, %590 : vector<4x256xf32>
    %c0_521 = arith.constant 0 : index
    %c256_522 = arith.constant 256 : index
    %592 = vector.load %arg58[%c0_521, %c256_522] : memref<4x768xf32, #tpu.memory_space<vmem>>, vector<4x256xf32>
    tpu.vector_store %arg58[%c0_521, %c256_522], %591 {strides = array<i32>} : memref<4x768xf32, #tpu.memory_space<vmem>>, vector<4x256xf32>,
    %c0_523 = arith.constant 0 : index
    %c0_524 = arith.constant 0 : index
    %593 = vector.load %arg34[%c0_523, %c0_524] : memref<4x1xf32, #tpu.memory_space<vmem>>, vector<4x1xf32>
    %c0_525 = arith.constant 0 : index
    %c0_526 = arith.constant 0 : index
    %c0_527 = arith.constant 0 : index
    %594 = vector.load %arg35[%c0_525, %c0_526, %c0_527] : memref<9x4x256xf32, #tpu.memory_space<vmem>>, vector<1x4x256xf32>
    %595 = vector.shape_cast %594 : vector<1x4x256xf32> to vector<4x256xf32>
    %c0_528 = arith.constant 0 : index
    %c0_529 = arith.constant 0 : index
    %596 = vector.load %arg58[%c0_528, %c0_529] : memref<4x768xf32, #tpu.memory_space<vmem>>, vector<4x256xf32>
    %597 = arith.mulf %595, %596 : vector<4x256xf32>
    %598 = vector.broadcast %593 : vector<4x1xf32> to vector<4x256xf32>
    %599 = arith.addf %598, %597 : vector<4x256xf32>
    %c1_530 = arith.constant 1 : index
    %c0_531 = arith.constant 0 : index
    %c0_532 = arith.constant 0 : index
    %600 = vector.load %arg35[%c1_530, %c0_531, %c0_532] : memref<9x4x256xf32, #tpu.memory_space<vmem>>, vector<1x4x256xf32>
    %601 = vector.shape_cast %600 : vector<1x4x256xf32> to vector<4x256xf32>
    %c0_533 = arith.constant 0 : index
    %c64 = arith.constant 64 : index
    %602 = vector.load %arg58[%c0_533, %c64] : memref<4x768xf32, #tpu.memory_space<vmem>>, vector<4x256xf32>
    %603 = arith.mulf %601, %602 : vector<4x256xf32>
    %604 = arith.addf %599, %603 : vector<4x256xf32>
    %c2_534 = arith.constant 2 : index
    %c0_535 = arith.constant 0 : index
    %c0_536 = arith.constant 0 : index
    %605 = vector.load %arg35[%c2_534, %c0_535, %c0_536] : memref<9x4x256xf32, #tpu.memory_space<vmem>>, vector<1x4x256xf32>
    %606 = vector.shape_cast %605 : vector<1x4x256xf32> to vector<4x256xf32>
    %c0_537 = arith.constant 0 : index
    %c128 = arith.constant 128 : index
    %607 = vector.load %arg58[%c0_537, %c128] : memref<4x768xf32, #tpu.memory_space<vmem>>, vector<4x256xf32>
    %608 = arith.mulf %606, %607 : vector<4x256xf32>
    %609 = arith.addf %604, %608 : vector<4x256xf32>
    %c3_538 = arith.constant 3 : index
    %c0_539 = arith.constant 0 : index
    %c0_540 = arith.constant 0 : index
    %610 = vector.load %arg35[%c3_538, %c0_539, %c0_540] : memref<9x4x256xf32, #tpu.memory_space<vmem>>, vector<1x4x256xf32>
    %611 = vector.shape_cast %610 : vector<1x4x256xf32> to vector<4x256xf32>
    %c0_541 = arith.constant 0 : index
    %c192_542 = arith.constant 192 : index
    %612 = vector.load %arg58[%c0_541, %c192_542] : memref<4x768xf32, #tpu.memory_space<vmem>>, vector<4x256xf32>
    %613 = arith.mulf %611, %612 : vector<4x256xf32>
    %614 = arith.addf %609, %613 : vector<4x256xf32>
    %c4_543 = arith.constant 4 : index
    %c0_544 = arith.constant 0 : index
    %c0_545 = arith.constant 0 : index
    %615 = vector.load %arg35[%c4_543, %c0_544, %c0_545] : memref<9x4x256xf32, #tpu.memory_space<vmem>>, vector<1x4x256xf32>
    %616 = vector.shape_cast %615 : vector<1x4x256xf32> to vector<4x256xf32>
    %c0_546 = arith.constant 0 : index
    %c256_547 = arith.constant 256 : index
    %617 = vector.load %arg58[%c0_546, %c256_547] : memref<4x768xf32, #tpu.memory_space<vmem>>, vector<4x256xf32>
    %618 = arith.mulf %616, %617 : vector<4x256xf32>
    %619 = arith.addf %614, %618 : vector<4x256xf32>
    %c5_548 = arith.constant 5 : index
    %c0_549 = arith.constant 0 : index
    %c0_550 = arith.constant 0 : index
    %620 = vector.load %arg35[%c5_548, %c0_549, %c0_550] : memref<9x4x256xf32, #tpu.memory_space<vmem>>, vector<1x4x256xf32>
    %621 = vector.shape_cast %620 : vector<1x4x256xf32> to vector<4x256xf32>
    %c0_551 = arith.constant 0 : index
    %c320_552 = arith.constant 320 : index
    %622 = vector.load %arg58[%c0_551, %c320_552] : memref<4x768xf32, #tpu.memory_space<vmem>>, vector<4x256xf32>
    %623 = arith.mulf %621, %622 : vector<4x256xf32>
    %624 = arith.addf %619, %623 : vector<4x256xf32>
    %c6_553 = arith.constant 6 : index
    %c0_554 = arith.constant 0 : index
    %c0_555 = arith.constant 0 : index
    %625 = vector.load %arg35[%c6_553, %c0_554, %c0_555] : memref<9x4x256xf32, #tpu.memory_space<vmem>>, vector<1x4x256xf32>
    %626 = vector.shape_cast %625 : vector<1x4x256xf32> to vector<4x256xf32>
    %c0_556 = arith.constant 0 : index
    %c384 = arith.constant 384 : index
    %627 = vector.load %arg58[%c0_556, %c384] : memref<4x768xf32, #tpu.memory_space<vmem>>, vector<4x256xf32>
    %628 = arith.mulf %626, %627 : vector<4x256xf32>
    %629 = arith.addf %624, %628 : vector<4x256xf32>
    %c7_557 = arith.constant 7 : index
    %c0_558 = arith.constant 0 : index
    %c0_559 = arith.constant 0 : index
    %630 = vector.load %arg35[%c7_557, %c0_558, %c0_559] : memref<9x4x256xf32, #tpu.memory_space<vmem>>, vector<1x4x256xf32>
    %631 = vector.shape_cast %630 : vector<1x4x256xf32> to vector<4x256xf32>
    %c0_560 = arith.constant 0 : index
    %c448 = arith.constant 448 : index
    %632 = vector.load %arg58[%c0_560, %c448] : memref<4x768xf32, #tpu.memory_space<vmem>>, vector<4x256xf32>
    %633 = arith.mulf %631, %632 : vector<4x256xf32>
    %634 = arith.addf %629, %633 : vector<4x256xf32>
    %c8_561 = arith.constant 8 : index
    %c0_562 = arith.constant 0 : index
    %c0_563 = arith.constant 0 : index
    %635 = vector.load %arg35[%c8_561, %c0_562, %c0_563] : memref<9x4x256xf32, #tpu.memory_space<vmem>>, vector<1x4x256xf32>
    %636 = vector.shape_cast %635 : vector<1x4x256xf32> to vector<4x256xf32>
    %c0_564 = arith.constant 0 : index
    %c512 = arith.constant 512 : index
    %637 = vector.load %arg58[%c0_564, %c512] : memref<4x768xf32, #tpu.memory_space<vmem>>, vector<4x256xf32>
    %638 = arith.mulf %636, %637 : vector<4x256xf32>
    %639 = arith.addf %634, %638 : vector<4x256xf32>
    %c0_565 = arith.constant 0 : index
    %c0_566 = arith.constant 0 : index
    %640 = vector.load %arg37[%c0_565, %c0_566] : memref<4x4xf32, #tpu.memory_space<vmem>>, vector<4x4xf32>
    %cst_567 = arith.constant dense<0.000000e+00> : vector<4x256xf32>
    %641 = tpu.matmul %640, %639, %cst_567 {dimension_numbers = #tpu.dot_dimension_numbers<[1], [0], [0], [1], [0, 0, 1, 1], [], []>} : vector<4x4xf32>, vector<4x256xf32>, vector<4x256xf32> -> vector<4x256xf32>
    %c0_568 = arith.constant 0 : index
    %c0_569 = arith.constant 0 : index
    %642 = vector.load %arg36[%c0_568, %c0_569] : memref<4x1xf32, #tpu.memory_space<vmem>>, vector<4x1xf32>
    %643 = vector.broadcast %642 : vector<4x1xf32> to vector<4x256xf32>
    %644 = arith.addf %641, %643 : vector<4x256xf32>
    %c0_570 = arith.constant 0 : index
    %c256_571 = arith.constant 256 : index
    %645 = vector.load %arg58[%c0_570, %c256_571] : memref<4x768xf32, #tpu.memory_space<vmem>>, vector<4x256xf32>
    tpu.vector_store %arg58[%c0_570, %c256_571], %40 {strides = array<i32>} : memref<4x768xf32, #tpu.memory_space<vmem>>, vector<4x256xf32>,
    %c0_572 = arith.constant 0 : index
    %c0_573 = arith.constant 0 : index
    %646 = vector.load %arg6[%c0_572, %c0_573] : memref<4x1xf32, #tpu.memory_space<vmem>>, vector<4x1xf32>
    %c0_574 = arith.constant 0 : index
    %c0_575 = arith.constant 0 : index
    %c0_576 = arith.constant 0 : index
    %647 = vector.load %arg7[%c0_574, %c0_575, %c0_576] : memref<49x4x256xf32, #tpu.memory_space<vmem>>, vector<1x4x256xf32>
    %648 = vector.shape_cast %647 : vector<1x4x256xf32> to vector<4x256xf32>
    %c0_577 = arith.constant 0 : index
    %c205 = arith.constant 205 : index
    %649 = vector.load %arg58[%c0_577, %c205] : memref<4x768xf32, #tpu.memory_space<vmem>>, vector<4x256xf32>
    %650 = arith.mulf %648, %649 : vector<4x256xf32>
    %651 = vector.broadcast %646 : vector<4x1xf32> to vector<4x256xf32>
    %652 = arith.addf %651, %650 : vector<4x256xf32>
    %c1_578 = arith.constant 1 : index
    %c0_579 = arith.constant 0 : index
    %c0_580 = arith.constant 0 : index
    %653 = vector.load %arg7[%c1_578, %c0_579, %c0_580] : memref<49x4x256xf32, #tpu.memory_space<vmem>>, vector<1x4x256xf32>
    %654 = vector.shape_cast %653 : vector<1x4x256xf32> to vector<4x256xf32>
    %c0_581 = arith.constant 0 : index
    %c206 = arith.constant 206 : index
    %655 = vector.load %arg58[%c0_581, %c206] : memref<4x768xf32, #tpu.memory_space<vmem>>, vector<4x256xf32>
    %656 = arith.mulf %654, %655 : vector<4x256xf32>
    %657 = arith.addf %652, %656 : vector<4x256xf32>
    %c2_582 = arith.constant 2 : index
    %c0_583 = arith.constant 0 : index
    %c0_584 = arith.constant 0 : index
    %658 = vector.load %arg7[%c2_582, %c0_583, %c0_584] : memref<49x4x256xf32, #tpu.memory_space<vmem>>, vector<1x4x256xf32>
    %659 = vector.shape_cast %658 : vector<1x4x256xf32> to vector<4x256xf32>
    %c0_585 = arith.constant 0 : index
    %c207 = arith.constant 207 : index
    %660 = vector.load %arg58[%c0_585, %c207] : memref<4x768xf32, #tpu.memory_space<vmem>>, vector<4x256xf32>
    %661 = arith.mulf %659, %660 : vector<4x256xf32>
    %662 = arith.addf %657, %661 : vector<4x256xf32>
    %c3_586 = arith.constant 3 : index
    %c0_587 = arith.constant 0 : index
    %c0_588 = arith.constant 0 : index
    %663 = vector.load %arg7[%c3_586, %c0_587, %c0_588] : memref<49x4x256xf32, #tpu.memory_space<vmem>>, vector<1x4x256xf32>
    %664 = vector.shape_cast %663 : vector<1x4x256xf32> to vector<4x256xf32>
    %c0_589 = arith.constant 0 : index
    %c208_590 = arith.constant 208 : index
    %665 = vector.load %arg58[%c0_589, %c208_590] : memref<4x768xf32, #tpu.memory_space<vmem>>, vector<4x256xf32>
    %666 = arith.mulf %664, %665 : vector<4x256xf32>
    %667 = arith.addf %662, %666 : vector<4x256xf32>
    %c4_591 = arith.constant 4 : index
    %c0_592 = arith.constant 0 : index
    %c0_593 = arith.constant 0 : index
    %668 = vector.load %arg7[%c4_591, %c0_592, %c0_593] : memref<49x4x256xf32, #tpu.memory_space<vmem>>, vector<1x4x256xf32>
    %669 = vector.shape_cast %668 : vector<1x4x256xf32> to vector<4x256xf32>
    %c0_594 = arith.constant 0 : index
    %c209 = arith.constant 209 : index
    %670 = vector.load %arg58[%c0_594, %c209] : memref<4x768xf32, #tpu.memory_space<vmem>>, vector<4x256xf32>
    %671 = arith.mulf %669, %670 : vector<4x256xf32>
    %672 = arith.addf %667, %671 : vector<4x256xf32>
    %c5_595 = arith.constant 5 : index
    %c0_596 = arith.constant 0 : index
    %c0_597 = arith.constant 0 : index
    %673 = vector.load %arg7[%c5_595, %c0_596, %c0_597] : memref<49x4x256xf32, #tpu.memory_space<vmem>>, vector<1x4x256xf32>
    %674 = vector.shape_cast %673 : vector<1x4x256xf32> to vector<4x256xf32>
    %c0_598 = arith.constant 0 : index
    %c210 = arith.constant 210 : index
    %675 = vector.load %arg58[%c0_598, %c210] : memref<4x768xf32, #tpu.memory_space<vmem>>, vector<4x256xf32>
    %676 = arith.mulf %674, %675 : vector<4x256xf32>
    %677 = arith.addf %672, %676 : vector<4x256xf32>
    %c6_599 = arith.constant 6 : index
    %c0_600 = arith.constant 0 : index
    %c0_601 = arith.constant 0 : index
    %678 = vector.load %arg7[%c6_599, %c0_600, %c0_601] : memref<49x4x256xf32, #tpu.memory_space<vmem>>, vector<1x4x256xf32>
    %679 = vector.shape_cast %678 : vector<1x4x256xf32> to vector<4x256xf32>
    %c0_602 = arith.constant 0 : index
    %c211 = arith.constant 211 : index
    %680 = vector.load %arg58[%c0_602, %c211] : memref<4x768xf32, #tpu.memory_space<vmem>>, vector<4x256xf32>
    %681 = arith.mulf %679, %680 : vector<4x256xf32>
    %682 = arith.addf %677, %681 : vector<4x256xf32>
    %c7_603 = arith.constant 7 : index
    %c0_604 = arith.constant 0 : index
    %c0_605 = arith.constant 0 : index
    %683 = vector.load %arg7[%c7_603, %c0_604, %c0_605] : memref<49x4x256xf32, #tpu.memory_space<vmem>>, vector<1x4x256xf32>
    %684 = vector.shape_cast %683 : vector<1x4x256xf32> to vector<4x256xf32>
    %c0_606 = arith.constant 0 : index
    %c221 = arith.constant 221 : index
    %685 = vector.load %arg58[%c0_606, %c221] : memref<4x768xf32, #tpu.memory_space<vmem>>, vector<4x256xf32>
    %686 = arith.mulf %684, %685 : vector<4x256xf32>
    %687 = arith.addf %682, %686 : vector<4x256xf32>
    %c8_607 = arith.constant 8 : index
    %c0_608 = arith.constant 0 : index
    %c0_609 = arith.constant 0 : index
    %688 = vector.load %arg7[%c8_607, %c0_608, %c0_609] : memref<49x4x256xf32, #tpu.memory_space<vmem>>, vector<1x4x256xf32>
    %689 = vector.shape_cast %688 : vector<1x4x256xf32> to vector<4x256xf32>
    %c0_610 = arith.constant 0 : index
    %c222_611 = arith.constant 222 : index
    %690 = vector.load %arg58[%c0_610, %c222_611] : memref<4x768xf32, #tpu.memory_space<vmem>>, vector<4x256xf32>
    %691 = arith.mulf %689, %690 : vector<4x256xf32>
    %692 = arith.addf %687, %691 : vector<4x256xf32>
    %c9_612 = arith.constant 9 : index
    %c0_613 = arith.constant 0 : index
    %c0_614 = arith.constant 0 : index
    %693 = vector.load %arg7[%c9_612, %c0_613, %c0_614] : memref<49x4x256xf32, #tpu.memory_space<vmem>>, vector<1x4x256xf32>
    %694 = vector.shape_cast %693 : vector<1x4x256xf32> to vector<4x256xf32>
    %c0_615 = arith.constant 0 : index
    %c223_616 = arith.constant 223 : index
    %695 = vector.load %arg58[%c0_615, %c223_616] : memref<4x768xf32, #tpu.memory_space<vmem>>, vector<4x256xf32>
    %696 = arith.mulf %694, %695 : vector<4x256xf32>
    %697 = arith.addf %692, %696 : vector<4x256xf32>
    %c10_617 = arith.constant 10 : index
    %c0_618 = arith.constant 0 : index
    %c0_619 = arith.constant 0 : index
    %698 = vector.load %arg7[%c10_617, %c0_618, %c0_619] : memref<49x4x256xf32, #tpu.memory_space<vmem>>, vector<1x4x256xf32>
    %699 = vector.shape_cast %698 : vector<1x4x256xf32> to vector<4x256xf32>
    %c0_620 = arith.constant 0 : index
    %c224_621 = arith.constant 224 : index
    %700 = vector.load %arg58[%c0_620, %c224_621] : memref<4x768xf32, #tpu.memory_space<vmem>>, vector<4x256xf32>
    %701 = arith.mulf %699, %700 : vector<4x256xf32>
    %702 = arith.addf %697, %701 : vector<4x256xf32>
    %c11_622 = arith.constant 11 : index
    %c0_623 = arith.constant 0 : index
    %c0_624 = arith.constant 0 : index
    %703 = vector.load %arg7[%c11_622, %c0_623, %c0_624] : memref<49x4x256xf32, #tpu.memory_space<vmem>>, vector<1x4x256xf32>
    %704 = vector.shape_cast %703 : vector<1x4x256xf32> to vector<4x256xf32>
    %c0_625 = arith.constant 0 : index
    %c225_626 = arith.constant 225 : index
    %705 = vector.load %arg58[%c0_625, %c225_626] : memref<4x768xf32, #tpu.memory_space<vmem>>, vector<4x256xf32>
    %706 = arith.mulf %704, %705 : vector<4x256xf32>
    %707 = arith.addf %702, %706 : vector<4x256xf32>
    %c12_627 = arith.constant 12 : index
    %c0_628 = arith.constant 0 : index
    %c0_629 = arith.constant 0 : index
    %708 = vector.load %arg7[%c12_627, %c0_628, %c0_629] : memref<49x4x256xf32, #tpu.memory_space<vmem>>, vector<1x4x256xf32>
    %709 = vector.shape_cast %708 : vector<1x4x256xf32> to vector<4x256xf32>
    %c0_630 = arith.constant 0 : index
    %c226_631 = arith.constant 226 : index
    %710 = vector.load %arg58[%c0_630, %c226_631] : memref<4x768xf32, #tpu.memory_space<vmem>>, vector<4x256xf32>
    %711 = arith.mulf %709, %710 : vector<4x256xf32>
    %712 = arith.addf %707, %711 : vector<4x256xf32>
    %c13_632 = arith.constant 13 : index
    %c0_633 = arith.constant 0 : index
    %c0_634 = arith.constant 0 : index
    %713 = vector.load %arg7[%c13_632, %c0_633, %c0_634] : memref<49x4x256xf32, #tpu.memory_space<vmem>>, vector<1x4x256xf32>
    %714 = vector.shape_cast %713 : vector<1x4x256xf32> to vector<4x256xf32>
    %c0_635 = arith.constant 0 : index
    %c227 = arith.constant 227 : index
    %715 = vector.load %arg58[%c0_635, %c227] : memref<4x768xf32, #tpu.memory_space<vmem>>, vector<4x256xf32>
    %716 = arith.mulf %714, %715 : vector<4x256xf32>
    %717 = arith.addf %712, %716 : vector<4x256xf32>
    %c14_636 = arith.constant 14 : index
    %c0_637 = arith.constant 0 : index
    %c0_638 = arith.constant 0 : index
    %718 = vector.load %arg7[%c14_636, %c0_637, %c0_638] : memref<49x4x256xf32, #tpu.memory_space<vmem>>, vector<1x4x256xf32>
    %719 = vector.shape_cast %718 : vector<1x4x256xf32> to vector<4x256xf32>
    %c0_639 = arith.constant 0 : index
    %c237 = arith.constant 237 : index
    %720 = vector.load %arg58[%c0_639, %c237] : memref<4x768xf32, #tpu.memory_space<vmem>>, vector<4x256xf32>
    %721 = arith.mulf %719, %720 : vector<4x256xf32>
    %722 = arith.addf %717, %721 : vector<4x256xf32>
    %c15_640 = arith.constant 15 : index
    %c0_641 = arith.constant 0 : index
    %c0_642 = arith.constant 0 : index
    %723 = vector.load %arg7[%c15_640, %c0_641, %c0_642] : memref<49x4x256xf32, #tpu.memory_space<vmem>>, vector<1x4x256xf32>
    %724 = vector.shape_cast %723 : vector<1x4x256xf32> to vector<4x256xf32>
    %c0_643 = arith.constant 0 : index
    %c238_644 = arith.constant 238 : index
    %725 = vector.load %arg58[%c0_643, %c238_644] : memref<4x768xf32, #tpu.memory_space<vmem>>, vector<4x256xf32>
    %726 = arith.mulf %724, %725 : vector<4x256xf32>
    %727 = arith.addf %722, %726 : vector<4x256xf32>
    %c16_645 = arith.constant 16 : index
    %c0_646 = arith.constant 0 : index
    %c0_647 = arith.constant 0 : index
    %728 = vector.load %arg7[%c16_645, %c0_646, %c0_647] : memref<49x4x256xf32, #tpu.memory_space<vmem>>, vector<1x4x256xf32>
    %729 = vector.shape_cast %728 : vector<1x4x256xf32> to vector<4x256xf32>
    %c0_648 = arith.constant 0 : index
    %c239_649 = arith.constant 239 : index
    %730 = vector.load %arg58[%c0_648, %c239_649] : memref<4x768xf32, #tpu.memory_space<vmem>>, vector<4x256xf32>
    %731 = arith.mulf %729, %730 : vector<4x256xf32>
    %732 = arith.addf %727, %731 : vector<4x256xf32>
    %c17_650 = arith.constant 17 : index
    %c0_651 = arith.constant 0 : index
    %c0_652 = arith.constant 0 : index
    %733 = vector.load %arg7[%c17_650, %c0_651, %c0_652] : memref<49x4x256xf32, #tpu.memory_space<vmem>>, vector<1x4x256xf32>
    %734 = vector.shape_cast %733 : vector<1x4x256xf32> to vector<4x256xf32>
    %c0_653 = arith.constant 0 : index
    %c240_654 = arith.constant 240 : index
    %735 = vector.load %arg58[%c0_653, %c240_654] : memref<4x768xf32, #tpu.memory_space<vmem>>, vector<4x256xf32>
    %736 = arith.mulf %734, %735 : vector<4x256xf32>
    %737 = arith.addf %732, %736 : vector<4x256xf32>
    %c18_655 = arith.constant 18 : index
    %c0_656 = arith.constant 0 : index
    %c0_657 = arith.constant 0 : index
    %738 = vector.load %arg7[%c18_655, %c0_656, %c0_657] : memref<49x4x256xf32, #tpu.memory_space<vmem>>, vector<1x4x256xf32>
    %739 = vector.shape_cast %738 : vector<1x4x256xf32> to vector<4x256xf32>
    %c0_658 = arith.constant 0 : index
    %c241_659 = arith.constant 241 : index
    %740 = vector.load %arg58[%c0_658, %c241_659] : memref<4x768xf32, #tpu.memory_space<vmem>>, vector<4x256xf32>
    %741 = arith.mulf %739, %740 : vector<4x256xf32>
    %742 = arith.addf %737, %741 : vector<4x256xf32>
    %c19_660 = arith.constant 19 : index
    %c0_661 = arith.constant 0 : index
    %c0_662 = arith.constant 0 : index
    %743 = vector.load %arg7[%c19_660, %c0_661, %c0_662] : memref<49x4x256xf32, #tpu.memory_space<vmem>>, vector<1x4x256xf32>
    %744 = vector.shape_cast %743 : vector<1x4x256xf32> to vector<4x256xf32>
    %c0_663 = arith.constant 0 : index
    %c242_664 = arith.constant 242 : index
    %745 = vector.load %arg58[%c0_663, %c242_664] : memref<4x768xf32, #tpu.memory_space<vmem>>, vector<4x256xf32>
    %746 = arith.mulf %744, %745 : vector<4x256xf32>
    %747 = arith.addf %742, %746 : vector<4x256xf32>
    %c20_665 = arith.constant 20 : index
    %c0_666 = arith.constant 0 : index
    %c0_667 = arith.constant 0 : index
    %748 = vector.load %arg7[%c20_665, %c0_666, %c0_667] : memref<49x4x256xf32, #tpu.memory_space<vmem>>, vector<1x4x256xf32>
    %749 = vector.shape_cast %748 : vector<1x4x256xf32> to vector<4x256xf32>
    %c0_668 = arith.constant 0 : index
    %c243 = arith.constant 243 : index
    %750 = vector.load %arg58[%c0_668, %c243] : memref<4x768xf32, #tpu.memory_space<vmem>>, vector<4x256xf32>
    %751 = arith.mulf %749, %750 : vector<4x256xf32>
    %752 = arith.addf %747, %751 : vector<4x256xf32>
    %c21_669 = arith.constant 21 : index
    %c0_670 = arith.constant 0 : index
    %c0_671 = arith.constant 0 : index
    %753 = vector.load %arg7[%c21_669, %c0_670, %c0_671] : memref<49x4x256xf32, #tpu.memory_space<vmem>>, vector<1x4x256xf32>
    %754 = vector.shape_cast %753 : vector<1x4x256xf32> to vector<4x256xf32>
    %c0_672 = arith.constant 0 : index
    %c253_673 = arith.constant 253 : index
    %755 = vector.load %arg58[%c0_672, %c253_673] : memref<4x768xf32, #tpu.memory_space<vmem>>, vector<4x256xf32>
    %756 = arith.mulf %754, %755 : vector<4x256xf32>
    %757 = arith.addf %752, %756 : vector<4x256xf32>
    %c22_674 = arith.constant 22 : index
    %c0_675 = arith.constant 0 : index
    %c0_676 = arith.constant 0 : index
    %758 = vector.load %arg7[%c22_674, %c0_675, %c0_676] : memref<49x4x256xf32, #tpu.memory_space<vmem>>, vector<1x4x256xf32>
    %759 = vector.shape_cast %758 : vector<1x4x256xf32> to vector<4x256xf32>
    %c0_677 = arith.constant 0 : index
    %c254_678 = arith.constant 254 : index
    %760 = vector.load %arg58[%c0_677, %c254_678] : memref<4x768xf32, #tpu.memory_space<vmem>>, vector<4x256xf32>
    %761 = arith.mulf %759, %760 : vector<4x256xf32>
    %762 = arith.addf %757, %761 : vector<4x256xf32>
    %c23_679 = arith.constant 23 : index
    %c0_680 = arith.constant 0 : index
    %c0_681 = arith.constant 0 : index
    %763 = vector.load %arg7[%c23_679, %c0_680, %c0_681] : memref<49x4x256xf32, #tpu.memory_space<vmem>>, vector<1x4x256xf32>
    %764 = vector.shape_cast %763 : vector<1x4x256xf32> to vector<4x256xf32>
    %c0_682 = arith.constant 0 : index
    %c255_683 = arith.constant 255 : index
    %765 = vector.load %arg58[%c0_682, %c255_683] : memref<4x768xf32, #tpu.memory_space<vmem>>, vector<4x256xf32>
    %766 = arith.mulf %764, %765 : vector<4x256xf32>
    %767 = arith.addf %762, %766 : vector<4x256xf32>
    %c24_684 = arith.constant 24 : index
    %c0_685 = arith.constant 0 : index
    %c0_686 = arith.constant 0 : index
    %768 = vector.load %arg7[%c24_684, %c0_685, %c0_686] : memref<49x4x256xf32, #tpu.memory_space<vmem>>, vector<1x4x256xf32>
    %769 = vector.shape_cast %768 : vector<1x4x256xf32> to vector<4x256xf32>
    %c0_687 = arith.constant 0 : index
    %c256_688 = arith.constant 256 : index
    %770 = vector.load %arg58[%c0_687, %c256_688] : memref<4x768xf32, #tpu.memory_space<vmem>>, vector<4x256xf32>
    %771 = arith.mulf %769, %770 : vector<4x256xf32>
    %772 = arith.addf %767, %771 : vector<4x256xf32>
    %c25 = arith.constant 25 : index
    %c0_689 = arith.constant 0 : index
    %c0_690 = arith.constant 0 : index
    %773 = vector.load %arg7[%c25, %c0_689, %c0_690] : memref<49x4x256xf32, #tpu.memory_space<vmem>>, vector<1x4x256xf32>
    %774 = vector.shape_cast %773 : vector<1x4x256xf32> to vector<4x256xf32>
    %c0_691 = arith.constant 0 : index
    %c257_692 = arith.constant 257 : index
    %775 = vector.load %arg58[%c0_691, %c257_692] : memref<4x768xf32, #tpu.memory_space<vmem>>, vector<4x256xf32>
    %776 = arith.mulf %774, %775 : vector<4x256xf32>
    %777 = arith.addf %772, %776 : vector<4x256xf32>
    %c26 = arith.constant 26 : index
    %c0_693 = arith.constant 0 : index
    %c0_694 = arith.constant 0 : index
    %778 = vector.load %arg7[%c26, %c0_693, %c0_694] : memref<49x4x256xf32, #tpu.memory_space<vmem>>, vector<1x4x256xf32>
    %779 = vector.shape_cast %778 : vector<1x4x256xf32> to vector<4x256xf32>
    %c0_695 = arith.constant 0 : index
    %c258_696 = arith.constant 258 : index
    %780 = vector.load %arg58[%c0_695, %c258_696] : memref<4x768xf32, #tpu.memory_space<vmem>>, vector<4x256xf32>
    %781 = arith.mulf %779, %780 : vector<4x256xf32>
    %782 = arith.addf %777, %781 : vector<4x256xf32>
    %c27 = arith.constant 27 : index
    %c0_697 = arith.constant 0 : index
    %c0_698 = arith.constant 0 : index
    %783 = vector.load %arg7[%c27, %c0_697, %c0_698] : memref<49x4x256xf32, #tpu.memory_space<vmem>>, vector<1x4x256xf32>
    %784 = vector.shape_cast %783 : vector<1x4x256xf32> to vector<4x256xf32>
    %c0_699 = arith.constant 0 : index
    %c259_700 = arith.constant 259 : index
    %785 = vector.load %arg58[%c0_699, %c259_700] : memref<4x768xf32, #tpu.memory_space<vmem>>, vector<4x256xf32>
    %786 = arith.mulf %784, %785 : vector<4x256xf32>
    %787 = arith.addf %782, %786 : vector<4x256xf32>
    %c28 = arith.constant 28 : index
    %c0_701 = arith.constant 0 : index
    %c0_702 = arith.constant 0 : index
    %788 = vector.load %arg7[%c28, %c0_701, %c0_702] : memref<49x4x256xf32, #tpu.memory_space<vmem>>, vector<1x4x256xf32>
    %789 = vector.shape_cast %788 : vector<1x4x256xf32> to vector<4x256xf32>
    %c0_703 = arith.constant 0 : index
    %c269 = arith.constant 269 : index
    %790 = vector.load %arg58[%c0_703, %c269] : memref<4x768xf32, #tpu.memory_space<vmem>>, vector<4x256xf32>
    %791 = arith.mulf %789, %790 : vector<4x256xf32>
    %792 = arith.addf %787, %791 : vector<4x256xf32>
    %c29 = arith.constant 29 : index
    %c0_704 = arith.constant 0 : index
    %c0_705 = arith.constant 0 : index
    %793 = vector.load %arg7[%c29, %c0_704, %c0_705] : memref<49x4x256xf32, #tpu.memory_space<vmem>>, vector<1x4x256xf32>
    %794 = vector.shape_cast %793 : vector<1x4x256xf32> to vector<4x256xf32>
    %c0_706 = arith.constant 0 : index
    %c270_707 = arith.constant 270 : index
    %795 = vector.load %arg58[%c0_706, %c270_707] : memref<4x768xf32, #tpu.memory_space<vmem>>, vector<4x256xf32>
    %796 = arith.mulf %794, %795 : vector<4x256xf32>
    %797 = arith.addf %792, %796 : vector<4x256xf32>
    %c30 = arith.constant 30 : index
    %c0_708 = arith.constant 0 : index
    %c0_709 = arith.constant 0 : index
    %798 = vector.load %arg7[%c30, %c0_708, %c0_709] : memref<49x4x256xf32, #tpu.memory_space<vmem>>, vector<1x4x256xf32>
    %799 = vector.shape_cast %798 : vector<1x4x256xf32> to vector<4x256xf32>
    %c0_710 = arith.constant 0 : index
    %c271_711 = arith.constant 271 : index
    %800 = vector.load %arg58[%c0_710, %c271_711] : memref<4x768xf32, #tpu.memory_space<vmem>>, vector<4x256xf32>
    %801 = arith.mulf %799, %800 : vector<4x256xf32>
    %802 = arith.addf %797, %801 : vector<4x256xf32>
    %c31 = arith.constant 31 : index
    %c0_712 = arith.constant 0 : index
    %c0_713 = arith.constant 0 : index
    %803 = vector.load %arg7[%c31, %c0_712, %c0_713] : memref<49x4x256xf32, #tpu.memory_space<vmem>>, vector<1x4x256xf32>
    %804 = vector.shape_cast %803 : vector<1x4x256xf32> to vector<4x256xf32>
    %c0_714 = arith.constant 0 : index
    %c272_715 = arith.constant 272 : index
    %805 = vector.load %arg58[%c0_714, %c272_715] : memref<4x768xf32, #tpu.memory_space<vmem>>, vector<4x256xf32>
    %806 = arith.mulf %804, %805 : vector<4x256xf32>
    %807 = arith.addf %802, %806 : vector<4x256xf32>
    %c32 = arith.constant 32 : index
    %c0_716 = arith.constant 0 : index
    %c0_717 = arith.constant 0 : index
    %808 = vector.load %arg7[%c32, %c0_716, %c0_717] : memref<49x4x256xf32, #tpu.memory_space<vmem>>, vector<1x4x256xf32>
    %809 = vector.shape_cast %808 : vector<1x4x256xf32> to vector<4x256xf32>
    %c0_718 = arith.constant 0 : index
    %c273_719 = arith.constant 273 : index
    %810 = vector.load %arg58[%c0_718, %c273_719] : memref<4x768xf32, #tpu.memory_space<vmem>>, vector<4x256xf32>
    %811 = arith.mulf %809, %810 : vector<4x256xf32>
    %812 = arith.addf %807, %811 : vector<4x256xf32>
    %c33 = arith.constant 33 : index
    %c0_720 = arith.constant 0 : index
    %c0_721 = arith.constant 0 : index
    %813 = vector.load %arg7[%c33, %c0_720, %c0_721] : memref<49x4x256xf32, #tpu.memory_space<vmem>>, vector<1x4x256xf32>
    %814 = vector.shape_cast %813 : vector<1x4x256xf32> to vector<4x256xf32>
    %c0_722 = arith.constant 0 : index
    %c274_723 = arith.constant 274 : index
    %815 = vector.load %arg58[%c0_722, %c274_723] : memref<4x768xf32, #tpu.memory_space<vmem>>, vector<4x256xf32>
    %816 = arith.mulf %814, %815 : vector<4x256xf32>
    %817 = arith.addf %812, %816 : vector<4x256xf32>
    %c34 = arith.constant 34 : index
    %c0_724 = arith.constant 0 : index
    %c0_725 = arith.constant 0 : index
    %818 = vector.load %arg7[%c34, %c0_724, %c0_725] : memref<49x4x256xf32, #tpu.memory_space<vmem>>, vector<1x4x256xf32>
    %819 = vector.shape_cast %818 : vector<1x4x256xf32> to vector<4x256xf32>
    %c0_726 = arith.constant 0 : index
    %c275 = arith.constant 275 : index
    %820 = vector.load %arg58[%c0_726, %c275] : memref<4x768xf32, #tpu.memory_space<vmem>>, vector<4x256xf32>
    %821 = arith.mulf %819, %820 : vector<4x256xf32>
    %822 = arith.addf %817, %821 : vector<4x256xf32>
    %c35 = arith.constant 35 : index
    %c0_727 = arith.constant 0 : index
    %c0_728 = arith.constant 0 : index
    %823 = vector.load %arg7[%c35, %c0_727, %c0_728] : memref<49x4x256xf32, #tpu.memory_space<vmem>>, vector<1x4x256xf32>
    %824 = vector.shape_cast %823 : vector<1x4x256xf32> to vector<4x256xf32>
    %c0_729 = arith.constant 0 : index
    %c285 = arith.constant 285 : index
    %825 = vector.load %arg58[%c0_729, %c285] : memref<4x768xf32, #tpu.memory_space<vmem>>, vector<4x256xf32>
    %826 = arith.mulf %824, %825 : vector<4x256xf32>
    %827 = arith.addf %822, %826 : vector<4x256xf32>
    %c36 = arith.constant 36 : index
    %c0_730 = arith.constant 0 : index
    %c0_731 = arith.constant 0 : index
    %828 = vector.load %arg7[%c36, %c0_730, %c0_731] : memref<49x4x256xf32, #tpu.memory_space<vmem>>, vector<1x4x256xf32>
    %829 = vector.shape_cast %828 : vector<1x4x256xf32> to vector<4x256xf32>
    %c0_732 = arith.constant 0 : index
    %c286_733 = arith.constant 286 : index
    %830 = vector.load %arg58[%c0_732, %c286_733] : memref<4x768xf32, #tpu.memory_space<vmem>>, vector<4x256xf32>
    %831 = arith.mulf %829, %830 : vector<4x256xf32>
    %832 = arith.addf %827, %831 : vector<4x256xf32>
    %c37 = arith.constant 37 : index
    %c0_734 = arith.constant 0 : index
    %c0_735 = arith.constant 0 : index
    %833 = vector.load %arg7[%c37, %c0_734, %c0_735] : memref<49x4x256xf32, #tpu.memory_space<vmem>>, vector<1x4x256xf32>
    %834 = vector.shape_cast %833 : vector<1x4x256xf32> to vector<4x256xf32>
    %c0_736 = arith.constant 0 : index
    %c287_737 = arith.constant 287 : index
    %835 = vector.load %arg58[%c0_736, %c287_737] : memref<4x768xf32, #tpu.memory_space<vmem>>, vector<4x256xf32>
    %836 = arith.mulf %834, %835 : vector<4x256xf32>
    %837 = arith.addf %832, %836 : vector<4x256xf32>
    %c38 = arith.constant 38 : index
    %c0_738 = arith.constant 0 : index
    %c0_739 = arith.constant 0 : index
    %838 = vector.load %arg7[%c38, %c0_738, %c0_739] : memref<49x4x256xf32, #tpu.memory_space<vmem>>, vector<1x4x256xf32>
    %839 = vector.shape_cast %838 : vector<1x4x256xf32> to vector<4x256xf32>
    %c0_740 = arith.constant 0 : index
    %c288_741 = arith.constant 288 : index
    %840 = vector.load %arg58[%c0_740, %c288_741] : memref<4x768xf32, #tpu.memory_space<vmem>>, vector<4x256xf32>
    %841 = arith.mulf %839, %840 : vector<4x256xf32>
    %842 = arith.addf %837, %841 : vector<4x256xf32>
    %c39 = arith.constant 39 : index
    %c0_742 = arith.constant 0 : index
    %c0_743 = arith.constant 0 : index
    %843 = vector.load %arg7[%c39, %c0_742, %c0_743] : memref<49x4x256xf32, #tpu.memory_space<vmem>>, vector<1x4x256xf32>
    %844 = vector.shape_cast %843 : vector<1x4x256xf32> to vector<4x256xf32>
    %c0_744 = arith.constant 0 : index
    %c289_745 = arith.constant 289 : index
    %845 = vector.load %arg58[%c0_744, %c289_745] : memref<4x768xf32, #tpu.memory_space<vmem>>, vector<4x256xf32>
    %846 = arith.mulf %844, %845 : vector<4x256xf32>
    %847 = arith.addf %842, %846 : vector<4x256xf32>
    %c40 = arith.constant 40 : index
    %c0_746 = arith.constant 0 : index
    %c0_747 = arith.constant 0 : index
    %848 = vector.load %arg7[%c40, %c0_746, %c0_747] : memref<49x4x256xf32, #tpu.memory_space<vmem>>, vector<1x4x256xf32>
    %849 = vector.shape_cast %848 : vector<1x4x256xf32> to vector<4x256xf32>
    %c0_748 = arith.constant 0 : index
    %c290_749 = arith.constant 290 : index
    %850 = vector.load %arg58[%c0_748, %c290_749] : memref<4x768xf32, #tpu.memory_space<vmem>>, vector<4x256xf32>
    %851 = arith.mulf %849, %850 : vector<4x256xf32>
    %852 = arith.addf %847, %851 : vector<4x256xf32>
    %c41 = arith.constant 41 : index
    %c0_750 = arith.constant 0 : index
    %c0_751 = arith.constant 0 : index
    %853 = vector.load %arg7[%c41, %c0_750, %c0_751] : memref<49x4x256xf32, #tpu.memory_space<vmem>>, vector<1x4x256xf32>
    %854 = vector.shape_cast %853 : vector<1x4x256xf32> to vector<4x256xf32>
    %c0_752 = arith.constant 0 : index
    %c291 = arith.constant 291 : index
    %855 = vector.load %arg58[%c0_752, %c291] : memref<4x768xf32, #tpu.memory_space<vmem>>, vector<4x256xf32>
    %856 = arith.mulf %854, %855 : vector<4x256xf32>
    %857 = arith.addf %852, %856 : vector<4x256xf32>
    %c42 = arith.constant 42 : index
    %c0_753 = arith.constant 0 : index
    %c0_754 = arith.constant 0 : index
    %858 = vector.load %arg7[%c42, %c0_753, %c0_754] : memref<49x4x256xf32, #tpu.memory_space<vmem>>, vector<1x4x256xf32>
    %859 = vector.shape_cast %858 : vector<1x4x256xf32> to vector<4x256xf32>
    %c0_755 = arith.constant 0 : index
    %c301 = arith.constant 301 : index
    %860 = vector.load %arg58[%c0_755, %c301] : memref<4x768xf32, #tpu.memory_space<vmem>>, vector<4x256xf32>
    %861 = arith.mulf %859, %860 : vector<4x256xf32>
    %862 = arith.addf %857, %861 : vector<4x256xf32>
    %c43 = arith.constant 43 : index
    %c0_756 = arith.constant 0 : index
    %c0_757 = arith.constant 0 : index
    %863 = vector.load %arg7[%c43, %c0_756, %c0_757] : memref<49x4x256xf32, #tpu.memory_space<vmem>>, vector<1x4x256xf32>
    %864 = vector.shape_cast %863 : vector<1x4x256xf32> to vector<4x256xf32>
    %c0_758 = arith.constant 0 : index
    %c302 = arith.constant 302 : index
    %865 = vector.load %arg58[%c0_758, %c302] : memref<4x768xf32, #tpu.memory_space<vmem>>, vector<4x256xf32>
    %866 = arith.mulf %864, %865 : vector<4x256xf32>
    %867 = arith.addf %862, %866 : vector<4x256xf32>
    %c44 = arith.constant 44 : index
    %c0_759 = arith.constant 0 : index
    %c0_760 = arith.constant 0 : index
    %868 = vector.load %arg7[%c44, %c0_759, %c0_760] : memref<49x4x256xf32, #tpu.memory_space<vmem>>, vector<1x4x256xf32>
    %869 = vector.shape_cast %868 : vector<1x4x256xf32> to vector<4x256xf32>
    %c0_761 = arith.constant 0 : index
    %c303 = arith.constant 303 : index
    %870 = vector.load %arg58[%c0_761, %c303] : memref<4x768xf32, #tpu.memory_space<vmem>>, vector<4x256xf32>
    %871 = arith.mulf %869, %870 : vector<4x256xf32>
    %872 = arith.addf %867, %871 : vector<4x256xf32>
    %c45 = arith.constant 45 : index
    %c0_762 = arith.constant 0 : index
    %c0_763 = arith.constant 0 : index
    %873 = vector.load %arg7[%c45, %c0_762, %c0_763] : memref<49x4x256xf32, #tpu.memory_space<vmem>>, vector<1x4x256xf32>
    %874 = vector.shape_cast %873 : vector<1x4x256xf32> to vector<4x256xf32>
    %c0_764 = arith.constant 0 : index
    %c304_765 = arith.constant 304 : index
    %875 = vector.load %arg58[%c0_764, %c304_765] : memref<4x768xf32, #tpu.memory_space<vmem>>, vector<4x256xf32>
    %876 = arith.mulf %874, %875 : vector<4x256xf32>
    %877 = arith.addf %872, %876 : vector<4x256xf32>
    %c46 = arith.constant 46 : index
    %c0_766 = arith.constant 0 : index
    %c0_767 = arith.constant 0 : index
    %878 = vector.load %arg7[%c46, %c0_766, %c0_767] : memref<49x4x256xf32, #tpu.memory_space<vmem>>, vector<1x4x256xf32>
    %879 = vector.shape_cast %878 : vector<1x4x256xf32> to vector<4x256xf32>
    %c0_768 = arith.constant 0 : index
    %c305 = arith.constant 305 : index
    %880 = vector.load %arg58[%c0_768, %c305] : memref<4x768xf32, #tpu.memory_space<vmem>>, vector<4x256xf32>
    %881 = arith.mulf %879, %880 : vector<4x256xf32>
    %882 = arith.addf %877, %881 : vector<4x256xf32>
    %c47 = arith.constant 47 : index
    %c0_769 = arith.constant 0 : index
    %c0_770 = arith.constant 0 : index
    %883 = vector.load %arg7[%c47, %c0_769, %c0_770] : memref<49x4x256xf32, #tpu.memory_space<vmem>>, vector<1x4x256xf32>
    %884 = vector.shape_cast %883 : vector<1x4x256xf32> to vector<4x256xf32>
    %c0_771 = arith.constant 0 : index
    %c306 = arith.constant 306 : index
    %885 = vector.load %arg58[%c0_771, %c306] : memref<4x768xf32, #tpu.memory_space<vmem>>, vector<4x256xf32>
    %886 = arith.mulf %884, %885 : vector<4x256xf32>
    %887 = arith.addf %882, %886 : vector<4x256xf32>
    %c48 = arith.constant 48 : index
    %c0_772 = arith.constant 0 : index
    %c0_773 = arith.constant 0 : index
    %888 = vector.load %arg7[%c48, %c0_772, %c0_773] : memref<49x4x256xf32, #tpu.memory_space<vmem>>, vector<1x4x256xf32>
    %889 = vector.shape_cast %888 : vector<1x4x256xf32> to vector<4x256xf32>
    %c0_774 = arith.constant 0 : index
    %c307 = arith.constant 307 : index
    %890 = vector.load %arg58[%c0_774, %c307] : memref<4x768xf32, #tpu.memory_space<vmem>>, vector<4x256xf32>
    %891 = arith.mulf %889, %890 : vector<4x256xf32>
    %892 = arith.addf %887, %891 : vector<4x256xf32>
    %893 = arith.mulf %644, %892 : vector<4x256xf32>
    %c0_775 = arith.constant 0 : index
    %c0_776 = arith.constant 0 : index
    %894 = vector.load %arg52[%c0_775, %c0_776] : memref<12x1xf32, #tpu.memory_space<vmem>>, vector<12x1xf32>
    %c0_777 = arith.constant 0 : index
    %c0_778 = arith.constant 0 : index
    %895 = vector.load %arg53[%c0_777, %c0_778] : memref<12x4xf32, #tpu.memory_space<vmem>>, vector<12x4xf32>
    %896 = arith.mulf %45, %201 : vector<4x256xf32>
    %cst_779 = arith.constant dense<0.000000e+00> : vector<12x256xf32>
    %897 = tpu.matmul %895, %896, %cst_779 {dimension_numbers = #tpu.dot_dimension_numbers<[1], [0], [0], [1], [0, 0, 1, 1], [], []>} : vector<12x4xf32>, vector<4x256xf32>, vector<12x256xf32> -> vector<12x256xf32>
    %898 = vector.broadcast %894 : vector<12x1xf32> to vector<12x256xf32>
    %899 = arith.addf %898, %897 : vector<12x256xf32>
    %c0_780 = arith.constant 0 : index
    %c0_781 = arith.constant 0 : index
    %900 = vector.load %arg54[%c0_780, %c0_781] : memref<12x4xf32, #tpu.memory_space<vmem>>, vector<12x4xf32>
    %901 = arith.mulf %50, %467 : vector<4x256xf32>
    %cst_782 = arith.constant dense<0.000000e+00> : vector<12x256xf32>
    %902 = tpu.matmul %900, %901, %cst_782 {dimension_numbers = #tpu.dot_dimension_numbers<[1], [0], [0], [1], [0, 0, 1, 1], [], []>} : vector<12x4xf32>, vector<4x256xf32>, vector<12x256xf32> -> vector<12x256xf32>
    %903 = arith.addf %899, %902 : vector<12x256xf32>
    %c0_783 = arith.constant 0 : index
    %c0_784 = arith.constant 0 : index
    %904 = vector.load %arg55[%c0_783, %c0_784] : memref<12x4xf32, #tpu.memory_space<vmem>>, vector<12x4xf32>
    %905 = arith.mulf %55, %893 : vector<4x256xf32>
    %cst_785 = arith.constant dense<0.000000e+00> : vector<12x256xf32>
    %906 = tpu.matmul %904, %905, %cst_785 {dimension_numbers = #tpu.dot_dimension_numbers<[1], [0], [0], [1], [0, 0, 1, 1], [], []>} : vector<12x4xf32>, vector<4x256xf32>, vector<12x256xf32> -> vector<12x256xf32>
    %907 = arith.addf %903, %906 : vector<12x256xf32>
    %c0_786 = arith.constant 0 : index
    %c0_787 = arith.constant 0 : index
    %908 = vector.load %arg56[%c0_786, %c0_787] : memref<12x1xf32, #tpu.memory_space<vmem>>, vector<12x1xf32>
    %909 = vector.broadcast %908 : vector<12x1xf32> to vector<12x256xf32>
    %910 = arith.mulf %907, %909 : vector<12x256xf32>
    %c0_788 = arith.constant 0 : index
    %c0_789 = arith.constant 0 : index
    %c0_790 = arith.constant 0 : index
    %911 = vector.load %arg1[%c0_788, %c0_789, %c0_790] : memref<1x12x256xf32, #tpu.memory_space<vmem>>, vector<1x12x256xf32>
    %912 = vector.shape_cast %911 : vector<1x12x256xf32> to vector<12x256xf32>
    %913 = arith.addf %910, %912 : vector<12x256xf32>
    %c0_791 = arith.constant 0 : index
    %c0_792 = arith.constant 0 : index
    %c0_793 = arith.constant 0 : index
    %914 = vector.load %arg57[%c0_791, %c0_792, %c0_793] : memref<1x12x256xf32, #tpu.memory_space<vmem>>, vector<1x12x256xf32>
    %915 = vector.shape_cast %914 : vector<1x12x256xf32> to vector<12x256xf32>
    %916 = vector.shape_cast %913 : vector<12x256xf32> to vector<1x12x256xf32>
    tpu.vector_store %arg57[%c0_791, %c0_792, %c0_793], %916 {strides = array<i32>} : memref<1x12x256xf32, #tpu.memory_space<vmem>>, vector<1x12x256xf32>,
    return
  }
  func.func @transform_0(%arg0: i32) -> (i32, i32, i32) {
    %c0_i32 = arith.constant 0 : i32
    %c0_i32_0 = arith.constant 0 : i32
    %c0_i32_1 = arith.constant 0 : i32
    return %arg0, %c0_i32, %c0_i32_0 : i32, i32, i32
  }
  func.func @transform_1(%arg0: i32) -> (i32, i32) {
    %c0_i32 = arith.constant 0 : i32
    %c0_i32_0 = arith.constant 0 : i32
    %c0_i32_1 = arith.constant 0 : i32
    return %c0_i32, %c0_i32_0 : i32, i32
  }
  func.func @transform_2(%arg0: i32) -> (i32, i32, i32) {
    %c0_i32 = arith.constant 0 : i32
    %c0_i32_0 = arith.constant 0 : i32
    %c0_i32_1 = arith.constant 0 : i32
    %c0_i32_2 = arith.constant 0 : i32
    return %c0_i32, %c0_i32_0, %c0_i32_1 : i32, i32, i32
  }
  func.func @transform_3(%arg0: i32) -> (i32, i32) {
    %c0_i32 = arith.constant 0 : i32
    %c0_i32_0 = arith.constant 0 : i32
    %c0_i32_1 = arith.constant 0 : i32
    return %c0_i32, %c0_i32_0 : i32, i32
  }
  func.func @transform_4(%arg0: i32) -> (i32, i32, i32) {
    %c0_i32 = arith.constant 0 : i32
    %c0_i32_0 = arith.constant 0 : i32
    %c0_i32_1 = arith.constant 0 : i32
    %c0_i32_2 = arith.constant 0 : i32
    return %c0_i32, %c0_i32_0, %c0_i32_1 : i32, i32, i32
  }
  func.func @transform_5(%arg0: i32) -> (i32, i32) {
    %c0_i32 = arith.constant 0 : i32
    %c0_i32_0 = arith.constant 0 : i32
    %c0_i32_1 = arith.constant 0 : i32
    return %c0_i32, %c0_i32_0 : i32, i32
  }
  func.func @transform_6(%arg0: i32) -> (i32, i32, i32) {
    %c0_i32 = arith.constant 0 : i32
    %c0_i32_0 = arith.constant 0 : i32
    %c0_i32_1 = arith.constant 0 : i32
    %c0_i32_2 = arith.constant 0 : i32
    return %c0_i32, %c0_i32_0, %c0_i32_1 : i32, i32, i32
  }
  func.func @transform_7(%arg0: i32) -> (i32, i32) {
    %c0_i32 = arith.constant 0 : i32
    %c0_i32_0 = arith.constant 0 : i32
    %c0_i32_1 = arith.constant 0 : i32
    return %c0_i32, %c0_i32_0 : i32, i32
  }
  func.func @transform_8(%arg0: i32) -> (i32, i32, i32) {
    %c0_i32 = arith.constant 0 : i32
    %c0_i32_0 = arith.constant 0 : i32
    %c0_i32_1 = arith.constant 0 : i32
    %c0_i32_2 = arith.constant 0 : i32
    return %c0_i32, %c0_i32_0, %c0_i32_1 : i32, i32, i32
  }
  func.func @transform_9(%arg0: i32) -> (i32, i32) {
    %c0_i32 = arith.constant 0 : i32
    %c0_i32_0 = arith.constant 0 : i32
    %c0_i32_1 = arith.constant 0 : i32
    return %c0_i32, %c0_i32_0 : i32, i32
  }
  func.func @transform_10(%arg0: i32) -> (i32, i32, i32) {
    %c0_i32 = arith.constant 0 : i32
    %c0_i32_0 = arith.constant 0 : i32
    %c0_i32_1 = arith.constant 0 : i32
    %c0_i32_2 = arith.constant 0 : i32
    return %c0_i32, %c0_i32_0, %c0_i32_1 : i32, i32, i32
  }
  func.func @transform_11(%arg0: i32) -> (i32, i32) {
    %c0_i32 = arith.constant 0 : i32
    %c0_i32_0 = arith.constant 0 : i32
    %c0_i32_1 = arith.constant 0 : i32
    return %c0_i32, %c0_i32_0 : i32, i32
  }
  func.func @transform_12(%arg0: i32) -> (i32, i32, i32) {
    %c0_i32 = arith.constant 0 : i32
    %c0_i32_0 = arith.constant 0 : i32
    %c0_i32_1 = arith.constant 0 : i32
    %c0_i32_2 = arith.constant 0 : i32
    return %c0_i32, %c0_i32_0, %c0_i32_1 : i32, i32, i32
  }
  func.func @transform_13(%arg0: i32) -> (i32, i32) {
    %c0_i32 = arith.constant 0 : i32
    %c0_i32_0 = arith.constant 0 : i32
    %c0_i32_1 = arith.constant 0 : i32
    return %c0_i32, %c0_i32_0 : i32, i32
  }
  func.func @transform_14(%arg0: i32) -> (i32, i32, i32) {
    %c0_i32 = arith.constant 0 : i32
    %c0_i32_0 = arith.constant 0 : i32
    %c0_i32_1 = arith.constant 0 : i32
    %c0_i32_2 = arith.constant 0 : i32
    return %c0_i32, %c0_i32_0, %c0_i32_1 : i32, i32, i32
  }
  func.func @transform_15(%arg0: i32) -> (i32, i32) {
    %c0_i32 = arith.constant 0 : i32
    %c0_i32_0 = arith.constant 0 : i32
    %c0_i32_1 = arith.constant 0 : i32
    return %c0_i32, %c0_i32_0 : i32, i32
  }
  func.func @transform_16(%arg0: i32) -> (i32, i32) {
    %c0_i32 = arith.constant 0 : i32
    %c0_i32_0 = arith.constant 0 : i32
    %c0_i32_1 = arith.constant 0 : i32
    return %c0_i32, %c0_i32_0 : i32, i32
  }
  func.func @transform_17(%arg0: i32) -> (i32, i32) {
    %c0_i32 = arith.constant 0 : i32
    %c0_i32_0 = arith.constant 0 : i32
    %c0_i32_1 = arith.constant 0 : i32
    return %c0_i32, %c0_i32_0 : i32, i32
  }
  func.func @transform_18(%arg0: i32) -> (i32, i32, i32) {
    %c0_i32 = arith.constant 0 : i32
    %c0_i32_0 = arith.constant 0 : i32
    %c0_i32_1 = arith.constant 0 : i32
    %c0_i32_2 = arith.constant 0 : i32
    return %c0_i32, %c0_i32_0, %c0_i32_1 : i32, i32, i32
  }
  func.func @transform_19(%arg0: i32) -> (i32, i32) {
    %c0_i32 = arith.constant 0 : i32
    %c0_i32_0 = arith.constant 0 : i32
    %c0_i32_1 = arith.constant 0 : i32
    return %c0_i32, %c0_i32_0 : i32, i32
  }
  func.func @transform_20(%arg0: i32) -> (i32, i32, i32) {
    %c0_i32 = arith.constant 0 : i32
    %c0_i32_0 = arith.constant 0 : i32
    %c0_i32_1 = arith.constant 0 : i32
    %c0_i32_2 = arith.constant 0 : i32
    return %c0_i32, %c0_i32_0, %c0_i32_1 : i32, i32, i32
  }
  func.func @transform_21(%arg0: i32) -> (i32, i32) {
    %c0_i32 = arith.constant 0 : i32
    %c0_i32_0 = arith.constant 0 : i32
    %c0_i32_1 = arith.constant 0 : i32
    return %c0_i32, %c0_i32_0 : i32, i32
  }
  func.func @transform_22(%arg0: i32) -> (i32, i32, i32) {
    %c0_i32 = arith.constant 0 : i32
    %c0_i32_0 = arith.constant 0 : i32
    %c0_i32_1 = arith.constant 0 : i32
    %c0_i32_2 = arith.constant 0 : i32
    return %c0_i32, %c0_i32_0, %c0_i32_1 : i32, i32, i32
  }
  func.func @transform_23(%arg0: i32) -> (i32, i32) {
    %c0_i32 = arith.constant 0 : i32
    %c0_i32_0 = arith.constant 0 : i32
    %c0_i32_1 = arith.constant 0 : i32
    return %c0_i32, %c0_i32_0 : i32, i32
  }
  func.func @transform_24(%arg0: i32) -> (i32, i32, i32) {
    %c0_i32 = arith.constant 0 : i32
    %c0_i32_0 = arith.constant 0 : i32
    %c0_i32_1 = arith.constant 0 : i32
    %c0_i32_2 = arith.constant 0 : i32
    return %c0_i32, %c0_i32_0, %c0_i32_1 : i32, i32, i32
  }
  func.func @transform_25(%arg0: i32) -> (i32, i32) {
    %c0_i32 = arith.constant 0 : i32
    %c0_i32_0 = arith.constant 0 : i32
    %c0_i32_1 = arith.constant 0 : i32
    return %c0_i32, %c0_i32_0 : i32, i32
  }
  func.func @transform_26(%arg0: i32) -> (i32, i32) {
    %c0_i32 = arith.constant 0 : i32
    %c0_i32_0 = arith.constant 0 : i32
    %c0_i32_1 = arith.constant 0 : i32
    return %c0_i32, %c0_i32_0 : i32, i32
  }
  func.func @transform_27(%arg0: i32) -> (i32, i32) {
    %c0_i32 = arith.constant 0 : i32
    %c0_i32_0 = arith.constant 0 : i32
    %c0_i32_1 = arith.constant 0 : i32
    return %c0_i32, %c0_i32_0 : i32, i32
  }
  func.func @transform_28(%arg0: i32) -> (i32, i32, i32) {
    %c0_i32 = arith.constant 0 : i32
    %c0_i32_0 = arith.constant 0 : i32
    %c0_i32_1 = arith.constant 0 : i32
    %c0_i32_2 = arith.constant 0 : i32
    return %c0_i32, %c0_i32_0, %c0_i32_1 : i32, i32, i32
  }
  func.func @transform_29(%arg0: i32) -> (i32, i32) {
    %c0_i32 = arith.constant 0 : i32
    %c0_i32_0 = arith.constant 0 : i32
    %c0_i32_1 = arith.constant 0 : i32
    return %c0_i32, %c0_i32_0 : i32, i32
  }
  func.func @transform_30(%arg0: i32) -> (i32, i32, i32) {
    %c0_i32 = arith.constant 0 : i32
    %c0_i32_0 = arith.constant 0 : i32
    %c0_i32_1 = arith.constant 0 : i32
    %c0_i32_2 = arith.constant 0 : i32
    return %c0_i32, %c0_i32_0, %c0_i32_1 : i32, i32, i32
  }
  func.func @transform_31(%arg0: i32) -> (i32, i32) {
    %c0_i32 = arith.constant 0 : i32
    %c0_i32_0 = arith.constant 0 : i32
    %c0_i32_1 = arith.constant 0 : i32
    return %c0_i32, %c0_i32_0 : i32, i32
  }
  func.func @transform_32(%arg0: i32) -> (i32, i32, i32) {
    %c0_i32 = arith.constant 0 : i32
    %c0_i32_0 = arith.constant 0 : i32
    %c0_i32_1 = arith.constant 0 : i32
    %c0_i32_2 = arith.constant 0 : i32
    return %c0_i32, %c0_i32_0, %c0_i32_1 : i32, i32, i32
  }
  func.func @transform_33(%arg0: i32) -> (i32, i32) {
    %c0_i32 = arith.constant 0 : i32
    %c0_i32_0 = arith.constant 0 : i32
    %c0_i32_1 = arith.constant 0 : i32
    return %c0_i32, %c0_i32_0 : i32, i32
  }
  func.func @transform_34(%arg0: i32) -> (i32, i32, i32) {
    %c0_i32 = arith.constant 0 : i32
    %c0_i32_0 = arith.constant 0 : i32
    %c0_i32_1 = arith.constant 0 : i32
    %c0_i32_2 = arith.constant 0 : i32
    return %c0_i32, %c0_i32_0, %c0_i32_1 : i32, i32, i32
  }
  func.func @transform_35(%arg0: i32) -> (i32, i32) {
    %c0_i32 = arith.constant 0 : i32
    %c0_i32_0 = arith.constant 0 : i32
    %c0_i32_1 = arith.constant 0 : i32
    return %c0_i32, %c0_i32_0 : i32, i32
  }
  func.func @transform_36(%arg0: i32) -> (i32, i32) {
    %c0_i32 = arith.constant 0 : i32
    %c0_i32_0 = arith.constant 0 : i32
    %c0_i32_1 = arith.constant 0 : i32
    return %c0_i32, %c0_i32_0 : i32, i32
  }
  func.func @transform_37(%arg0: i32) -> (i32, i32) {
    %c0_i32 = arith.constant 0 : i32
    %c0_i32_0 = arith.constant 0 : i32
    %c0_i32_1 = arith.constant 0 : i32
    return %c0_i32, %c0_i32_0 : i32, i32
  }
  func.func @transform_38(%arg0: i32) -> (i32, i32) {
    %c0_i32 = arith.constant 0 : i32
    %c0_i32_0 = arith.constant 0 : i32
    %c0_i32_1 = arith.constant 0 : i32
    return %c0_i32, %c0_i32_0 : i32, i32
  }
  func.func @transform_39(%arg0: i32) -> (i32, i32) {
    %c0_i32 = arith.constant 0 : i32
    %c0_i32_0 = arith.constant 0 : i32
    %c0_i32_1 = arith.constant 0 : i32
    return %c0_i32, %c0_i32_0 : i32, i32
  }
  func.func @transform_40(%arg0: i32) -> (i32, i32) {
    %c0_i32 = arith.constant 0 : i32
    %c0_i32_0 = arith.constant 0 : i32
    %c0_i32_1 = arith.constant 0 : i32
    return %c0_i32, %c0_i32_0 : i32, i32
  }
  func.func @transform_41(%arg0: i32) -> (i32, i32) {
    %c0_i32 = arith.constant 0 : i32
    %c0_i32_0 = arith.constant 0 : i32
    %c0_i32_1 = arith.constant 0 : i32
    return %c0_i32, %c0_i32_0 : i32, i32
  }
  func.func @transform_42(%arg0: i32) -> (i32, i32) {
    %c0_i32 = arith.constant 0 : i32
    %c0_i32_0 = arith.constant 0 : i32
    %c0_i32_1 = arith.constant 0 : i32
    return %c0_i32, %c0_i32_0 : i32, i32
  }
  func.func @transform_43(%arg0: i32) -> (i32, i32) {
    %c0_i32 = arith.constant 0 : i32
    %c0_i32_0 = arith.constant 0 : i32
    %c0_i32_1 = arith.constant 0 : i32
    return %c0_i32, %c0_i32_0 : i32, i32
  }
  func.func @transform_44(%arg0: i32) -> (i32, i32) {
    %c0_i32 = arith.constant 0 : i32
    %c0_i32_0 = arith.constant 0 : i32
    %c0_i32_1 = arith.constant 0 : i32
    return %c0_i32, %c0_i32_0 : i32, i32
  }
  func.func @transform_45(%arg0: i32) -> (i32, i32) {
    %c0_i32 = arith.constant 0 : i32
    %c0_i32_0 = arith.constant 0 : i32
    %c0_i32_1 = arith.constant 0 : i32
    return %c0_i32, %c0_i32_0 : i32, i32
  }
  func.func @transform_46(%arg0: i32) -> (i32, i32) {
    %c0_i32 = arith.constant 0 : i32
    %c0_i32_0 = arith.constant 0 : i32
    %c0_i32_1 = arith.constant 0 : i32
    return %c0_i32, %c0_i32_0 : i32, i32
  }
  func.func @transform_47(%arg0: i32) -> (i32, i32) {
    %c0_i32 = arith.constant 0 : i32
    %c0_i32_0 = arith.constant 0 : i32
    %c0_i32_1 = arith.constant 0 : i32
    return %c0_i32, %c0_i32_0 : i32, i32
  }
  func.func @transform_48(%arg0: i32) -> (i32, i32) {
    %c0_i32 = arith.constant 0 : i32
    %c0_i32_0 = arith.constant 0 : i32
    %c0_i32_1 = arith.constant 0 : i32
    return %c0_i32, %c0_i32_0 : i32, i32
  }
  func.func @transform_49(%arg0: i32) -> (i32, i32) {
    %c0_i32 = arith.constant 0 : i32
    %c0_i32_0 = arith.constant 0 : i32
    %c0_i32_1 = arith.constant 0 : i32
    return %c0_i32, %c0_i32_0 : i32, i32
  }
  func.func @transform_50(%arg0: i32) -> (i32, i32) {
    %c0_i32 = arith.constant 0 : i32
    %c0_i32_0 = arith.constant 0 : i32
    %c0_i32_1 = arith.constant 0 : i32
    return %c0_i32, %c0_i32_0 : i32, i32
  }
  func.func @transform_51(%arg0: i32) -> (i32, i32) {
    %c0_i32 = arith.constant 0 : i32
    %c0_i32_0 = arith.constant 0 : i32
    %c0_i32_1 = arith.constant 0 : i32
    return %c0_i32, %c0_i32_0 : i32, i32
  }
  func.func @transform_52(%arg0: i32) -> (i32, i32) {
    %c0_i32 = arith.constant 0 : i32
    %c0_i32_0 = arith.constant 0 : i32
    %c0_i32_1 = arith.constant 0 : i32
    return %c0_i32, %c0_i32_0 : i32, i32
  }
  func.func @transform_53(%arg0: i32) -> (i32, i32) {
    %c0_i32 = arith.constant 0 : i32
    %c0_i32_0 = arith.constant 0 : i32
    %c0_i32_1 = arith.constant 0 : i32
    return %c0_i32, %c0_i32_0 : i32, i32
  }
  func.func @transform_54(%arg0: i32) -> (i32, i32) {
    %c0_i32 = arith.constant 0 : i32
    %c0_i32_0 = arith.constant 0 : i32
    %c0_i32_1 = arith.constant 0 : i32
    return %c0_i32, %c0_i32_0 : i32, i32
  }
  func.func @transform_55(%arg0: i32) -> (i32, i32) {
    %c0_i32 = arith.constant 0 : i32
    %c0_i32_0 = arith.constant 0 : i32
    %c0_i32_1 = arith.constant 0 : i32
    return %c0_i32, %c0_i32_0 : i32, i32
  }
  func.func @transform_56(%arg0: i32) -> (i32, i32, i32) {
    %c0_i32 = arith.constant 0 : i32
    %c0_i32_0 = arith.constant 0 : i32
    %c0_i32_1 = arith.constant 0 : i32
    return %arg0, %c0_i32, %c0_i32_0 : i32, i32, i32
  }
}

</mosaic_0001>

<llo_original>
// kernel: mlda_pallas.1
$region0: #{mlda_pallas.1}
  #allocation0 [shape = 'u32[]', space=smem, size = 0x4, offset = 0x4, fixed_abs, tag = 'smem constant byte address 0x4 - core index']
  #allocation1 [shape = 'u32[144,128]{1,0:T(1,128)}', space=vmem, size = 0x12000, scoped, tag = 'internal scratch']
  #allocation2 [shape = 'f32[4,768]{1,0:T(4,128)}', space=vmem, size = 0x3000, scoped, tag = 'scratch operand']
  %s0 = inlined_call_operand.smem [shape: u32[57], index: -1, kind: input, shape index: {}]
  %s1 = sld [smem:[%s0]]
  %s2 = scalar_lea.smem %s0, 1
  %s3 = sld [smem:[%s2]]
  %s4 = scalar_lea.smem %s0, 2
  %s5 = sld [smem:[%s4]]
  %s6 = scalar_lea.smem %s0, 3
  %s7 = sld [smem:[%s6]]
  %s8 = scalar_lea.smem %s0, 4
  %s9 = sld [smem:[%s8]]
  %s10 = scalar_lea.smem %s0, 5
  %s11 = sld [smem:[%s10]]
  %s12 = scalar_lea.smem %s0, 6
  %s13 = sld [smem:[%s12]]
  %s14 = scalar_lea.smem %s0, 7
  %s15 = sld [smem:[%s14]]
  %s16 = scalar_lea.smem %s0, 8
  %s17 = sld [smem:[%s16]]
  %s18 = scalar_lea.smem %s0, 9
  %s19 = sld [smem:[%s18]]
  %s20 = scalar_lea.smem %s0, 10
  %s21 = sld [smem:[%s20]]
  %s22 = scalar_lea.smem %s0, 11
  %s23 = sld [smem:[%s22]]
  %s24 = scalar_lea.smem %s0, 12
  %s25 = sld [smem:[%s24]]
  %s26 = scalar_lea.smem %s0, 13
  %s27 = sld [smem:[%s26]]
  %s28 = scalar_lea.smem %s0, 14
  %s29 = sld [smem:[%s28]]
  %s30 = scalar_lea.smem %s0, 15
  %s31 = sld [smem:[%s30]]
  %s32 = scalar_lea.smem %s0, 16
  %s33 = sld [smem:[%s32]]
  %s34 = scalar_lea.smem %s0, 17
  %s35 = sld [smem:[%s34]]
  %s36 = scalar_lea.smem %s0, 18
  %s37 = sld [smem:[%s36]]
  %s38 = scalar_lea.smem %s0, 19
  %s39 = sld [smem:[%s38]]
  %s40 = scalar_lea.smem %s0, 20
  %s41 = sld [smem:[%s40]]
  %s42 = scalar_lea.smem %s0, 21
  %s43 = sld [smem:[%s42]]
  %s44 = scalar_lea.smem %s0, 22
  %s45 = sld [smem:[%s44]]
  %s46 = scalar_lea.smem %s0, 23
  %s47 = sld [smem:[%s46]]
  %s48 = scalar_lea.smem %s0, 24
  %s49 = sld [smem:[%s48]]
  %s50 = scalar_lea.smem %s0, 25
  %s51 = sld [smem:[%s50]]
  %s52 = scalar_lea.smem %s0, 26
  %s53 = sld [smem:[%s52]]
  %s54 = scalar_lea.smem %s0, 27
  %s55 = sld [smem:[%s54]]
  %s56 = scalar_lea.smem %s0, 28
  %s57 = sld [smem:[%s56]]
  %s58 = scalar_lea.smem %s0, 29
  %s59 = sld [smem:[%s58]]
  %s60 = scalar_lea.smem %s0, 30
  %s61 = sld [smem:[%s60]]
  %s62 = scalar_lea.smem %s0, 31
  %s63 = sld [smem:[%s62]]
  %s64 = scalar_lea.smem %s0, 32
  %s65 = sld [smem:[%s64]]
  %s66 = scalar_lea.smem %s0, 33
  %s67 = sld [smem:[%s66]]
  %s68 = scalar_lea.smem %s0, 34
  %s69 = sld [smem:[%s68]]
  %s70 = scalar_lea.smem %s0, 35
  %s71 = sld [smem:[%s70]]
  %s72 = scalar_lea.smem %s0, 36
  %s73 = sld [smem:[%s72]]
  %s74 = scalar_lea.smem %s0, 37
  %s75 = sld [smem:[%s74]]
  %s76 = scalar_lea.smem %s0, 38
  %s77 = sld [smem:[%s76]]
  %s78 = scalar_lea.smem %s0, 39
  %s79 = sld [smem:[%s78]]
  %s80 = scalar_lea.smem %s0, 40
  %s81 = sld [smem:[%s80]]
  %s82 = scalar_lea.smem %s0, 41
  %s83 = sld [smem:[%s82]]
  %s84 = scalar_lea.smem %s0, 42
  %s85 = sld [smem:[%s84]]
  %s86 = scalar_lea.smem %s0, 43
  %s87 = sld [smem:[%s86]]
  %s88 = scalar_lea.smem %s0, 44
  %s89 = sld [smem:[%s88]]
  %s90 = scalar_lea.smem %s0, 45
  %s91 = sld [smem:[%s90]]
  %s92 = scalar_lea.smem %s0, 46
  %s93 = sld [smem:[%s92]]
  %s94 = scalar_lea.smem %s0, 47
  %s95 = sld [smem:[%s94]]
  %s96 = scalar_lea.smem %s0, 48
  %s97 = sld [smem:[%s96]]
  %s98 = scalar_lea.smem %s0, 49
  %s99 = sld [smem:[%s98]]
  %s100 = scalar_lea.smem %s0, 50
  %s101 = sld [smem:[%s100]]
  %s102 = scalar_lea.smem %s0, 51
  %s103 = sld [smem:[%s102]]
  %s104 = scalar_lea.smem %s0, 52
  %s105 = sld [smem:[%s104]]
  %s106 = scalar_lea.smem %s0, 53
  %s107 = sld [smem:[%s106]]
  %s108 = scalar_lea.smem %s0, 54
  %s109 = sld [smem:[%s108]]
  %s110 = scalar_lea.smem %s0, 55
  %s111 = sld [smem:[%s110]]
  %s112 = scalar_lea.smem %s0, 56
  %s113 = sld [smem:[%s112]]
  %s114 = sld [smem:[#allocation0]]
  $region305: #{mlda_pallas.1} parent=0
    _
  %s116 = ssub.s32 1, %s114
  %s117 = scalar_select 0, %s116, %s114
  $region1: #{mlda_pallas.1} parent=0
    #allocation3 [shape = 'u8[12288]{0}', space=vmem, size = 0x3000, scoped, tag = 'input window, operand 8, single buffered']
    #allocation4 [shape = 's32[2]{0}', space=sflag, size = 0x8, scoped, tag = 'scoped memory for mlda_pallas.1']
    #allocation5 [shape = 'u8[12288]{0}', space=vmem, size = 0x3000, scoped, tag = 'input window, operand 10, single buffered']
    #allocation6 [shape = 's32[1]{0}', space=sflag, size = 0x4, scoped, tag = 'scoped memory for mlda_pallas.1']
    #allocation7 [shape = 'u8[20480]{0}', space=vmem, size = 0x5000, scoped, tag = 'input window, operand 12, single buffered']
    #allocation8 [shape = 'u8[20480]{0}', space=vmem, size = 0x5000, scoped, tag = 'input window, operand 14, single buffered']
    #allocation9 [shape = 's32[1]{0}', space=sflag, size = 0x4, scoped, tag = 'scoped memory for mlda_pallas.1']
    #allocation10 [shape = 'u8[20480]{0}', space=vmem, size = 0x5000, scoped, tag = 'input window, operand 18, single buffered']
    #allocation11 [shape = 'u8[20480]{0}', space=vmem, size = 0x5000, scoped, tag = 'input window, operand 20, single buffered']
    #allocation12 [shape = 's32[1]{0}', space=sflag, size = 0x4, scoped, tag = 'scoped memory for mlda_pallas.1']
    #allocation13 [shape = 'u8[28672]{0}', space=vmem, size = 0x7000, scoped, tag = 'input window, operand 22, single buffered']
    #allocation14 [shape = 'u8[28672]{0}', space=vmem, size = 0x7000, scoped, tag = 'input window, operand 24, single buffered']
    #allocation15 [shape = 's32[1]{0}', space=sflag, size = 0x4, scoped, tag = 'scoped memory for mlda_pallas.1']
    #allocation16 [shape = 'u8[2048]{0}', space=vmem, size = 0x800, scoped, tag = 'input window, operand 26, single buffered']
    #allocation17 [shape = 'u8[28672]{0}', space=vmem, size = 0x7000, scoped, tag = 'input window, operand 28, single buffered']
    #allocation18 [shape = 's32[1]{0}', space=sflag, size = 0x4, scoped, tag = 'scoped memory for mlda_pallas.1']
    #allocation19 [shape = 'u8[28672]{0}', space=vmem, size = 0x7000, scoped, tag = 'input window, operand 30, single buffered']
    #allocation20 [shape = 'u8[36864]{0}', space=vmem, size = 0x9000, scoped, tag = 'input window, operand 34, single buffered']
    #allocation21 [shape = 's32[1]{0}', space=sflag, size = 0x4, scoped, tag = 'scoped memory for mlda_pallas.1']
    %118 = vsyncpa [#allocation4], 0
    %119 = vsyncpa [#allocation6], 0
    %120 = vsyncpa [#allocation9], 0
    %121 = vsyncpa [#allocation12], 0
    %122 = vsyncpa [#allocation15], 0
    %123 = vsyncpa [#allocation18], 0
    %124 = vsyncpa [#allocation21], 0
    loop: start=0, step=1, limit=4
    $region2: #{mlda_pallas.1} parent=1 // loop_pre_header
      _
    $region3: #{mlda_pallas.1} parent=1 // loop_header
      %s126 = sphi 0, %s130
      %p127 = scmp.ge.s32.totalorder %s126, 4
      %s136 = sphi 0, %s138
      %s139 = sphi 0, %s136
      %s140 = sphi 0, %s139
      %s156 = sphi 0, %s140
      %s160 = sphi 0, %s160
      %s162 = sphi 0, %s160
      %s163 = sphi 0, %s162
      %s177 = sphi 0, %s163
      %s181 = sphi 0, %s181
      %s183 = sphi 0, %s181
      %s184 = sphi 0, %s183
      %s198 = sphi 0, %s184
      %s202 = sphi 0, %s202
      %s204 = sphi 0, %s202
      %s205 = sphi 0, %s204
      %s219 = sphi 0, %s205
      %s223 = sphi 0, %s223
      %s225 = sphi 0, %s223
      %s226 = sphi 0, %s225
      %s240 = sphi 0, %s226
      %s244 = sphi 0, %s244
      %s246 = sphi 0, %s244
      %s247 = sphi 0, %s246
      %s261 = sphi 0, %s247
      %s265 = sphi 0, %s265
      %s267 = sphi 0, %s265
      %s268 = sphi 0, %s267
      %s282 = sphi 0, %s268
      %s286 = sphi 0, %s286
      %s288 = sphi 0, %s286
      %s289 = sphi 0, %s288
      %s303 = sphi 0, %s289
      %s307 = sphi 0, %s307
      %s309 = sphi 0, %s307
      %s310 = sphi 0, %s309
      %s324 = sphi 0, %s310
      %s328 = sphi 0, %s328
      %s330 = sphi 0, %s328
      %s331 = sphi 0, %s330
      %s345 = sphi 0, %s331
      %s349 = sphi 0, %s349
      %s351 = sphi 0, %s349
      %s352 = sphi 0, %s351
      %s366 = sphi 0, %s352
      %s370 = sphi 0, %s370
      %s372 = sphi 0, %s370
      %s373 = sphi 0, %s372
      %s387 = sphi 0, %s373
      %s391 = sphi 0, %s391
      %s393 = sphi 0, %s391
      %s394 = sphi 0, %s393
      %s408 = sphi 0, %s394
      %s412 = sphi 0, %s412
      %s414 = sphi 0, %s412
      %s415 = sphi 0, %s414
      %s429 = sphi 0, %s415
      %s433 = sphi 0, %s433
      %s435 = sphi 0, %s433
      %s436 = sphi 0, %s435
      %s450 = sphi 0, %s436
      %s454 = sphi 0, %s454
      %s456 = sphi 0, %s454
      %s457 = sphi 0, %s456
      %s471 = sphi 0, %s457
      %s475 = sphi 0, %s475
      %s477 = sphi 0, %s475
      %s478 = sphi 0, %s477
      %s492 = sphi 0, %s478
      %s496 = sphi 0, %s496
      %s498 = sphi 0, %s496
      %s499 = sphi 0, %s498
      %s513 = sphi 0, %s499
      %s517 = sphi 0, %s517
      %s519 = sphi 0, %s517
      %s520 = sphi 0, %s519
      %s534 = sphi 0, %s520
      %s538 = sphi 0, %s538
      %s540 = sphi 0, %s538
      %s541 = sphi 0, %s540
      %s555 = sphi 0, %s541
      %s559 = sphi 0, %s559
      %s561 = sphi 0, %s559
      %s562 = sphi 0, %s561
      %s576 = sphi 0, %s562
      %s580 = sphi 0, %s580
      %s582 = sphi 0, %s580
      %s583 = sphi 0, %s582
      %s597 = sphi 0, %s583
      %s601 = sphi 0, %s601
      %s603 = sphi 0, %s601
      %s604 = sphi 0, %s603
      %s618 = sphi 0, %s604
      %s622 = sphi 0, %s622
      %s624 = sphi 0, %s622
      %s625 = sphi 0, %s624
      %s639 = sphi 0, %s625
      %s643 = sphi 0, %s643
      %s645 = sphi 0, %s643
      %s646 = sphi 0, %s645
      %s660 = sphi 0, %s646
      %s664 = sphi 0, %s664
      %s666 = sphi 0, %s664
      %s667 = sphi 0, %s666
      %s681 = sphi 0, %s667
      %s685 = sphi 0, %s685
      %s687 = sphi 0, %s685
      %s688 = sphi 0, %s687
      %s702 = sphi 0, %s688
      %s706 = sphi 0, %s706
      %s708 = sphi 0, %s706
      %s709 = sphi 0, %s708
      %s723 = sphi 0, %s709
      %s727 = sphi 0, %s727
      %s729 = sphi 0, %s727
      %s730 = sphi 0, %s729
      %s744 = sphi 0, %s730
      %s748 = sphi 0, %s748
      %s750 = sphi 0, %s748
      %s751 = sphi 0, %s750
      %s765 = sphi 0, %s751
      %s769 = sphi 0, %s769
      %s771 = sphi 0, %s769
      %s772 = sphi 0, %s771
      %s786 = sphi 0, %s772
      %s790 = sphi 0, %s790
      %s792 = sphi 0, %s790
      %s793 = sphi 0, %s792
      %s807 = sphi 0, %s793
      %s811 = sphi 0, %s811
      %s813 = sphi 0, %s811
      %s814 = sphi 0, %s813
      %s828 = sphi 0, %s814
      %s832 = sphi 0, %s832
      %s834 = sphi 0, %s832
      %s835 = sphi 0, %s834
      %s849 = sphi 0, %s835
      %s853 = sphi 0, %s853
      %s855 = sphi 0, %s853
      %s856 = sphi 0, %s855
      %s870 = sphi 0, %s856
      %s874 = sphi 0, %s874
      %s876 = sphi 0, %s874
      %s877 = sphi 0, %s876
      %s891 = sphi 0, %s877
      %s895 = sphi 0, %s895
      %s897 = sphi 0, %s895
      %s898 = sphi 0, %s897
      %s912 = sphi 0, %s898
      %s916 = sphi 0, %s916
      %s918 = sphi 0, %s916
      %s919 = sphi 0, %s918
      %s933 = sphi 0, %s919
      %s937 = sphi 0, %s937
      %s939 = sphi 0, %s937
      %s940 = sphi 0, %s939
      %s954 = sphi 0, %s940
      %s958 = sphi 0, %s958
      %s960 = sphi 0, %s958
      %s961 = sphi 0, %s960
      %s975 = sphi 0, %s961
      %s979 = sphi 0, %s979
      %s981 = sphi 0, %s979
      %s982 = sphi 0, %s981
      %s996 = sphi 0, %s982
      %s1000 = sphi 0, %s1000
      %s1002 = sphi 0, %s1000
      %s1003 = sphi 0, %s1002
      %s1017 = sphi 0, %s1003
      %s1021 = sphi 0, %s1021
      %s1023 = sphi 0, %s1021
      %s1024 = sphi 0, %s1023
      %s1038 = sphi 0, %s1024
      %s1042 = sphi 0, %s1042
      %s1044 = sphi 0, %s1042
      %s1045 = sphi 0, %s1044
      %s1059 = sphi 0, %s1045
      %s1063 = sphi 0, %s1063
      %s1065 = sphi 0, %s1063
      %s1066 = sphi 0, %s1065
      %s1080 = sphi 0, %s1066
      %s1084 = sphi 0, %s1084
      %s1086 = sphi 0, %s1084
      %s1087 = sphi 0, %s1086
      %s1101 = sphi 0, %s1087
      %s1105 = sphi 0, %s1105
      %s1107 = sphi 0, %s1105
      %s1108 = sphi 0, %s1107
      %s1122 = sphi 0, %s1108
      %s1126 = sphi 0, %s1126
      %s1128 = sphi 0, %s1126
      %s1129 = sphi 0, %s1128
      %s1143 = sphi 0, %s1129
      %s1147 = sphi 0, %s1147
      %s1149 = sphi 0, %s1147
      %s1150 = sphi 0, %s1149
      %s1164 = sphi 0, %s1150
      %s1168 = sphi 0, %s1168
      %s1170 = sphi 0, %s1168
      %s1171 = sphi 0, %s1170
      %s1185 = sphi 0, %s1171
      %s1189 = sphi 0, %s1189
      %s1191 = sphi 0, %s1189
      %s1192 = sphi 0, %s1191
      %s1206 = sphi 0, %s1192
      %s1210 = sphi 0, %s1210
      %s1212 = sphi 0, %s1210
      %s1213 = sphi 0, %s1212
      %s1227 = sphi 0, %s1213
      %s1231 = sphi 0, %s1231
      %s1233 = sphi 0, %s1231
      %s1234 = sphi 0, %s1233
      %s1248 = sphi 0, %s1234
      %s1252 = sphi 0, %s1252
      %s1254 = sphi 0, %s1252
      %s1255 = sphi 0, %s1254
      %s1269 = sphi 0, %s1255
      %s1273 = sphi 0, %s1273
      %s1275 = sphi 0, %s1273
      %s1276 = sphi 0, %s1275
      %s1290 = sphi 0, %s1276
      %s1294 = sphi 0, %s1294
      %s1296 = sphi 0, %s1294
      %s1297 = sphi 0, %s1296
      %s1311 = sphi 0, %s1297
      %s1317 = sphi 0, %s1319
      %s1320 = sphi 0, %s1317
      %s1321 = sphi 0, %s1320
      %s1337 = sphi 0, %s1321
    $region4: #{mlda_pallas.1} parent=1 // loop_header_branch
      %129 = sbr.rel (%p127) target = $region8
    $region5: #{mlda_pallas.1} parent=1 // loop_body
      %s131 = ssub.s32 %s126, 1
      %s132 = ssub.s32 %s126, 2
      %s133 = sadd.s32 %s126, 1
      %s134 = ssub.s32 %s126, %s133
      %p135 = scmp.eq.s32.totalorder %s134, 0
      %s137 = sadd.s32 %s136, 1
      %s138 = scalar_select %p135, %s136, %s137
      %p141 = pneg %p135
      %p142 = scmp.eq.s32.totalorder %s126, 1
      %p143 = por %p141, %p142
      %p144 = scmp.ne.s32.totalorder %s136, %s139
      %p145 = scmp.eq.s32.totalorder %s126, 0
      %p146 = por %p144, %p145
      %p147 = scmp.ne.s32.totalorder %s136, %s139
      %p148 = scmp.eq.s32.totalorder %s131, 1
      %p149 = por %p147, %p148
      %p150 = scmp.ne.s32.totalorder %s139, %s140
      %p151 = scmp.eq.s32.totalorder %s131, 0
      %p152 = por %p150, %p151
      %p153 = scmp.ne.s32.totalorder %s139, %s140
      %p154 = scmp.eq.s32.totalorder %s132, 1
      %p155 = por %p153, %p154
      %p157 = scmp.ne.s32.totalorder %s140, %s156
      %p158 = scmp.eq.s32.totalorder %s132, 0
      %p159 = por %p157, %p158
      %s161 = sadd.s32 %s160, 1
      %p164 = scmp.eq.s32.totalorder %s126, 1
      %p165 = scmp.ne.s32.totalorder %s160, %s162
      %p166 = scmp.eq.s32.totalorder %s126, 0
      %p167 = por %p165, %p166
      %p168 = scmp.ne.s32.totalorder %s160, %s162
      %p169 = scmp.eq.s32.totalorder %s131, 1
      %p170 = por %p168, %p169
      %p171 = scmp.ne.s32.totalorder %s162, %s163
      %p172 = scmp.eq.s32.totalorder %s131, 0
      %p173 = por %p171, %p172
      %p174 = scmp.ne.s32.totalorder %s162, %s163
      %p175 = scmp.eq.s32.totalorder %s132, 1
      %p176 = por %p174, %p175
      %p178 = scmp.ne.s32.totalorder %s163, %s177
      %p179 = scmp.eq.s32.totalorder %s132, 0
      %p180 = por %p178, %p179
      %s182 = sadd.s32 %s181, 1
      %p185 = scmp.eq.s32.totalorder %s126, 1
      %p186 = scmp.ne.s32.totalorder %s181, %s183
      %p187 = scmp.eq.s32.totalorder %s126, 0
      %p188 = por %p186, %p187
      %p189 = scmp.ne.s32.totalorder %s181, %s183
      %p190 = scmp.eq.s32.totalorder %s131, 1
      %p191 = por %p189, %p190
      %p192 = scmp.ne.s32.totalorder %s183, %s184
      %p193 = scmp.eq.s32.totalorder %s131, 0
      %p194 = por %p192, %p193
      %p195 = scmp.ne.s32.totalorder %s183, %s184
      %p196 = scmp.eq.s32.totalorder %s132, 1
      %p197 = por %p195, %p196
      %p199 = scmp.ne.s32.totalorder %s184, %s198
      %p200 = scmp.eq.s32.totalorder %s132, 0
      %p201 = por %p199, %p200
      %s203 = sadd.s32 %s202, 1
      %p206 = scmp.eq.s32.totalorder %s126, 1
      %p207 = scmp.ne.s32.totalorder %s202, %s204
      %p208 = scmp.eq.s32.totalorder %s126, 0
      %p209 = por %p207, %p208
      %p210 = scmp.ne.s32.totalorder %s202, %s204
      %p211 = scmp.eq.s32.totalorder %s131, 1
      %p212 = por %p210, %p211
      %p213 = scmp.ne.s32.totalorder %s204, %s205
      %p214 = scmp.eq.s32.totalorder %s131, 0
      %p215 = por %p213, %p214
      %p216 = scmp.ne.s32.totalorder %s204, %s205
      %p217 = scmp.eq.s32.totalorder %s132, 1
      %p218 = por %p216, %p217
      %p220 = scmp.ne.s32.totalorder %s205, %s219
      %p221 = scmp.eq.s32.totalorder %s132, 0
      %p222 = por %p220, %p221
      %s224 = sadd.s32 %s223, 1
      %p227 = scmp.eq.s32.totalorder %s126, 1
      %p228 = scmp.ne.s32.totalorder %s223, %s225
      %p229 = scmp.eq.s32.totalorder %s126, 0
      %p230 = por %p228, %p229
      %p231 = scmp.ne.s32.totalorder %s223, %s225
      %p232 = scmp.eq.s32.totalorder %s131, 1
      %p233 = por %p231, %p232
      %p234 = scmp.ne.s32.totalorder %s225, %s226
      %p235 = scmp.eq.s32.totalorder %s131, 0
      %p236 = por %p234, %p235
      %p237 = scmp.ne.s32.totalorder %s225, %s226
      %p238 = scmp.eq.s32.totalorder %s132, 1
      %p239 = por %p237, %p238
      %p241 = scmp.ne.s32.totalorder %s226, %s240
      %p242 = scmp.eq.s32.totalorder %s132, 0
      %p243 = por %p241, %p242
      %s245 = sadd.s32 %s244, 1
      %p248 = scmp.eq.s32.totalorder %s126, 1
      %p249 = scmp.ne.s32.totalorder %s244, %s246
      %p250 = scmp.eq.s32.totalorder %s126, 0
      %p251 = por %p249, %p250
      %p252 = scmp.ne.s32.totalorder %s244, %s246
      %p253 = scmp.eq.s32.totalorder %s131, 1
      %p254 = por %p252, %p253
      %p255 = scmp.ne.s32.totalorder %s246, %s247
      %p256 = scmp.eq.s32.totalorder %s131, 0
      %p257 = por %p255, %p256
      %p258 = scmp.ne.s32.totalorder %s246, %s247
      %p259 = scmp.eq.s32.totalorder %s132, 1
      %p260 = por %p258, %p259
      %p262 = scmp.ne.s32.totalorder %s247, %s261
      %p263 = scmp.eq.s32.totalorder %s132, 0
      %p264 = por %p262, %p263
      %s266 = sadd.s32 %s265, 1
      %p269 = scmp.eq.s32.totalorder %s126, 1
      %p270 = scmp.ne.s32.totalorder %s265, %s267
      %p271 = scmp.eq.s32.totalorder %s126, 0
      %p272 = por %p270, %p271
      %p273 = scmp.ne.s32.totalorder %s265, %s267
      %p274 = scmp.eq.s32.totalorder %s131, 1
      %p275 = por %p273, %p274
      %p276 = scmp.ne.s32.totalorder %s267, %s268
      %p277 = scmp.eq.s32.totalorder %s131, 0
      %p278 = por %p276, %p277
      %p279 = scmp.ne.s32.totalorder %s267, %s268
      %p280 = scmp.eq.s32.totalorder %s132, 1
      %p281 = por %p279, %p280
      %p283 = scmp.ne.s32.totalorder %s268, %s282
      %p284 = scmp.eq.s32.totalorder %s132, 0
      %p285 = por %p283, %p284
      %s287 = sadd.s32 %s286, 1
      %p290 = scmp.eq.s32.totalorder %s126, 1
      %p291 = scmp.ne.s32.totalorder %s286, %s288
      %p292 = scmp.eq.s32.totalorder %s126, 0
      %p293 = por %p291, %p292
      %p294 = scmp.ne.s32.totalorder %s286, %s288
      %p295 = scmp.eq.s32.totalorder %s131, 1
      %p296 = por %p294, %p295
      %p297 = scmp.ne.s32.totalorder %s288, %s289
      %p298 = scmp.eq.s32.totalorder %s131, 0
      %p299 = por %p297, %p298
      %p300 = scmp.ne.s32.totalorder %s288, %s289
      %p301 = scmp.eq.s32.totalorder %s132, 1
      %p302 = por %p300, %p301
      %p304 = scmp.ne.s32.totalorder %s289, %s303
      %p305 = scmp.eq.s32.totalorder %s132, 0
      %p306 = por %p304, %p305
      %s308 = sadd.s32 %s307, 1
      %p311 = scmp.eq.s32.totalorder %s126, 1
      %p312 = scmp.ne.s32.totalorder %s307, %s309
      %p313 = scmp.eq.s32.totalorder %s126, 0
      %p314 = por %p312, %p313
      %p315 = scmp.ne.s32.totalorder %s307, %s309
      %p316 = scmp.eq.s32.totalorder %s131, 1
      %p317 = por %p315, %p316
      %p318 = scmp.ne.s32.totalorder %s309, %s310
      %p319 = scmp.eq.s32.totalorder %s131, 0
      %p320 = por %p318, %p319
      %p321 = scmp.ne.s32.totalorder %s309, %s310
      %p322 = scmp.eq.s32.totalorder %s132, 1
      %p323 = por %p321, %p322
      %p325 = scmp.ne.s32.totalorder %s310, %s324
      %p326 = scmp.eq.s32.totalorder %s132, 0
      %p327 = por %p325, %p326
      %s329 = sadd.s32 %s328, 1
      %p332 = scmp.eq.s32.totalorder %s126, 1
      %p333 = scmp.ne.s32.totalorder %s328, %s330
      %p334 = scmp.eq.s32.totalorder %s126, 0
      %p335 = por %p333, %p334
      %p336 = scmp.ne.s32.totalorder %s328, %s330
      %p337 = scmp.eq.s32.totalorder %s131, 1
      %p338 = por %p336, %p337
      %p339 = scmp.ne.s32.totalorder %s330, %s331
      %p340 = scmp.eq.s32.totalorder %s131, 0
      %p341 = por %p339, %p340
      %p342 = scmp.ne.s32.totalorder %s330, %s331
      %p343 = scmp.eq.s32.totalorder %s132, 1
      %p344 = por %p342, %p343
      %p346 = scmp.ne.s32.totalorder %s331, %s345
      %p347 = scmp.eq.s32.totalorder %s132, 0
      %p348 = por %p346, %p347
      %s350 = sadd.s32 %s349, 1
      %p353 = scmp.eq.s32.totalorder %s126, 1
      %p354 = scmp.ne.s32.totalorder %s349, %s351
      %p355 = scmp.eq.s32.totalorder %s126, 0
      %p356 = por %p354, %p355
      %p357 = scmp.ne.s32.totalorder %s349, %s351
      %p358 = scmp.eq.s32.totalorder %s131, 1
      %p359 = por %p357, %p358
      %p360 = scmp.ne.s32.totalorder %s351, %s352
      %p361 = scmp.eq.s32.totalorder %s131, 0
      %p362 = por %p360, %p361
      %p363 = scmp.ne.s32.totalorder %s351, %s352
      %p364 = scmp.eq.s32.totalorder %s132, 1
      %p365 = por %p363, %p364
      %p367 = scmp.ne.s32.totalorder %s352, %s366
      %p368 = scmp.eq.s32.totalorder %s132, 0
      %p369 = por %p367, %p368
      %s371 = sadd.s32 %s370, 1
      %p374 = scmp.eq.s32.totalorder %s126, 1
      %p375 = scmp.ne.s32.totalorder %s370, %s372
      %p376 = scmp.eq.s32.totalorder %s126, 0
      %p377 = por %p375, %p376
      %p378 = scmp.ne.s32.totalorder %s370, %s372
      %p379 = scmp.eq.s32.totalorder %s131, 1
      %p380 = por %p378, %p379
      %p381 = scmp.ne.s32.totalorder %s372, %s373
      %p382 = scmp.eq.s32.totalorder %s131, 0
      %p383 = por %p381, %p382
      %p384 = scmp.ne.s32.totalorder %s372, %s373
      %p385 = scmp.eq.s32.totalorder %s132, 1
      %p386 = por %p384, %p385
      %p388 = scmp.ne.s32.totalorder %s373, %s387
      %p389 = scmp.eq.s32.totalorder %s132, 0
      %p390 = por %p388, %p389
      %s392 = sadd.s32 %s391, 1
      %p395 = scmp.eq.s32.totalorder %s126, 1
      %p396 = scmp.ne.s32.totalorder %s391, %s393
      %p397 = scmp.eq.s32.totalorder %s126, 0
      %p398 = por %p396, %p397
      %p399 = scmp.ne.s32.totalorder %s391, %s393
      %p400 = scmp.eq.s32.totalorder %s131, 1
      %p401 = por %p399, %p400
      %p402 = scmp.ne.s32.totalorder %s393, %s394
      %p403 = scmp.eq.s32.totalorder %s131, 0
      %p404 = por %p402, %p403
      %p405 = scmp.ne.s32.totalorder %s393, %s394
      %p406 = scmp.eq.s32.totalorder %s132, 1
      %p407 = por %p405, %p406
      %p409 = scmp.ne.s32.totalorder %s394, %s408
      %p410 = scmp.eq.s32.totalorder %s132, 0
      %p411 = por %p409, %p410
      %s413 = sadd.s32 %s412, 1
      %p416 = scmp.eq.s32.totalorder %s126, 1
      %p417 = scmp.ne.s32.totalorder %s412, %s414
      %p418 = scmp.eq.s32.totalorder %s126, 0
      %p419 = por %p417, %p418
      %p420 = scmp.ne.s32.totalorder %s412, %s414
      %p421 = scmp.eq.s32.totalorder %s131, 1
      %p422 = por %p420, %p421
      %p423 = scmp.ne.s32.totalorder %s414, %s415
      %p424 = scmp.eq.s32.totalorder %s131, 0
      %p425 = por %p423, %p424
      %p426 = scmp.ne.s32.totalorder %s414, %s415
      %p427 = scmp.eq.s32.totalorder %s132, 1
      %p428 = por %p426, %p427
      %p430 = scmp.ne.s32.totalorder %s415, %s429
      %p431 = scmp.eq.s32.totalorder %s132, 0
      %p432 = por %p430, %p431
      %s434 = sadd.s32 %s433, 1
      %p437 = scmp.eq.s32.totalorder %s126, 1
      %p438 = scmp.ne.s32.totalorder %s433, %s435
      %p439 = scmp.eq.s32.totalorder %s126, 0
      %p440 = por %p438, %p439
      %p441 = scmp.ne.s32.totalorder %s433, %s435
      %p442 = scmp.eq.s32.totalorder %s131, 1
      %p443 = por %p441, %p442
      %p444 = scmp.ne.s32.totalorder %s435, %s436
      %p445 = scmp.eq.s32.totalorder %s131, 0
      %p446 = por %p444, %p445
      %p447 = scmp.ne.s32.totalorder %s435, %s436
      %p448 = scmp.eq.s32.totalorder %s132, 1
      %p449 = por %p447, %p448
      %p451 = scmp.ne.s32.totalorder %s436, %s450
      %p452 = scmp.eq.s32.totalorder %s132, 0
      %p453 = por %p451, %p452
      %s455 = sadd.s32 %s454, 1
      %p458 = scmp.eq.s32.totalorder %s126, 1
      %p459 = scmp.ne.s32.totalorder %s454, %s456
      %p460 = scmp.eq.s32.totalorder %s126, 0
      %p461 = por %p459, %p460
      %p462 = scmp.ne.s32.totalorder %s454, %s456
      %p463 = scmp.eq.s32.totalorder %s131, 1
      %p464 = por %p462, %p463
      %p465 = scmp.ne.s32.totalorder %s456, %s457
      %p466 = scmp.eq.s32.totalorder %s131, 0
      %p467 = por %p465, %p466
      %p468 = scmp.ne.s32.totalorder %s456, %s457
      %p469 = scmp.eq.s32.totalorder %s132, 1
      %p470 = por %p468, %p469
      %p472 = scmp.ne.s32.totalorder %s457, %s471
      %p473 = scmp.eq.s32.totalorder %s132, 0
      %p474 = por %p472, %p473
      %s476 = sadd.s32 %s475, 1
      %p479 = scmp.eq.s32.totalorder %s126, 1
      %p480 = scmp.ne.s32.totalorder %s475, %s477
      %p481 = scmp.eq.s32.totalorder %s126, 0
      %p482 = por %p480, %p481
      %p483 = scmp.ne.s32.totalorder %s475, %s477
      %p484 = scmp.eq.s32.totalorder %s131, 1
      %p485 = por %p483, %p484
      %p486 = scmp.ne.s32.totalorder %s477, %s478
      %p487 = scmp.eq.s32.totalorder %s131, 0
      %p488 = por %p486, %p487
      %p489 = scmp.ne.s32.totalorder %s477, %s478
      %p490 = scmp.eq.s32.totalorder %s132, 1
      %p491 = por %p489, %p490
      %p493 = scmp.ne.s32.totalorder %s478, %s492
      %p494 = scmp.eq.s32.totalorder %s132, 0
      %p495 = por %p493, %p494
      %s497 = sadd.s32 %s496, 1
      %p500 = scmp.eq.s32.totalorder %s126, 1
      %p501 = scmp.ne.s32.totalorder %s496, %s498
      %p502 = scmp.eq.s32.totalorder %s126, 0
      %p503 = por %p501, %p502
      %p504 = scmp.ne.s32.totalorder %s496, %s498
      %p505 = scmp.eq.s32.totalorder %s131, 1
      %p506 = por %p504, %p505
      %p507 = scmp.ne.s32.totalorder %s498, %s499
      %p508 = scmp.eq.s32.totalorder %s131, 0
      %p509 = por %p507, %p508
      %p510 = scmp.ne.s32.totalorder %s498, %s499
      %p511 = scmp.eq.s32.totalorder %s132, 1
      %p512 = por %p510, %p511
      %p514 = scmp.ne.s32.totalorder %s499, %s513
      %p515 = scmp.eq.s32.totalorder %s132, 0
      %p516 = por %p514, %p515
      %s518 = sadd.s32 %s517, 1
      %p521 = scmp.eq.s32.totalorder %s126, 1
      %p522 = scmp.ne.s32.totalorder %s517, %s519
      %p523 = scmp.eq.s32.totalorder %s126, 0
      %p524 = por %p522, %p523
      %p525 = scmp.ne.s32.totalorder %s517, %s519
      %p526 = scmp.eq.s32.totalorder %s131, 1
      %p527 = por %p525, %p526
      %p528 = scmp.ne.s32.totalorder %s519, %s520
      %p529 = scmp.eq.s32.totalorder %s131, 0
      %p530 = por %p528, %p529
      %p531 = scmp.ne.s32.totalorder %s519, %s520
      %p532 = scmp.eq.s32.totalorder %s132, 1
      %p533 = por %p531, %p532
      %p535 = scmp.ne.s32.totalorder %s520, %s534
      %p536 = scmp.eq.s32.totalorder %s132, 0
      %p537 = por %p535, %p536
      %s539 = sadd.s32 %s538, 1
      %p542 = scmp.eq.s32.totalorder %s126, 1
      %p543 = scmp.ne.s32.totalorder %s538, %s540
      %p544 = scmp.eq.s32.totalorder %s126, 0
      %p545 = por %p543, %p544
      %p546 = scmp.ne.s32.totalorder %s538, %s540
      %p547 = scmp.eq.s32.totalorder %s131, 1
      %p548 = por %p546, %p547
      %p549 = scmp.ne.s32.totalorder %s540, %s541
      %p550 = scmp.eq.s32.totalorder %s131, 0
      %p551 = por %p549, %p550
      %p552 = scmp.ne.s32.totalorder %s540, %s541
      %p553 = scmp.eq.s32.totalorder %s132, 1
      %p554 = por %p552, %p553
      %p556 = scmp.ne.s32.totalorder %s541, %s555
      %p557 = scmp.eq.s32.totalorder %s132, 0
      %p558 = por %p556, %p557
      %s560 = sadd.s32 %s559, 1
      %p563 = scmp.eq.s32.totalorder %s126, 1
      %p564 = scmp.ne.s32.totalorder %s559, %s561
      %p565 = scmp.eq.s32.totalorder %s126, 0
      %p566 = por %p564, %p565
      %p567 = scmp.ne.s32.totalorder %s559, %s561
      %p568 = scmp.eq.s32.totalorder %s131, 1
      %p569 = por %p567, %p568
      %p570 = scmp.ne.s32.totalorder %s561, %s562
      %p571 = scmp.eq.s32.totalorder %s131, 0
      %p572 = por %p570, %p571
      %p573 = scmp.ne.s32.totalorder %s561, %s562
      %p574 = scmp.eq.s32.totalorder %s132, 1
      %p575 = por %p573, %p574
      %p577 = scmp.ne.s32.totalorder %s562, %s576
      %p578 = scmp.eq.s32.totalorder %s132, 0
      %p579 = por %p577, %p578
      %s581 = sadd.s32 %s580, 1
      %p584 = scmp.eq.s32.totalorder %s126, 1
      %p585 = scmp.ne.s32.totalorder %s580, %s582
      %p586 = scmp.eq.s32.totalorder %s126, 0
      %p587 = por %p585, %p586
      %p588 = scmp.ne.s32.totalorder %s580, %s582
      %p589 = scmp.eq.s32.totalorder %s131, 1
      %p590 = por %p588, %p589
      %p591 = scmp.ne.s32.totalorder %s582, %s583
      %p592 = scmp.eq.s32.totalorder %s131, 0
      %p593 = por %p591, %p592
      %p594 = scmp.ne.s32.totalorder %s582, %s583
      %p595 = scmp.eq.s32.totalorder %s132, 1
      %p596 = por %p594, %p595
      %p598 = scmp.ne.s32.totalorder %s583, %s597
      %p599 = scmp.eq.s32.totalorder %s132, 0
      %p600 = por %p598, %p599
      %s602 = sadd.s32 %s601, 1
      %p605 = scmp.eq.s32.totalorder %s126, 1
      %p606 = scmp.ne.s32.totalorder %s601, %s603
      %p607 = scmp.eq.s32.totalorder %s126, 0
      %p608 = por %p606, %p607
      %p609 = scmp.ne.s32.totalorder %s601, %s603
      %p610 = scmp.eq.s32.totalorder %s131, 1
      %p611 = por %p609, %p610
      %p612 = scmp.ne.s32.totalorder %s603, %s604
      %p613 = scmp.eq.s32.totalorder %s131, 0
      %p614 = por %p612, %p613
      %p615 = scmp.ne.s32.totalorder %s603, %s604
      %p616 = scmp.eq.s32.totalorder %s132, 1
      %p617 = por %p615, %p616
      %p619 = scmp.ne.s32.totalorder %s604, %s618
      %p620 = scmp.eq.s32.totalorder %s132, 0
      %p621 = por %p619, %p620
      %s623 = sadd.s32 %s622, 1
      %p626 = scmp.eq.s32.totalorder %s126, 1
      %p627 = scmp.ne.s32.totalorder %s622, %s624
      %p628 = scmp.eq.s32.totalorder %s126, 0
      %p629 = por %p627, %p628
      %p630 = scmp.ne.s32.totalorder %s622, %s624
      %p631 = scmp.eq.s32.totalorder %s131, 1
      %p632 = por %p630, %p631
      %p633 = scmp.ne.s32.totalorder %s624, %s625
      %p634 = scmp.eq.s32.totalorder %s131, 0
      %p635 = por %p633, %p634
      %p636 = scmp.ne.s32.totalorder %s624, %s625
      %p637 = scmp.eq.s32.totalorder %s132, 1
      %p638 = por %p636, %p637
      %p640 = scmp.ne.s32.totalorder %s625, %s639
      %p641 = scmp.eq.s32.totalorder %s132, 0
      %p642 = por %p640, %p641
      %s644 = sadd.s32 %s643, 1
      %p647 = scmp.eq.s32.totalorder %s126, 1
      %p648 = scmp.ne.s32.totalorder %s643, %s645
      %p649 = scmp.eq.s32.totalorder %s126, 0
      %p650 = por %p648, %p649
      %p651 = scmp.ne.s32.totalorder %s643, %s645
      %p652 = scmp.eq.s32.totalorder %s131, 1
      %p653 = por %p651, %p652
      %p654 = scmp.ne.s32.totalorder %s645, %s646
      %p655 = scmp.eq.s32.totalorder %s131, 0
      %p656 = por %p654, %p655
      %p657 = scmp.ne.s32.totalorder %s645, %s646
      %p658 = scmp.eq.s32.totalorder %s132, 1
      %p659 = por %p657, %p658
      %p661 = scmp.ne.s32.totalorder %s646, %s660
      %p662 = scmp.eq.s32.totalorder %s132, 0
      %p663 = por %p661, %p662
      %s665 = sadd.s32 %s664, 1
      %p668 = scmp.eq.s32.totalorder %s126, 1
      %p669 = scmp.ne.s32.totalorder %s664, %s666
      %p670 = scmp.eq.s32.totalorder %s126, 0
      %p671 = por %p669, %p670
      %p672 = scmp.ne.s32.totalorder %s664, %s666
      %p673 = scmp.eq.s32.totalorder %s131, 1
      %p674 = por %p672, %p673
      %p675 = scmp.ne.s32.totalorder %s666, %s667
      %p676 = scmp.eq.s32.totalorder %s131, 0
      %p677 = por %p675, %p676
      %p678 = scmp.ne.s32.totalorder %s666, %s667
      %p679 = scmp.eq.s32.totalorder %s132, 1
      %p680 = por %p678, %p679
      %p682 = scmp.ne.s32.totalorder %s667, %s681
      %p683 = scmp.eq.s32.totalorder %s132, 0
      %p684 = por %p682, %p683
      %s686 = sadd.s32 %s685, 1
      %p689 = scmp.eq.s32.totalorder %s126, 1
      %p690 = scmp.ne.s32.totalorder %s685, %s687
      %p691 = scmp.eq.s32.totalorder %s126, 0
      %p692 = por %p690, %p691
      %p693 = scmp.ne.s32.totalorder %s685, %s687
      %p694 = scmp.eq.s32.totalorder %s131, 1
      %p695 = por %p693, %p694
      %p696 = scmp.ne.s32.totalorder %s687, %s688
      %p697 = scmp.eq.s32.totalorder %s131, 0
      %p698 = por %p696, %p697
      %p699 = scmp.ne.s32.totalorder %s687, %s688
      %p700 = scmp.eq.s32.totalorder %s132, 1
      %p701 = por %p699, %p700
      %p703 = scmp.ne.s32.totalorder %s688, %s702
      %p704 = scmp.eq.s32.totalorder %s132, 0
      %p705 = por %p703, %p704
      %s707 = sadd.s32 %s706, 1
      %p710 = scmp.eq.s32.totalorder %s126, 1
      %p711 = scmp.ne.s32.totalorder %s706, %s708
      %p712 = scmp.eq.s32.totalorder %s126, 0
      %p713 = por %p711, %p712
      %p714 = scmp.ne.s32.totalorder %s706, %s708
      %p715 = scmp.eq.s32.totalorder %s131, 1
      %p716 = por %p714, %p715
      %p717 = scmp.ne.s32.totalorder %s708, %s709
      %p718 = scmp.eq.s32.totalorder %s131, 0
      %p719 = por %p717, %p718
      %p720 = scmp.ne.s32.totalorder %s708, %s709
      %p721 = scmp.eq.s32.totalorder %s132, 1
      %p722 = por %p720, %p721
      %p724 = scmp.ne.s32.totalorder %s709, %s723
      %p725 = scmp.eq.s32.totalorder %s132, 0
      %p726 = por %p724, %p725
      %s728 = sadd.s32 %s727, 1
      %p731 = scmp.eq.s32.totalorder %s126, 1
      %p732 = scmp.ne.s32.totalorder %s727, %s729
      %p733 = scmp.eq.s32.totalorder %s126, 0
      %p734 = por %p732, %p733
      %p735 = scmp.ne.s32.totalorder %s727, %s729
      %p736 = scmp.eq.s32.totalorder %s131, 1
      %p737 = por %p735, %p736
      %p738 = scmp.ne.s32.totalorder %s729, %s730
      %p739 = scmp.eq.s32.totalorder %s131, 0
      %p740 = por %p738, %p739
      %p741 = scmp.ne.s32.totalorder %s729, %s730
      %p742 = scmp.eq.s32.totalorder %s132, 1
      %p743 = por %p741, %p742
      %p745 = scmp.ne.s32.totalorder %s730, %s744
      %p746 = scmp.eq.s32.totalorder %s132, 0
      %p747 = por %p745, %p746
      %s749 = sadd.s32 %s748, 1
      %p752 = scmp.eq.s32.totalorder %s126, 1
      %p753 = scmp.ne.s32.totalorder %s748, %s750
      %p754 = scmp.eq.s32.totalorder %s126, 0
      %p755 = por %p753, %p754
      %p756 = scmp.ne.s32.totalorder %s748, %s750
      %p757 = scmp.eq.s32.totalorder %s131, 1
      %p758 = por %p756, %p757
      %p759 = scmp.ne.s32.totalorder %s750, %s751
      %p760 = scmp.eq.s32.totalorder %s131, 0
      %p761 = por %p759, %p760
      %p762 = scmp.ne.s32.totalorder %s750, %s751
      %p763 = scmp.eq.s32.totalorder %s132, 1
      %p764 = por %p762, %p763
      %p766 = scmp.ne.s32.totalorder %s751, %s765
      %p767 = scmp.eq.s32.totalorder %s132, 0
      %p768 = por %p766, %p767
      %s770 = sadd.s32 %s769, 1
      %p773 = scmp.eq.s32.totalorder %s126, 1
      %p774 = scmp.ne.s32.totalorder %s769, %s771
      %p775 = scmp.eq.s32.totalorder %s126, 0
      %p776 = por %p774, %p775
      %p777 = scmp.ne.s32.totalorder %s769, %s771
      %p778 = scmp.eq.s32.totalorder %s131, 1
      %p779 = por %p777, %p778
      %p780 = scmp.ne.s32.totalorder %s771, %s772
      %p781 = scmp.eq.s32.totalorder %s131, 0
      %p782 = por %p780, %p781
      %p783 = scmp.ne.s32.totalorder %s771, %s772
      %p784 = scmp.eq.s32.totalorder %s132, 1
      %p785 = por %p783, %p784
      %p787 = scmp.ne.s32.totalorder %s772, %s786
      %p788 = scmp.eq.s32.totalorder %s132, 0
      %p789 = por %p787, %p788
      %s791 = sadd.s32 %s790, 1
      %p794 = scmp.eq.s32.totalorder %s126, 1
      %p795 = scmp.ne.s32.totalorder %s790, %s792
      %p796 = scmp.eq.s32.totalorder %s126, 0
      %p797 = por %p795, %p796
      %p798 = scmp.ne.s32.totalorder %s790, %s792
      %p799 = scmp.eq.s32.totalorder %s131, 1
      %p800 = por %p798, %p799
      %p801 = scmp.ne.s32.totalorder %s792, %s793
      %p802 = scmp.eq.s32.totalorder %s131, 0
      %p803 = por %p801, %p802
      %p804 = scmp.ne.s32.totalorder %s792, %s793
      %p805 = scmp.eq.s32.totalorder %s132, 1
      %p806 = por %p804, %p805
      %p808 = scmp.ne.s32.totalorder %s793, %s807
      %p809 = scmp.eq.s32.totalorder %s132, 0
      %p810 = por %p808, %p809
      %s812 = sadd.s32 %s811, 1
      %p815 = scmp.eq.s32.totalorder %s126, 1
      %p816 = scmp.ne.s32.totalorder %s811, %s813
      %p817 = scmp.eq.s32.totalorder %s126, 0
      %p818 = por %p816, %p817
      %p819 = scmp.ne.s32.totalorder %s811, %s813
      %p820 = scmp.eq.s32.totalorder %s131, 1
      %p821 = por %p819, %p820
      %p822 = scmp.ne.s32.totalorder %s813, %s814
      %p823 = scmp.eq.s32.totalorder %s131, 0
      %p824 = por %p822, %p823
      %p825 = scmp.ne.s32.totalorder %s813, %s814
      %p826 = scmp.eq.s32.totalorder %s132, 1
      %p827 = por %p825, %p826
      %p829 = scmp.ne.s32.totalorder %s814, %s828
      %p830 = scmp.eq.s32.totalorder %s132, 0
      %p831 = por %p829, %p830
      %s833 = sadd.s32 %s832, 1
      %p836 = scmp.eq.s32.totalorder %s126, 1
      %p837 = scmp.ne.s32.totalorder %s832, %s834
      %p838 = scmp.eq.s32.totalorder %s126, 0
      %p839 = por %p837, %p838
      %p840 = scmp.ne.s32.totalorder %s832, %s834
      %p841 = scmp.eq.s32.totalorder %s131, 1
      %p842 = por %p840, %p841
      %p843 = scmp.ne.s32.totalorder %s834, %s835
      %p844 = scmp.eq.s32.totalorder %s131, 0
      %p845 = por %p843, %p844
      %p846 = scmp.ne.s32.totalorder %s834, %s835
      %p847 = scmp.eq.s32.totalorder %s132, 1
      %p848 = por %p846, %p847
      %p850 = scmp.ne.s32.totalorder %s835, %s849
      %p851 = scmp.eq.s32.totalorder %s132, 0
      %p852 = por %p850, %p851
      %s854 = sadd.s32 %s853, 1
      %p857 = scmp.eq.s32.totalorder %s126, 1
      %p858 = scmp.ne.s32.totalorder %s853, %s855
      %p859 = scmp.eq.s32.totalorder %s126, 0
      %p860 = por %p858, %p859
      %p861 = scmp.ne.s32.totalorder %s853, %s855
      %p862 = scmp.eq.s32.totalorder %s131, 1
      %p863 = por %p861, %p862
      %p864 = scmp.ne.s32.totalorder %s855, %s856
      %p865 = scmp.eq.s32.totalorder %s131, 0
      %p866 = por %p864, %p865
      %p867 = scmp.ne.s32.totalorder %s855, %s856
      %p868 = scmp.eq.s32.totalorder %s132, 1
      %p869 = por %p867, %p868
      %p871 = scmp.ne.s32.totalorder %s856, %s870
      %p872 = scmp.eq.s32.totalorder %s132, 0
      %p873 = por %p871, %p872
      %s875 = sadd.s32 %s874, 1
      %p878 = scmp.eq.s32.totalorder %s126, 1
      %p879 = scmp.ne.s32.totalorder %s874, %s876
      %p880 = scmp.eq.s32.totalorder %s126, 0
      %p881 = por %p879, %p880
      %p882 = scmp.ne.s32.totalorder %s874, %s876
      %p883 = scmp.eq.s32.totalorder %s131, 1
      %p884 = por %p882, %p883
      %p885 = scmp.ne.s32.totalorder %s876, %s877
      %p886 = scmp.eq.s32.totalorder %s131, 0
      %p887 = por %p885, %p886
      %p888 = scmp.ne.s32.totalorder %s876, %s877
      %p889 = scmp.eq.s32.totalorder %s132, 1
      %p890 = por %p888, %p889
      %p892 = scmp.ne.s32.totalorder %s877, %s891
      %p893 = scmp.eq.s32.totalorder %s132, 0
      %p894 = por %p892, %p893
      %s896 = sadd.s32 %s895, 1
      %p899 = scmp.eq.s32.totalorder %s126, 1
      %p900 = scmp.ne.s32.totalorder %s895, %s897
      %p901 = scmp.eq.s32.totalorder %s126, 0
      %p902 = por %p900, %p901
      %p903 = scmp.ne.s32.totalorder %s895, %s897
      %p904 = scmp.eq.s32.totalorder %s131, 1
      %p905 = por %p903, %p904
      %p906 = scmp.ne.s32.totalorder %s897, %s898
      %p907 = scmp.eq.s32.totalorder %s131, 0
      %p908 = por %p906, %p907
      %p909 = scmp.ne.s32.totalorder %s897, %s898
      %p910 = scmp.eq.s32.totalorder %s132, 1
      %p911 = por %p909, %p910
      %p913 = scmp.ne.s32.totalorder %s898, %s912
      %p914 = scmp.eq.s32.totalorder %s132, 0
      %p915 = por %p913, %p914
      %s917 = sadd.s32 %s916, 1
      %p920 = scmp.eq.s32.totalorder %s126, 1
      %p921 = scmp.ne.s32.totalorder %s916, %s918
      %p922 = scmp.eq.s32.totalorder %s126, 0
      %p923 = por %p921, %p922
      %p924 = scmp.ne.s32.totalorder %s916, %s918
      %p925 = scmp.eq.s32.totalorder %s131, 1
      %p926 = por %p924, %p925
      %p927 = scmp.ne.s32.totalorder %s918, %s919
      %p928 = scmp.eq.s32.totalorder %s131, 0
      %p929 = por %p927, %p928
      %p930 = scmp.ne.s32.totalorder %s918, %s919
      %p931 = scmp.eq.s32.totalorder %s132, 1
      %p932 = por %p930, %p931
      %p934 = scmp.ne.s32.totalorder %s919, %s933
      %p935 = scmp.eq.s32.totalorder %s132, 0
      %p936 = por %p934, %p935
      %s938 = sadd.s32 %s937, 1
      %p941 = scmp.eq.s32.totalorder %s126, 1
      %p942 = scmp.ne.s32.totalorder %s937, %s939
      %p943 = scmp.eq.s32.totalorder %s126, 0
      %p944 = por %p942, %p943
      %p945 = scmp.ne.s32.totalorder %s937, %s939
      %p946 = scmp.eq.s32.totalorder %s131, 1
      %p947 = por %p945, %p946
      %p948 = scmp.ne.s32.totalorder %s939, %s940
      %p949 = scmp.eq.s32.totalorder %s131, 0
      %p950 = por %p948, %p949
      %p951 = scmp.ne.s32.totalorder %s939, %s940
      %p952 = scmp.eq.s32.totalorder %s132, 1
      %p953 = por %p951, %p952
      %p955 = scmp.ne.s32.totalorder %s940, %s954
      %p956 = scmp.eq.s32.totalorder %s132, 0
      %p957 = por %p955, %p956
      %s959 = sadd.s32 %s958, 1
      %p962 = scmp.eq.s32.totalorder %s126, 1
      %p963 = scmp.ne.s32.totalorder %s958, %s960
      %p964 = scmp.eq.s32.totalorder %s126, 0
      %p965 = por %p963, %p964
      %p966 = scmp.ne.s32.totalorder %s958, %s960
      %p967 = scmp.eq.s32.totalorder %s131, 1
      %p968 = por %p966, %p967
      %p969 = scmp.ne.s32.totalorder %s960, %s961
      %p970 = scmp.eq.s32.totalorder %s131, 0
      %p971 = por %p969, %p970
      %p972 = scmp.ne.s32.totalorder %s960, %s961
      %p973 = scmp.eq.s32.totalorder %s132, 1
      %p974 = por %p972, %p973
      %p976 = scmp.ne.s32.totalorder %s961, %s975
      %p977 = scmp.eq.s32.totalorder %s132, 0
      %p978 = por %p976, %p977
      %s980 = sadd.s32 %s979, 1
      %p983 = scmp.eq.s32.totalorder %s126, 1
      %p984 = scmp.ne.s32.totalorder %s979, %s981
      %p985 = scmp.eq.s32.totalorder %s126, 0
      %p986 = por %p984, %p985
      %p987 = scmp.ne.s32.totalorder %s979, %s981
      %p988 = scmp.eq.s32.totalorder %s131, 1
      %p989 = por %p987, %p988
      %p990 = scmp.ne.s32.totalorder %s981, %s982
      %p991 = scmp.eq.s32.totalorder %s131, 0
      %p992 = por %p990, %p991
      %p993 = scmp.ne.s32.totalorder %s981, %s982
      %p994 = scmp.eq.s32.totalorder %s132, 1
      %p995 = por %p993, %p994
      %p997 = scmp.ne.s32.totalorder %s982, %s996
      %p998 = scmp.eq.s32.totalorder %s132, 0
      %p999 = por %p997, %p998
      %s1001 = sadd.s32 %s1000, 1
      %p1004 = scmp.eq.s32.totalorder %s126, 1
      %p1005 = scmp.ne.s32.totalorder %s1000, %s1002
      %p1006 = scmp.eq.s32.totalorder %s126, 0
      %p1007 = por %p1005, %p1006
      %p1008 = scmp.ne.s32.totalorder %s1000, %s1002
      %p1009 = scmp.eq.s32.totalorder %s131, 1
      %p1010 = por %p1008, %p1009
      %p1011 = scmp.ne.s32.totalorder %s1002, %s1003
      %p1012 = scmp.eq.s32.totalorder %s131, 0
      %p1013 = por %p1011, %p1012
      %p1014 = scmp.ne.s32.totalorder %s1002, %s1003
      %p1015 = scmp.eq.s32.totalorder %s132, 1
      %p1016 = por %p1014, %p1015
      %p1018 = scmp.ne.s32.totalorder %s1003, %s1017
      %p1019 = scmp.eq.s32.totalorder %s132, 0
      %p1020 = por %p1018, %p1019
      %s1022 = sadd.s32 %s1021, 1
      %p1025 = scmp.eq.s32.totalorder %s126, 1
      %p1026 = scmp.ne.s32.totalorder %s1021, %s1023
      %p1027 = scmp.eq.s32.totalorder %s126, 0
      %p1028 = por %p1026, %p1027
      %p1029 = scmp.ne.s32.totalorder %s1021, %s1023
      %p1030 = scmp.eq.s32.totalorder %s131, 1
      %p1031 = por %p1029, %p1030
      %p1032 = scmp.ne.s32.totalorder %s1023, %s1024
      %p1033 = scmp.eq.s32.totalorder %s131, 0
      %p1034 = por %p1032, %p1033
      %p1035 = scmp.ne.s32.totalorder %s1023, %s1024
      %p1036 = scmp.eq.s32.totalorder %s132, 1
      %p1037 = por %p1035, %p1036
      %p1039 = scmp.ne.s32.totalorder %s1024, %s1038
      %p1040 = scmp.eq.s32.totalorder %s132, 0
      %p1041 = por %p1039, %p1040
      %s1043 = sadd.s32 %s1042, 1
      %p1046 = scmp.eq.s32.totalorder %s126, 1
      %p1047 = scmp.ne.s32.totalorder %s1042, %s1044
      %p1048 = scmp.eq.s32.totalorder %s126, 0
      %p1049 = por %p1047, %p1048
      %p1050 = scmp.ne.s32.totalorder %s1042, %s1044
      %p1051 = scmp.eq.s32.totalorder %s131, 1
      %p1052 = por %p1050, %p1051
      %p1053 = scmp.ne.s32.totalorder %s1044, %s1045
      %p1054 = scmp.eq.s32.totalorder %s131, 0
      %p1055 = por %p1053, %p1054
      %p1056 = scmp.ne.s32.totalorder %s1044, %s1045
      %p1057 = scmp.eq.s32.totalorder %s132, 1
      %p1058 = por %p1056, %p1057
      %p1060 = scmp.ne.s32.totalorder %s1045, %s1059
      %p1061 = scmp.eq.s32.totalorder %s132, 0
      %p1062 = por %p1060, %p1061
      %s1064 = sadd.s32 %s1063, 1
      %p1067 = scmp.eq.s32.totalorder %s126, 1
      %p1068 = scmp.ne.s32.totalorder %s1063, %s1065
      %p1069 = scmp.eq.s32.totalorder %s126, 0
      %p1070 = por %p1068, %p1069
      %p1071 = scmp.ne.s32.totalorder %s1063, %s1065
      %p1072 = scmp.eq.s32.totalorder %s131, 1
      %p1073 = por %p1071, %p1072
      %p1074 = scmp.ne.s32.totalorder %s1065, %s1066
      %p1075 = scmp.eq.s32.totalorder %s131, 0
      %p1076 = por %p1074, %p1075
      %p1077 = scmp.ne.s32.totalorder %s1065, %s1066
      %p1078 = scmp.eq.s32.totalorder %s132, 1
      %p1079 = por %p1077, %p1078
      %p1081 = scmp.ne.s32.totalorder %s1066, %s1080
      %p1082 = scmp.eq.s32.totalorder %s132, 0
      %p1083 = por %p1081, %p1082
      %s1085 = sadd.s32 %s1084, 1
      %p1088 = scmp.eq.s32.totalorder %s126, 1
      %p1089 = scmp.ne.s32.totalorder %s1084, %s1086
      %p1090 = scmp.eq.s32.totalorder %s126, 0
      %p1091 = por %p1089, %p1090
      %p1092 = scmp.ne.s32.totalorder %s1084, %s1086
      %p1093 = scmp.eq.s32.totalorder %s131, 1
      %p1094 = por %p1092, %p1093
      %p1095 = scmp.ne.s32.totalorder %s1086, %s1087
      %p1096 = scmp.eq.s32.totalorder %s131, 0
      %p1097 = por %p1095, %p1096
      %p1098 = scmp.ne.s32.totalorder %s1086, %s1087
      %p1099 = scmp.eq.s32.totalorder %s132, 1
      %p1100 = por %p1098, %p1099
      %p1102 = scmp.ne.s32.totalorder %s1087, %s1101
      %p1103 = scmp.eq.s32.totalorder %s132, 0
      %p1104 = por %p1102, %p1103
      %s1106 = sadd.s32 %s1105, 1
      %p1109 = scmp.eq.s32.totalorder %s126, 1
      %p1110 = scmp.ne.s32.totalorder %s1105, %s1107
      %p1111 = scmp.eq.s32.totalorder %s126, 0
      %p1112 = por %p1110, %p1111
      %p1113 = scmp.ne.s32.totalorder %s1105, %s1107
      %p1114 = scmp.eq.s32.totalorder %s131, 1
      %p1115 = por %p1113, %p1114
      %p1116 = scmp.ne.s32.totalorder %s1107, %s1108
      %p1117 = scmp.eq.s32.totalorder %s131, 0
      %p1118 = por %p1116, %p1117
      %p1119 = scmp.ne.s32.totalorder %s1107, %s1108
      %p1120 = scmp.eq.s32.totalorder %s132, 1
      %p1121 = por %p1119, %p1120
      %p1123 = scmp.ne.s32.totalorder %s1108, %s1122
      %p1124 = scmp.eq.s32.totalorder %s132, 0
      %p1125 = por %p1123, %p1124
      %s1127 = sadd.s32 %s1126, 1
      %p1130 = scmp.eq.s32.totalorder %s126, 1
      %p1131 = scmp.ne.s32.totalorder %s1126, %s1128
      %p1132 = scmp.eq.s32.totalorder %s126, 0
      %p1133 = por %p1131, %p1132
      %p1134 = scmp.ne.s32.totalorder %s1126, %s1128
      %p1135 = scmp.eq.s32.totalorder %s131, 1
      %p1136 = por %p1134, %p1135
      %p1137 = scmp.ne.s32.totalorder %s1128, %s1129
      %p1138 = scmp.eq.s32.totalorder %s131, 0
      %p1139 = por %p1137, %p1138
      %p1140 = scmp.ne.s32.totalorder %s1128, %s1129
      %p1141 = scmp.eq.s32.totalorder %s132, 1
      %p1142 = por %p1140, %p1141
      %p1144 = scmp.ne.s32.totalorder %s1129, %s1143
      %p1145 = scmp.eq.s32.totalorder %s132, 0
      %p1146 = por %p1144, %p1145
      %s1148 = sadd.s32 %s1147, 1
      %p1151 = scmp.eq.s32.totalorder %s126, 1
      %p1152 = scmp.ne.s32.totalorder %s1147, %s1149
      %p1153 = scmp.eq.s32.totalorder %s126, 0
      %p1154 = por %p1152, %p1153
      %p1155 = scmp.ne.s32.totalorder %s1147, %s1149
      %p1156 = scmp.eq.s32.totalorder %s131, 1
      %p1157 = por %p1155, %p1156
      %p1158 = scmp.ne.s32.totalorder %s1149, %s1150
      %p1159 = scmp.eq.s32.totalorder %s131, 0
      %p1160 = por %p1158, %p1159
      %p1161 = scmp.ne.s32.totalorder %s1149, %s1150
      %p1162 = scmp.eq.s32.totalorder %s132, 1
      %p1163 = por %p1161, %p1162
      %p1165 = scmp.ne.s32.totalorder %s1150, %s1164
      %p1166 = scmp.eq.s32.totalorder %s132, 0
      %p1167 = por %p1165, %p1166
      %s1169 = sadd.s32 %s1168, 1
      %p1172 = scmp.eq.s32.totalorder %s126, 1
      %p1173 = scmp.ne.s32.totalorder %s1168, %s1170
      %p1174 = scmp.eq.s32.totalorder %s126, 0
      %p1175 = por %p1173, %p1174
      %p1176 = scmp.ne.s32.totalorder %s1168, %s1170
      %p1177 = scmp.eq.s32.totalorder %s131, 1
      %p1178 = por %p1176, %p1177
      %p1179 = scmp.ne.s32.totalorder %s1170, %s1171
      %p1180 = scmp.eq.s32.totalorder %s131, 0
      %p1181 = por %p1179, %p1180
      %p1182 = scmp.ne.s32.totalorder %s1170, %s1171
      %p1183 = scmp.eq.s32.totalorder %s132, 1
      %p1184 = por %p1182, %p1183
      %p1186 = scmp.ne.s32.totalorder %s1171, %s1185
      %p1187 = scmp.eq.s32.totalorder %s132, 0
      %p1188 = por %p1186, %p1187
      %s1190 = sadd.s32 %s1189, 1
      %p1193 = scmp.eq.s32.totalorder %s126, 1
      %p1194 = scmp.ne.s32.totalorder %s1189, %s1191
      %p1195 = scmp.eq.s32.totalorder %s126, 0
      %p1196 = por %p1194, %p1195
      %p1197 = scmp.ne.s32.totalorder %s1189, %s1191
      %p1198 = scmp.eq.s32.totalorder %s131, 1
      %p1199 = por %p1197, %p1198
      %p1200 = scmp.ne.s32.totalorder %s1191, %s1192
      %p1201 = scmp.eq.s32.totalorder %s131, 0
      %p1202 = por %p1200, %p1201
      %p1203 = scmp.ne.s32.totalorder %s1191, %s1192
      %p1204 = scmp.eq.s32.totalorder %s132, 1
      %p1205 = por %p1203, %p1204
      %p1207 = scmp.ne.s32.totalorder %s1192, %s1206
      %p1208 = scmp.eq.s32.totalorder %s132, 0
      %p1209 = por %p1207, %p1208
      %s1211 = sadd.s32 %s1210, 1
      %p1214 = scmp.eq.s32.totalorder %s126, 1
      %p1215 = scmp.ne.s32.totalorder %s1210, %s1212
      %p1216 = scmp.eq.s32.totalorder %s126, 0
      %p1217 = por %p1215, %p1216
      %p1218 = scmp.ne.s32.totalorder %s1210, %s1212
      %p1219 = scmp.eq.s32.totalorder %s131, 1
      %p1220 = por %p1218, %p1219
      %p1221 = scmp.ne.s32.totalorder %s1212, %s1213
      %p1222 = scmp.eq.s32.totalorder %s131, 0
      %p1223 = por %p1221, %p1222
      %p1224 = scmp.ne.s32.totalorder %s1212, %s1213
      %p1225 = scmp.eq.s32.totalorder %s132, 1
      %p1226 = por %p1224, %p1225
      %p1228 = scmp.ne.s32.totalorder %s1213, %s1227
      %p1229 = scmp.eq.s32.totalorder %s132, 0
      %p1230 = por %p1228, %p1229
      %s1232 = sadd.s32 %s1231, 1
      %p1235 = scmp.eq.s32.totalorder %s126, 1
      %p1236 = scmp.ne.s32.totalorder %s1231, %s1233
      %p1237 = scmp.eq.s32.totalorder %s126, 0
      %p1238 = por %p1236, %p1237
      %p1239 = scmp.ne.s32.totalorder %s1231, %s1233
      %p1240 = scmp.eq.s32.totalorder %s131, 1
      %p1241 = por %p1239, %p1240
      %p1242 = scmp.ne.s32.totalorder %s1233, %s1234
      %p1243 = scmp.eq.s32.totalorder %s131, 0
      %p1244 = por %p1242, %p1243
      %p1245 = scmp.ne.s32.totalorder %s1233, %s1234
      %p1246 = scmp.eq.s32.totalorder %s132, 1
      %p1247 = por %p1245, %p1246
      %p1249 = scmp.ne.s32.totalorder %s1234, %s1248
      %p1250 = scmp.eq.s32.totalorder %s132, 0
      %p1251 = por %p1249, %p1250
      %s1253 = sadd.s32 %s1252, 1
      %p1256 = scmp.eq.s32.totalorder %s126, 1
      %p1257 = scmp.ne.s32.totalorder %s1252, %s1254
      %p1258 = scmp.eq.s32.totalorder %s126, 0
      %p1259 = por %p1257, %p1258
      %p1260 = scmp.ne.s32.totalorder %s1252, %s1254
      %p1261 = scmp.eq.s32.totalorder %s131, 1
      %p1262 = por %p1260, %p1261
      %p1263 = scmp.ne.s32.totalorder %s1254, %s1255
      %p1264 = scmp.eq.s32.totalorder %s131, 0
      %p1265 = por %p1263, %p1264
      %p1266 = scmp.ne.s32.totalorder %s1254, %s1255
      %p1267 = scmp.eq.s32.totalorder %s132, 1
      %p1268 = por %p1266, %p1267
      %p1270 = scmp.ne.s32.totalorder %s1255, %s1269
      %p1271 = scmp.eq.s32.totalorder %s132, 0
      %p1272 = por %p1270, %p1271
      %s1274 = sadd.s32 %s1273, 1
      %p1277 = scmp.eq.s32.totalorder %s126, 1
      %p1278 = scmp.ne.s32.totalorder %s1273, %s1275
      %p1279 = scmp.eq.s32.totalorder %s126, 0
      %p1280 = por %p1278, %p1279
      %p1281 = scmp.ne.s32.totalorder %s1273, %s1275
      %p1282 = scmp.eq.s32.totalorder %s131, 1
      %p1283 = por %p1281, %p1282
      %p1284 = scmp.ne.s32.totalorder %s1275, %s1276
      %p1285 = scmp.eq.s32.totalorder %s131, 0
      %p1286 = por %p1284, %p1285
      %p1287 = scmp.ne.s32.totalorder %s1275, %s1276
      %p1288 = scmp.eq.s32.totalorder %s132, 1
      %p1289 = por %p1287, %p1288
      %p1291 = scmp.ne.s32.totalorder %s1276, %s1290
      %p1292 = scmp.eq.s32.totalorder %s132, 0
      %p1293 = por %p1291, %p1292
      %s1295 = sadd.s32 %s1294, 1
      %p1298 = scmp.eq.s32.totalorder %s126, 1
      %p1299 = scmp.ne.s32.totalorder %s1294, %s1296
      %p1300 = scmp.eq.s32.totalorder %s126, 0
      %p1301 = por %p1299, %p1300
      %p1302 = scmp.ne.s32.totalorder %s1294, %s1296
      %p1303 = scmp.eq.s32.totalorder %s131, 1
      %p1304 = por %p1302, %p1303
      %p1305 = scmp.ne.s32.totalorder %s1296, %s1297
      %p1306 = scmp.eq.s32.totalorder %s131, 0
      %p1307 = por %p1305, %p1306
      %p1308 = scmp.ne.s32.totalorder %s1296, %s1297
      %p1309 = scmp.eq.s32.totalorder %s132, 1
      %p1310 = por %p1308, %p1309
      %p1312 = scmp.ne.s32.totalorder %s1297, %s1311
      %p1313 = scmp.eq.s32.totalorder %s132, 0
      %p1314 = por %p1312, %p1313
      %s1315 = ssub.s32 %s126, %s133
      %p1316 = scmp.eq.s32.totalorder %s1315, 0
      %s1318 = sadd.s32 %s1317, 1
      %s1319 = scalar_select %p1316, %s1317, %s1318
      %p1322 = pneg %p1316
      %p1323 = scmp.eq.s32.totalorder %s126, 1
      %p1324 = por %p1322, %p1323
      %p1325 = scmp.ne.s32.totalorder %s1317, %s1320
      %p1326 = scmp.eq.s32.totalorder %s126, 0
      %p1327 = por %p1325, %p1326
      %p1328 = scmp.ne.s32.totalorder %s1317, %s1320
      %p1329 = scmp.eq.s32.totalorder %s131, 1
      %p1330 = por %p1328, %p1329
      %p1331 = scmp.ne.s32.totalorder %s1320, %s1321
      %p1332 = scmp.eq.s32.totalorder %s131, 0
      %p1333 = por %p1331, %p1332
      %p1334 = scmp.ne.s32.totalorder %s1320, %s1321
      %p1335 = scmp.eq.s32.totalorder %s132, 1
      %p1336 = por %p1334, %p1335
      %p1338 = scmp.ne.s32.totalorder %s1321, %s1337
      %p1339 = scmp.eq.s32.totalorder %s132, 0
      %p1340 = por %p1338, %p1339
      %p1341 = scmp.le.s32.totalorder 1, %s126
      %p1342 = scmp.lt.s32.totalorder %s126, 3
      %p1343 = pnand %p1341, %p1342
      %p1344 = pneg %p1343
      // Predicated region
      $region9: #{mlda_pallas.1} parent=5 // pred_check
        _
      $region10: #{mlda_pallas.1} parent=5 // pred_check_branch
        %1346 = sbr.rel (%p1343) target = $region12
      $region11: #{mlda_pallas.1} parent=5 // pred_region
        %s1347 = ssub.s32 %s126, 1
        // Predicated region
        $region13: #{mlda_pallas.1} parent=11 // pred_check
          %p1348 = pneg %p173
        $region14: #{mlda_pallas.1} parent=11 // pred_check_branch
          %1350 = sbr.rel (%p1348) target = $region16
        $region15: #{mlda_pallas.1} parent=11 // pred_region
          _
        $region16: #{mlda_pallas.1} parent=11 // pred_fallthru
          _
        // Predicated region
        $region17: #{mlda_pallas.1} parent=11 // pred_check
          %p1351 = pneg %p194
        $region18: #{mlda_pallas.1} parent=11 // pred_check_branch
          %1353 = sbr.rel (%p1351) target = $region20
        $region19: #{mlda_pallas.1} parent=11 // pred_region
          _
        $region20: #{mlda_pallas.1} parent=11 // pred_fallthru
          _
        // Predicated region
        $region21: #{mlda_pallas.1} parent=11 // pred_check
          %p1354 = pneg %p215
        $region22: #{mlda_pallas.1} parent=11 // pred_check_branch
          %1356 = sbr.rel (%p1354) target = $region24
        $region23: #{mlda_pallas.1} parent=11 // pred_region
          _
        $region24: #{mlda_pallas.1} parent=11 // pred_fallthru
          _
        // Predicated region
        $region25: #{mlda_pallas.1} parent=11 // pred_check
          %p1357 = pneg %p236
        $region26: #{mlda_pallas.1} parent=11 // pred_check_branch
          %1359 = sbr.rel (%p1357) target = $region28
        $region27: #{mlda_pallas.1} parent=11 // pred_region
          _
        $region28: #{mlda_pallas.1} parent=11 // pred_fallthru
          _
        // Predicated region
        $region29: #{mlda_pallas.1} parent=11 // pred_check
          %p1360 = pneg %p257
        $region30: #{mlda_pallas.1} parent=11 // pred_check_branch
          %1362 = sbr.rel (%p1360) target = $region32
        $region31: #{mlda_pallas.1} parent=11 // pred_region
          _
        $region32: #{mlda_pallas.1} parent=11 // pred_fallthru
          _
        // Predicated region
        $region33: #{mlda_pallas.1} parent=11 // pred_check
          %p1363 = pneg %p278
        $region34: #{mlda_pallas.1} parent=11 // pred_check_branch
          %1365 = sbr.rel (%p1363) target = $region36
        $region35: #{mlda_pallas.1} parent=11 // pred_region
          _
        $region36: #{mlda_pallas.1} parent=11 // pred_fallthru
          _
        // Predicated region
        $region37: #{mlda_pallas.1} parent=11 // pred_check
          %p1366 = pneg %p299
        $region38: #{mlda_pallas.1} parent=11 // pred_check_branch
          %1368 = sbr.rel (%p1366) target = $region40
        $region39: #{mlda_pallas.1} parent=11 // pred_region
          _
        $region40: #{mlda_pallas.1} parent=11 // pred_fallthru
          _
        // Predicated region
        $region41: #{mlda_pallas.1} parent=11 // pred_check
          %p1369 = pneg %p320
        $region42: #{mlda_pallas.1} parent=11 // pred_check_branch
          %1371 = sbr.rel (%p1369) target = $region44
        $region43: #{mlda_pallas.1} parent=11 // pred_region
          %s1373 = ssub.s32 384, 384
          %1374 = vsyncadd [#allocation4], %s1373
          %s1375 = sshll.u32 [#allocation3], 4
          %s1376 = int_to_ptr.vmem [resolvable:$true] %s1375
          %1381 = dma.hbm_to_vmem [thread:$0]  %s17, 384, %s1376, [#allocation4], 128, 128, 8
        $region44: #{mlda_pallas.1} parent=11 // pred_fallthru
          _
        // Predicated region
        $region45: #{mlda_pallas.1} parent=11 // pred_check
          %p1382 = pneg %p341
        $region46: #{mlda_pallas.1} parent=11 // pred_check_branch
          %1384 = sbr.rel (%p1382) target = $region48
        $region47: #{mlda_pallas.1} parent=11 // pred_region
          _
        $region48: #{mlda_pallas.1} parent=11 // pred_fallthru
          _
        // Predicated region
        $region49: #{mlda_pallas.1} parent=11 // pred_check
          %p1385 = pneg %p362
        $region50: #{mlda_pallas.1} parent=11 // pred_check_branch
          %1387 = sbr.rel (%p1385) target = $region52
        $region51: #{mlda_pallas.1} parent=11 // pred_region
          %s1389 = ssub.s32 384, 384
          %1390 = vsyncadd [#allocation6], %s1389
          %s1391 = sshll.u32 [#allocation5], 4
          %s1392 = int_to_ptr.vmem [resolvable:$true] %s1391
          %1397 = dma.hbm_to_vmem [thread:$0]  %s21, 384, %s1392, [#allocation6], 128, 128, 8
        $region52: #{mlda_pallas.1} parent=11 // pred_fallthru
          _
        // Predicated region
        $region53: #{mlda_pallas.1} parent=11 // pred_check
          %p1398 = pneg %p383
        $region54: #{mlda_pallas.1} parent=11 // pred_check_branch
          %1400 = sbr.rel (%p1398) target = $region56
        $region55: #{mlda_pallas.1} parent=11 // pred_region
          _
        $region56: #{mlda_pallas.1} parent=11 // pred_fallthru
          _
        // Predicated region
        $region57: #{mlda_pallas.1} parent=11 // pred_check
          %p1401 = pneg %p404
        $region58: #{mlda_pallas.1} parent=11 // pred_check_branch
          %1403 = sbr.rel (%p1401) target = $region60
        $region59: #{mlda_pallas.1} parent=11 // pred_region
          %s1405 = ssub.s32 640, 640
          %1406 = vsyncadd [#allocation6], %s1405
          %s1407 = sshll.u32 [#allocation7], 4
          %s1408 = int_to_ptr.vmem [resolvable:$true] %s1407
          %1413 = dma.hbm_to_vmem [thread:$0]  %s25, 640, %s1408, [#allocation6], 128, 128, 8
        $region60: #{mlda_pallas.1} parent=11 // pred_fallthru
          _
        // Predicated region
        $region61: #{mlda_pallas.1} parent=11 // pred_check
          %p1414 = pneg %p425
        $region62: #{mlda_pallas.1} parent=11 // pred_check_branch
          %1416 = sbr.rel (%p1414) target = $region64
        $region63: #{mlda_pallas.1} parent=11 // pred_region
          _
        $region64: #{mlda_pallas.1} parent=11 // pred_fallthru
          _
        // Predicated region
        $region65: #{mlda_pallas.1} parent=11 // pred_check
          %p1417 = pneg %p446
        $region66: #{mlda_pallas.1} parent=11 // pred_check_branch
          %1419 = sbr.rel (%p1417) target = $region68
        $region67: #{mlda_pallas.1} parent=11 // pred_region
          %s1421 = ssub.s32 640, 640
          %1422 = vsyncadd [#allocation9], %s1421
          %s1423 = sshll.u32 [#allocation8], 4
          %s1424 = int_to_ptr.vmem [resolvable:$true] %s1423
          %1429 = dma.hbm_to_vmem [thread:$0]  %s29, 640, %s1424, [#allocation9], 128, 128, 8
        $region68: #{mlda_pallas.1} parent=11 // pred_fallthru
          _
        // Predicated region
        $region69: #{mlda_pallas.1} parent=11 // pred_check
          %p1430 = pneg %p467
        $region70: #{mlda_pallas.1} parent=11 // pred_check_branch
          %1432 = sbr.rel (%p1430) target = $region72
        $region71: #{mlda_pallas.1} parent=11 // pred_region
          _
        $region72: #{mlda_pallas.1} parent=11 // pred_fallthru
          _
        // Predicated region
        $region73: #{mlda_pallas.1} parent=11 // pred_check
          %p1433 = pneg %p488
        $region74: #{mlda_pallas.1} parent=11 // pred_check_branch
          %1435 = sbr.rel (%p1433) target = $region76
        $region75: #{mlda_pallas.1} parent=11 // pred_region
          _
        $region76: #{mlda_pallas.1} parent=11 // pred_fallthru
          _
        // Predicated region
        $region77: #{mlda_pallas.1} parent=11 // pred_check
          %p1436 = pneg %p509
        $region78: #{mlda_pallas.1} parent=11 // pred_check_branch
          %1438 = sbr.rel (%p1436) target = $region80
        $region79: #{mlda_pallas.1} parent=11 // pred_region
          _
        $region80: #{mlda_pallas.1} parent=11 // pred_fallthru
          _
        // Predicated region
        $region81: #{mlda_pallas.1} parent=11 // pred_check
          %p1439 = pneg %p530
        $region82: #{mlda_pallas.1} parent=11 // pred_check_branch
          %1441 = sbr.rel (%p1439) target = $region84
        $region83: #{mlda_pallas.1} parent=11 // pred_region
          %s1443 = ssub.s32 640, 640
          %1444 = vsyncadd [#allocation9], %s1443
          %s1445 = sshll.u32 [#allocation10], 4
          %s1446 = int_to_ptr.vmem [resolvable:$true] %s1445
          %1451 = dma.hbm_to_vmem [thread:$0]  %s37, 640, %s1446, [#allocation9], 128, 128, 8
        $region84: #{mlda_pallas.1} parent=11 // pred_fallthru
          _
        // Predicated region
        $region85: #{mlda_pallas.1} parent=11 // pred_check
          %p1452 = pneg %p551
        $region86: #{mlda_pallas.1} parent=11 // pred_check_branch
          %1454 = sbr.rel (%p1452) target = $region88
        $region87: #{mlda_pallas.1} parent=11 // pred_region
          _
        $region88: #{mlda_pallas.1} parent=11 // pred_fallthru
          _
        // Predicated region
        $region89: #{mlda_pallas.1} parent=11 // pred_check
          %p1455 = pneg %p572
        $region90: #{mlda_pallas.1} parent=11 // pred_check_branch
          %1457 = sbr.rel (%p1455) target = $region92
        $region91: #{mlda_pallas.1} parent=11 // pred_region
          %s1459 = ssub.s32 640, 640
          %1460 = vsyncadd [#allocation12], %s1459
          %s1461 = sshll.u32 [#allocation11], 4
          %s1462 = int_to_ptr.vmem [resolvable:$true] %s1461
          %1467 = dma.hbm_to_vmem [thread:$0]  %s41, 640, %s1462, [#allocation12], 128, 128, 8
        $region92: #{mlda_pallas.1} parent=11 // pred_fallthru
          _
        // Predicated region
        $region93: #{mlda_pallas.1} parent=11 // pred_check
          %p1468 = pneg %p593
        $region94: #{mlda_pallas.1} parent=11 // pred_check_branch
          %1470 = sbr.rel (%p1468) target = $region96
        $region95: #{mlda_pallas.1} parent=11 // pred_region
          _
        $region96: #{mlda_pallas.1} parent=11 // pred_fallthru
          _
        // Predicated region
        $region97: #{mlda_pallas.1} parent=11 // pred_check
          %p1471 = pneg %p614
        $region98: #{mlda_pallas.1} parent=11 // pred_check_branch
          %1473 = sbr.rel (%p1471) target = $region100
        $region99: #{mlda_pallas.1} parent=11 // pred_region
          %s1475 = ssub.s32 896, 896
          %1476 = vsyncadd [#allocation12], %s1475
          %s1477 = sshll.u32 [#allocation13], 4
          %s1478 = int_to_ptr.vmem [resolvable:$true] %s1477
          %1483 = dma.hbm_to_vmem [thread:$0]  %s45, 896, %s1478, [#allocation12], 128, 128, 8
        $region100: #{mlda_pallas.1} parent=11 // pred_fallthru
          _
        // Predicated region
        $region101: #{mlda_pallas.1} parent=11 // pred_check
          %p1484 = pneg %p635
        $region102: #{mlda_pallas.1} parent=11 // pred_check_branch
          %1486 = sbr.rel (%p1484) target = $region104
        $region103: #{mlda_pallas.1} parent=11 // pred_region
          _
        $region104: #{mlda_pallas.1} parent=11 // pred_fallthru
          _
        // Predicated region
        $region105: #{mlda_pallas.1} parent=11 // pred_check
          %p1487 = pneg %p656
        $region106: #{mlda_pallas.1} parent=11 // pred_check_branch
          %1489 = sbr.rel (%p1487) target = $region108
        $region107: #{mlda_pallas.1} parent=11 // pred_region
          %s1491 = ssub.s32 896, 896
          %1492 = vsyncadd [#allocation15], %s1491
          %s1493 = sshll.u32 [#allocation14], 4
          %s1494 = int_to_ptr.vmem [resolvable:$true] %s1493
          %1499 = dma.hbm_to_vmem [thread:$0]  %s49, 896, %s1494, [#allocation15], 128, 128, 8
        $region108: #{mlda_pallas.1} parent=11 // pred_fallthru
          _
        // Predicated region
        $region109: #{mlda_pallas.1} parent=11 // pred_check
          %p1500 = pneg %p677
        $region110: #{mlda_pallas.1} parent=11 // pred_check_branch
          %1502 = sbr.rel (%p1500) target = $region112
        $region111: #{mlda_pallas.1} parent=11 // pred_region
          _
        $region112: #{mlda_pallas.1} parent=11 // pred_fallthru
          _
        // Predicated region
        $region113: #{mlda_pallas.1} parent=11 // pred_check
          %p1503 = pneg %p698
        $region114: #{mlda_pallas.1} parent=11 // pred_check_branch
          %1505 = sbr.rel (%p1503) target = $region116
        $region115: #{mlda_pallas.1} parent=11 // pred_region
          %s1507 = ssub.s32 64, 64
          %1508 = vsyncadd [#allocation15], %s1507
          %s1510 = sshll.u32 [#allocation16], 4
          %s1511 = int_to_ptr.vmem [resolvable:$true] %s1510
          %1513 = dma.hbm_to_vmem [thread:$0]  %s53, 64, %s1511, [#allocation15]
        $region116: #{mlda_pallas.1} parent=11 // pred_fallthru
          _
        // Predicated region
        $region117: #{mlda_pallas.1} parent=11 // pred_check
          %p1514 = pneg %p719
        $region118: #{mlda_pallas.1} parent=11 // pred_check_branch
          %1516 = sbr.rel (%p1514) target = $region120
        $region119: #{mlda_pallas.1} parent=11 // pred_region
          _
        $region120: #{mlda_pallas.1} parent=11 // pred_fallthru
          _
        // Predicated region
        $region121: #{mlda_pallas.1} parent=11 // pred_check
          %p1517 = pneg %p740
        $region122: #{mlda_pallas.1} parent=11 // pred_check_branch
          %1519 = sbr.rel (%p1517) target = $region124
        $region123: #{mlda_pallas.1} parent=11 // pred_region
          %s1521 = ssub.s32 896, 896
          %1522 = vsyncadd [#allocation18], %s1521
          %s1523 = sshll.u32 [#allocation17], 4
          %s1524 = int_to_ptr.vmem [resolvable:$true] %s1523
          %1529 = dma.hbm_to_vmem [thread:$0]  %s57, 896, %s1524, [#allocation18], 128, 128, 8
        $region124: #{mlda_pallas.1} parent=11 // pred_fallthru
          _
        // Predicated region
        $region125: #{mlda_pallas.1} parent=11 // pred_check
          %p1530 = pneg %p761
        $region126: #{mlda_pallas.1} parent=11 // pred_check_branch
          %1532 = sbr.rel (%p1530) target = $region128
        $region127: #{mlda_pallas.1} parent=11 // pred_region
          _
        $region128: #{mlda_pallas.1} parent=11 // pred_fallthru
          _
        // Predicated region
        $region129: #{mlda_pallas.1} parent=11 // pred_check
          %p1533 = pneg %p782
        $region130: #{mlda_pallas.1} parent=11 // pred_check_branch
          %1535 = sbr.rel (%p1533) target = $region132
        $region131: #{mlda_pallas.1} parent=11 // pred_region
          %s1537 = ssub.s32 896, 896
          %1538 = vsyncadd [#allocation18], %s1537
          %s1539 = sshll.u32 [#allocation19], 4
          %s1540 = int_to_ptr.vmem [resolvable:$true] %s1539
          %1545 = dma.hbm_to_vmem [thread:$0]  %s61, 896, %s1540, [#allocation18], 128, 128, 8
        $region132: #{mlda_pallas.1} parent=11 // pred_fallthru
          _
        // Predicated region
        $region133: #{mlda_pallas.1} parent=11 // pred_check
          %p1546 = pneg %p803
        $region134: #{mlda_pallas.1} parent=11 // pred_check_branch
          %1548 = sbr.rel (%p1546) target = $region136
        $region135: #{mlda_pallas.1} parent=11 // pred_region
          _
        $region136: #{mlda_pallas.1} parent=11 // pred_fallthru
          _
        // Predicated region
        $region137: #{mlda_pallas.1} parent=11 // pred_check
          %p1549 = pneg %p824
        $region138: #{mlda_pallas.1} parent=11 // pred_check_branch
          %1551 = sbr.rel (%p1549) target = $region140
        $region139: #{mlda_pallas.1} parent=11 // pred_region
          _
        $region140: #{mlda_pallas.1} parent=11 // pred_fallthru
          _
        // Predicated region
        $region141: #{mlda_pallas.1} parent=11 // pred_check
          %p1552 = pneg %p845
        $region142: #{mlda_pallas.1} parent=11 // pred_check_branch
          %1554 = sbr.rel (%p1552) target = $region144
        $region143: #{mlda_pallas.1} parent=11 // pred_region
          _
        $region144: #{mlda_pallas.1} parent=11 // pred_fallthru
          _
        // Predicated region
        $region145: #{mlda_pallas.1} parent=11 // pred_check
          %p1555 = pneg %p866
        $region146: #{mlda_pallas.1} parent=11 // pred_check_branch
          %1557 = sbr.rel (%p1555) target = $region148
        $region147: #{mlda_pallas.1} parent=11 // pred_region
          %s1559 = ssub.s32 1152, 1152
          %1560 = vsyncadd [#allocation21], %s1559
          %s1561 = sshll.u32 [#allocation20], 4
          %s1562 = int_to_ptr.vmem [resolvable:$true] %s1561
          %1567 = dma.hbm_to_vmem [thread:$0]  %s69, 1152, %s1562, [#allocation21], 128, 128, 8
        $region148: #{mlda_pallas.1} parent=11 // pred_fallthru
          _
        // Predicated region
        $region149: #{mlda_pallas.1} parent=11 // pred_check
          %p1568 = pneg %p887
        $region150: #{mlda_pallas.1} parent=11 // pred_check_branch
          %1570 = sbr.rel (%p1568) target = $region152
        $region151: #{mlda_pallas.1} parent=11 // pred_region
          _
        $region152: #{mlda_pallas.1} parent=11 // pred_fallthru
          _
        // Predicated region
        $region153: #{mlda_pallas.1} parent=11 // pred_check
          %p1571 = pneg %p908
        $region154: #{mlda_pallas.1} parent=11 // pred_check_branch
          %1573 = sbr.rel (%p1571) target = $region156
        $region155: #{mlda_pallas.1} parent=11 // pred_region
          _
        $region156: #{mlda_pallas.1} parent=11 // pred_fallthru
          _
        // Predicated region
        $region157: #{mlda_pallas.1} parent=11 // pred_check
          %p1574 = pneg %p929
        $region158: #{mlda_pallas.1} parent=11 // pred_check_branch
          %1576 = sbr.rel (%p1574) target = $region160
        $region159: #{mlda_pallas.1} parent=11 // pred_region
          _
        $region160: #{mlda_pallas.1} parent=11 // pred_fallthru
          _
        // Predicated region
        $region161: #{mlda_pallas.1} parent=11 // pred_check
          %p1577 = pneg %p950
        $region162: #{mlda_pallas.1} parent=11 // pred_check_branch
          %1579 = sbr.rel (%p1577) target = $region164
        $region163: #{mlda_pallas.1} parent=11 // pred_region
          _
        $region164: #{mlda_pallas.1} parent=11 // pred_fallthru
          _
        // Predicated region
        $region165: #{mlda_pallas.1} parent=11 // pred_check
          %p1580 = pneg %p971
        $region166: #{mlda_pallas.1} parent=11 // pred_check_branch
          %1582 = sbr.rel (%p1580) target = $region168
        $region167: #{mlda_pallas.1} parent=11 // pred_region
          _
        $region168: #{mlda_pallas.1} parent=11 // pred_fallthru
          _
        // Predicated region
        $region169: #{mlda_pallas.1} parent=11 // pred_check
          %p1583 = pneg %p992
        $region170: #{mlda_pallas.1} parent=11 // pred_check_branch
          %1585 = sbr.rel (%p1583) target = $region172
        $region171: #{mlda_pallas.1} parent=11 // pred_region
          _
        $region172: #{mlda_pallas.1} parent=11 // pred_fallthru
          _
        // Predicated region
        $region173: #{mlda_pallas.1} parent=11 // pred_check
          %p1586 = pneg %p1013
        $region174: #{mlda_pallas.1} parent=11 // pred_check_branch
          %1588 = sbr.rel (%p1586) target = $region176
        $region175: #{mlda_pallas.1} parent=11 // pred_region
          _
        $region176: #{mlda_pallas.1} parent=11 // pred_fallthru
          _
        // Predicated region
        $region177: #{mlda_pallas.1} parent=11 // pred_check
          %p1589 = pneg %p1034
        $region178: #{mlda_pallas.1} parent=11 // pred_check_branch
          %1591 = sbr.rel (%p1589) target = $region180
        $region179: #{mlda_pallas.1} parent=11 // pred_region
          _
        $region180: #{mlda_pallas.1} parent=11 // pred_fallthru
          _
        // Predicated region
        $region181: #{mlda_pallas.1} parent=11 // pred_check
          %p1592 = pneg %p1055
        $region182: #{mlda_pallas.1} parent=11 // pred_check_branch
          %1594 = sbr.rel (%p1592) target = $region184
        $region183: #{mlda_pallas.1} parent=11 // pred_region
          _
        $region184: #{mlda_pallas.1} parent=11 // pred_fallthru
          _
        // Predicated region
        $region185: #{mlda_pallas.1} parent=11 // pred_check
          %p1595 = pneg %p1076
        $region186: #{mlda_pallas.1} parent=11 // pred_check_branch
          %1597 = sbr.rel (%p1595) target = $region188
        $region187: #{mlda_pallas.1} parent=11 // pred_region
          _
        $region188: #{mlda_pallas.1} parent=11 // pred_fallthru
          _
        // Predicated region
        $region189: #{mlda_pallas.1} parent=11 // pred_check
          %p1598 = pneg %p1097
        $region190: #{mlda_pallas.1} parent=11 // pred_check_branch
          %1600 = sbr.rel (%p1598) target = $region192
        $region191: #{mlda_pallas.1} parent=11 // pred_region
          _
        $region192: #{mlda_pallas.1} parent=11 // pred_fallthru
          _
        // Predicated region
        $region193: #{mlda_pallas.1} parent=11 // pred_check
          %p1601 = pneg %p1118
        $region194: #{mlda_pallas.1} parent=11 // pred_check_branch
          %1603 = sbr.rel (%p1601) target = $region196
        $region195: #{mlda_pallas.1} parent=11 // pred_region
          _
        $region196: #{mlda_pallas.1} parent=11 // pred_fallthru
          _
        // Predicated region
        $region197: #{mlda_pallas.1} parent=11 // pred_check
          %p1604 = pneg %p1139
        $region198: #{mlda_pallas.1} parent=11 // pred_check_branch
          %1606 = sbr.rel (%p1604) target = $region200
        $region199: #{mlda_pallas.1} parent=11 // pred_region
          _
        $region200: #{mlda_pallas.1} parent=11 // pred_fallthru
          _
        // Predicated region
        $region201: #{mlda_pallas.1} parent=11 // pred_check
          %p1607 = pneg %p1160
        $region202: #{mlda_pallas.1} parent=11 // pred_check_branch
          %1609 = sbr.rel (%p1607) target = $region204
        $region203: #{mlda_pallas.1} parent=11 // pred_region
          _
        $region204: #{mlda_pallas.1} parent=11 // pred_fallthru
          _
        // Predicated region
        $region205: #{mlda_pallas.1} parent=11 // pred_check
          %p1610 = pneg %p1181
        $region206: #{mlda_pallas.1} parent=11 // pred_check_branch
          %1612 = sbr.rel (%p1610) target = $region208
        $region207: #{mlda_pallas.1} parent=11 // pred_region
          _
        $region208: #{mlda_pallas.1} parent=11 // pred_fallthru
          _
        // Predicated region
        $region209: #{mlda_pallas.1} parent=11 // pred_check
          %p1613 = pneg %p1202
        $region210: #{mlda_pallas.1} parent=11 // pred_check_branch
          %1615 = sbr.rel (%p1613) target = $region212
        $region211: #{mlda_pallas.1} parent=11 // pred_region
          _
        $region212: #{mlda_pallas.1} parent=11 // pred_fallthru
          _
        // Predicated region
        $region213: #{mlda_pallas.1} parent=11 // pred_check
          %p1616 = pneg %p1223
        $region214: #{mlda_pallas.1} parent=11 // pred_check_branch
          %1618 = sbr.rel (%p1616) target = $region216
        $region215: #{mlda_pallas.1} parent=11 // pred_region
          _
        $region216: #{mlda_pallas.1} parent=11 // pred_fallthru
          _
        // Predicated region
        $region217: #{mlda_pallas.1} parent=11 // pred_check
          %p1619 = pneg %p1244
        $region218: #{mlda_pallas.1} parent=11 // pred_check_branch
          %1621 = sbr.rel (%p1619) target = $region220
        $region219: #{mlda_pallas.1} parent=11 // pred_region
          _
        $region220: #{mlda_pallas.1} parent=11 // pred_fallthru
          _
        // Predicated region
        $region221: #{mlda_pallas.1} parent=11 // pred_check
          %p1622 = pneg %p1265
        $region222: #{mlda_pallas.1} parent=11 // pred_check_branch
          %1624 = sbr.rel (%p1622) target = $region224
        $region223: #{mlda_pallas.1} parent=11 // pred_region
          _
        $region224: #{mlda_pallas.1} parent=11 // pred_fallthru
          _
        // Predicated region
        $region225: #{mlda_pallas.1} parent=11 // pred_check
          %p1625 = pneg %p1286
        $region226: #{mlda_pallas.1} parent=11 // pred_check_branch
          %1627 = sbr.rel (%p1625) target = $region228
        $region227: #{mlda_pallas.1} parent=11 // pred_region
          _
        $region228: #{mlda_pallas.1} parent=11 // pred_fallthru
          _
        // Predicated region
        $region229: #{mlda_pallas.1} parent=11 // pred_check
          %p1628 = pneg %p1307
        $region230: #{mlda_pallas.1} parent=11 // pred_check_branch
          %1630 = sbr.rel (%p1628) target = $region232
        $region231: #{mlda_pallas.1} parent=11 // pred_region
          _
        $region232: #{mlda_pallas.1} parent=11 // pred_fallthru
          _
      $region12: #{mlda_pallas.1} parent=5 // pred_fallthru
        _
      %p1631 = scmp.lt.s32.totalorder %s126, 2
      // Predicated region
      $region233: #{mlda_pallas.1} parent=5 // pred_check
        %p1632 = pneg %p1631
      $region234: #{mlda_pallas.1} parent=5 // pred_check_branch
        %1634 = sbr.rel (%p1632) target = $region236
      $region235: #{mlda_pallas.1} parent=5 // pred_region
        // Predicated region
        $region237: #{mlda_pallas.1} parent=235 // pred_check
          %p1635 = pneg %p146
        $region238: #{mlda_pallas.1} parent=235 // pred_check_branch
          %1637 = sbr.rel (%p1635) target = $region240
        $region239: #{mlda_pallas.1} parent=235 // pred_region
          %p1638 = scmp.lt.s32.totalorder %s126, 1
          %s1639 = scalar_select %p1638, %s126, 1
          %s1640 = smul.addr %s1639, 4
          %s1641 = smul.addr %s1640, 8
          %s1642 = scalar_lea.vmem %s1, %s1641
        $region240: #{mlda_pallas.1} parent=235 // pred_fallthru
          _
      $region236: #{mlda_pallas.1} parent=5 // pred_fallthru
        _
      %p1643 = scmp.le.s32.totalorder 1, %s126
      %p1644 = scmp.lt.s32.totalorder %s126, 3
      %p1645 = pnand %p1643, %p1644
      %p1646 = pneg %p1645
      // Predicated region
      $region241: #{mlda_pallas.1} parent=5 // pred_check
        _
      $region242: #{mlda_pallas.1} parent=5 // pred_check_branch
        %1648 = sbr.rel (%p1645) target = $region244
      $region243: #{mlda_pallas.1} parent=5 // pred_region
        %s1649 = ssub.s32 %s126, 1
        // Predicated region
        $region245: #{mlda_pallas.1} parent=243 // pred_check
          %p1650 = pneg %p320
        $region246: #{mlda_pallas.1} parent=243 // pred_check_branch
          %1652 = sbr.rel (%p1650) target = $region248
        $region247: #{mlda_pallas.1} parent=243 // pred_region
          %1653 = dma.done [#allocation4], 384
        $region248: #{mlda_pallas.1} parent=243 // pred_fallthru
          _
        // Predicated region
        $region249: #{mlda_pallas.1} parent=243 // pred_check
          %p1654 = pneg %p362
        $region250: #{mlda_pallas.1} parent=243 // pred_check_branch
          %1656 = sbr.rel (%p1654) target = $region252
        $region251: #{mlda_pallas.1} parent=243 // pred_region
          %1657 = dma.done [#allocation6], 384
        $region252: #{mlda_pallas.1} parent=243 // pred_fallthru
          _
        // Predicated region
        $region253: #{mlda_pallas.1} parent=243 // pred_check
          %p1658 = pneg %p404
        $region254: #{mlda_pallas.1} parent=243 // pred_check_branch
          %1660 = sbr.rel (%p1658) target = $region256
        $region255: #{mlda_pallas.1} parent=243 // pred_region
          %1661 = dma.done [#allocation6], 640
        $region256: #{mlda_pallas.1} parent=243 // pred_fallthru
          _
        // Predicated region
        $region257: #{mlda_pallas.1} parent=243 // pred_check
          %p1662 = pneg %p446
        $region258: #{mlda_pallas.1} parent=243 // pred_check_branch
          %1664 = sbr.rel (%p1662) target = $region260
        $region259: #{mlda_pallas.1} parent=243 // pred_region
          %1665 = dma.done [#allocation9], 640
        $region260: #{mlda_pallas.1} parent=243 // pred_fallthru
          _
        // Predicated region
        $region261: #{mlda_pallas.1} parent=243 // pred_check
          %p1666 = pneg %p530
        $region262: #{mlda_pallas.1} parent=243 // pred_check_branch
          %1668 = sbr.rel (%p1666) target = $region264
        $region263: #{mlda_pallas.1} parent=243 // pred_region
          %1669 = dma.done [#allocation9], 640
        $region264: #{mlda_pallas.1} parent=243 // pred_fallthru
          _
        // Predicated region
        $region265: #{mlda_pallas.1} parent=243 // pred_check
          %p1670 = pneg %p572
        $region266: #{mlda_pallas.1} parent=243 // pred_check_branch
          %1672 = sbr.rel (%p1670) target = $region268
        $region267: #{mlda_pallas.1} parent=243 // pred_region
          %1673 = dma.done [#allocation12], 640
        $region268: #{mlda_pallas.1} parent=243 // pred_fallthru
          _
        // Predicated region
        $region269: #{mlda_pallas.1} parent=243 // pred_check
          %p1674 = pneg %p614
        $region270: #{mlda_pallas.1} parent=243 // pred_check_branch
          %1676 = sbr.rel (%p1674) target = $region272
        $region271: #{mlda_pallas.1} parent=243 // pred_region
          %1677 = dma.done [#allocation12], 896
        $region272: #{mlda_pallas.1} parent=243 // pred_fallthru
          _
        // Predicated region
        $region273: #{mlda_pallas.1} parent=243 // pred_check
          %p1678 = pneg %p656
        $region274: #{mlda_pallas.1} parent=243 // pred_check_branch
          %1680 = sbr.rel (%p1678) target = $region276
        $region275: #{mlda_pallas.1} parent=243 // pred_region
          %1681 = dma.done [#allocation15], 896
        $region276: #{mlda_pallas.1} parent=243 // pred_fallthru
          _
        // Predicated region
        $region277: #{mlda_pallas.1} parent=243 // pred_check
          %p1682 = pneg %p698
        $region278: #{mlda_pallas.1} parent=243 // pred_check_branch
          %1684 = sbr.rel (%p1682) target = $region280
        $region279: #{mlda_pallas.1} parent=243 // pred_region
          %1685 = dma.done [#allocation15], 64
        $region280: #{mlda_pallas.1} parent=243 // pred_fallthru
          _
        // Predicated region
        $region281: #{mlda_pallas.1} parent=243 // pred_check
          %p1686 = pneg %p740
        $region282: #{mlda_pallas.1} parent=243 // pred_check_branch
          %1688 = sbr.rel (%p1686) target = $region284
        $region283: #{mlda_pallas.1} parent=243 // pred_region
          %1689 = dma.done [#allocation18], 896
        $region284: #{mlda_pallas.1} parent=243 // pred_fallthru
          _
        // Predicated region
        $region285: #{mlda_pallas.1} parent=243 // pred_check
          %p1690 = pneg %p782
        $region286: #{mlda_pallas.1} parent=243 // pred_check_branch
          %1692 = sbr.rel (%p1690) target = $region288
        $region287: #{mlda_pallas.1} parent=243 // pred_region
          %1693 = dma.done [#allocation18], 896
        $region288: #{mlda_pallas.1} parent=243 // pred_fallthru
          _
        // Predicated region
        $region289: #{mlda_pallas.1} parent=243 // pred_check
          %p1694 = pneg %p866
        $region290: #{mlda_pallas.1} parent=243 // pred_check_branch
          %1696 = sbr.rel (%p1694) target = $region292
        $region291: #{mlda_pallas.1} parent=243 // pred_region
          %1697 = dma.done [#allocation21], 1152
        $region292: #{mlda_pallas.1} parent=243 // pred_fallthru
          _
        %p1698 = scmp.lt.s32.totalorder %s131, 1
        %s1699 = scalar_select %p1698, %s131, 1
        %s1700 = smul.addr %s1699, 4
        %s1701 = smul.addr %s1700, 8
        %s1702 = scalar_lea.vmem %s1, %s1701
        %p1703 = pneg %p152
        %p1704 = pneg %p149
        %p1705 = pneg %p173
        %p1706 = pneg %p170
        %p1707 = pneg %p194
        %p1708 = pneg %p191
        %p1709 = pneg %p215
        %p1710 = pneg %p212
        %p1711 = pneg %p236
        %p1712 = pneg %p233
        %p1713 = pneg %p257
        %p1714 = pneg %p254
        %p1715 = pneg %p278
        %p1716 = pneg %p275
        %p1717 = pneg %p299
        %p1718 = pneg %p296
        %p1719 = pneg %p320
        %p1720 = pneg %p317
        %p1721 = pneg %p341
        %p1722 = pneg %p338
        %p1723 = pneg %p362
        %p1724 = pneg %p359
        %p1725 = pneg %p383
        %p1726 = pneg %p380
        %p1727 = pneg %p404
        %p1728 = pneg %p401
        %p1729 = pneg %p425
        %p1730 = pneg %p422
        %p1731 = pneg %p446
        %p1732 = pneg %p443
        %p1733 = pneg %p467
        %p1734 = pneg %p464
        %p1735 = pneg %p488
        %p1736 = pneg %p485
        %p1737 = pneg %p509
        %p1738 = pneg %p506
        %p1739 = pneg %p530
        %p1740 = pneg %p527
        %p1741 = pneg %p551
        %p1742 = pneg %p548
        %p1743 = pneg %p572
        %p1744 = pneg %p569
        %p1745 = pneg %p593
        %p1746 = pneg %p590
        %p1747 = pneg %p614
        %p1748 = pneg %p611
        %p1749 = pneg %p635
        %p1750 = pneg %p632
        %p1751 = pneg %p656
        %p1752 = pneg %p653
        %p1753 = pneg %p677
        %p1754 = pneg %p674
        %p1755 = pneg %p698
        %p1756 = pneg %p695
        %p1757 = pneg %p719
        %p1758 = pneg %p716
        %p1759 = pneg %p740
        %p1760 = pneg %p737
        %p1761 = pneg %p761
        %p1762 = pneg %p758
        %p1763 = pneg %p782
        %p1764 = pneg %p779
        %p1765 = pneg %p803
        %p1766 = pneg %p800
        %p1767 = pneg %p824
        %p1768 = pneg %p821
        %p1769 = pneg %p845
        %p1770 = pneg %p842
        %p1771 = pneg %p866
        %p1772 = pneg %p863
        %p1773 = pneg %p887
        %p1774 = pneg %p884
        %p1775 = pneg %p908
        %p1776 = pneg %p905
        %p1777 = pneg %p929
        %p1778 = pneg %p926
        %p1779 = pneg %p950
        %p1780 = pneg %p947
        %p1781 = pneg %p971
        %p1782 = pneg %p968
        %p1783 = pneg %p992
        %p1784 = pneg %p989
        %p1785 = pneg %p1013
        %p1786 = pneg %p1010
        %p1787 = pneg %p1034
        %p1788 = pneg %p1031
        %p1789 = pneg %p1055
        %p1790 = pneg %p1052
        %p1791 = pneg %p1076
        %p1792 = pneg %p1073
        %p1793 = pneg %p1097
        %p1794 = pneg %p1094
        %p1795 = pneg %p1118
        %p1796 = pneg %p1115
        %p1797 = pneg %p1139
        %p1798 = pneg %p1136
        %p1799 = pneg %p1160
        %p1800 = pneg %p1157
        %p1801 = pneg %p1181
        %p1802 = pneg %p1178
        %p1803 = pneg %p1202
        %p1804 = pneg %p1199
        %p1805 = pneg %p1223
        %p1806 = pneg %p1220
        %p1807 = pneg %p1244
        %p1808 = pneg %p1241
        %p1809 = pneg %p1265
        %p1810 = pneg %p1262
        %p1811 = pneg %p1286
        %p1812 = pneg %p1283
        %p1813 = pneg %p1307
        %p1814 = pneg %p1304
        %p1815 = pneg %p1333
        %p1816 = pneg %p1330
        %p1817 = scmp.lt.s32.totalorder %s131, 1
        %s1818 = scalar_select %p1817, %s131, 1
        %s1819 = smul.addr %s1818, 4
        %s1820 = smul.addr %s1819, 8
        %s1821 = scalar_lea.vmem %s113, %s1820
        %p1822 = scmp.lt.s32.totalorder %s131, 1
        %s1823 = scalar_select %p1822, %s131, 1
        %s1824 = smul.addr %s1823, 4
        %s1825 = smul.addr %s1824, 8
        %s1826 = scalar_lea.vmem %s1, %s1825
        %p1827 = scmp.lt.s32.totalorder %s131, 1
        %s1828 = scalar_select %p1827, %s131, 1
        %s1829 = smul.addr %s1828, 4
        %s1830 = smul.addr %s1829, 8
        %s1831 = scalar_lea.vmem %s113, %s1830
        %1832 = vst [vmem:[#allocation2] sm:$0xff] 0.0
        %1833 = vst [vmem:[#allocation2 + $0x8] sm:$0xff] 0.0
        %1834 = vst [vmem:[#allocation2 + $0x10] sm:$0xff] 0.0
        %v1835 = vld [vmem:[%s1826] sm:$0xff]
        %v1836 = vld [vmem:[%s1826 + $0x8] sm:$0xff]
        %v1837 = vld [vmem:[%s1826 + $0x10] sm:$0xf]
        %v1838 = vld [vmem:[%s1826 + $0x18] sm:$0xf]
        %vm1839 = vcmask 1043456
        %v1840 = vsel %vm1839, %v1837, 0.0
        %v1841 = vadd.f32 %v1835, %v1840
        %v1842 = vrot.slane %v1841, 4
        %v1843 = vadd.f32 %v1841, %v1842
        %v1844 = vrot.slane %v1843, 2
        %v1845 = vadd.f32 %v1843, %v1844
        %v1846 = vrot.slane %v1845, 1
        %v1847 = vadd.f32 %v1845, %v1846
        %v1848 = vsel %vm1839, %v1838, 0.0
        %v1849 = vadd.f32 %v1836, %v1848
        %v1850 = vrot.slane %v1849, 4
        %v1851 = vadd.f32 %v1849, %v1850
        %v1852 = vrot.slane %v1851, 2
        %v1853 = vadd.f32 %v1851, %v1852
        %v1854 = vrot.slane %v1853, 1
        %v1855 = vadd.f32 %v1853, %v1854
        %v1856 = vrcp.pop 12.0
        %v1857 = vmul.f32 %v1847, %v1856
        %v1858 = vmul.f32 %v1855, %v1856
        %v1859 = vsub.f32 %v1835, %v1857
        %v1860 = vsub.f32 %v1836, %v1858
        %v1861 = vsub.f32 %v1837, %v1857
        %v1862 = vsub.f32 %v1838, %v1858
        %v1863 = vmul.f32 %v1859, %v1859
        %v1864 = vmul.f32 %v1860, %v1860
        %v1865 = vmul.f32 %v1861, %v1861
        %v1866 = vmul.f32 %v1862, %v1862
        %v1867 = vsel %vm1839, %v1865, 0.0
        %v1868 = vadd.f32 %v1863, %v1867
        %v1869 = vrot.slane %v1868, 4
        %v1870 = vadd.f32 %v1868, %v1869
        %v1871 = vrot.slane %v1870, 2
        %v1872 = vadd.f32 %v1870, %v1871
        %v1873 = vrot.slane %v1872, 1
        %v1874 = vadd.f32 %v1872, %v1873
        %v1875 = vsel %vm1839, %v1866, 0.0
        %v1876 = vadd.f32 %v1864, %v1875
        %v1877 = vrot.slane %v1876, 4
        %v1878 = vadd.f32 %v1876, %v1877
        %v1879 = vrot.slane %v1878, 2
        %v1880 = vadd.f32 %v1878, %v1879
        %v1881 = vrot.slane %v1880, 1
        %v1882 = vadd.f32 %v1880, %v1881
        %v1883 = vmul.f32 %v1874, %v1856
        %v1884 = vmul.f32 %v1882, %v1856
        %v1885 = vld [vmem:[%s77] sm:$0xff]
        %v1886 = vld [vmem:[%s77 + $0x8] sm:$0xf]
        %v1887 = vadd.f32 %v1883, 1e-06
        %v1888 = vadd.f32 %v1884, 1e-06
        %v1889 = vrsqrt.pop %v1887
        %v1890 = vrsqrt.pop %v1888
        %v1891 = vmul.f32 %v1859, %v1889
        %v1892 = vmul.f32 %v1860, %v1890
        %v1893 = vmul.f32 %v1861, %v1889
        %v1894 = vmul.f32 %v1862, %v1890
        %1896 = vset.pattern.permute.xlu0 0
        %1897 = vperm.xlu0 %1896, %v1885
        %v1898 = vpop.permute.xlu0 %1897
        %1901 = vset.pattern.permute.xlu0 0
        %1902 = vperm.xlu0 %1901, %v1886
        %v1903 = vpop.permute.xlu0 %1902
        %v1905 = vmul.f32 %v1898, %v1891
        %v1906 = vmul.f32 %v1898, %v1892
        %v1907 = vmul.f32 %v1903, %v1893
        %v1908 = vmul.f32 %v1903, %v1894
        %v1909 = vld [vmem:[%s75] sm:$0xff]
        %v1910 = vld [vmem:[%s75 + $0x8] sm:$0xf]
        %1912 = vset.pattern.permute.xlu0 0
        %1913 = vperm.xlu0 %1912, %v1909
        %v1914 = vpop.permute.xlu0 %1913
        %1917 = vset.pattern.permute.xlu0 0
        %1918 = vperm.xlu0 %1917, %v1910
        %v1919 = vpop.permute.xlu0 %1918
        %v1921 = vadd.f32 %v1905, %v1914
        %v1922 = vadd.f32 %v1906, %v1914
        %v1923 = vadd.f32 %v1907, %v1919
        %v1924 = vadd.f32 %v1908, %v1919
        %v1925 = vld [vmem:[%s91] sm:$0xf]
        %v1926 = vld [vmem:[%s79] sm:$0xf]
        %1928 = vset.pattern.permute.xlu0 0
        %1929 = vperm.xlu0 %1928, %v1926
        %v1930 = vpop.permute.xlu0 %1929
        %vm1932 = vcmask 97280
        %v1934 = vsel %vm1932, %v1925, 0
        %v1937 = vsel %vm1839, %v1923, 0
        %v1940 = vsel %vm1839, %v1924, 0
        %1942 = vmatprep.subr.mxu0 0.0
        %1943 = vmatpush1.msra.mxu0 0.0
        %1944 = vmatprep.subr.mxu0 0.0
        %1945 = vmatpush1.msra.mxu0 0.0
        %1946 = vmatprep.subr.mxu0 0.0
        %1947 = vmatpush1.msra.mxu0 0.0
        %1948 = vmatprep.subr.mxu0 0.0
        %1949 = vmatpush1.msra.mxu0 0.0
        %1950 = vmatprep.subr.mxu0 0.0
        %1951 = vmatpush1.msra.mxu0 0.0
        %1952 = vmatprep.subr.mxu0 0.0
        %1953 = vmatpush1.msra.mxu0 0.0
        %1954 = vmatprep.subr.mxu0 0.0
        %1955 = vmatpush1.msra.mxu0 0.0
        %1956 = vmatprep.subr.mxu0 0.0
        %1957 = vmatpush1.msra.mxu0 0.0
        %1958 = vmatprep.subr.mxu0 0.0
        %1959 = vmatpush1.msra.mxu0 0.0
        %1960 = vmatprep.subr.mxu0 0.0
        %1961 = vmatpush1.msra.mxu0 0.0
        %1962 = vmatprep.subr.mxu0 0.0
        %1963 = vmatpush1.msra.mxu0 0.0
        %1964 = vmatprep.subr.mxu0 0.0
        %1965 = vmatpush1.msra.mxu0 0.0
        %1966 = vmatprep.subr.mxu0 0.0
        %1967 = vmatpush1.msra.mxu0 0.0
        %1968 = vmatprep.subr.mxu0 0.0
        %1969 = vmatpush1.msra.mxu0 0.0
        %1970 = vmatprep.subr.mxu0 %v1940
        %1971 = vmatpush1.msra.mxu0 %v1937
        %1972 = vmatprep.subr.mxu0 %v1922
        %1973 = vmatpush1.msra.mxu0 %v1921
        %1974 = vmatprep.subr.mxu0 0.0
        %1975 = vmatpush2.msra.mxu0 0.0
        %1976 = vmatprep.subr.mxu0 0.0
        %1977 = vmatpush2.msra.mxu0 0.0
        %1978 = vmatprep.subr.mxu0 0.0
        %1979 = vmatpush2.msra.mxu0 0.0
        %1980 = vmatprep.subr.mxu0 0.0
        %1981 = vmatpush2.msra.mxu0 0.0
        %1982 = vmatprep.subr.mxu0 0.0
        %1983 = vmatpush2.msra.mxu0 0.0
        %1984 = vmatprep.subr.mxu0 0.0
        %1985 = vmatpush2.msra.mxu0 0.0
        %1986 = vmatprep.subr.mxu0 0.0
        %1987 = vmatpush2.msra.mxu0 0.0
        %1988 = vmatprep.subr.mxu0 0.0
        %1989 = vmatpush2.msra.mxu0 0.0
        %1990 = vmatprep.subr.mxu0 0.0
        %1991 = vmatpush2.msra.mxu0 0.0
        %1992 = vmatprep.subr.mxu0 0.0
        %1993 = vmatpush2.msra.mxu0 0.0
        %1994 = vmatprep.subr.mxu0 0.0
        %1995 = vmatpush2.msra.mxu0 0.0
        %1996 = vmatprep.subr.mxu0 0.0
        %1997 = vmatpush2.msra.mxu0 0.0
        %1998 = vmatprep.subr.mxu0 0.0
        %1999 = vmatpush2.msra.mxu0 0.0
        %2000 = vmatprep.subr.mxu0 0.0
        %2001 = vmatpush2.msra.mxu0 0.0
        %2002 = vmatprep.subr.mxu0 0.0
        %2003 = vmatpush2.msra.mxu0 0.0
        %2004 = vmatprep.subr.mxu0 0.0
        %2005 = vmatpush2.msra.mxu0 0.0
        %2006 = vmatprep.mubr.f32.mxu0 0.0
        %2007 = vmatmul.mubr.f32.gmra.mxu0 %v1934
        %v2008 = vpop.f32.mrf.mxu0
        %v2009 = vadd.f32 %v1930, %v2008
        %v2010 = vpop.f32.mrf.mxu0
        %v2011 = vadd.f32 %v1930, %v2010
        %2012 = vdwg.mxu0
        %v2013 = vld [vmem:[%s93] sm:$0xf]
        %v2014 = vld [vmem:[%s81] sm:$0xf]
        %2016 = vset.pattern.permute.xlu0 0
        %2017 = vperm.xlu0 %2016, %v2014
        %v2018 = vpop.permute.xlu0 %2017
        %v2021 = vsel %vm1932, %v2013, 0
        %2023 = vmatprep.subr.mxu0 0.0
        %2024 = vmatpush1.msra.mxu0 0.0
        %2025 = vmatprep.subr.mxu0 0.0
        %2026 = vmatpush1.msra.mxu0 0.0
        %2027 = vmatprep.subr.mxu0 0.0
        %2028 = vmatpush1.msra.mxu0 0.0
        %2029 = vmatprep.subr.mxu0 0.0
        %2030 = vmatpush1.msra.mxu0 0.0
        %2031 = vmatprep.subr.mxu0 0.0
        %2032 = vmatpush1.msra.mxu0 0.0
        %2033 = vmatprep.subr.mxu0 0.0
        %2034 = vmatpush1.msra.mxu0 0.0
        %2035 = vmatprep.subr.mxu0 0.0
        %2036 = vmatpush1.msra.mxu0 0.0
        %2037 = vmatprep.subr.mxu0 0.0
        %2038 = vmatpush1.msra.mxu0 0.0
        %2039 = vmatprep.subr.mxu0 0.0
        %2040 = vmatpush1.msra.mxu0 0.0
        %2041 = vmatprep.subr.mxu0 0.0
        %2042 = vmatpush1.msra.mxu0 0.0
        %2043 = vmatprep.subr.mxu0 0.0
        %2044 = vmatpush1.msra.mxu0 0.0
        %2045 = vmatprep.subr.mxu0 0.0
        %2046 = vmatpush1.msra.mxu0 0.0
        %2047 = vmatprep.subr.mxu0 0.0
        %2048 = vmatpush1.msra.mxu0 0.0
        %2049 = vmatprep.subr.mxu0 0.0
        %2050 = vmatpush1.msra.mxu0 0.0
        %2051 = vmatprep.subr.mxu0 %v1940
        %2052 = vmatpush1.msra.mxu0 %v1937
        %2053 = vmatprep.subr.mxu0 %v1922
        %2054 = vmatpush1.msra.mxu0 %v1921
        %2055 = vmatprep.subr.mxu0 0.0
        %2056 = vmatpush2.msra.mxu0 0.0
        %2057 = vmatprep.subr.mxu0 0.0
        %2058 = vmatpush2.msra.mxu0 0.0
        %2059 = vmatprep.subr.mxu0 0.0
        %2060 = vmatpush2.msra.mxu0 0.0
        %2061 = vmatprep.subr.mxu0 0.0
        %2062 = vmatpush2.msra.mxu0 0.0
        %2063 = vmatprep.subr.mxu0 0.0
        %2064 = vmatpush2.msra.mxu0 0.0
        %2065 = vmatprep.subr.mxu0 0.0
        %2066 = vmatpush2.msra.mxu0 0.0
        %2067 = vmatprep.subr.mxu0 0.0
        %2068 = vmatpush2.msra.mxu0 0.0
        %2069 = vmatprep.subr.mxu0 0.0
        %2070 = vmatpush2.msra.mxu0 0.0
        %2071 = vmatprep.subr.mxu0 0.0
        %2072 = vmatpush2.msra.mxu0 0.0
        %2073 = vmatprep.subr.mxu0 0.0
        %2074 = vmatpush2.msra.mxu0 0.0
        %2075 = vmatprep.subr.mxu0 0.0
        %2076 = vmatpush2.msra.mxu0 0.0
        %2077 = vmatprep.subr.mxu0 0.0
        %2078 = vmatpush2.msra.mxu0 0.0
        %2079 = vmatprep.subr.mxu0 0.0
        %2080 = vmatpush2.msra.mxu0 0.0
        %2081 = vmatprep.subr.mxu0 0.0
        %2082 = vmatpush2.msra.mxu0 0.0
        %2083 = vmatprep.subr.mxu0 0.0
        %2084 = vmatpush2.msra.mxu0 0.0
        %2085 = vmatprep.subr.mxu0 0.0
        %2086 = vmatpush2.msra.mxu0 0.0
        %2087 = vmatprep.mubr.f32.mxu0 0.0
        %2088 = vmatmul.mubr.f32.gmra.mxu0 %v2021
        %v2089 = vpop.f32.mrf.mxu0
        %v2090 = vadd.f32 %v2018, %v2089
        %v2091 = vpop.f32.mrf.mxu0
        %v2092 = vadd.f32 %v2018, %v2091
        %2093 = vdwg.mxu0
        %v2094 = vld [vmem:[%s95] sm:$0xf]
        %v2095 = vld [vmem:[%s83] sm:$0xf]
        %2097 = vset.pattern.permute.xlu0 0
        %2098 = vperm.xlu0 %2097, %v2095
        %v2099 = vpop.permute.xlu0 %2098
        %v2102 = vsel %vm1932, %v2094, 0
        %2104 = vmatprep.subr.mxu0 0.0
        %2105 = vmatpush1.msra.mxu0 0.0
        %2106 = vmatprep.subr.mxu0 0.0
        %2107 = vmatpush1.msra.mxu0 0.0
        %2108 = vmatprep.subr.mxu0 0.0
        %2109 = vmatpush1.msra.mxu0 0.0
        %2110 = vmatprep.subr.mxu0 0.0
        %2111 = vmatpush1.msra.mxu0 0.0
        %2112 = vmatprep.subr.mxu0 0.0
        %2113 = vmatpush1.msra.mxu0 0.0
        %2114 = vmatprep.subr.mxu0 0.0
        %2115 = vmatpush1.msra.mxu0 0.0
        %2116 = vmatprep.subr.mxu0 0.0
        %2117 = vmatpush1.msra.mxu0 0.0
        %2118 = vmatprep.subr.mxu0 0.0
        %2119 = vmatpush1.msra.mxu0 0.0
        %2120 = vmatprep.subr.mxu0 0.0
        %2121 = vmatpush1.msra.mxu0 0.0
        %2122 = vmatprep.subr.mxu0 0.0
        %2123 = vmatpush1.msra.mxu0 0.0
        %2124 = vmatprep.subr.mxu0 0.0
        %2125 = vmatpush1.msra.mxu0 0.0
        %2126 = vmatprep.subr.mxu0 0.0
        %2127 = vmatpush1.msra.mxu0 0.0
        %2128 = vmatprep.subr.mxu0 0.0
        %2129 = vmatpush1.msra.mxu0 0.0
        %2130 = vmatprep.subr.mxu0 0.0
        %2131 = vmatpush1.msra.mxu0 0.0
        %2132 = vmatprep.subr.mxu0 %v1940
        %2133 = vmatpush1.msra.mxu0 %v1937
        %2134 = vmatprep.subr.mxu0 %v1922
        %2135 = vmatpush1.msra.mxu0 %v1921
        %2136 = vmatprep.subr.mxu0 0.0
        %2137 = vmatpush2.msra.mxu0 0.0
        %2138 = vmatprep.subr.mxu0 0.0
        %2139 = vmatpush2.msra.mxu0 0.0
        %2140 = vmatprep.subr.mxu0 0.0
        %2141 = vmatpush2.msra.mxu0 0.0
        %2142 = vmatprep.subr.mxu0 0.0
        %2143 = vmatpush2.msra.mxu0 0.0
        %2144 = vmatprep.subr.mxu0 0.0
        %2145 = vmatpush2.msra.mxu0 0.0
        %2146 = vmatprep.subr.mxu0 0.0
        %2147 = vmatpush2.msra.mxu0 0.0
        %2148 = vmatprep.subr.mxu0 0.0
        %2149 = vmatpush2.msra.mxu0 0.0
        %2150 = vmatprep.subr.mxu0 0.0
        %2151 = vmatpush2.msra.mxu0 0.0
        %2152 = vmatprep.subr.mxu0 0.0
        %2153 = vmatpush2.msra.mxu0 0.0
        %2154 = vmatprep.subr.mxu0 0.0
        %2155 = vmatpush2.msra.mxu0 0.0
        %2156 = vmatprep.subr.mxu0 0.0
        %2157 = vmatpush2.msra.mxu0 0.0
        %2158 = vmatprep.subr.mxu0 0.0
        %2159 = vmatpush2.msra.mxu0 0.0
        %2160 = vmatprep.subr.mxu0 0.0
        %2161 = vmatpush2.msra.mxu0 0.0
        %2162 = vmatprep.subr.mxu0 0.0
        %2163 = vmatpush2.msra.mxu0 0.0
        %2164 = vmatprep.subr.mxu0 0.0
        %2165 = vmatpush2.msra.mxu0 0.0
        %2166 = vmatprep.subr.mxu0 0.0
        %2167 = vmatpush2.msra.mxu0 0.0
        %2168 = vmatprep.mubr.f32.mxu0 0.0
        %2169 = vmatmul.mubr.f32.gmra.mxu0 %v2102
        %v2170 = vpop.f32.mrf.mxu0
        %v2171 = vadd.f32 %v2099, %v2170
        %v2172 = vpop.f32.mrf.mxu0
        %v2173 = vadd.f32 %v2099, %v2172
        %2174 = vdwg.mxu0
        %v2175 = vld [vmem:[%s97] sm:$0xf]
        %v2176 = vld [vmem:[%s85] sm:$0xf]
        %2178 = vset.pattern.permute.xlu0 0
        %2179 = vperm.xlu0 %2178, %v2176
        %v2180 = vpop.permute.xlu0 %2179
        %v2183 = vsel %vm1932, %v2175, 0
        %2185 = vmatprep.subr.mxu0 0.0
        %2186 = vmatpush1.msra.mxu0 0.0
        %2187 = vmatprep.subr.mxu0 0.0
        %2188 = vmatpush1.msra.mxu0 0.0
        %2189 = vmatprep.subr.mxu0 0.0
        %2190 = vmatpush1.msra.mxu0 0.0
        %2191 = vmatprep.subr.mxu0 0.0
        %2192 = vmatpush1.msra.mxu0 0.0
        %2193 = vmatprep.subr.mxu0 0.0
        %2194 = vmatpush1.msra.mxu0 0.0
        %2195 = vmatprep.subr.mxu0 0.0
        %2196 = vmatpush1.msra.mxu0 0.0
        %2197 = vmatprep.subr.mxu0 0.0
        %2198 = vmatpush1.msra.mxu0 0.0
        %2199 = vmatprep.subr.mxu0 0.0
        %2200 = vmatpush1.msra.mxu0 0.0
        %2201 = vmatprep.subr.mxu0 0.0
        %2202 = vmatpush1.msra.mxu0 0.0
        %2203 = vmatprep.subr.mxu0 0.0
        %2204 = vmatpush1.msra.mxu0 0.0
        %2205 = vmatprep.subr.mxu0 0.0
        %2206 = vmatpush1.msra.mxu0 0.0
        %2207 = vmatprep.subr.mxu0 0.0
        %2208 = vmatpush1.msra.mxu0 0.0
        %2209 = vmatprep.subr.mxu0 0.0
        %2210 = vmatpush1.msra.mxu0 0.0
        %2211 = vmatprep.subr.mxu0 0.0
        %2212 = vmatpush1.msra.mxu0 0.0
        %2213 = vmatprep.subr.mxu0 %v1940
        %2214 = vmatpush1.msra.mxu0 %v1937
        %2215 = vmatprep.subr.mxu0 %v1922
        %2216 = vmatpush1.msra.mxu0 %v1921
        %2217 = vmatprep.subr.mxu0 0.0
        %2218 = vmatpush2.msra.mxu0 0.0
        %2219 = vmatprep.subr.mxu0 0.0
        %2220 = vmatpush2.msra.mxu0 0.0
        %2221 = vmatprep.subr.mxu0 0.0
        %2222 = vmatpush2.msra.mxu0 0.0
        %2223 = vmatprep.subr.mxu0 0.0
        %2224 = vmatpush2.msra.mxu0 0.0
        %2225 = vmatprep.subr.mxu0 0.0
        %2226 = vmatpush2.msra.mxu0 0.0
        %2227 = vmatprep.subr.mxu0 0.0
        %2228 = vmatpush2.msra.mxu0 0.0
        %2229 = vmatprep.subr.mxu0 0.0
        %2230 = vmatpush2.msra.mxu0 0.0
        %2231 = vmatprep.subr.mxu0 0.0
        %2232 = vmatpush2.msra.mxu0 0.0
        %2233 = vmatprep.subr.mxu0 0.0
        %2234 = vmatpush2.msra.mxu0 0.0
        %2235 = vmatprep.subr.mxu0 0.0
        %2236 = vmatpush2.msra.mxu0 0.0
        %2237 = vmatprep.subr.mxu0 0.0
        %2238 = vmatpush2.msra.mxu0 0.0
        %2239 = vmatprep.subr.mxu0 0.0
        %2240 = vmatpush2.msra.mxu0 0.0
        %2241 = vmatprep.subr.mxu0 0.0
        %2242 = vmatpush2.msra.mxu0 0.0
        %2243 = vmatprep.subr.mxu0 0.0
        %2244 = vmatpush2.msra.mxu0 0.0
        %2245 = vmatprep.subr.mxu0 0.0
        %2246 = vmatpush2.msra.mxu0 0.0
        %2247 = vmatprep.subr.mxu0 0.0
        %2248 = vmatpush2.msra.mxu0 0.0
        %2249 = vmatprep.mubr.f32.mxu0 0.0
        %2250 = vmatmul.mubr.f32.gmra.mxu0 %v2183
        %v2251 = vpop.f32.mrf.mxu0
        %v2252 = vadd.f32 %v2180, %v2251
        %v2253 = vpop.f32.mrf.mxu0
        %v2254 = vadd.f32 %v2180, %v2253
        %2255 = vdwg.mxu0
        %v2256 = vld [vmem:[%s99] sm:$0xf]
        %v2257 = vld [vmem:[%s87] sm:$0xf]
        %2259 = vset.pattern.permute.xlu0 0
        %2260 = vperm.xlu0 %2259, %v2257
        %v2261 = vpop.permute.xlu0 %2260
        %v2264 = vsel %vm1932, %v2256, 0
        %2266 = vmatprep.subr.mxu0 0.0
        %2267 = vmatpush1.msra.mxu0 0.0
        %2268 = vmatprep.subr.mxu0 0.0
        %2269 = vmatpush1.msra.mxu0 0.0
        %2270 = vmatprep.subr.mxu0 0.0
        %2271 = vmatpush1.msra.mxu0 0.0
        %2272 = vmatprep.subr.mxu0 0.0
        %2273 = vmatpush1.msra.mxu0 0.0
        %2274 = vmatprep.subr.mxu0 0.0
        %2275 = vmatpush1.msra.mxu0 0.0
        %2276 = vmatprep.subr.mxu0 0.0
        %2277 = vmatpush1.msra.mxu0 0.0
        %2278 = vmatprep.subr.mxu0 0.0
        %2279 = vmatpush1.msra.mxu0 0.0
        %2280 = vmatprep.subr.mxu0 0.0
        %2281 = vmatpush1.msra.mxu0 0.0
        %2282 = vmatprep.subr.mxu0 0.0
        %2283 = vmatpush1.msra.mxu0 0.0
        %2284 = vmatprep.subr.mxu0 0.0
        %2285 = vmatpush1.msra.mxu0 0.0
        %2286 = vmatprep.subr.mxu0 0.0
        %2287 = vmatpush1.msra.mxu0 0.0
        %2288 = vmatprep.subr.mxu0 0.0
        %2289 = vmatpush1.msra.mxu0 0.0
        %2290 = vmatprep.subr.mxu0 0.0
        %2291 = vmatpush1.msra.mxu0 0.0
        %2292 = vmatprep.subr.mxu0 0.0
        %2293 = vmatpush1.msra.mxu0 0.0
        %2294 = vmatprep.subr.mxu0 %v1940
        %2295 = vmatpush1.msra.mxu0 %v1937
        %2296 = vmatprep.subr.mxu0 %v1922
        %2297 = vmatpush1.msra.mxu0 %v1921
        %2298 = vmatprep.subr.mxu0 0.0
        %2299 = vmatpush2.msra.mxu0 0.0
        %2300 = vmatprep.subr.mxu0 0.0
        %2301 = vmatpush2.msra.mxu0 0.0
        %2302 = vmatprep.subr.mxu0 0.0
        %2303 = vmatpush2.msra.mxu0 0.0
        %2304 = vmatprep.subr.mxu0 0.0
        %2305 = vmatpush2.msra.mxu0 0.0
        %2306 = vmatprep.subr.mxu0 0.0
        %2307 = vmatpush2.msra.mxu0 0.0
        %2308 = vmatprep.subr.mxu0 0.0
        %2309 = vmatpush2.msra.mxu0 0.0
        %2310 = vmatprep.subr.mxu0 0.0
        %2311 = vmatpush2.msra.mxu0 0.0
        %2312 = vmatprep.subr.mxu0 0.0
        %2313 = vmatpush2.msra.mxu0 0.0
        %2314 = vmatprep.subr.mxu0 0.0
        %2315 = vmatpush2.msra.mxu0 0.0
        %2316 = vmatprep.subr.mxu0 0.0
        %2317 = vmatpush2.msra.mxu0 0.0
        %2318 = vmatprep.subr.mxu0 0.0
        %2319 = vmatpush2.msra.mxu0 0.0
        %2320 = vmatprep.subr.mxu0 0.0
        %2321 = vmatpush2.msra.mxu0 0.0
        %2322 = vmatprep.subr.mxu0 0.0
        %2323 = vmatpush2.msra.mxu0 0.0
        %2324 = vmatprep.subr.mxu0 0.0
        %2325 = vmatpush2.msra.mxu0 0.0
        %2326 = vmatprep.subr.mxu0 0.0
        %2327 = vmatpush2.msra.mxu0 0.0
        %2328 = vmatprep.subr.mxu0 0.0
        %2329 = vmatpush2.msra.mxu0 0.0
        %2330 = vmatprep.mubr.f32.mxu0 0.0
        %2331 = vmatmul.mubr.f32.gmra.mxu0 %v2264
        %v2332 = vpop.f32.mrf.mxu0
        %v2333 = vadd.f32 %v2261, %v2332
        %v2334 = vpop.f32.mrf.mxu0
        %v2335 = vadd.f32 %v2261, %v2334
        %2336 = vdwg.mxu0
        %v2337 = vld [vmem:[%s101] sm:$0xf]
        %v2338 = vld [vmem:[%s89] sm:$0xf]
        %2340 = vset.pattern.permute.xlu0 0
        %2341 = vperm.xlu0 %2340, %v2338
        %v2342 = vpop.permute.xlu0 %2341
        %v2345 = vsel %vm1932, %v2337, 0
        %2347 = vmatprep.subr.mxu0 0.0
        %2348 = vmatpush1.msra.mxu0 0.0
        %2349 = vmatprep.subr.mxu0 0.0
        %2350 = vmatpush1.msra.mxu0 0.0
        %2351 = vmatprep.subr.mxu0 0.0
        %2352 = vmatpush1.msra.mxu0 0.0
        %2353 = vmatprep.subr.mxu0 0.0
        %2354 = vmatpush1.msra.mxu0 0.0
        %2355 = vmatprep.subr.mxu0 0.0
        %2356 = vmatpush1.msra.mxu0 0.0
        %2357 = vmatprep.subr.mxu0 0.0
        %2358 = vmatpush1.msra.mxu0 0.0
        %2359 = vmatprep.subr.mxu0 0.0
        %2360 = vmatpush1.msra.mxu0 0.0
        %2361 = vmatprep.subr.mxu0 0.0
        %2362 = vmatpush1.msra.mxu0 0.0
        %2363 = vmatprep.subr.mxu0 0.0
        %2364 = vmatpush1.msra.mxu0 0.0
        %2365 = vmatprep.subr.mxu0 0.0
        %2366 = vmatpush1.msra.mxu0 0.0
        %2367 = vmatprep.subr.mxu0 0.0
        %2368 = vmatpush1.msra.mxu0 0.0
        %2369 = vmatprep.subr.mxu0 0.0
        %2370 = vmatpush1.msra.mxu0 0.0
        %2371 = vmatprep.subr.mxu0 0.0
        %2372 = vmatpush1.msra.mxu0 0.0
        %2373 = vmatprep.subr.mxu0 0.0
        %2374 = vmatpush1.msra.mxu0 0.0
        %2375 = vmatprep.subr.mxu0 %v1940
        %2376 = vmatpush1.msra.mxu0 %v1937
        %2377 = vmatprep.subr.mxu0 %v1922
        %2378 = vmatpush1.msra.mxu0 %v1921
        %2379 = vmatprep.subr.mxu0 0.0
        %2380 = vmatpush2.msra.mxu0 0.0
        %2381 = vmatprep.subr.mxu0 0.0
        %2382 = vmatpush2.msra.mxu0 0.0
        %2383 = vmatprep.subr.mxu0 0.0
        %2384 = vmatpush2.msra.mxu0 0.0
        %2385 = vmatprep.subr.mxu0 0.0
        %2386 = vmatpush2.msra.mxu0 0.0
        %2387 = vmatprep.subr.mxu0 0.0
        %2388 = vmatpush2.msra.mxu0 0.0
        %2389 = vmatprep.subr.mxu0 0.0
        %2390 = vmatpush2.msra.mxu0 0.0
        %2391 = vmatprep.subr.mxu0 0.0
        %2392 = vmatpush2.msra.mxu0 0.0
        %2393 = vmatprep.subr.mxu0 0.0
        %2394 = vmatpush2.msra.mxu0 0.0
        %2395 = vmatprep.subr.mxu0 0.0
        %2396 = vmatpush2.msra.mxu0 0.0
        %2397 = vmatprep.subr.mxu0 0.0
        %2398 = vmatpush2.msra.mxu0 0.0
        %2399 = vmatprep.subr.mxu0 0.0
        %2400 = vmatpush2.msra.mxu0 0.0
        %2401 = vmatprep.subr.mxu0 0.0
        %2402 = vmatpush2.msra.mxu0 0.0
        %2403 = vmatprep.subr.mxu0 0.0
        %2404 = vmatpush2.msra.mxu0 0.0
        %2405 = vmatprep.subr.mxu0 0.0
        %2406 = vmatpush2.msra.mxu0 0.0
        %2407 = vmatprep.subr.mxu0 0.0
        %2408 = vmatpush2.msra.mxu0 0.0
        %2409 = vmatprep.subr.mxu0 0.0
        %2410 = vmatpush2.msra.mxu0 0.0
        %2411 = vmatprep.mubr.f32.mxu0 0.0
        %2412 = vmatmul.mubr.f32.gmra.mxu0 %v2345
        %v2413 = vpop.f32.mrf.mxu0
        %v2414 = vadd.f32 %v2342, %v2413
        %v2415 = vpop.f32.mrf.mxu0
        %v2416 = vadd.f32 %v2342, %v2415
        %2417 = vdwg.mxu0
        %v2420 = vcombine.low %v2009, %v2011
        %2422 = vst [vmem:[#allocation2 + $0x8] sm:$0xff] %v2420
        %v2423 = vld [vmem:[%s15] sm:$0xf]
        %v2424 = vld [vmem:[#allocation3] sm:$0xff]
        %v2425 = vld [vmem:[#allocation2 + $0x4] sm:$0xff]
        %v2426 = vld [vmem:[#allocation2 + $0xc] sm:$0xf]
        %2429 = vrot.lane.b32.xlu0 %v2425, 1
        %v2430 = vpop.permute.xlu0 %2429
        %2431 = vrot.lane.b32.xlu0 %v2426, 1
        %v2432 = vpop.permute.xlu0 %2431
        %v2433 = vrot.slane %v2430, 4
        %v2434 = vrot.slane %v2432, 4
        %v2435 = vsel %vm1839, %v2433, %v2434
        %vm2436 = vcmask 7168
        %v2437 = vsel %vm2436, %v2430, %v2435
        %v2439 = vmul.f32 %v2424, %v2437
        %2441 = vset.pattern.permute.xlu0 0
        %2442 = vperm.xlu0 %2441, %v2423
        %v2443 = vpop.permute.xlu0 %2442
        %v2446 = vcombine.high %v2439, %v2439
        %v2448 = vadd.f32 %v2443, %v2439
        %v2449 = vadd.f32 %v2443, %v2446
        %s2450 = scalar_lea.vmem [#allocation3], 8
        %v2451 = vld [vmem:[%s2450] sm:$0xff]
        %v2452 = vld [vmem:[#allocation2 + $0x8] sm:$0xff]
        %v2453 = vmul.f32 %v2451, %v2452
        %v2455 = vcombine.high %v2453, %v2453
        %v2457 = vadd.f32 %v2448, %v2453
        %v2458 = vadd.f32 %v2449, %v2455
        %s2459 = scalar_lea.vmem [#allocation3], 16
        %v2460 = vld [vmem:[%s2459] sm:$0xff]
        %v2461 = vld [vmem:[#allocation2 + $0x10] sm:$0xf]
        %2464 = vrot.lane.b32.xlu0 %v2452, 127
        %v2465 = vpop.permute.xlu0 %2464
        %2466 = vrot.lane.b32.xlu0 %v2461, 127
        %v2467 = vpop.permute.xlu0 %2466
        %v2468 = vrot.slane %v2465, 4
        %v2469 = vrot.slane %v2467, 4
        %v2470 = vsel %vm1839, %v2468, %v2469
        %vm2471 = vcmask 1039360
        %v2472 = vsel %vm2471, %v2465, %v2470
        %v2474 = vmul.f32 %v2460, %v2472
        %v2476 = vcombine.high %v2474, %v2474
        %v2478 = vadd.f32 %v2457, %v2474
        %v2479 = vadd.f32 %v2458, %v2476
        %v2482 = vcombine.low %v2478, %v2479
        %2484 = vst [vmem:[#allocation2 + $0x8] sm:$0xff] %v2482
        %v2485 = vld [vmem:[%s19] sm:$0xf]
        %v2486 = vld [vmem:[#allocation5] sm:$0xff]
        %v2487 = vld [vmem:[#allocation2 + $0x4] sm:$0xff]
        %v2488 = vld [vmem:[#allocation2 + $0xc] sm:$0xf]
        %2491 = vrot.lane.b32.xlu0 %v2487, 16
        %v2492 = vpop.permute.xlu0 %2491
        %2493 = vrot.lane.b32.xlu0 %v2488, 16
        %v2494 = vpop.permute.xlu0 %2493
        %v2495 = vrot.slane %v2492, 4
        %v2496 = vrot.slane %v2494, 4
        %v2497 = vsel %vm1839, %v2495, %v2496
        %vm2498 = vcmask 130048
        %v2499 = vsel %vm2498, %v2492, %v2497
        %v2501 = vmul.f32 %v2486, %v2499
        %2503 = vset.pattern.permute.xlu0 0
        %2504 = vperm.xlu0 %2503, %v2485
        %v2505 = vpop.permute.xlu0 %2504
        %v2508 = vcombine.high %v2501, %v2501
        %v2510 = vadd.f32 %v2505, %v2501
        %v2511 = vadd.f32 %v2505, %v2508
        %s2512 = scalar_lea.vmem [#allocation5], 8
        %v2513 = vld [vmem:[%s2512] sm:$0xff]
        %v2514 = vld [vmem:[#allocation2 + $0x8] sm:$0xff]
        %v2515 = vmul.f32 %v2513, %v2514
        %v2517 = vcombine.high %v2515, %v2515
        %v2519 = vadd.f32 %v2510, %v2515
        %v2520 = vadd.f32 %v2511, %v2517
        %s2521 = scalar_lea.vmem [#allocation5], 16
        %v2522 = vld [vmem:[%s2521] sm:$0xff]
        %v2523 = vld [vmem:[#allocation2 + $0x10] sm:$0xf]
        %2526 = vrot.lane.b32.xlu0 %v2514, 112
        %v2527 = vpop.permute.xlu0 %2526
        %2528 = vrot.lane.b32.xlu0 %v2523, 112
        %v2529 = vpop.permute.xlu0 %2528
        %v2530 = vrot.slane %v2527, 4
        %v2531 = vrot.slane %v2529, 4
        %v2532 = vsel %vm1839, %v2530, %v2531
        %vm2533 = vcmask 916480
        %v2534 = vsel %vm2533, %v2527, %v2532
        %v2536 = vmul.f32 %v2522, %v2534
        %v2538 = vcombine.high %v2536, %v2536
        %v2540 = vadd.f32 %v2519, %v2536
        %v2541 = vadd.f32 %v2520, %v2538
        %v2544 = vcombine.low %v2540, %v2541
        %2546 = vst [vmem:[#allocation2 + $0x8] sm:$0xff] %v2544
        %v2547 = vld [vmem:[%s23] sm:$0xf]
        %v2548 = vld [vmem:[#allocation7] sm:$0xff]
        %v2549 = vld [vmem:[#allocation2 + $0x4] sm:$0xff]
        %v2550 = vld [vmem:[#allocation2 + $0xc] sm:$0xf]
        %2553 = vrot.lane.b32.xlu0 %v2549, 4
        %v2554 = vpop.permute.xlu0 %2553
        %2555 = vrot.lane.b32.xlu0 %v2550, 4
        %v2556 = vpop.permute.xlu0 %2555
        %v2557 = vrot.slane %v2554, 4
        %v2558 = vrot.slane %v2556, 4
        %v2559 = vsel %vm1839, %v2557, %v2558
        %vm2560 = vcmask 31744
        %v2561 = vsel %vm2560, %v2554, %v2559
        %v2563 = vmul.f32 %v2548, %v2561
        %2565 = vset.pattern.permute.xlu0 0
        %2566 = vperm.xlu0 %2565, %v2547
        %v2567 = vpop.permute.xlu0 %2566
        %v2570 = vcombine.high %v2563, %v2563
        %v2572 = vadd.f32 %v2567, %v2563
        %v2573 = vadd.f32 %v2567, %v2570
        %s2574 = scalar_lea.vmem [#allocation7], 8
        %v2575 = vld [vmem:[%s2574] sm:$0xff]
        %v2576 = vld [vmem:[#allocation2 + $0x4] sm:$0xff]
        %v2577 = vld [vmem:[#allocation2 + $0xc] sm:$0xf]
        %2580 = vrot.lane.b32.xlu0 %v2576, 2
        %v2581 = vpop.permute.xlu0 %2580
        %2582 = vrot.lane.b32.xlu0 %v2577, 2
        %v2583 = vpop.permute.xlu0 %2582
        %v2584 = vrot.slane %v2581, 4
        %v2585 = vrot.slane %v2583, 4
        %v2586 = vsel %vm1839, %v2584, %v2585
        %vm2587 = vcmask 15360
        %v2588 = vsel %vm2587, %v2581, %v2586
        %v2590 = vmul.f32 %v2575, %v2588
        %v2592 = vcombine.high %v2590, %v2590
        %v2594 = vadd.f32 %v2572, %v2590
        %v2595 = vadd.f32 %v2573, %v2592
        %s2596 = scalar_lea.vmem [#allocation7], 16
        %v2597 = vld [vmem:[%s2596] sm:$0xff]
        %v2598 = vld [vmem:[#allocation2 + $0x8] sm:$0xff]
        %v2599 = vmul.f32 %v2597, %v2598
        %v2601 = vcombine.high %v2599, %v2599
        %v2603 = vadd.f32 %v2594, %v2599
        %v2604 = vadd.f32 %v2595, %v2601
        %s2605 = scalar_lea.vmem [#allocation7], 24
        %v2606 = vld [vmem:[%s2605] sm:$0xff]
        %v2607 = vld [vmem:[#allocation2 + $0x10] sm:$0xf]
        %2610 = vrot.lane.b32.xlu0 %v2598, 126
        %v2611 = vpop.permute.xlu0 %2610
        %2612 = vrot.lane.b32.xlu0 %v2607, 126
        %v2613 = vpop.permute.xlu0 %2612
        %v2614 = vrot.slane %v2611, 4
        %v2615 = vrot.slane %v2613, 4
        %v2616 = vsel %vm1839, %v2614, %v2615
        %vm2617 = vcmask 1031168
        %v2618 = vsel %vm2617, %v2611, %v2616
        %v2620 = vmul.f32 %v2606, %v2618
        %v2622 = vcombine.high %v2620, %v2620
        %v2624 = vadd.f32 %v2603, %v2620
        %v2625 = vadd.f32 %v2604, %v2622
        %s2626 = scalar_lea.vmem [#allocation7], 32
        %v2627 = vld [vmem:[%s2626] sm:$0xff]
        %2628 = vrot.lane.b32.xlu0 %v2598, 124
        %v2629 = vpop.permute.xlu0 %2628
        %2630 = vrot.lane.b32.xlu0 %v2607, 124
        %v2631 = vpop.permute.xlu0 %2630
        %v2632 = vrot.slane %v2629, 4
        %v2633 = vrot.slane %v2631, 4
        %v2634 = vsel %vm1839, %v2632, %v2633
        %vm2635 = vcmask 1014784
        %v2636 = vsel %vm2635, %v2629, %v2634
        %v2638 = vmul.f32 %v2627, %v2636
        %v2640 = vcombine.high %v2638, %v2638
        %v2642 = vadd.f32 %v2624, %v2638
        %v2643 = vadd.f32 %v2625, %v2640
        %v2646 = vcombine.low %v2642, %v2643
        %2648 = vst [vmem:[#allocation2 + $0x8] sm:$0xff] %v2646
        %v2649 = vld [vmem:[%s27] sm:$0xf]
        %v2650 = vld [vmem:[#allocation8] sm:$0xff]
        %v2651 = vld [vmem:[#allocation2 + $0x4] sm:$0xff]
        %v2652 = vld [vmem:[#allocation2 + $0xc] sm:$0xf]
        %2655 = vrot.lane.b32.xlu0 %v2651, 64
        %v2656 = vpop.permute.xlu0 %2655
        %2657 = vrot.lane.b32.xlu0 %v2652, 64
        %v2658 = vpop.permute.xlu0 %2657
        %v2659 = vrot.slane %v2656, 4
        %v2660 = vrot.slane %v2658, 4
        %v2661 = vsel %vm1839, %v2659, %v2660
        %vm2662 = vcmask 523264
        %v2663 = vsel %vm2662, %v2656, %v2661
        %v2665 = vmul.f32 %v2650, %v2663
        %2667 = vset.pattern.permute.xlu0 0
        %2668 = vperm.xlu0 %2667, %v2649
        %v2669 = vpop.permute.xlu0 %2668
        %v2672 = vcombine.high %v2665, %v2665
        %v2674 = vadd.f32 %v2669, %v2665
        %v2675 = vadd.f32 %v2669, %v2672
        %s2676 = scalar_lea.vmem [#allocation8], 8
        %v2677 = vld [vmem:[%s2676] sm:$0xff]
        %v2678 = vld [vmem:[#allocation2 + $0x4] sm:$0xff]
        %v2679 = vld [vmem:[#allocation2 + $0xc] sm:$0xf]
        %2682 = vrot.lane.b32.xlu0 %v2678, 32
        %v2683 = vpop.permute.xlu0 %2682
        %2684 = vrot.lane.b32.xlu0 %v2679, 32
        %v2685 = vpop.permute.xlu0 %2684
        %v2686 = vrot.slane %v2683, 4
        %v2687 = vrot.slane %v2685, 4
        %v2688 = vsel %vm1839, %v2686, %v2687
        %vm2689 = vcmask 261120
        %v2690 = vsel %vm2689, %v2683, %v2688
        %v2692 = vmul.f32 %v2677, %v2690
        %v2694 = vcombine.high %v2692, %v2692
        %v2696 = vadd.f32 %v2674, %v2692
        %v2697 = vadd.f32 %v2675, %v2694
        %s2698 = scalar_lea.vmem [#allocation8], 16
        %v2699 = vld [vmem:[%s2698] sm:$0xff]
        %v2700 = vld [vmem:[#allocation2 + $0x8] sm:$0xff]
        %v2701 = vmul.f32 %v2699, %v2700
        %v2703 = vcombine.high %v2701, %v2701
        %v2705 = vadd.f32 %v2696, %v2701
        %v2706 = vadd.f32 %v2697, %v2703
        %s2707 = scalar_lea.vmem [#allocation8], 24
        %v2708 = vld [vmem:[%s2707] sm:$0xff]
        %v2709 = vld [vmem:[#allocation2 + $0x10] sm:$0xf]
        %2712 = vrot.lane.b32.xlu0 %v2700, 96
        %v2713 = vpop.permute.xlu0 %2712
        %2714 = vrot.lane.b32.xlu0 %v2709, 96
        %v2715 = vpop.permute.xlu0 %2714
        %v2716 = vrot.slane %v2713, 4
        %v2717 = vrot.slane %v2715, 4
        %v2718 = vsel %vm1839, %v2716, %v2717
        %vm2719 = vcmask 785408
        %v2720 = vsel %vm2719, %v2713, %v2718
        %v2722 = vmul.f32 %v2708, %v2720
        %v2724 = vcombine.high %v2722, %v2722
        %v2726 = vadd.f32 %v2705, %v2722
        %v2727 = vadd.f32 %v2706, %v2724
        %s2728 = scalar_lea.vmem [#allocation8], 32
        %v2729 = vld [vmem:[%s2728] sm:$0xff]
        %2730 = vrot.lane.b32.xlu0 %v2700, 64
        %v2731 = vpop.permute.xlu0 %2730
        %2732 = vrot.lane.b32.xlu0 %v2709, 64
        %v2733 = vpop.permute.xlu0 %2732
        %v2734 = vrot.slane %v2731, 4
        %v2735 = vrot.slane %v2733, 4
        %v2736 = vsel %vm1839, %v2734, %v2735
        %v2737 = vsel %vm2662, %v2731, %v2736
        %v2739 = vmul.f32 %v2729, %v2737
        %v2741 = vcombine.high %v2739, %v2739
        %v2743 = vadd.f32 %v2726, %v2739
        %v2744 = vadd.f32 %v2727, %v2741
        %v2745 = vld [vmem:[%s33] sm:$0xf]
        %v2746 = vld [vmem:[%s31] sm:$0xf]
        %2748 = vset.pattern.permute.xlu0 0
        %2749 = vperm.xlu0 %2748, %v2746
        %v2750 = vpop.permute.xlu0 %2749
        %v2753 = vsel %vm2560, %v2745, 0
        %v2756 = vsel %vm1839, %v2743, 0
        %v2759 = vsel %vm1839, %v2744, 0
        %2761 = vmatprep.subr.mxu0 0.0
        %2762 = vmatpush1.msra.mxu0 0.0
        %2763 = vmatprep.subr.mxu0 0.0
        %2764 = vmatpush1.msra.mxu0 0.0
        %2765 = vmatprep.subr.mxu0 0.0
        %2766 = vmatpush1.msra.mxu0 0.0
        %2767 = vmatprep.subr.mxu0 0.0
        %2768 = vmatpush1.msra.mxu0 0.0
        %2769 = vmatprep.subr.mxu0 0.0
        %2770 = vmatpush1.msra.mxu0 0.0
        %2771 = vmatprep.subr.mxu0 0.0
        %2772 = vmatpush1.msra.mxu0 0.0
        %2773 = vmatprep.subr.mxu0 0.0
        %2774 = vmatpush1.msra.mxu0 0.0
        %2775 = vmatprep.subr.mxu0 0.0
        %2776 = vmatpush1.msra.mxu0 0.0
        %2777 = vmatprep.subr.mxu0 0.0
        %2778 = vmatpush1.msra.mxu0 0.0
        %2779 = vmatprep.subr.mxu0 0.0
        %2780 = vmatpush1.msra.mxu0 0.0
        %2781 = vmatprep.subr.mxu0 0.0
        %2782 = vmatpush1.msra.mxu0 0.0
        %2783 = vmatprep.subr.mxu0 0.0
        %2784 = vmatpush1.msra.mxu0 0.0
        %2785 = vmatprep.subr.mxu0 0.0
        %2786 = vmatpush1.msra.mxu0 0.0
        %2787 = vmatprep.subr.mxu0 0.0
        %2788 = vmatpush1.msra.mxu0 0.0
        %2789 = vmatprep.subr.mxu0 0.0
        %2790 = vmatpush1.msra.mxu0 0.0
        %2791 = vmatprep.subr.mxu0 %v2759
        %2792 = vmatpush1.msra.mxu0 %v2756
        %2793 = vmatprep.subr.mxu0 0.0
        %2794 = vmatpush2.msra.mxu0 0.0
        %2795 = vmatprep.subr.mxu0 0.0
        %2796 = vmatpush2.msra.mxu0 0.0
        %2797 = vmatprep.subr.mxu0 0.0
        %2798 = vmatpush2.msra.mxu0 0.0
        %2799 = vmatprep.subr.mxu0 0.0
        %2800 = vmatpush2.msra.mxu0 0.0
        %2801 = vmatprep.subr.mxu0 0.0
        %2802 = vmatpush2.msra.mxu0 0.0
        %2803 = vmatprep.subr.mxu0 0.0
        %2804 = vmatpush2.msra.mxu0 0.0
        %2805 = vmatprep.subr.mxu0 0.0
        %2806 = vmatpush2.msra.mxu0 0.0
        %2807 = vmatprep.subr.mxu0 0.0
        %2808 = vmatpush2.msra.mxu0 0.0
        %2809 = vmatprep.subr.mxu0 0.0
        %2810 = vmatpush2.msra.mxu0 0.0
        %2811 = vmatprep.subr.mxu0 0.0
        %2812 = vmatpush2.msra.mxu0 0.0
        %2813 = vmatprep.subr.mxu0 0.0
        %2814 = vmatpush2.msra.mxu0 0.0
        %2815 = vmatprep.subr.mxu0 0.0
        %2816 = vmatpush2.msra.mxu0 0.0
        %2817 = vmatprep.subr.mxu0 0.0
        %2818 = vmatpush2.msra.mxu0 0.0
        %2819 = vmatprep.subr.mxu0 0.0
        %2820 = vmatpush2.msra.mxu0 0.0
        %2821 = vmatprep.subr.mxu0 0.0
        %2822 = vmatpush2.msra.mxu0 0.0
        %2823 = vmatprep.subr.mxu0 0.0
        %2824 = vmatpush2.msra.mxu0 0.0
        %2825 = vmatprep.mubr.f32.mxu0 0.0
        %2826 = vmatmul.mubr.f32.gmra.mxu0 %v2753
        %v2827 = vpop.f32.mrf.mxu0
        %v2828 = vadd.f32 %v2750, %v2827
        %v2829 = vpop.f32.mrf.mxu0
        %v2830 = vadd.f32 %v2750, %v2829
        %2831 = vdwg.mxu0
        %2832 = vst [vmem:[#allocation2 + $0x8] sm:$0xff] %v2420
        %v2833 = vld [vmem:[%s3] sm:$0xf]
        %v2834 = vld [vmem:[%s5] sm:$0xff]
        %v2835 = vld [vmem:[#allocation2 + $0x4] sm:$0xff]
        %v2836 = vld [vmem:[#allocation2 + $0xc] sm:$0xf]
        %2839 = vrot.lane.b32.xlu0 %v2835, 17
        %v2840 = vpop.permute.xlu0 %2839
        %2841 = vrot.lane.b32.xlu0 %v2836, 17
        %v2842 = vpop.permute.xlu0 %2841
        %v2843 = vrot.slane %v2840, 4
        %v2844 = vrot.slane %v2842, 4
        %v2845 = vsel %vm1839, %v2843, %v2844
        %vm2846 = vcmask 138240
        %v2847 = vsel %vm2846, %v2840, %v2845
        %v2849 = vmul.f32 %v2834, %v2847
        %2851 = vset.pattern.permute.xlu0 0
        %2852 = vperm.xlu0 %2851, %v2833
        %v2853 = vpop.permute.xlu0 %2852
        %v2856 = vcombine.high %v2849, %v2849
        %v2858 = vadd.f32 %v2853, %v2849
        %v2859 = vadd.f32 %v2853, %v2856
        %s2860 = scalar_lea.vmem %s5, 8
        %v2861 = vld [vmem:[%s2860] sm:$0xff]
        %v2862 = vld [vmem:[#allocation2 + $0x4] sm:$0xff]
        %v2863 = vld [vmem:[#allocation2 + $0xc] sm:$0xf]
        %2866 = vrot.lane.b32.xlu0 %v2862, 16
        %v2867 = vpop.permute.xlu0 %2866
        %2868 = vrot.lane.b32.xlu0 %v2863, 16
        %v2869 = vpop.permute.xlu0 %2868
        %v2870 = vrot.slane %v2867, 4
        %v2871 = vrot.slane %v2869, 4
        %v2872 = vsel %vm1839, %v2870, %v2871
        %v2873 = vsel %vm2498, %v2867, %v2872
        %v2875 = vmul.f32 %v2861, %v2873
        %v2877 = vcombine.high %v2875, %v2875
        %v2879 = vadd.f32 %v2858, %v2875
        %v2880 = vadd.f32 %v2859, %v2877
        %s2881 = scalar_lea.vmem %s5, 16
        %v2882 = vld [vmem:[%s2881] sm:$0xff]
        %2883 = vrot.lane.b32.xlu0 %v2862, 15
        %v2884 = vpop.permute.xlu0 %2883
        %2885 = vrot.lane.b32.xlu0 %v2863, 15
        %v2886 = vpop.permute.xlu0 %2885
        %v2887 = vrot.slane %v2884, 4
        %v2888 = vrot.slane %v2886, 4
        %v2889 = vsel %vm1839, %v2887, %v2888
        %vm2890 = vcmask 121856
        %v2891 = vsel %vm2890, %v2884, %v2889
        %v2893 = vmul.f32 %v2882, %v2891
        %v2895 = vcombine.high %v2893, %v2893
        %v2897 = vadd.f32 %v2879, %v2893
        %v2898 = vadd.f32 %v2880, %v2895
        %s2899 = scalar_lea.vmem %s5, 24
        %v2900 = vld [vmem:[%s2899] sm:$0xff]
        %2901 = vrot.lane.b32.xlu0 %v2862, 1
        %v2902 = vpop.permute.xlu0 %2901
        %2903 = vrot.lane.b32.xlu0 %v2863, 1
        %v2904 = vpop.permute.xlu0 %2903
        %v2905 = vrot.slane %v2902, 4
        %v2906 = vrot.slane %v2904, 4
        %v2907 = vsel %vm1839, %v2905, %v2906
        %v2908 = vsel %vm2436, %v2902, %v2907
        %v2910 = vmul.f32 %v2900, %v2908
        %v2912 = vcombine.high %v2910, %v2910
        %v2914 = vadd.f32 %v2897, %v2910
        %v2915 = vadd.f32 %v2898, %v2912
        %s2916 = scalar_lea.vmem %s5, 32
        %v2917 = vld [vmem:[%s2916] sm:$0xff]
        %v2918 = vld [vmem:[#allocation2 + $0x8] sm:$0xff]
        %v2919 = vmul.f32 %v2917, %v2918
        %v2921 = vcombine.high %v2919, %v2919
        %v2923 = vadd.f32 %v2914, %v2919
        %v2924 = vadd.f32 %v2915, %v2921
        %s2925 = scalar_lea.vmem %s5, 40
        %v2926 = vld [vmem:[%s2925] sm:$0xff]
        %v2927 = vld [vmem:[#allocation2 + $0x10] sm:$0xf]
        %2930 = vrot.lane.b32.xlu0 %v2918, 127
        %v2931 = vpop.permute.xlu0 %2930
        %2932 = vrot.lane.b32.xlu0 %v2927, 127
        %v2933 = vpop.permute.xlu0 %2932
        %v2934 = vrot.slane %v2931, 4
        %v2935 = vrot.slane %v2933, 4
        %v2936 = vsel %vm1839, %v2934, %v2935
        %v2937 = vsel %vm2471, %v2931, %v2936
        %v2939 = vmul.f32 %v2926, %v2937
        %v2941 = vcombine.high %v2939, %v2939
        %v2943 = vadd.f32 %v2923, %v2939
        %v2944 = vadd.f32 %v2924, %v2941
        %s2945 = scalar_lea.vmem %s5, 48
        %v2946 = vld [vmem:[%s2945] sm:$0xff]
        %2947 = vrot.lane.b32.xlu0 %v2918, 113
        %v2948 = vpop.permute.xlu0 %2947
        %2949 = vrot.lane.b32.xlu0 %v2927, 113
        %v2950 = vpop.permute.xlu0 %2949
        %v2951 = vrot.slane %v2948, 4
        %v2952 = vrot.slane %v2950, 4
        %v2953 = vsel %vm1839, %v2951, %v2952
        %vm2954 = vcmask 924672
        %v2955 = vsel %vm2954, %v2948, %v2953
        %v2957 = vmul.f32 %v2946, %v2955
        %v2959 = vcombine.high %v2957, %v2957
        %v2961 = vadd.f32 %v2943, %v2957
        %v2962 = vadd.f32 %v2944, %v2959
        %s2963 = scalar_lea.vmem %s5, 56
        %v2964 = vld [vmem:[%s2963] sm:$0xff]
        %2965 = vrot.lane.b32.xlu0 %v2918, 112
        %v2966 = vpop.permute.xlu0 %2965
        %2967 = vrot.lane.b32.xlu0 %v2927, 112
        %v2968 = vpop.permute.xlu0 %2967
        %v2969 = vrot.slane %v2966, 4
        %v2970 = vrot.slane %v2968, 4
        %v2971 = vsel %vm1839, %v2969, %v2970
        %v2972 = vsel %vm2533, %v2966, %v2971
        %v2974 = vmul.f32 %v2964, %v2972
        %v2976 = vcombine.high %v2974, %v2974
        %v2978 = vadd.f32 %v2961, %v2974
        %v2979 = vadd.f32 %v2962, %v2976
        %s2980 = scalar_lea.vmem %s5, 64
        %v2981 = vld [vmem:[%s2980] sm:$0xff]
        %2982 = vrot.lane.b32.xlu0 %v2918, 111
        %v2983 = vpop.permute.xlu0 %2982
        %2984 = vrot.lane.b32.xlu0 %v2927, 111
        %v2985 = vpop.permute.xlu0 %2984
        %v2986 = vrot.slane %v2983, 4
        %v2987 = vrot.slane %v2985, 4
        %v2988 = vsel %vm1839, %v2986, %v2987
        %vm2989 = vcmask 908288
        %v2990 = vsel %vm2989, %v2983, %v2988
        %v2992 = vmul.f32 %v2981, %v2990
        %v2994 = vcombine.high %v2992, %v2992
        %v2996 = vadd.f32 %v2978, %v2992
        %v2997 = vadd.f32 %v2979, %v2994
        %v2998 = vmul.f32 %v2828, %v2996
        %v2999 = vmul.f32 %v2830, %v2997
        %3000 = vst [vmem:[#allocation2 + $0x8] sm:$0xff] %v2420
        %v3001 = vld [vmem:[%s35] sm:$0xf]
        %v3002 = vld [vmem:[#allocation10] sm:$0xff]
        %v3003 = vld [vmem:[#allocation2 + $0x4] sm:$0xff]
        %v3004 = vld [vmem:[#allocation2 + $0xc] sm:$0xf]
        %3007 = vrot.lane.b32.xlu0 %v3003, 2
        %v3008 = vpop.permute.xlu0 %3007
        %3009 = vrot.lane.b32.xlu0 %v3004, 2
        %v3010 = vpop.permute.xlu0 %3009
        %v3011 = vrot.slane %v3008, 4
        %v3012 = vrot.slane %v3010, 4
        %v3013 = vsel %vm1839, %v3011, %v3012
        %v3014 = vsel %vm2587, %v3008, %v3013
        %v3016 = vmul.f32 %v3002, %v3014
        %3018 = vset.pattern.permute.xlu0 0
        %3019 = vperm.xlu0 %3018, %v3001
        %v3020 = vpop.permute.xlu0 %3019
        %v3023 = vcombine.high %v3016, %v3016
        %v3025 = vadd.f32 %v3020, %v3016
        %v3026 = vadd.f32 %v3020, %v3023
        %s3027 = scalar_lea.vmem [#allocation10], 8
        %v3028 = vld [vmem:[%s3027] sm:$0xff]
        %v3029 = vld [vmem:[#allocation2 + $0x4] sm:$0xff]
        %v3030 = vld [vmem:[#allocation2 + $0xc] sm:$0xf]
        %3033 = vrot.lane.b32.xlu0 %v3029, 1
        %v3034 = vpop.permute.xlu0 %3033
        %3035 = vrot.lane.b32.xlu0 %v3030, 1
        %v3036 = vpop.permute.xlu0 %3035
        %v3037 = vrot.slane %v3034, 4
        %v3038 = vrot.slane %v3036, 4
        %v3039 = vsel %vm1839, %v3037, %v3038
        %v3040 = vsel %vm2436, %v3034, %v3039
        %v3042 = vmul.f32 %v3028, %v3040
        %v3044 = vcombine.high %v3042, %v3042
        %v3046 = vadd.f32 %v3025, %v3042
        %v3047 = vadd.f32 %v3026, %v3044
        %s3048 = scalar_lea.vmem [#allocation10], 16
        %v3049 = vld [vmem:[%s3048] sm:$0xff]
        %v3050 = vld [vmem:[#allocation2 + $0x8] sm:$0xff]
        %v3051 = vmul.f32 %v3049, %v3050
        %v3053 = vcombine.high %v3051, %v3051
        %v3055 = vadd.f32 %v3046, %v3051
        %v3056 = vadd.f32 %v3047, %v3053
        %s3057 = scalar_lea.vmem [#allocation10], 24
        %v3058 = vld [vmem:[%s3057] sm:$0xff]
        %v3059 = vld [vmem:[#allocation2 + $0x10] sm:$0xf]
        %3062 = vrot.lane.b32.xlu0 %v3050, 127
        %v3063 = vpop.permute.xlu0 %3062
        %3064 = vrot.lane.b32.xlu0 %v3059, 127
        %v3065 = vpop.permute.xlu0 %3064
        %v3066 = vrot.slane %v3063, 4
        %v3067 = vrot.slane %v3065, 4
        %v3068 = vsel %vm1839, %v3066, %v3067
        %v3069 = vsel %vm2471, %v3063, %v3068
        %v3071 = vmul.f32 %v3058, %v3069
        %v3073 = vcombine.high %v3071, %v3071
        %v3075 = vadd.f32 %v3055, %v3071
        %v3076 = vadd.f32 %v3056, %v3073
        %s3077 = scalar_lea.vmem [#allocation10], 32
        %v3078 = vld [vmem:[%s3077] sm:$0xff]
        %3079 = vrot.lane.b32.xlu0 %v3050, 126
        %v3080 = vpop.permute.xlu0 %3079
        %3081 = vrot.lane.b32.xlu0 %v3059, 126
        %v3082 = vpop.permute.xlu0 %3081
        %v3083 = vrot.slane %v3080, 4
        %v3084 = vrot.slane %v3082, 4
        %v3085 = vsel %vm1839, %v3083, %v3084
        %v3086 = vsel %vm2617, %v3080, %v3085
        %v3088 = vmul.f32 %v3078, %v3086
        %v3090 = vcombine.high %v3088, %v3088
        %v3092 = vadd.f32 %v3075, %v3088
        %v3093 = vadd.f32 %v3076, %v3090
        %v3096 = vcombine.low %v3092, %v3093
        %3098 = vst [vmem:[#allocation2 + $0x8] sm:$0xff] %v3096
        %v3099 = vld [vmem:[%s39] sm:$0xf]
        %v3100 = vld [vmem:[#allocation11] sm:$0xff]
        %v3101 = vld [vmem:[#allocation2 + $0x4] sm:$0xff]
        %v3102 = vld [vmem:[#allocation2 + $0xc] sm:$0xf]
        %3105 = vrot.lane.b32.xlu0 %v3101, 32
        %v3106 = vpop.permute.xlu0 %3105
        %3107 = vrot.lane.b32.xlu0 %v3102, 32
        %v3108 = vpop.permute.xlu0 %3107
        %v3109 = vrot.slane %v3106, 4
        %v3110 = vrot.slane %v3108, 4
        %v3111 = vsel %vm1839, %v3109, %v3110
        %v3112 = vsel %vm2689, %v3106, %v3111
        %v3114 = vmul.f32 %v3100, %v3112
        %3116 = vset.pattern.permute.xlu0 0
        %3117 = vperm.xlu0 %3116, %v3099
        %v3118 = vpop.permute.xlu0 %3117
        %v3121 = vcombine.high %v3114, %v3114
        %v3123 = vadd.f32 %v3118, %v3114
        %v3124 = vadd.f32 %v3118, %v3121
        %s3125 = scalar_lea.vmem [#allocation11], 8
        %v3126 = vld [vmem:[%s3125] sm:$0xff]
        %v3127 = vld [vmem:[#allocation2 + $0x4] sm:$0xff]
        %v3128 = vld [vmem:[#allocation2 + $0xc] sm:$0xf]
        %3131 = vrot.lane.b32.xlu0 %v3127, 16
        %v3132 = vpop.permute.xlu0 %3131
        %3133 = vrot.lane.b32.xlu0 %v3128, 16
        %v3134 = vpop.permute.xlu0 %3133
        %v3135 = vrot.slane %v3132, 4
        %v3136 = vrot.slane %v3134, 4
        %v3137 = vsel %vm1839, %v3135, %v3136
        %v3138 = vsel %vm2498, %v3132, %v3137
        %v3140 = vmul.f32 %v3126, %v3138
        %v3142 = vcombine.high %v3140, %v3140
        %v3144 = vadd.f32 %v3123, %v3140
        %v3145 = vadd.f32 %v3124, %v3142
        %s3146 = scalar_lea.vmem [#allocation11], 16
        %v3147 = vld [vmem:[%s3146] sm:$0xff]
        %v3148 = vld [vmem:[#allocation2 + $0x8] sm:$0xff]
        %v3149 = vmul.f32 %v3147, %v3148
        %v3151 = vcombine.high %v3149, %v3149
        %v3153 = vadd.f32 %v3144, %v3149
        %v3154 = vadd.f32 %v3145, %v3151
        %s3155 = scalar_lea.vmem [#allocation11], 24
        %v3156 = vld [vmem:[%s3155] sm:$0xff]
        %v3157 = vld [vmem:[#allocation2 + $0x10] sm:$0xf]
        %3160 = vrot.lane.b32.xlu0 %v3148, 112
        %v3161 = vpop.permute.xlu0 %3160
        %3162 = vrot.lane.b32.xlu0 %v3157, 112
        %v3163 = vpop.permute.xlu0 %3162
        %v3164 = vrot.slane %v3161, 4
        %v3165 = vrot.slane %v3163, 4
        %v3166 = vsel %vm1839, %v3164, %v3165
        %v3167 = vsel %vm2533, %v3161, %v3166
        %v3169 = vmul.f32 %v3156, %v3167
        %v3171 = vcombine.high %v3169, %v3169
        %v3173 = vadd.f32 %v3153, %v3169
        %v3174 = vadd.f32 %v3154, %v3171
        %s3175 = scalar_lea.vmem [#allocation11], 32
        %v3176 = vld [vmem:[%s3175] sm:$0xff]
        %3177 = vrot.lane.b32.xlu0 %v3148, 96
        %v3178 = vpop.permute.xlu0 %3177
        %3179 = vrot.lane.b32.xlu0 %v3157, 96
        %v3180 = vpop.permute.xlu0 %3179
        %v3181 = vrot.slane %v3178, 4
        %v3182 = vrot.slane %v3180, 4
        %v3183 = vsel %vm1839, %v3181, %v3182
        %v3184 = vsel %vm2719, %v3178, %v3183
        %v3186 = vmul.f32 %v3176, %v3184
        %v3188 = vcombine.high %v3186, %v3186
        %v3190 = vadd.f32 %v3173, %v3186
        %v3191 = vadd.f32 %v3174, %v3188
        %v3194 = vcombine.low %v3190, %v3191
        %3196 = vst [vmem:[#allocation2 + $0x8] sm:$0xff] %v3194
        %v3197 = vld [vmem:[%s43] sm:$0xf]
        %v3198 = vld [vmem:[#allocation13] sm:$0xff]
        %v3199 = vld [vmem:[#allocation2 + $0x4] sm:$0xff]
        %v3200 = vld [vmem:[#allocation2 + $0xc] sm:$0xf]
        %3203 = vrot.lane.b32.xlu0 %v3199, 9
        %v3204 = vpop.permute.xlu0 %3203
        %3205 = vrot.lane.b32.xlu0 %v3200, 9
        %v3206 = vpop.permute.xlu0 %3205
        %v3207 = vrot.slane %v3204, 4
        %v3208 = vrot.slane %v3206, 4
        %v3209 = vsel %vm1839, %v3207, %v3208
        %vm3210 = vcmask 72704
        %v3211 = vsel %vm3210, %v3204, %v3209
        %v3213 = vmul.f32 %v3198, %v3211
        %3215 = vset.pattern.permute.xlu0 0
        %3216 = vperm.xlu0 %3215, %v3197
        %v3217 = vpop.permute.xlu0 %3216
        %v3220 = vcombine.high %v3213, %v3213
        %v3222 = vadd.f32 %v3217, %v3213
        %v3223 = vadd.f32 %v3217, %v3220
        %s3224 = scalar_lea.vmem [#allocation13], 8
        %v3225 = vld [vmem:[%s3224] sm:$0xff]
        %v3226 = vld [vmem:[#allocation2 + $0x4] sm:$0xff]
        %v3227 = vld [vmem:[#allocation2 + $0xc] sm:$0xf]
        %3230 = vrot.lane.b32.xlu0 %v3226, 6
        %v3231 = vpop.permute.xlu0 %3230
        %3232 = vrot.lane.b32.xlu0 %v3227, 6
        %v3233 = vpop.permute.xlu0 %3232
        %v3234 = vrot.slane %v3231, 4
        %v3235 = vrot.slane %v3233, 4
        %v3236 = vsel %vm1839, %v3234, %v3235
        %vm3237 = vcmask 48128
        %v3238 = vsel %vm3237, %v3231, %v3236
        %v3240 = vmul.f32 %v3225, %v3238
        %v3242 = vcombine.high %v3240, %v3240
        %v3244 = vadd.f32 %v3222, %v3240
        %v3245 = vadd.f32 %v3223, %v3242
        %s3246 = scalar_lea.vmem [#allocation13], 16
        %v3247 = vld [vmem:[%s3246] sm:$0xff]
        %3248 = vrot.lane.b32.xlu0 %v3226, 3
        %v3249 = vpop.permute.xlu0 %3248
        %3250 = vrot.lane.b32.xlu0 %v3227, 3
        %v3251 = vpop.permute.xlu0 %3250
        %v3252 = vrot.slane %v3249, 4
        %v3253 = vrot.slane %v3251, 4
        %v3254 = vsel %vm1839, %v3252, %v3253
        %vm3255 = vcmask 23552
        %v3256 = vsel %vm3255, %v3249, %v3254
        %v3258 = vmul.f32 %v3247, %v3256
        %v3260 = vcombine.high %v3258, %v3258
        %v3262 = vadd.f32 %v3244, %v3258
        %v3263 = vadd.f32 %v3245, %v3260
        %s3264 = scalar_lea.vmem [#allocation13], 24
        %v3265 = vld [vmem:[%s3264] sm:$0xff]
        %v3266 = vld [vmem:[#allocation2 + $0x8] sm:$0xff]
        %v3267 = vmul.f32 %v3265, %v3266
        %v3269 = vcombine.high %v3267, %v3267
        %v3271 = vadd.f32 %v3262, %v3267
        %v3272 = vadd.f32 %v3263, %v3269
        %s3273 = scalar_lea.vmem [#allocation13], 32
        %v3274 = vld [vmem:[%s3273] sm:$0xff]
        %v3275 = vld [vmem:[#allocation2 + $0x10] sm:$0xf]
        %3278 = vrot.lane.b32.xlu0 %v3266, 125
        %v3279 = vpop.permute.xlu0 %3278
        %3280 = vrot.lane.b32.xlu0 %v3275, 125
        %v3281 = vpop.permute.xlu0 %3280
        %v3282 = vrot.slane %v3279, 4
        %v3283 = vrot.slane %v3281, 4
        %v3284 = vsel %vm1839, %v3282, %v3283
        %vm3285 = vcmask 1022976
        %v3286 = vsel %vm3285, %v3279, %v3284
        %v3288 = vmul.f32 %v3274, %v3286
        %v3290 = vcombine.high %v3288, %v3288
        %v3292 = vadd.f32 %v3271, %v3288
        %v3293 = vadd.f32 %v3272, %v3290
        %s3294 = scalar_lea.vmem [#allocation13], 40
        %v3295 = vld [vmem:[%s3294] sm:$0xff]
        %3296 = vrot.lane.b32.xlu0 %v3266, 122
        %v3297 = vpop.permute.xlu0 %3296
        %3298 = vrot.lane.b32.xlu0 %v3275, 122
        %v3299 = vpop.permute.xlu0 %3298
        %v3300 = vrot.slane %v3297, 4
        %v3301 = vrot.slane %v3299, 4
        %v3302 = vsel %vm1839, %v3300, %v3301
        %vm3303 = vcmask 998400
        %v3304 = vsel %vm3303, %v3297, %v3302
        %v3306 = vmul.f32 %v3295, %v3304
        %v3308 = vcombine.high %v3306, %v3306
        %v3310 = vadd.f32 %v3292, %v3306
        %v3311 = vadd.f32 %v3293, %v3308
        %s3312 = scalar_lea.vmem [#allocation13], 48
        %v3313 = vld [vmem:[%s3312] sm:$0xff]
        %3314 = vrot.lane.b32.xlu0 %v3266, 119
        %v3315 = vpop.permute.xlu0 %3314
        %3316 = vrot.lane.b32.xlu0 %v3275, 119
        %v3317 = vpop.permute.xlu0 %3316
        %v3318 = vrot.slane %v3315, 4
        %v3319 = vrot.slane %v3317, 4
        %v3320 = vsel %vm1839, %v3318, %v3319
        %vm3321 = vcmask 973824
        %v3322 = vsel %vm3321, %v3315, %v3320
        %v3324 = vmul.f32 %v3313, %v3322
        %v3326 = vcombine.high %v3324, %v3324
        %v3328 = vadd.f32 %v3310, %v3324
        %v3329 = vadd.f32 %v3311, %v3326
        %v3332 = vcombine.low %v3328, %v3329
        %3334 = vst [vmem:[#allocation2 + $0x8] sm:$0xff] %v3332
        %v3335 = vld [vmem:[%s47] sm:$0xf]
        %v3336 = vld [vmem:[#allocation14] sm:$0xff]
        %v3337 = vld [vmem:[#allocation2] sm:$0xff]
        %v3338 = vld [vmem:[#allocation2 + $0x8] sm:$0xf]
        %3341 = vrot.lane.b32.xlu0 %v3337, 16
        %v3342 = vpop.permute.xlu0 %3341
        %3343 = vrot.lane.b32.xlu0 %v3338, 16
        %v3344 = vpop.permute.xlu0 %3343
        %v3345 = vrot.slane %v3342, 4
        %v3346 = vrot.slane %v3344, 4
        %v3347 = vsel %vm1839, %v3345, %v3346
        %v3348 = vsel %vm2498, %v3342, %v3347
        %v3350 = vmul.f32 %v3336, %v3348
        %3352 = vset.pattern.permute.xlu0 0
        %3353 = vperm.xlu0 %3352, %v3335
        %v3354 = vpop.permute.xlu0 %3353
        %v3357 = vcombine.high %v3350, %v3350
        %v3359 = vadd.f32 %v3354, %v3350
        %v3360 = vadd.f32 %v3354, %v3357
        %s3361 = scalar_lea.vmem [#allocation14], 8
        %v3362 = vld [vmem:[%s3361] sm:$0xff]
        %v3363 = vld [vmem:[#allocation2 + $0x4] sm:$0xff]
        %v3364 = vld [vmem:[#allocation2 + $0xc] sm:$0xf]
        %3367 = vrot.lane.b32.xlu0 %v3363, 96
        %v3368 = vpop.permute.xlu0 %3367
        %3369 = vrot.lane.b32.xlu0 %v3364, 96
        %v3370 = vpop.permute.xlu0 %3369
        %v3371 = vrot.slane %v3368, 4
        %v3372 = vrot.slane %v3370, 4
        %v3373 = vsel %vm1839, %v3371, %v3372
        %v3374 = vsel %vm2719, %v3368, %v3373
        %v3376 = vmul.f32 %v3362, %v3374
        %v3378 = vcombine.high %v3376, %v3376
        %v3380 = vadd.f32 %v3359, %v3376
        %v3381 = vadd.f32 %v3360, %v3378
        %s3382 = scalar_lea.vmem [#allocation14], 16
        %v3383 = vld [vmem:[%s3382] sm:$0xff]
        %3384 = vrot.lane.b32.xlu0 %v3363, 48
        %v3385 = vpop.permute.xlu0 %3384
        %3386 = vrot.lane.b32.xlu0 %v3364, 48
        %v3387 = vpop.permute.xlu0 %3386
        %v3388 = vrot.slane %v3385, 4
        %v3389 = vrot.slane %v3387, 4
        %v3390 = vsel %vm1839, %v3388, %v3389
        %vm3391 = vcmask 392192
        %v3392 = vsel %vm3391, %v3385, %v3390
        %v3394 = vmul.f32 %v3383, %v3392
        %v3396 = vcombine.high %v3394, %v3394
        %v3398 = vadd.f32 %v3380, %v3394
        %v3399 = vadd.f32 %v3381, %v3396
        %s3400 = scalar_lea.vmem [#allocation14], 24
        %v3401 = vld [vmem:[%s3400] sm:$0xff]
        %v3402 = vld [vmem:[#allocation2 + $0x8] sm:$0xff]
        %v3403 = vmul.f32 %v3401, %v3402
        %v3405 = vcombine.high %v3403, %v3403
        %v3407 = vadd.f32 %v3398, %v3403
        %v3408 = vadd.f32 %v3399, %v3405
        %s3409 = scalar_lea.vmem [#allocation14], 32
        %v3410 = vld [vmem:[%s3409] sm:$0xff]
        %v3411 = vld [vmem:[#allocation2 + $0x10] sm:$0xf]
        %3414 = vrot.lane.b32.xlu0 %v3402, 80
        %v3415 = vpop.permute.xlu0 %3414
        %3416 = vrot.lane.b32.xlu0 %v3411, 80
        %v3417 = vpop.permute.xlu0 %3416
        %v3418 = vrot.slane %v3415, 4
        %v3419 = vrot.slane %v3417, 4
        %v3420 = vsel %vm1839, %v3418, %v3419
        %vm3421 = vcmask 654336
        %v3422 = vsel %vm3421, %v3415, %v3420
        %v3424 = vmul.f32 %v3410, %v3422
        %v3426 = vcombine.high %v3424, %v3424
        %v3428 = vadd.f32 %v3407, %v3424
        %v3429 = vadd.f32 %v3408, %v3426
        %s3430 = scalar_lea.vmem [#allocation14], 40
        %v3431 = vld [vmem:[%s3430] sm:$0xff]
        %3432 = vrot.lane.b32.xlu0 %v3402, 32
        %v3433 = vpop.permute.xlu0 %3432
        %3434 = vrot.lane.b32.xlu0 %v3411, 32
        %v3435 = vpop.permute.xlu0 %3434
        %v3436 = vrot.slane %v3433, 4
        %v3437 = vrot.slane %v3435, 4
        %v3438 = vsel %vm1839, %v3436, %v3437
        %v3439 = vsel %vm2689, %v3433, %v3438
        %v3441 = vmul.f32 %v3431, %v3439
        %v3443 = vcombine.high %v3441, %v3441
        %v3445 = vadd.f32 %v3428, %v3441
        %v3446 = vadd.f32 %v3429, %v3443
        %s3447 = scalar_lea.vmem [#allocation14], 48
        %v3448 = vld [vmem:[%s3447] sm:$0xff]
        %v3449 = vld [vmem:[#allocation2 + $0xc] sm:$0xff]
        %v3450 = vld [vmem:[#allocation2 + $0x14] sm:$0xf]
        %3453 = vrot.lane.b32.xlu0 %v3449, 112
        %v3454 = vpop.permute.xlu0 %3453
        %3455 = vrot.lane.b32.xlu0 %v3450, 112
        %v3456 = vpop.permute.xlu0 %3455
        %v3457 = vrot.slane %v3454, 4
        %v3458 = vrot.slane %v3456, 4
        %v3459 = vsel %vm1839, %v3457, %v3458
        %v3460 = vsel %vm2533, %v3454, %v3459
        %v3462 = vmul.f32 %v3448, %v3460
        %v3464 = vcombine.high %v3462, %v3462
        %v3466 = vadd.f32 %v3445, %v3462
        %v3467 = vadd.f32 %v3446, %v3464
        %v3468 = vld [vmem:[#allocation16] sm:$0xf]
        %v3469 = vld [vmem:[%s51] sm:$0xf]
        %3471 = vset.pattern.permute.xlu0 0
        %3472 = vperm.xlu0 %3471, %v3469
        %v3473 = vpop.permute.xlu0 %3472
        %v3476 = vsel %vm2560, %v3468, 0
        %v3479 = vsel %vm1839, %v3466, 0
        %v3482 = vsel %vm1839, %v3467, 0
        %3484 = vmatprep.subr.mxu0 0.0
        %3485 = vmatpush1.msra.mxu0 0.0
        %3486 = vmatprep.subr.mxu0 0.0
        %3487 = vmatpush1.msra.mxu0 0.0
        %3488 = vmatprep.subr.mxu0 0.0
        %3489 = vmatpush1.msra.mxu0 0.0
        %3490 = vmatprep.subr.mxu0 0.0
        %3491 = vmatpush1.msra.mxu0 0.0
        %3492 = vmatprep.subr.mxu0 0.0
        %3493 = vmatpush1.msra.mxu0 0.0
        %3494 = vmatprep.subr.mxu0 0.0
        %3495 = vmatpush1.msra.mxu0 0.0
        %3496 = vmatprep.subr.mxu0 0.0
        %3497 = vmatpush1.msra.mxu0 0.0
        %3498 = vmatprep.subr.mxu0 0.0
        %3499 = vmatpush1.msra.mxu0 0.0
        %3500 = vmatprep.subr.mxu0 0.0
        %3501 = vmatpush1.msra.mxu0 0.0
        %3502 = vmatprep.subr.mxu0 0.0
        %3503 = vmatpush1.msra.mxu0 0.0
        %3504 = vmatprep.subr.mxu0 0.0
        %3505 = vmatpush1.msra.mxu0 0.0
        %3506 = vmatprep.subr.mxu0 0.0
        %3507 = vmatpush1.msra.mxu0 0.0
        %3508 = vmatprep.subr.mxu0 0.0
        %3509 = vmatpush1.msra.mxu0 0.0
        %3510 = vmatprep.subr.mxu0 0.0
        %3511 = vmatpush1.msra.mxu0 0.0
        %3512 = vmatprep.subr.mxu0 0.0
        %3513 = vmatpush1.msra.mxu0 0.0
        %3514 = vmatprep.subr.mxu0 %v3482
        %3515 = vmatpush1.msra.mxu0 %v3479
        %3516 = vmatprep.subr.mxu0 0.0
        %3517 = vmatpush2.msra.mxu0 0.0
        %3518 = vmatprep.subr.mxu0 0.0
        %3519 = vmatpush2.msra.mxu0 0.0
        %3520 = vmatprep.subr.mxu0 0.0
        %3521 = vmatpush2.msra.mxu0 0.0
        %3522 = vmatprep.subr.mxu0 0.0
        %3523 = vmatpush2.msra.mxu0 0.0
        %3524 = vmatprep.subr.mxu0 0.0
        %3525 = vmatpush2.msra.mxu0 0.0
        %3526 = vmatprep.subr.mxu0 0.0
        %3527 = vmatpush2.msra.mxu0 0.0
        %3528 = vmatprep.subr.mxu0 0.0
        %3529 = vmatpush2.msra.mxu0 0.0
        %3530 = vmatprep.subr.mxu0 0.0
        %3531 = vmatpush2.msra.mxu0 0.0
        %3532 = vmatprep.subr.mxu0 0.0
        %3533 = vmatpush2.msra.mxu0 0.0
        %3534 = vmatprep.subr.mxu0 0.0
        %3535 = vmatpush2.msra.mxu0 0.0
        %3536 = vmatprep.subr.mxu0 0.0
        %3537 = vmatpush2.msra.mxu0 0.0
        %3538 = vmatprep.subr.mxu0 0.0
        %3539 = vmatpush2.msra.mxu0 0.0
        %3540 = vmatprep.subr.mxu0 0.0
        %3541 = vmatpush2.msra.mxu0 0.0
        %3542 = vmatprep.subr.mxu0 0.0
        %3543 = vmatpush2.msra.mxu0 0.0
        %3544 = vmatprep.subr.mxu0 0.0
        %3545 = vmatpush2.msra.mxu0 0.0
        %3546 = vmatprep.subr.mxu0 0.0
        %3547 = vmatpush2.msra.mxu0 0.0
        %3548 = vmatprep.mubr.f32.mxu0 0.0
        %3549 = vmatmul.mubr.f32.gmra.mxu0 %v3476
        %v3550 = vpop.f32.mrf.mxu0
        %v3551 = vadd.f32 %v3473, %v3550
        %v3552 = vpop.f32.mrf.mxu0
        %v3553 = vadd.f32 %v3473, %v3552
        %3554 = vdwg.mxu0
        %v3557 = vcombine.low %v2090, %v2092
        %3559 = vst [vmem:[#allocation2 + $0x8] sm:$0xff] %v3557
        %v3560 = vld [vmem:[%s7] sm:$0xf]
        %v3561 = vld [vmem:[%s9] sm:$0xff]
        %v3562 = vld [vmem:[#allocation2 + $0x4] sm:$0xff]
        %v3563 = vld [vmem:[#allocation2 + $0xc] sm:$0xf]
        %3566 = vrot.lane.b32.xlu0 %v3562, 34
        %v3567 = vpop.permute.xlu0 %3566
        %3568 = vrot.lane.b32.xlu0 %v3563, 34
        %v3569 = vpop.permute.xlu0 %3568
        %v3570 = vrot.slane %v3567, 4
        %v3571 = vrot.slane %v3569, 4
        %v3572 = vsel %vm1839, %v3570, %v3571
        %vm3573 = vcmask 277504
        %v3574 = vsel %vm3573, %v3567, %v3572
        %v3576 = vmul.f32 %v3561, %v3574
        %3578 = vset.pattern.permute.xlu0 0
        %3579 = vperm.xlu0 %3578, %v3560
        %v3580 = vpop.permute.xlu0 %3579
        %v3583 = vcombine.high %v3576, %v3576
        %v3585 = vadd.f32 %v3580, %v3576
        %v3586 = vadd.f32 %v3580, %v3583
        %s3587 = scalar_lea.vmem %s9, 8
        %v3588 = vld [vmem:[%s3587] sm:$0xff]
        %v3589 = vld [vmem:[#allocation2 + $0x4] sm:$0xff]
        %v3590 = vld [vmem:[#allocation2 + $0xc] sm:$0xf]
        %3593 = vrot.lane.b32.xlu0 %v3589, 33
        %v3594 = vpop.permute.xlu0 %3593
        %3595 = vrot.lane.b32.xlu0 %v3590, 33
        %v3596 = vpop.permute.xlu0 %3595
        %v3597 = vrot.slane %v3594, 4
        %v3598 = vrot.slane %v3596, 4
        %v3599 = vsel %vm1839, %v3597, %v3598
        %vm3600 = vcmask 269312
        %v3601 = vsel %vm3600, %v3594, %v3599
        %v3603 = vmul.f32 %v3588, %v3601
        %v3605 = vcombine.high %v3603, %v3603
        %v3607 = vadd.f32 %v3585, %v3603
        %v3608 = vadd.f32 %v3586, %v3605
        %s3609 = scalar_lea.vmem %s9, 16
        %v3610 = vld [vmem:[%s3609] sm:$0xff]
        %3611 = vrot.lane.b32.xlu0 %v3589, 32
        %v3612 = vpop.permute.xlu0 %3611
        %3613 = vrot.lane.b32.xlu0 %v3590, 32
        %v3614 = vpop.permute.xlu0 %3613
        %v3615 = vrot.slane %v3612, 4
        %v3616 = vrot.slane %v3614, 4
        %v3617 = vsel %vm1839, %v3615, %v3616
        %v3618 = vsel %vm2689, %v3612, %v3617
        %v3620 = vmul.f32 %v3610, %v3618
        %v3622 = vcombine.high %v3620, %v3620
        %v3624 = vadd.f32 %v3607, %v3620
        %v3625 = vadd.f32 %v3608, %v3622
        %s3626 = scalar_lea.vmem %s9, 24
        %v3627 = vld [vmem:[%s3626] sm:$0xff]
        %3628 = vrot.lane.b32.xlu0 %v3589, 31
        %v3629 = vpop.permute.xlu0 %3628
        %3630 = vrot.lane.b32.xlu0 %v3590, 31
        %v3631 = vpop.permute.xlu0 %3630
        %v3632 = vrot.slane %v3629, 4
        %v3633 = vrot.slane %v3631, 4
        %v3634 = vsel %vm1839, %v3632, %v3633
        %vm3635 = vcmask 252928
        %v3636 = vsel %vm3635, %v3629, %v3634
        %v3638 = vmul.f32 %v3627, %v3636
        %v3640 = vcombine.high %v3638, %v3638
        %v3642 = vadd.f32 %v3624, %v3638
        %v3643 = vadd.f32 %v3625, %v3640
        %s3644 = scalar_lea.vmem %s9, 32
        %v3645 = vld [vmem:[%s3644] sm:$0xff]
        %3646 = vrot.lane.b32.xlu0 %v3589, 30
        %v3647 = vpop.permute.xlu0 %3646
        %3648 = vrot.lane.b32.xlu0 %v3590, 30
        %v3649 = vpop.permute.xlu0 %3648
        %v3650 = vrot.slane %v3647, 4
        %v3651 = vrot.slane %v3649, 4
        %v3652 = vsel %vm1839, %v3650, %v3651
        %vm3653 = vcmask 244736
        %v3654 = vsel %vm3653, %v3647, %v3652
        %v3656 = vmul.f32 %v3645, %v3654
        %v3658 = vcombine.high %v3656, %v3656
        %v3660 = vadd.f32 %v3642, %v3656
        %v3661 = vadd.f32 %v3643, %v3658
        %s3662 = scalar_lea.vmem %s9, 40
        %v3663 = vld [vmem:[%s3662] sm:$0xff]
        %3664 = vrot.lane.b32.xlu0 %v3589, 18
        %v3665 = vpop.permute.xlu0 %3664
        %3666 = vrot.lane.b32.xlu0 %v3590, 18
        %v3667 = vpop.permute.xlu0 %3666
        %v3668 = vrot.slane %v3665, 4
        %v3669 = vrot.slane %v3667, 4
        %v3670 = vsel %vm1839, %v3668, %v3669
        %vm3671 = vcmask 146432
        %v3672 = vsel %vm3671, %v3665, %v3670
        %v3674 = vmul.f32 %v3663, %v3672
        %v3676 = vcombine.high %v3674, %v3674
        %v3678 = vadd.f32 %v3660, %v3674
        %v3679 = vadd.f32 %v3661, %v3676
        %s3680 = scalar_lea.vmem %s9, 48
        %v3681 = vld [vmem:[%s3680] sm:$0xff]
        %3682 = vrot.lane.b32.xlu0 %v3589, 17
        %v3683 = vpop.permute.xlu0 %3682
        %3684 = vrot.lane.b32.xlu0 %v3590, 17
        %v3685 = vpop.permute.xlu0 %3684
        %v3686 = vrot.slane %v3683, 4
        %v3687 = vrot.slane %v3685, 4
        %v3688 = vsel %vm1839, %v3686, %v3687
        %v3689 = vsel %vm2846, %v3683, %v3688
        %v3691 = vmul.f32 %v3681, %v3689
        %v3693 = vcombine.high %v3691, %v3691
        %v3695 = vadd.f32 %v3678, %v3691
        %v3696 = vadd.f32 %v3679, %v3693
        %s3697 = scalar_lea.vmem %s9, 56
        %v3698 = vld [vmem:[%s3697] sm:$0xff]
        %3699 = vrot.lane.b32.xlu0 %v3589, 16
        %v3700 = vpop.permute.xlu0 %3699
        %3701 = vrot.lane.b32.xlu0 %v3590, 16
        %v3702 = vpop.permute.xlu0 %3701
        %v3703 = vrot.slane %v3700, 4
        %v3704 = vrot.slane %v3702, 4
        %v3705 = vsel %vm1839, %v3703, %v3704
        %v3706 = vsel %vm2498, %v3700, %v3705
        %v3708 = vmul.f32 %v3698, %v3706
        %v3710 = vcombine.high %v3708, %v3708
        %v3712 = vadd.f32 %v3695, %v3708
        %v3713 = vadd.f32 %v3696, %v3710
        %s3714 = scalar_lea.vmem %s9, 64
        %v3715 = vld [vmem:[%s3714] sm:$0xff]
        %3716 = vrot.lane.b32.xlu0 %v3589, 15
        %v3717 = vpop.permute.xlu0 %3716
        %3718 = vrot.lane.b32.xlu0 %v3590, 15
        %v3719 = vpop.permute.xlu0 %3718
        %v3720 = vrot.slane %v3717, 4
        %v3721 = vrot.slane %v3719, 4
        %v3722 = vsel %vm1839, %v3720, %v3721
        %v3723 = vsel %vm2890, %v3717, %v3722
        %v3725 = vmul.f32 %v3715, %v3723
        %v3727 = vcombine.high %v3725, %v3725
        %v3729 = vadd.f32 %v3712, %v3725
        %v3730 = vadd.f32 %v3713, %v3727
        %s3731 = scalar_lea.vmem %s9, 72
        %v3732 = vld [vmem:[%s3731] sm:$0xff]
        %3733 = vrot.lane.b32.xlu0 %v3589, 14
        %v3734 = vpop.permute.xlu0 %3733
        %3735 = vrot.lane.b32.xlu0 %v3590, 14
        %v3736 = vpop.permute.xlu0 %3735
        %v3737 = vrot.slane %v3734, 4
        %v3738 = vrot.slane %v3736, 4
        %v3739 = vsel %vm1839, %v3737, %v3738
        %vm3740 = vcmask 113664
        %v3741 = vsel %vm3740, %v3734, %v3739
        %v3743 = vmul.f32 %v3732, %v3741
        %v3745 = vcombine.high %v3743, %v3743
        %v3747 = vadd.f32 %v3729, %v3743
        %v3748 = vadd.f32 %v3730, %v3745
        %s3749 = scalar_lea.vmem %s9, 80
        %v3750 = vld [vmem:[%s3749] sm:$0xff]
        %3751 = vrot.lane.b32.xlu0 %v3589, 2
        %v3752 = vpop.permute.xlu0 %3751
        %3753 = vrot.lane.b32.xlu0 %v3590, 2
        %v3754 = vpop.permute.xlu0 %3753
        %v3755 = vrot.slane %v3752, 4
        %v3756 = vrot.slane %v3754, 4
        %v3757 = vsel %vm1839, %v3755, %v3756
        %v3758 = vsel %vm2587, %v3752, %v3757
        %v3760 = vmul.f32 %v3750, %v3758
        %v3762 = vcombine.high %v3760, %v3760
        %v3764 = vadd.f32 %v3747, %v3760
        %v3765 = vadd.f32 %v3748, %v3762
        %s3766 = scalar_lea.vmem %s9, 88
        %v3767 = vld [vmem:[%s3766] sm:$0xff]
        %3768 = vrot.lane.b32.xlu0 %v3589, 1
        %v3769 = vpop.permute.xlu0 %3768
        %3770 = vrot.lane.b32.xlu0 %v3590, 1
        %v3771 = vpop.permute.xlu0 %3770
        %v3772 = vrot.slane %v3769, 4
        %v3773 = vrot.slane %v3771, 4
        %v3774 = vsel %vm1839, %v3772, %v3773
        %v3775 = vsel %vm2436, %v3769, %v3774
        %v3777 = vmul.f32 %v3767, %v3775
        %v3779 = vcombine.high %v3777, %v3777
        %v3781 = vadd.f32 %v3764, %v3777
        %v3782 = vadd.f32 %v3765, %v3779
        %s3783 = scalar_lea.vmem %s9, 96
        %v3784 = vld [vmem:[%s3783] sm:$0xff]
        %v3785 = vld [vmem:[#allocation2 + $0x8] sm:$0xff]
        %v3786 = vmul.f32 %v3784, %v3785
        %v3788 = vcombine.high %v3786, %v3786
        %v3790 = vadd.f32 %v3781, %v3786
        %v3791 = vadd.f32 %v3782, %v3788
        %s3792 = scalar_lea.vmem %s9, 104
        %v3793 = vld [vmem:[%s3792] sm:$0xff]
        %v3794 = vld [vmem:[#allocation2 + $0x10] sm:$0xf]
        %3797 = vrot.lane.b32.xlu0 %v3785, 127
        %v3798 = vpop.permute.xlu0 %3797
        %3799 = vrot.lane.b32.xlu0 %v3794, 127
        %v3800 = vpop.permute.xlu0 %3799
        %v3801 = vrot.slane %v3798, 4
        %v3802 = vrot.slane %v3800, 4
        %v3803 = vsel %vm1839, %v3801, %v3802
        %v3804 = vsel %vm2471, %v3798, %v3803
        %v3806 = vmul.f32 %v3793, %v3804
        %v3808 = vcombine.high %v3806, %v3806
        %v3810 = vadd.f32 %v3790, %v3806
        %v3811 = vadd.f32 %v3791, %v3808
        %s3812 = scalar_lea.vmem %s9, 112
        %v3813 = vld [vmem:[%s3812] sm:$0xff]
        %3814 = vrot.lane.b32.xlu0 %v3785, 126
        %v3815 = vpop.permute.xlu0 %3814
        %3816 = vrot.lane.b32.xlu0 %v3794, 126
        %v3817 = vpop.permute.xlu0 %3816
        %v3818 = vrot.slane %v3815, 4
        %v3819 = vrot.slane %v3817, 4
        %v3820 = vsel %vm1839, %v3818, %v3819
        %v3821 = vsel %vm2617, %v3815, %v3820
        %v3823 = vmul.f32 %v3813, %v3821
        %v3825 = vcombine.high %v3823, %v3823
        %v3827 = vadd.f32 %v3810, %v3823
        %v3828 = vadd.f32 %v3811, %v3825
        %s3829 = scalar_lea.vmem %s9, 120
        %v3830 = vld [vmem:[%s3829] sm:$0xff]
        %3831 = vrot.lane.b32.xlu0 %v3785, 114
        %v3832 = vpop.permute.xlu0 %3831
        %3833 = vrot.lane.b32.xlu0 %v3794, 114
        %v3834 = vpop.permute.xlu0 %3833
        %v3835 = vrot.slane %v3832, 4
        %v3836 = vrot.slane %v3834, 4
        %v3837 = vsel %vm1839, %v3835, %v3836
        %vm3838 = vcmask 932864
        %v3839 = vsel %vm3838, %v3832, %v3837
        %v3841 = vmul.f32 %v3830, %v3839
        %v3843 = vcombine.high %v3841, %v3841
        %v3845 = vadd.f32 %v3827, %v3841
        %v3846 = vadd.f32 %v3828, %v3843
        %s3847 = scalar_lea.vmem %s9, 128
        %v3848 = vld [vmem:[%s3847] sm:$0xff]
        %3849 = vrot.lane.b32.xlu0 %v3785, 113
        %v3850 = vpop.permute.xlu0 %3849
        %3851 = vrot.lane.b32.xlu0 %v3794, 113
        %v3852 = vpop.permute.xlu0 %3851
        %v3853 = vrot.slane %v3850, 4
        %v3854 = vrot.slane %v3852, 4
        %v3855 = vsel %vm1839, %v3853, %v3854
        %v3856 = vsel %vm2954, %v3850, %v3855
        %v3858 = vmul.f32 %v3848, %v3856
        %v3860 = vcombine.high %v3858, %v3858
        %v3862 = vadd.f32 %v3845, %v3858
        %v3863 = vadd.f32 %v3846, %v3860
        %s3864 = scalar_lea.vmem %s9, 136
        %v3865 = vld [vmem:[%s3864] sm:$0xff]
        %3866 = vrot.lane.b32.xlu0 %v3785, 112
        %v3867 = vpop.permute.xlu0 %3866
        %3868 = vrot.lane.b32.xlu0 %v3794, 112
        %v3869 = vpop.permute.xlu0 %3868
        %v3870 = vrot.slane %v3867, 4
        %v3871 = vrot.slane %v3869, 4
        %v3872 = vsel %vm1839, %v3870, %v3871
        %v3873 = vsel %vm2533, %v3867, %v3872
        %v3875 = vmul.f32 %v3865, %v3873
        %v3877 = vcombine.high %v3875, %v3875
        %v3879 = vadd.f32 %v3862, %v3875
        %v3880 = vadd.f32 %v3863, %v3877
        %s3881 = scalar_lea.vmem %s9, 144
        %v3882 = vld [vmem:[%s3881] sm:$0xff]
        %3883 = vrot.lane.b32.xlu0 %v3785, 111
        %v3884 = vpop.permute.xlu0 %3883
        %3885 = vrot.lane.b32.xlu0 %v3794, 111
        %v3886 = vpop.permute.xlu0 %3885
        %v3887 = vrot.slane %v3884, 4
        %v3888 = vrot.slane %v3886, 4
        %v3889 = vsel %vm1839, %v3887, %v3888
        %v3890 = vsel %vm2989, %v3884, %v3889
        %v3892 = vmul.f32 %v3882, %v3890
        %v3894 = vcombine.high %v3892, %v3892
        %v3896 = vadd.f32 %v3879, %v3892
        %v3897 = vadd.f32 %v3880, %v3894
        %s3898 = scalar_lea.vmem %s9, 152
        %v3899 = vld [vmem:[%s3898] sm:$0xff]
        %3900 = vrot.lane.b32.xlu0 %v3785, 110
        %v3901 = vpop.permute.xlu0 %3900
        %3902 = vrot.lane.b32.xlu0 %v3794, 110
        %v3903 = vpop.permute.xlu0 %3902
        %v3904 = vrot.slane %v3901, 4
        %v3905 = vrot.slane %v3903, 4
        %v3906 = vsel %vm1839, %v3904, %v3905
        %vm3907 = vcmask 900096
        %v3908 = vsel %vm3907, %v3901, %v3906
        %v3910 = vmul.f32 %v3899, %v3908
        %v3912 = vcombine.high %v3910, %v3910
        %v3914 = vadd.f32 %v3896, %v3910
        %v3915 = vadd.f32 %v3897, %v3912
        %s3916 = scalar_lea.vmem %s9, 160
        %v3917 = vld [vmem:[%s3916] sm:$0xff]
        %3918 = vrot.lane.b32.xlu0 %v3785, 98
        %v3919 = vpop.permute.xlu0 %3918
        %3920 = vrot.lane.b32.xlu0 %v3794, 98
        %v3921 = vpop.permute.xlu0 %3920
        %v3922 = vrot.slane %v3919, 4
        %v3923 = vrot.slane %v3921, 4
        %v3924 = vsel %vm1839, %v3922, %v3923
        %vm3925 = vcmask 801792
        %v3926 = vsel %vm3925, %v3919, %v3924
        %v3928 = vmul.f32 %v3917, %v3926
        %v3930 = vcombine.high %v3928, %v3928
        %v3932 = vadd.f32 %v3914, %v3928
        %v3933 = vadd.f32 %v3915, %v3930
        %s3934 = scalar_lea.vmem %s9, 168
        %v3935 = vld [vmem:[%s3934] sm:$0xff]
        %3936 = vrot.lane.b32.xlu0 %v3785, 97
        %v3937 = vpop.permute.xlu0 %3936
        %3938 = vrot.lane.b32.xlu0 %v3794, 97
        %v3939 = vpop.permute.xlu0 %3938
        %v3940 = vrot.slane %v3937, 4
        %v3941 = vrot.slane %v3939, 4
        %v3942 = vsel %vm1839, %v3940, %v3941
        %vm3943 = vcmask 793600
        %v3944 = vsel %vm3943, %v3937, %v3942
        %v3946 = vmul.f32 %v3935, %v3944
        %v3948 = vcombine.high %v3946, %v3946
        %v3950 = vadd.f32 %v3932, %v3946
        %v3951 = vadd.f32 %v3933, %v3948
        %s3952 = scalar_lea.vmem %s9, 176
        %v3953 = vld [vmem:[%s3952] sm:$0xff]
        %3954 = vrot.lane.b32.xlu0 %v3785, 96
        %v3955 = vpop.permute.xlu0 %3954
        %3956 = vrot.lane.b32.xlu0 %v3794, 96
        %v3957 = vpop.permute.xlu0 %3956
        %v3958 = vrot.slane %v3955, 4
        %v3959 = vrot.slane %v3957, 4
        %v3960 = vsel %vm1839, %v3958, %v3959
        %v3961 = vsel %vm2719, %v3955, %v3960
        %v3963 = vmul.f32 %v3953, %v3961
        %v3965 = vcombine.high %v3963, %v3963
        %v3967 = vadd.f32 %v3950, %v3963
        %v3968 = vadd.f32 %v3951, %v3965
        %s3969 = scalar_lea.vmem %s9, 184
        %v3970 = vld [vmem:[%s3969] sm:$0xff]
        %3971 = vrot.lane.b32.xlu0 %v3785, 95
        %v3972 = vpop.permute.xlu0 %3971
        %3973 = vrot.lane.b32.xlu0 %v3794, 95
        %v3974 = vpop.permute.xlu0 %3973
        %v3975 = vrot.slane %v3972, 4
        %v3976 = vrot.slane %v3974, 4
        %v3977 = vsel %vm1839, %v3975, %v3976
        %vm3978 = vcmask 777216
        %v3979 = vsel %vm3978, %v3972, %v3977
        %v3981 = vmul.f32 %v3970, %v3979
        %v3983 = vcombine.high %v3981, %v3981
        %v3985 = vadd.f32 %v3967, %v3981
        %v3986 = vadd.f32 %v3968, %v3983
        %s3987 = scalar_lea.vmem %s9, 192
        %v3988 = vld [vmem:[%s3987] sm:$0xff]
        %3989 = vrot.lane.b32.xlu0 %v3785, 94
        %v3990 = vpop.permute.xlu0 %3989
        %3991 = vrot.lane.b32.xlu0 %v3794, 94
        %v3992 = vpop.permute.xlu0 %3991
        %v3993 = vrot.slane %v3990, 4
        %v3994 = vrot.slane %v3992, 4
        %v3995 = vsel %vm1839, %v3993, %v3994
        %vm3996 = vcmask 769024
        %v3997 = vsel %vm3996, %v3990, %v3995
        %v3999 = vmul.f32 %v3988, %v3997
        %v4001 = vcombine.high %v3999, %v3999
        %v4003 = vadd.f32 %v3985, %v3999
        %v4004 = vadd.f32 %v3986, %v4001
        %v4005 = vmul.f32 %v3551, %v4003
        %v4006 = vmul.f32 %v3553, %v4004
        %4007 = vst [vmem:[#allocation2 + $0x8] sm:$0xff] %v2420
        %v4008 = vld [vmem:[%s55] sm:$0xf]
        %v4009 = vld [vmem:[#allocation17] sm:$0xff]
        %v4010 = vld [vmem:[#allocation2 + $0x4] sm:$0xff]
        %v4011 = vld [vmem:[#allocation2 + $0xc] sm:$0xf]
        %4014 = vrot.lane.b32.xlu0 %v4010, 3
        %v4015 = vpop.permute.xlu0 %4014
        %4016 = vrot.lane.b32.xlu0 %v4011, 3
        %v4017 = vpop.permute.xlu0 %4016
        %v4018 = vrot.slane %v4015, 4
        %v4019 = vrot.slane %v4017, 4
        %v4020 = vsel %vm1839, %v4018, %v4019
        %v4021 = vsel %vm3255, %v4015, %v4020
        %v4023 = vmul.f32 %v4009, %v4021
        %4025 = vset.pattern.permute.xlu0 0
        %4026 = vperm.xlu0 %4025, %v4008
        %v4027 = vpop.permute.xlu0 %4026
        %v4030 = vcombine.high %v4023, %v4023
        %v4032 = vadd.f32 %v4027, %v4023
        %v4033 = vadd.f32 %v4027, %v4030
        %s4034 = scalar_lea.vmem [#allocation17], 8
        %v4035 = vld [vmem:[%s4034] sm:$0xff]
        %v4036 = vld [vmem:[#allocation2 + $0x4] sm:$0xff]
        %v4037 = vld [vmem:[#allocation2 + $0xc] sm:$0xf]
        %4040 = vrot.lane.b32.xlu0 %v4036, 2
        %v4041 = vpop.permute.xlu0 %4040
        %4042 = vrot.lane.b32.xlu0 %v4037, 2
        %v4043 = vpop.permute.xlu0 %4042
        %v4044 = vrot.slane %v4041, 4
        %v4045 = vrot.slane %v4043, 4
        %v4046 = vsel %vm1839, %v4044, %v4045
        %v4047 = vsel %vm2587, %v4041, %v4046
        %v4049 = vmul.f32 %v4035, %v4047
        %v4051 = vcombine.high %v4049, %v4049
        %v4053 = vadd.f32 %v4032, %v4049
        %v4054 = vadd.f32 %v4033, %v4051
        %s4055 = scalar_lea.vmem [#allocation17], 16
        %v4056 = vld [vmem:[%s4055] sm:$0xff]
        %4057 = vrot.lane.b32.xlu0 %v4036, 1
        %v4058 = vpop.permute.xlu0 %4057
        %4059 = vrot.lane.b32.xlu0 %v4037, 1
        %v4060 = vpop.permute.xlu0 %4059
        %v4061 = vrot.slane %v4058, 4
        %v4062 = vrot.slane %v4060, 4
        %v4063 = vsel %vm1839, %v4061, %v4062
        %v4064 = vsel %vm2436, %v4058, %v4063
        %v4066 = vmul.f32 %v4056, %v4064
        %v4068 = vcombine.high %v4066, %v4066
        %v4070 = vadd.f32 %v4053, %v4066
        %v4071 = vadd.f32 %v4054, %v4068
        %s4072 = scalar_lea.vmem [#allocation17], 24
        %v4073 = vld [vmem:[%s4072] sm:$0xff]
        %v4074 = vld [vmem:[#allocation2 + $0x8] sm:$0xff]
        %v4075 = vmul.f32 %v4073, %v4074
        %v4077 = vcombine.high %v4075, %v4075
        %v4079 = vadd.f32 %v4070, %v4075
        %v4080 = vadd.f32 %v4071, %v4077
        %s4081 = scalar_lea.vmem [#allocation17], 32
        %v4082 = vld [vmem:[%s4081] sm:$0xff]
        %v4083 = vld [vmem:[#allocation2 + $0x10] sm:$0xf]
        %4086 = vrot.lane.b32.xlu0 %v4074, 127
        %v4087 = vpop.permute.xlu0 %4086
        %4088 = vrot.lane.b32.xlu0 %v4083, 127
        %v4089 = vpop.permute.xlu0 %4088
        %v4090 = vrot.slane %v4087, 4
        %v4091 = vrot.slane %v4089, 4
        %v4092 = vsel %vm1839, %v4090, %v4091
        %v4093 = vsel %vm2471, %v4087, %v4092
        %v4095 = vmul.f32 %v4082, %v4093
        %v4097 = vcombine.high %v4095, %v4095
        %v4099 = vadd.f32 %v4079, %v4095
        %v4100 = vadd.f32 %v4080, %v4097
        %s4101 = scalar_lea.vmem [#allocation17], 40
        %v4102 = vld [vmem:[%s4101] sm:$0xff]
        %4103 = vrot.lane.b32.xlu0 %v4074, 126
        %v4104 = vpop.permute.xlu0 %4103
        %4105 = vrot.lane.b32.xlu0 %v4083, 126
        %v4106 = vpop.permute.xlu0 %4105
        %v4107 = vrot.slane %v4104, 4
        %v4108 = vrot.slane %v4106, 4
        %v4109 = vsel %vm1839, %v4107, %v4108
        %v4110 = vsel %vm2617, %v4104, %v4109
        %v4112 = vmul.f32 %v4102, %v4110
        %v4114 = vcombine.high %v4112, %v4112
        %v4116 = vadd.f32 %v4099, %v4112
        %v4117 = vadd.f32 %v4100, %v4114
        %s4118 = scalar_lea.vmem [#allocation17], 48
        %v4119 = vld [vmem:[%s4118] sm:$0xff]
        %4120 = vrot.lane.b32.xlu0 %v4074, 125
        %v4121 = vpop.permute.xlu0 %4120
        %4122 = vrot.lane.b32.xlu0 %v4083, 125
        %v4123 = vpop.permute.xlu0 %4122
        %v4124 = vrot.slane %v4121, 4
        %v4125 = vrot.slane %v4123, 4
        %v4126 = vsel %vm1839, %v4124, %v4125
        %v4127 = vsel %vm3285, %v4121, %v4126
        %v4129 = vmul.f32 %v4119, %v4127
        %v4131 = vcombine.high %v4129, %v4129
        %v4133 = vadd.f32 %v4116, %v4129
        %v4134 = vadd.f32 %v4117, %v4131
        %v4137 = vcombine.low %v4133, %v4134
        %4139 = vst [vmem:[#allocation2 + $0x8] sm:$0xff] %v4137
        %v4140 = vld [vmem:[%s59] sm:$0xf]
        %v4141 = vld [vmem:[#allocation19] sm:$0xff]
        %v4142 = vld [vmem:[#allocation2 + $0x4] sm:$0xff]
        %v4143 = vld [vmem:[#allocation2 + $0xc] sm:$0xf]
        %4146 = vrot.lane.b32.xlu0 %v4142, 48
        %v4147 = vpop.permute.xlu0 %4146
        %4148 = vrot.lane.b32.xlu0 %v4143, 48
        %v4149 = vpop.permute.xlu0 %4148
        %v4150 = vrot.slane %v4147, 4
        %v4151 = vrot.slane %v4149, 4
        %v4152 = vsel %vm1839, %v4150, %v4151
        %v4153 = vsel %vm3391, %v4147, %v4152
        %v4155 = vmul.f32 %v4141, %v4153
        %4157 = vset.pattern.permute.xlu0 0
        %4158 = vperm.xlu0 %4157, %v4140
        %v4159 = vpop.permute.xlu0 %4158
        %v4162 = vcombine.high %v4155, %v4155
        %v4164 = vadd.f32 %v4159, %v4155
        %v4165 = vadd.f32 %v4159, %v4162
        %s4166 = scalar_lea.vmem [#allocation19], 8
        %v4167 = vld [vmem:[%s4166] sm:$0xff]
        %v4168 = vld [vmem:[#allocation2 + $0x4] sm:$0xff]
        %v4169 = vld [vmem:[#allocation2 + $0xc] sm:$0xf]
        %4172 = vrot.lane.b32.xlu0 %v4168, 32
        %v4173 = vpop.permute.xlu0 %4172
        %4174 = vrot.lane.b32.xlu0 %v4169, 32
        %v4175 = vpop.permute.xlu0 %4174
        %v4176 = vrot.slane %v4173, 4
        %v4177 = vrot.slane %v4175, 4
        %v4178 = vsel %vm1839, %v4176, %v4177
        %v4179 = vsel %vm2689, %v4173, %v4178
        %v4181 = vmul.f32 %v4167, %v4179
        %v4183 = vcombine.high %v4181, %v4181
        %v4185 = vadd.f32 %v4164, %v4181
        %v4186 = vadd.f32 %v4165, %v4183
        %s4187 = scalar_lea.vmem [#allocation19], 16
        %v4188 = vld [vmem:[%s4187] sm:$0xff]
        %4189 = vrot.lane.b32.xlu0 %v4168, 16
        %v4190 = vpop.permute.xlu0 %4189
        %4191 = vrot.lane.b32.xlu0 %v4169, 16
        %v4192 = vpop.permute.xlu0 %4191
        %v4193 = vrot.slane %v4190, 4
        %v4194 = vrot.slane %v4192, 4
        %v4195 = vsel %vm1839, %v4193, %v4194
        %v4196 = vsel %vm2498, %v4190, %v4195
        %v4198 = vmul.f32 %v4188, %v4196
        %v4200 = vcombine.high %v4198, %v4198
        %v4202 = vadd.f32 %v4185, %v4198
        %v4203 = vadd.f32 %v4186, %v4200
        %s4204 = scalar_lea.vmem [#allocation19], 24
        %v4205 = vld [vmem:[%s4204] sm:$0xff]
        %v4206 = vld [vmem:[#allocation2 + $0x8] sm:$0xff]
        %v4207 = vmul.f32 %v4205, %v4206
        %v4209 = vcombine.high %v4207, %v4207
        %v4211 = vadd.f32 %v4202, %v4207
        %v4212 = vadd.f32 %v4203, %v4209
        %s4213 = scalar_lea.vmem [#allocation19], 32
        %v4214 = vld [vmem:[%s4213] sm:$0xff]
        %v4215 = vld [vmem:[#allocation2 + $0x10] sm:$0xf]
        %4218 = vrot.lane.b32.xlu0 %v4206, 112
        %v4219 = vpop.permute.xlu0 %4218
        %4220 = vrot.lane.b32.xlu0 %v4215, 112
        %v4221 = vpop.permute.xlu0 %4220
        %v4222 = vrot.slane %v4219, 4
        %v4223 = vrot.slane %v4221, 4
        %v4224 = vsel %vm1839, %v4222, %v4223
        %v4225 = vsel %vm2533, %v4219, %v4224
        %v4227 = vmul.f32 %v4214, %v4225
        %v4229 = vcombine.high %v4227, %v4227
        %v4231 = vadd.f32 %v4211, %v4227
        %v4232 = vadd.f32 %v4212, %v4229
        %s4233 = scalar_lea.vmem [#allocation19], 40
        %v4234 = vld [vmem:[%s4233] sm:$0xff]
        %4235 = vrot.lane.b32.xlu0 %v4206, 96
        %v4236 = vpop.permute.xlu0 %4235
        %4237 = vrot.lane.b32.xlu0 %v4215, 96
        %v4238 = vpop.permute.xlu0 %4237
        %v4239 = vrot.slane %v4236, 4
        %v4240 = vrot.slane %v4238, 4
        %v4241 = vsel %vm1839, %v4239, %v4240
        %v4242 = vsel %vm2719, %v4236, %v4241
        %v4244 = vmul.f32 %v4234, %v4242
        %v4246 = vcombine.high %v4244, %v4244
        %v4248 = vadd.f32 %v4231, %v4244
        %v4249 = vadd.f32 %v4232, %v4246
        %s4250 = scalar_lea.vmem [#allocation19], 48
        %v4251 = vld [vmem:[%s4250] sm:$0xff]
        %4252 = vrot.lane.b32.xlu0 %v4206, 80
        %v4253 = vpop.permute.xlu0 %4252
        %4254 = vrot.lane.b32.xlu0 %v4215, 80
        %v4255 = vpop.permute.xlu0 %4254
        %v4256 = vrot.slane %v4253, 4
        %v4257 = vrot.slane %v4255, 4
        %v4258 = vsel %vm1839, %v4256, %v4257
        %v4259 = vsel %vm3421, %v4253, %v4258
        %v4261 = vmul.f32 %v4251, %v4259
        %v4263 = vcombine.high %v4261, %v4261
        %v4265 = vadd.f32 %v4248, %v4261
        %v4266 = vadd.f32 %v4249, %v4263
        %v4269 = vcombine.low %v4265, %v4266
        %4271 = vst [vmem:[#allocation2 + $0x8] sm:$0xff] %v4269
        %v4272 = vld [vmem:[%s63] sm:$0xf]
        %v4273 = vld [vmem:[%s65] sm:$0xff]
        %v4274 = vld [vmem:[#allocation2 + $0x4] sm:$0xff]
        %v4275 = vld [vmem:[#allocation2 + $0xc] sm:$0xf]
        %4278 = vrot.lane.b32.xlu0 %v4274, 16
        %v4279 = vpop.permute.xlu0 %4278
        %4280 = vrot.lane.b32.xlu0 %v4275, 16
        %v4281 = vpop.permute.xlu0 %4280
        %v4282 = vrot.slane %v4279, 4
        %v4283 = vrot.slane %v4281, 4
        %v4284 = vsel %vm1839, %v4282, %v4283
        %v4285 = vsel %vm2498, %v4279, %v4284
        %v4287 = vmul.f32 %v4273, %v4285
        %4289 = vset.pattern.permute.xlu0 0
        %4290 = vperm.xlu0 %4289, %v4272
        %v4291 = vpop.permute.xlu0 %4290
        %v4294 = vcombine.high %v4287, %v4287
        %v4296 = vadd.f32 %v4291, %v4287
        %v4297 = vadd.f32 %v4291, %v4294
        %s4298 = scalar_lea.vmem %s65, 8
        %v4299 = vld [vmem:[%s4298] sm:$0xff]
        %v4300 = vld [vmem:[#allocation2 + $0x4] sm:$0xff]
        %v4301 = vld [vmem:[#allocation2 + $0xc] sm:$0xf]
        %4304 = vrot.lane.b32.xlu0 %v4300, 12
        %v4305 = vpop.permute.xlu0 %4304
        %4306 = vrot.lane.b32.xlu0 %v4301, 12
        %v4307 = vpop.permute.xlu0 %4306
        %v4308 = vrot.slane %v4305, 4
        %v4309 = vrot.slane %v4307, 4
        %v4310 = vsel %vm1839, %v4308, %v4309
        %v4311 = vsel %vm1932, %v4305, %v4310
        %v4313 = vmul.f32 %v4299, %v4311
        %v4315 = vcombine.high %v4313, %v4313
        %v4317 = vadd.f32 %v4296, %v4313
        %v4318 = vadd.f32 %v4297, %v4315
        %s4319 = scalar_lea.vmem %s65, 16
        %v4320 = vld [vmem:[%s4319] sm:$0xff]
        %4321 = vrot.lane.b32.xlu0 %v4300, 8
        %v4322 = vpop.permute.xlu0 %4321
        %4323 = vrot.lane.b32.xlu0 %v4301, 8
        %v4324 = vpop.permute.xlu0 %4323
        %v4325 = vrot.slane %v4322, 4
        %v4326 = vrot.slane %v4324, 4
        %v4327 = vsel %vm1839, %v4325, %v4326
        %vm4328 = vcmask 64512
        %v4329 = vsel %vm4328, %v4322, %v4327
        %v4331 = vmul.f32 %v4320, %v4329
        %v4333 = vcombine.high %v4331, %v4331
        %v4335 = vadd.f32 %v4317, %v4331
        %v4336 = vadd.f32 %v4318, %v4333
        %s4337 = scalar_lea.vmem %s65, 24
        %v4338 = vld [vmem:[%s4337] sm:$0xff]
        %4339 = vrot.lane.b32.xlu0 %v4300, 4
        %v4340 = vpop.permute.xlu0 %4339
        %4341 = vrot.lane.b32.xlu0 %v4301, 4
        %v4342 = vpop.permute.xlu0 %4341
        %v4343 = vrot.slane %v4340, 4
        %v4344 = vrot.slane %v4342, 4
        %v4345 = vsel %vm1839, %v4343, %v4344
        %v4346 = vsel %vm2560, %v4340, %v4345
        %v4348 = vmul.f32 %v4338, %v4346
        %v4350 = vcombine.high %v4348, %v4348
        %v4352 = vadd.f32 %v4335, %v4348
        %v4353 = vadd.f32 %v4336, %v4350
        %s4354 = scalar_lea.vmem %s65, 32
        %v4355 = vld [vmem:[%s4354] sm:$0xff]
        %v4356 = vld [vmem:[#allocation2 + $0x8] sm:$0xff]
        %v4357 = vmul.f32 %v4355, %v4356
        %v4359 = vcombine.high %v4357, %v4357
        %v4361 = vadd.f32 %v4352, %v4357
        %v4362 = vadd.f32 %v4353, %v4359
        %s4363 = scalar_lea.vmem %s65, 40
        %v4364 = vld [vmem:[%s4363] sm:$0xff]
        %v4365 = vld [vmem:[#allocation2 + $0x10] sm:$0xf]
        %4368 = vrot.lane.b32.xlu0 %v4356, 124
        %v4369 = vpop.permute.xlu0 %4368
        %4370 = vrot.lane.b32.xlu0 %v4365, 124
        %v4371 = vpop.permute.xlu0 %4370
        %v4372 = vrot.slane %v4369, 4
        %v4373 = vrot.slane %v4371, 4
        %v4374 = vsel %vm1839, %v4372, %v4373
        %v4375 = vsel %vm2635, %v4369, %v4374
        %v4377 = vmul.f32 %v4364, %v4375
        %v4379 = vcombine.high %v4377, %v4377
        %v4381 = vadd.f32 %v4361, %v4377
        %v4382 = vadd.f32 %v4362, %v4379
        %s4383 = scalar_lea.vmem %s65, 48
        %v4384 = vld [vmem:[%s4383] sm:$0xff]
        %4385 = vrot.lane.b32.xlu0 %v4356, 120
        %v4386 = vpop.permute.xlu0 %4385
        %4387 = vrot.lane.b32.xlu0 %v4365, 120
        %v4388 = vpop.permute.xlu0 %4387
        %v4389 = vrot.slane %v4386, 4
        %v4390 = vrot.slane %v4388, 4
        %v4391 = vsel %vm1839, %v4389, %v4390
        %vm4392 = vcmask 982016
        %v4393 = vsel %vm4392, %v4386, %v4391
        %v4395 = vmul.f32 %v4384, %v4393
        %v4397 = vcombine.high %v4395, %v4395
        %v4399 = vadd.f32 %v4381, %v4395
        %v4400 = vadd.f32 %v4382, %v4397
        %s4401 = scalar_lea.vmem %s65, 56
        %v4402 = vld [vmem:[%s4401] sm:$0xff]
        %4403 = vrot.lane.b32.xlu0 %v4356, 116
        %v4404 = vpop.permute.xlu0 %4403
        %4405 = vrot.lane.b32.xlu0 %v4365, 116
        %v4406 = vpop.permute.xlu0 %4405
        %v4407 = vrot.slane %v4404, 4
        %v4408 = vrot.slane %v4406, 4
        %v4409 = vsel %vm1839, %v4407, %v4408
        %vm4410 = vcmask 949248
        %v4411 = vsel %vm4410, %v4404, %v4409
        %v4413 = vmul.f32 %v4402, %v4411
        %v4415 = vcombine.high %v4413, %v4413
        %v4417 = vadd.f32 %v4399, %v4413
        %v4418 = vadd.f32 %v4400, %v4415
        %s4419 = scalar_lea.vmem %s65, 64
        %v4420 = vld [vmem:[%s4419] sm:$0xff]
        %4421 = vrot.lane.b32.xlu0 %v4356, 112
        %v4422 = vpop.permute.xlu0 %4421
        %4423 = vrot.lane.b32.xlu0 %v4365, 112
        %v4424 = vpop.permute.xlu0 %4423
        %v4425 = vrot.slane %v4422, 4
        %v4426 = vrot.slane %v4424, 4
        %v4427 = vsel %vm1839, %v4425, %v4426
        %v4428 = vsel %vm2533, %v4422, %v4427
        %v4430 = vmul.f32 %v4420, %v4428
        %v4432 = vcombine.high %v4430, %v4430
        %v4434 = vadd.f32 %v4417, %v4430
        %v4435 = vadd.f32 %v4418, %v4432
        %v4438 = vcombine.low %v4434, %v4435
        %4440 = vst [vmem:[#allocation2 + $0x8] sm:$0xff] %v4438
        %v4441 = vld [vmem:[%s67] sm:$0xf]
        %v4442 = vld [vmem:[#allocation20] sm:$0xff]
        %v4443 = vld [vmem:[#allocation2] sm:$0xff]
        %v4444 = vmul.f32 %v4442, %v4443
        %4446 = vset.pattern.permute.xlu0 0
        %4447 = vperm.xlu0 %4446, %v4441
        %v4448 = vpop.permute.xlu0 %4447
        %v4451 = vcombine.high %v4444, %v4444
        %v4453 = vadd.f32 %v4448, %v4444
        %v4454 = vadd.f32 %v4448, %v4451
        %s4455 = scalar_lea.vmem [#allocation20], 8
        %v4456 = vld [vmem:[%s4455] sm:$0xff]
        %v4457 = vld [vmem:[#allocation2] sm:$0xff]
        %v4458 = vld [vmem:[#allocation2 + $0x8] sm:$0xf]
        %4461 = vrot.lane.b32.xlu0 %v4457, 64
        %v4462 = vpop.permute.xlu0 %4461
        %4463 = vrot.lane.b32.xlu0 %v4458, 64
        %v4464 = vpop.permute.xlu0 %4463
        %v4465 = vrot.slane %v4462, 4
        %v4466 = vrot.slane %v4464, 4
        %v4467 = vsel %vm1839, %v4465, %v4466
        %v4468 = vsel %vm2662, %v4462, %v4467
        %v4470 = vmul.f32 %v4456, %v4468
        %v4472 = vcombine.high %v4470, %v4470
        %v4474 = vadd.f32 %v4453, %v4470
        %v4475 = vadd.f32 %v4454, %v4472
        %s4476 = scalar_lea.vmem [#allocation20], 16
        %v4477 = vld [vmem:[%s4476] sm:$0xff]
        %v4478 = vld [vmem:[#allocation2 + $0x4] sm:$0xff]
        %v4479 = vmul.f32 %v4477, %v4478
        %v4481 = vcombine.high %v4479, %v4479
        %v4483 = vadd.f32 %v4474, %v4479
        %v4484 = vadd.f32 %v4475, %v4481
        %s4485 = scalar_lea.vmem [#allocation20], 24
        %v4486 = vld [vmem:[%s4485] sm:$0xff]
        %v4487 = vld [vmem:[#allocation2 + $0xc] sm:$0xf]
        %4490 = vrot.lane.b32.xlu0 %v4478, 64
        %v4491 = vpop.permute.xlu0 %4490
        %4492 = vrot.lane.b32.xlu0 %v4487, 64
        %v4493 = vpop.permute.xlu0 %4492
        %v4494 = vrot.slane %v4491, 4
        %v4495 = vrot.slane %v4493, 4
        %v4496 = vsel %vm1839, %v4494, %v4495
        %v4497 = vsel %vm2662, %v4491, %v4496
        %v4499 = vmul.f32 %v4486, %v4497
        %v4501 = vcombine.high %v4499, %v4499
        %v4503 = vadd.f32 %v4483, %v4499
        %v4504 = vadd.f32 %v4484, %v4501
        %s4505 = scalar_lea.vmem [#allocation20], 32
        %v4506 = vld [vmem:[%s4505] sm:$0xff]
        %v4507 = vld [vmem:[#allocation2 + $0x8] sm:$0xff]
        %v4508 = vmul.f32 %v4506, %v4507
        %v4510 = vcombine.high %v4508, %v4508
        %v4512 = vadd.f32 %v4503, %v4508
        %v4513 = vadd.f32 %v4504, %v4510
        %s4514 = scalar_lea.vmem [#allocation20], 40
        %v4515 = vld [vmem:[%s4514] sm:$0xff]
        %v4516 = vld [vmem:[#allocation2 + $0x10] sm:$0xf]
        %4519 = vrot.lane.b32.xlu0 %v4507, 64
        %v4520 = vpop.permute.xlu0 %4519
        %4521 = vrot.lane.b32.xlu0 %v4516, 64
        %v4522 = vpop.permute.xlu0 %4521
        %v4523 = vrot.slane %v4520, 4
        %v4524 = vrot.slane %v4522, 4
        %v4525 = vsel %vm1839, %v4523, %v4524
        %v4526 = vsel %vm2662, %v4520, %v4525
        %v4528 = vmul.f32 %v4515, %v4526
        %v4530 = vcombine.high %v4528, %v4528
        %v4532 = vadd.f32 %v4512, %v4528
        %v4533 = vadd.f32 %v4513, %v4530
        %s4534 = scalar_lea.vmem [#allocation20], 48
        %v4535 = vld [vmem:[%s4534] sm:$0xff]
        %v4536 = vld [vmem:[#allocation2 + $0xc] sm:$0xff]
        %v4537 = vmul.f32 %v4535, %v4536
        %v4539 = vcombine.high %v4537, %v4537
        %v4541 = vadd.f32 %v4532, %v4537
        %v4542 = vadd.f32 %v4533, %v4539
        %s4543 = scalar_lea.vmem [#allocation20], 56
        %v4544 = vld [vmem:[%s4543] sm:$0xff]
        %v4545 = vld [vmem:[#allocation2 + $0xc] sm:$0xff]
        %v4546 = vld [vmem:[#allocation2 + $0x14] sm:$0xf]
        %4549 = vrot.lane.b32.xlu0 %v4545, 64
        %v4550 = vpop.permute.xlu0 %4549
        %4551 = vrot.lane.b32.xlu0 %v4546, 64
        %v4552 = vpop.permute.xlu0 %4551
        %v4553 = vrot.slane %v4550, 4
        %v4554 = vrot.slane %v4552, 4
        %v4555 = vsel %vm1839, %v4553, %v4554
        %v4556 = vsel %vm2662, %v4550, %v4555
        %v4558 = vmul.f32 %v4544, %v4556
        %v4560 = vcombine.high %v4558, %v4558
        %v4562 = vadd.f32 %v4541, %v4558
        %v4563 = vadd.f32 %v4542, %v4560
        %s4564 = scalar_lea.vmem [#allocation20], 64
        %v4565 = vld [vmem:[%s4564] sm:$0xff]
        %v4566 = vld [vmem:[#allocation2 + $0x10] sm:$0xff]
        %v4567 = vmul.f32 %v4565, %v4566
        %v4569 = vcombine.high %v4567, %v4567
        %v4571 = vadd.f32 %v4562, %v4567
        %v4572 = vadd.f32 %v4563, %v4569
        %v4573 = vld [vmem:[%s73] sm:$0xf]
        %v4574 = vld [vmem:[%s71] sm:$0xf]
        %4576 = vset.pattern.permute.xlu0 0
        %4577 = vperm.xlu0 %4576, %v4574
        %v4578 = vpop.permute.xlu0 %4577
        %v4581 = vsel %vm2560, %v4573, 0
        %v4584 = vsel %vm1839, %v4571, 0
        %v4587 = vsel %vm1839, %v4572, 0
        %4589 = vmatprep.subr.mxu0 0.0
        %4590 = vmatpush1.msra.mxu0 0.0
        %4591 = vmatprep.subr.mxu0 0.0
        %4592 = vmatpush1.msra.mxu0 0.0
        %4593 = vmatprep.subr.mxu0 0.0
        %4594 = vmatpush1.msra.mxu0 0.0
        %4595 = vmatprep.subr.mxu0 0.0
        %4596 = vmatpush1.msra.mxu0 0.0
        %4597 = vmatprep.subr.mxu0 0.0
        %4598 = vmatpush1.msra.mxu0 0.0
        %4599 = vmatprep.subr.mxu0 0.0
        %4600 = vmatpush1.msra.mxu0 0.0
        %4601 = vmatprep.subr.mxu0 0.0
        %4602 = vmatpush1.msra.mxu0 0.0
        %4603 = vmatprep.subr.mxu0 0.0
        %4604 = vmatpush1.msra.mxu0 0.0
        %4605 = vmatprep.subr.mxu0 0.0
        %4606 = vmatpush1.msra.mxu0 0.0
        %4607 = vmatprep.subr.mxu0 0.0
        %4608 = vmatpush1.msra.mxu0 0.0
        %4609 = vmatprep.subr.mxu0 0.0
        %4610 = vmatpush1.msra.mxu0 0.0
        %4611 = vmatprep.subr.mxu0 0.0
        %4612 = vmatpush1.msra.mxu0 0.0
        %4613 = vmatprep.subr.mxu0 0.0
        %4614 = vmatpush1.msra.mxu0 0.0
        %4615 = vmatprep.subr.mxu0 0.0
        %4616 = vmatpush1.msra.mxu0 0.0
        %4617 = vmatprep.subr.mxu0 0.0
        %4618 = vmatpush1.msra.mxu0 0.0
        %4619 = vmatprep.subr.mxu0 %v4587
        %4620 = vmatpush1.msra.mxu0 %v4584
        %4621 = vmatprep.subr.mxu0 0.0
        %4622 = vmatpush2.msra.mxu0 0.0
        %4623 = vmatprep.subr.mxu0 0.0
        %4624 = vmatpush2.msra.mxu0 0.0
        %4625 = vmatprep.subr.mxu0 0.0
        %4626 = vmatpush2.msra.mxu0 0.0
        %4627 = vmatprep.subr.mxu0 0.0
        %4628 = vmatpush2.msra.mxu0 0.0
        %4629 = vmatprep.subr.mxu0 0.0
        %4630 = vmatpush2.msra.mxu0 0.0
        %4631 = vmatprep.subr.mxu0 0.0
        %4632 = vmatpush2.msra.mxu0 0.0
        %4633 = vmatprep.subr.mxu0 0.0
        %4634 = vmatpush2.msra.mxu0 0.0
        %4635 = vmatprep.subr.mxu0 0.0
        %4636 = vmatpush2.msra.mxu0 0.0
        %4637 = vmatprep.subr.mxu0 0.0
        %4638 = vmatpush2.msra.mxu0 0.0
        %4639 = vmatprep.subr.mxu0 0.0
        %4640 = vmatpush2.msra.mxu0 0.0
        %4641 = vmatprep.subr.mxu0 0.0
        %4642 = vmatpush2.msra.mxu0 0.0
        %4643 = vmatprep.subr.mxu0 0.0
        %4644 = vmatpush2.msra.mxu0 0.0
        %4645 = vmatprep.subr.mxu0 0.0
        %4646 = vmatpush2.msra.mxu0 0.0
        %4647 = vmatprep.subr.mxu0 0.0
        %4648 = vmatpush2.msra.mxu0 0.0
        %4649 = vmatprep.subr.mxu0 0.0
        %4650 = vmatpush2.msra.mxu0 0.0
        %4651 = vmatprep.subr.mxu0 0.0
        %4652 = vmatpush2.msra.mxu0 0.0
        %4653 = vmatprep.mubr.f32.mxu0 0.0
        %4654 = vmatmul.mubr.f32.gmra.mxu0 %v4581
        %v4655 = vpop.f32.mrf.mxu0
        %v4656 = vadd.f32 %v4578, %v4655
        %v4657 = vpop.f32.mrf.mxu0
        %v4658 = vadd.f32 %v4578, %v4657
        %4659 = vdwg.mxu0
        %v4662 = vcombine.low %v2171, %v2173
        %4664 = vst [vmem:[#allocation2 + $0x8] sm:$0xff] %v4662
        %v4665 = vld [vmem:[%s11] sm:$0xf]
        %v4666 = vld [vmem:[%s13] sm:$0xff]
        %v4667 = vld [vmem:[#allocation2 + $0x4] sm:$0xff]
        %v4668 = vld [vmem:[#allocation2 + $0xc] sm:$0xf]
        %4671 = vrot.lane.b32.xlu0 %v4667, 51
        %v4672 = vpop.permute.xlu0 %4671
        %4673 = vrot.lane.b32.xlu0 %v4668, 51
        %v4674 = vpop.permute.xlu0 %4673
        %v4675 = vrot.slane %v4672, 4
        %v4676 = vrot.slane %v4674, 4
        %v4677 = vsel %vm1839, %v4675, %v4676
        %vm4678 = vcmask 416768
        %v4679 = vsel %vm4678, %v4672, %v4677
        %v4681 = vmul.f32 %v4666, %v4679
        %4683 = vset.pattern.permute.xlu0 0
        %4684 = vperm.xlu0 %4683, %v4665
        %v4685 = vpop.permute.xlu0 %4684
        %v4688 = vcombine.high %v4681, %v4681
        %v4690 = vadd.f32 %v4685, %v4681
        %v4691 = vadd.f32 %v4685, %v4688
        %s4692 = scalar_lea.vmem %s13, 8
        %v4693 = vld [vmem:[%s4692] sm:$0xff]
        %v4694 = vld [vmem:[#allocation2 + $0x4] sm:$0xff]
        %v4695 = vld [vmem:[#allocation2 + $0xc] sm:$0xf]
        %4698 = vrot.lane.b32.xlu0 %v4694, 50
        %v4699 = vpop.permute.xlu0 %4698
        %4700 = vrot.lane.b32.xlu0 %v4695, 50
        %v4701 = vpop.permute.xlu0 %4700
        %v4702 = vrot.slane %v4699, 4
        %v4703 = vrot.slane %v4701, 4
        %v4704 = vsel %vm1839, %v4702, %v4703
        %vm4705 = vcmask 408576
        %v4706 = vsel %vm4705, %v4699, %v4704
        %v4708 = vmul.f32 %v4693, %v4706
        %v4710 = vcombine.high %v4708, %v4708
        %v4712 = vadd.f32 %v4690, %v4708
        %v4713 = vadd.f32 %v4691, %v4710
        %s4714 = scalar_lea.vmem %s13, 16
        %v4715 = vld [vmem:[%s4714] sm:$0xff]
        %4716 = vrot.lane.b32.xlu0 %v4694, 49
        %v4717 = vpop.permute.xlu0 %4716
        %4718 = vrot.lane.b32.xlu0 %v4695, 49
        %v4719 = vpop.permute.xlu0 %4718
        %v4720 = vrot.slane %v4717, 4
        %v4721 = vrot.slane %v4719, 4
        %v4722 = vsel %vm1839, %v4720, %v4721
        %vm4723 = vcmask 400384
        %v4724 = vsel %vm4723, %v4717, %v4722
        %v4726 = vmul.f32 %v4715, %v4724
        %v4728 = vcombine.high %v4726, %v4726
        %v4730 = vadd.f32 %v4712, %v4726
        %v4731 = vadd.f32 %v4713, %v4728
        %s4732 = scalar_lea.vmem %s13, 24
        %v4733 = vld [vmem:[%s4732] sm:$0xff]
        %4734 = vrot.lane.b32.xlu0 %v4694, 48
        %v4735 = vpop.permute.xlu0 %4734
        %4736 = vrot.lane.b32.xlu0 %v4695, 48
        %v4737 = vpop.permute.xlu0 %4736
        %v4738 = vrot.slane %v4735, 4
        %v4739 = vrot.slane %v4737, 4
        %v4740 = vsel %vm1839, %v4738, %v4739
        %v4741 = vsel %vm3391, %v4735, %v4740
        %v4743 = vmul.f32 %v4733, %v4741
        %v4745 = vcombine.high %v4743, %v4743
        %v4747 = vadd.f32 %v4730, %v4743
        %v4748 = vadd.f32 %v4731, %v4745
        %s4749 = scalar_lea.vmem %s13, 32
        %v4750 = vld [vmem:[%s4749] sm:$0xff]
        %4751 = vrot.lane.b32.xlu0 %v4694, 47
        %v4752 = vpop.permute.xlu0 %4751
        %4753 = vrot.lane.b32.xlu0 %v4695, 47
        %v4754 = vpop.permute.xlu0 %4753
        %v4755 = vrot.slane %v4752, 4
        %v4756 = vrot.slane %v4754, 4
        %v4757 = vsel %vm1839, %v4755, %v4756
        %vm4758 = vcmask 384000
        %v4759 = vsel %vm4758, %v4752, %v4757
        %v4761 = vmul.f32 %v4750, %v4759
        %v4763 = vcombine.high %v4761, %v4761
        %v4765 = vadd.f32 %v4747, %v4761
        %v4766 = vadd.f32 %v4748, %v4763
        %s4767 = scalar_lea.vmem %s13, 40
        %v4768 = vld [vmem:[%s4767] sm:$0xff]
        %4769 = vrot.lane.b32.xlu0 %v4694, 46
        %v4770 = vpop.permute.xlu0 %4769
        %4771 = vrot.lane.b32.xlu0 %v4695, 46
        %v4772 = vpop.permute.xlu0 %4771
        %v4773 = vrot.slane %v4770, 4
        %v4774 = vrot.slane %v4772, 4
        %v4775 = vsel %vm1839, %v4773, %v4774
        %vm4776 = vcmask 375808
        %v4777 = vsel %vm4776, %v4770, %v4775
        %v4779 = vmul.f32 %v4768, %v4777
        %v4781 = vcombine.high %v4779, %v4779
        %v4783 = vadd.f32 %v4765, %v4779
        %v4784 = vadd.f32 %v4766, %v4781
        %s4785 = scalar_lea.vmem %s13, 48
        %v4786 = vld [vmem:[%s4785] sm:$0xff]
        %4787 = vrot.lane.b32.xlu0 %v4694, 45
        %v4788 = vpop.permute.xlu0 %4787
        %4789 = vrot.lane.b32.xlu0 %v4695, 45
        %v4790 = vpop.permute.xlu0 %4789
        %v4791 = vrot.slane %v4788, 4
        %v4792 = vrot.slane %v4790, 4
        %v4793 = vsel %vm1839, %v4791, %v4792
        %vm4794 = vcmask 367616
        %v4795 = vsel %vm4794, %v4788, %v4793
        %v4797 = vmul.f32 %v4786, %v4795
        %v4799 = vcombine.high %v4797, %v4797
        %v4801 = vadd.f32 %v4783, %v4797
        %v4802 = vadd.f32 %v4784, %v4799
        %s4803 = scalar_lea.vmem %s13, 56
        %v4804 = vld [vmem:[%s4803] sm:$0xff]
        %4805 = vrot.lane.b32.xlu0 %v4694, 35
        %v4806 = vpop.permute.xlu0 %4805
        %4807 = vrot.lane.b32.xlu0 %v4695, 35
        %v4808 = vpop.permute.xlu0 %4807
        %v4809 = vrot.slane %v4806, 4
        %v4810 = vrot.slane %v4808, 4
        %v4811 = vsel %vm1839, %v4809, %v4810
        %vm4812 = vcmask 285696
        %v4813 = vsel %vm4812, %v4806, %v4811
        %v4815 = vmul.f32 %v4804, %v4813
        %v4817 = vcombine.high %v4815, %v4815
        %v4819 = vadd.f32 %v4801, %v4815
        %v4820 = vadd.f32 %v4802, %v4817
        %s4821 = scalar_lea.vmem %s13, 64
        %v4822 = vld [vmem:[%s4821] sm:$0xff]
        %4823 = vrot.lane.b32.xlu0 %v4694, 34
        %v4824 = vpop.permute.xlu0 %4823
        %4825 = vrot.lane.b32.xlu0 %v4695, 34
        %v4826 = vpop.permute.xlu0 %4825
        %v4827 = vrot.slane %v4824, 4
        %v4828 = vrot.slane %v4826, 4
        %v4829 = vsel %vm1839, %v4827, %v4828
        %v4830 = vsel %vm3573, %v4824, %v4829
        %v4832 = vmul.f32 %v4822, %v4830
        %v4834 = vcombine.high %v4832, %v4832
        %v4836 = vadd.f32 %v4819, %v4832
        %v4837 = vadd.f32 %v4820, %v4834
        %s4838 = scalar_lea.vmem %s13, 72
        %v4839 = vld [vmem:[%s4838] sm:$0xff]
        %4840 = vrot.lane.b32.xlu0 %v4694, 33
        %v4841 = vpop.permute.xlu0 %4840
        %4842 = vrot.lane.b32.xlu0 %v4695, 33
        %v4843 = vpop.permute.xlu0 %4842
        %v4844 = vrot.slane %v4841, 4
        %v4845 = vrot.slane %v4843, 4
        %v4846 = vsel %vm1839, %v4844, %v4845
        %v4847 = vsel %vm3600, %v4841, %v4846
        %v4849 = vmul.f32 %v4839, %v4847
        %v4851 = vcombine.high %v4849, %v4849
        %v4853 = vadd.f32 %v4836, %v4849
        %v4854 = vadd.f32 %v4837, %v4851
        %s4855 = scalar_lea.vmem %s13, 80
        %v4856 = vld [vmem:[%s4855] sm:$0xff]
        %4857 = vrot.lane.b32.xlu0 %v4694, 32
        %v4858 = vpop.permute.xlu0 %4857
        %4859 = vrot.lane.b32.xlu0 %v4695, 32
        %v4860 = vpop.permute.xlu0 %4859
        %v4861 = vrot.slane %v4858, 4
        %v4862 = vrot.slane %v4860, 4
        %v4863 = vsel %vm1839, %v4861, %v4862
        %v4864 = vsel %vm2689, %v4858, %v4863
        %v4866 = vmul.f32 %v4856, %v4864
        %v4868 = vcombine.high %v4866, %v4866
        %v4870 = vadd.f32 %v4853, %v4866
        %v4871 = vadd.f32 %v4854, %v4868
        %s4872 = scalar_lea.vmem %s13, 88
        %v4873 = vld [vmem:[%s4872] sm:$0xff]
        %4874 = vrot.lane.b32.xlu0 %v4694, 31
        %v4875 = vpop.permute.xlu0 %4874
        %4876 = vrot.lane.b32.xlu0 %v4695, 31
        %v4877 = vpop.permute.xlu0 %4876
        %v4878 = vrot.slane %v4875, 4
        %v4879 = vrot.slane %v4877, 4
        %v4880 = vsel %vm1839, %v4878, %v4879
        %v4881 = vsel %vm3635, %v4875, %v4880
        %v4883 = vmul.f32 %v4873, %v4881
        %v4885 = vcombine.high %v4883, %v4883
        %v4887 = vadd.f32 %v4870, %v4883
        %v4888 = vadd.f32 %v4871, %v4885
        %s4889 = scalar_lea.vmem %s13, 96
        %v4890 = vld [vmem:[%s4889] sm:$0xff]
        %4891 = vrot.lane.b32.xlu0 %v4694, 30
        %v4892 = vpop.permute.xlu0 %4891
        %4893 = vrot.lane.b32.xlu0 %v4695, 30
        %v4894 = vpop.permute.xlu0 %4893
        %v4895 = vrot.slane %v4892, 4
        %v4896 = vrot.slane %v4894, 4
        %v4897 = vsel %vm1839, %v4895, %v4896
        %v4898 = vsel %vm3653, %v4892, %v4897
        %v4900 = vmul.f32 %v4890, %v4898
        %v4902 = vcombine.high %v4900, %v4900
        %v4904 = vadd.f32 %v4887, %v4900
        %v4905 = vadd.f32 %v4888, %v4902
        %s4906 = scalar_lea.vmem %s13, 104
        %v4907 = vld [vmem:[%s4906] sm:$0xff]
        %4908 = vrot.lane.b32.xlu0 %v4694, 29
        %v4909 = vpop.permute.xlu0 %4908
        %4910 = vrot.lane.b32.xlu0 %v4695, 29
        %v4911 = vpop.permute.xlu0 %4910
        %v4912 = vrot.slane %v4909, 4
        %v4913 = vrot.slane %v4911, 4
        %v4914 = vsel %vm1839, %v4912, %v4913
        %vm4915 = vcmask 236544
        %v4916 = vsel %vm4915, %v4909, %v4914
        %v4918 = vmul.f32 %v4907, %v4916
        %v4920 = vcombine.high %v4918, %v4918
        %v4922 = vadd.f32 %v4904, %v4918
        %v4923 = vadd.f32 %v4905, %v4920
        %s4924 = scalar_lea.vmem %s13, 112
        %v4925 = vld [vmem:[%s4924] sm:$0xff]
        %4926 = vrot.lane.b32.xlu0 %v4694, 19
        %v4927 = vpop.permute.xlu0 %4926
        %4928 = vrot.lane.b32.xlu0 %v4695, 19
        %v4929 = vpop.permute.xlu0 %4928
        %v4930 = vrot.slane %v4927, 4
        %v4931 = vrot.slane %v4929, 4
        %v4932 = vsel %vm1839, %v4930, %v4931
        %vm4933 = vcmask 154624
        %v4934 = vsel %vm4933, %v4927, %v4932
        %v4936 = vmul.f32 %v4925, %v4934
        %v4938 = vcombine.high %v4936, %v4936
        %v4940 = vadd.f32 %v4922, %v4936
        %v4941 = vadd.f32 %v4923, %v4938
        %s4942 = scalar_lea.vmem %s13, 120
        %v4943 = vld [vmem:[%s4942] sm:$0xff]
        %4944 = vrot.lane.b32.xlu0 %v4694, 18
        %v4945 = vpop.permute.xlu0 %4944
        %4946 = vrot.lane.b32.xlu0 %v4695, 18
        %v4947 = vpop.permute.xlu0 %4946
        %v4948 = vrot.slane %v4945, 4
        %v4949 = vrot.slane %v4947, 4
        %v4950 = vsel %vm1839, %v4948, %v4949
        %v4951 = vsel %vm3671, %v4945, %v4950
        %v4953 = vmul.f32 %v4943, %v4951
        %v4955 = vcombine.high %v4953, %v4953
        %v4957 = vadd.f32 %v4940, %v4953
        %v4958 = vadd.f32 %v4941, %v4955
        %s4959 = scalar_lea.vmem %s13, 128
        %v4960 = vld [vmem:[%s4959] sm:$0xff]
        %4961 = vrot.lane.b32.xlu0 %v4694, 17
        %v4962 = vpop.permute.xlu0 %4961
        %4963 = vrot.lane.b32.xlu0 %v4695, 17
        %v4964 = vpop.permute.xlu0 %4963
        %v4965 = vrot.slane %v4962, 4
        %v4966 = vrot.slane %v4964, 4
        %v4967 = vsel %vm1839, %v4965, %v4966
        %v4968 = vsel %vm2846, %v4962, %v4967
        %v4970 = vmul.f32 %v4960, %v4968
        %v4972 = vcombine.high %v4970, %v4970
        %v4974 = vadd.f32 %v4957, %v4970
        %v4975 = vadd.f32 %v4958, %v4972
        %s4976 = scalar_lea.vmem %s13, 136
        %v4977 = vld [vmem:[%s4976] sm:$0xff]
        %4978 = vrot.lane.b32.xlu0 %v4694, 16
        %v4979 = vpop.permute.xlu0 %4978
        %4980 = vrot.lane.b32.xlu0 %v4695, 16
        %v4981 = vpop.permute.xlu0 %4980
        %v4982 = vrot.slane %v4979, 4
        %v4983 = vrot.slane %v4981, 4
        %v4984 = vsel %vm1839, %v4982, %v4983
        %v4985 = vsel %vm2498, %v4979, %v4984
        %v4987 = vmul.f32 %v4977, %v4985
        %v4989 = vcombine.high %v4987, %v4987
        %v4991 = vadd.f32 %v4974, %v4987
        %v4992 = vadd.f32 %v4975, %v4989
        %s4993 = scalar_lea.vmem %s13, 144
        %v4994 = vld [vmem:[%s4993] sm:$0xff]
        %4995 = vrot.lane.b32.xlu0 %v4694, 15
        %v4996 = vpop.permute.xlu0 %4995
        %4997 = vrot.lane.b32.xlu0 %v4695, 15
        %v4998 = vpop.permute.xlu0 %4997
        %v4999 = vrot.slane %v4996, 4
        %v5000 = vrot.slane %v4998, 4
        %v5001 = vsel %vm1839, %v4999, %v5000
        %v5002 = vsel %vm2890, %v4996, %v5001
        %v5004 = vmul.f32 %v4994, %v5002
        %v5006 = vcombine.high %v5004, %v5004
        %v5008 = vadd.f32 %v4991, %v5004
        %v5009 = vadd.f32 %v4992, %v5006
        %s5010 = scalar_lea.vmem %s13, 152
        %v5011 = vld [vmem:[%s5010] sm:$0xff]
        %5012 = vrot.lane.b32.xlu0 %v4694, 14
        %v5013 = vpop.permute.xlu0 %5012
        %5014 = vrot.lane.b32.xlu0 %v4695, 14
        %v5015 = vpop.permute.xlu0 %5014
        %v5016 = vrot.slane %v5013, 4
        %v5017 = vrot.slane %v5015, 4
        %v5018 = vsel %vm1839, %v5016, %v5017
        %v5019 = vsel %vm3740, %v5013, %v5018
        %v5021 = vmul.f32 %v5011, %v5019
        %v5023 = vcombine.high %v5021, %v5021
        %v5025 = vadd.f32 %v5008, %v5021
        %v5026 = vadd.f32 %v5009, %v5023
        %s5027 = scalar_lea.vmem %s13, 160
        %v5028 = vld [vmem:[%s5027] sm:$0xff]
        %5029 = vrot.lane.b32.xlu0 %v4694, 13
        %v5030 = vpop.permute.xlu0 %5029
        %5031 = vrot.lane.b32.xlu0 %v4695, 13
        %v5032 = vpop.permute.xlu0 %5031
        %v5033 = vrot.slane %v5030, 4
        %v5034 = vrot.slane %v5032, 4
        %v5035 = vsel %vm1839, %v5033, %v5034
        %vm5036 = vcmask 105472
        %v5037 = vsel %vm5036, %v5030, %v5035
        %v5039 = vmul.f32 %v5028, %v5037
        %v5041 = vcombine.high %v5039, %v5039
        %v5043 = vadd.f32 %v5025, %v5039
        %v5044 = vadd.f32 %v5026, %v5041
        %s5045 = scalar_lea.vmem %s13, 168
        %v5046 = vld [vmem:[%s5045] sm:$0xff]
        %5047 = vrot.lane.b32.xlu0 %v4694, 3
        %v5048 = vpop.permute.xlu0 %5047
        %5049 = vrot.lane.b32.xlu0 %v4695, 3
        %v5050 = vpop.permute.xlu0 %5049
        %v5051 = vrot.slane %v5048, 4
        %v5052 = vrot.slane %v5050, 4
        %v5053 = vsel %vm1839, %v5051, %v5052
        %v5054 = vsel %vm3255, %v5048, %v5053
        %v5056 = vmul.f32 %v5046, %v5054
        %v5058 = vcombine.high %v5056, %v5056
        %v5060 = vadd.f32 %v5043, %v5056
        %v5061 = vadd.f32 %v5044, %v5058
        %s5062 = scalar_lea.vmem %s13, 176
        %v5063 = vld [vmem:[%s5062] sm:$0xff]
        %5064 = vrot.lane.b32.xlu0 %v4694, 2
        %v5065 = vpop.permute.xlu0 %5064
        %5066 = vrot.lane.b32.xlu0 %v4695, 2
        %v5067 = vpop.permute.xlu0 %5066
        %v5068 = vrot.slane %v5065, 4
        %v5069 = vrot.slane %v5067, 4
        %v5070 = vsel %vm1839, %v5068, %v5069
        %v5071 = vsel %vm2587, %v5065, %v5070
        %v5073 = vmul.f32 %v5063, %v5071
        %v5075 = vcombine.high %v5073, %v5073
        %v5077 = vadd.f32 %v5060, %v5073
        %v5078 = vadd.f32 %v5061, %v5075
        %s5079 = scalar_lea.vmem %s13, 184
        %v5080 = vld [vmem:[%s5079] sm:$0xff]
        %5081 = vrot.lane.b32.xlu0 %v4694, 1
        %v5082 = vpop.permute.xlu0 %5081
        %5083 = vrot.lane.b32.xlu0 %v4695, 1
        %v5084 = vpop.permute.xlu0 %5083
        %v5085 = vrot.slane %v5082, 4
        %v5086 = vrot.slane %v5084, 4
        %v5087 = vsel %vm1839, %v5085, %v5086
        %v5088 = vsel %vm2436, %v5082, %v5087
        %v5090 = vmul.f32 %v5080, %v5088
        %v5092 = vcombine.high %v5090, %v5090
        %v5094 = vadd.f32 %v5077, %v5090
        %v5095 = vadd.f32 %v5078, %v5092
        %s5096 = scalar_lea.vmem %s13, 192
        %v5097 = vld [vmem:[%s5096] sm:$0xff]
        %v5098 = vld [vmem:[#allocation2 + $0x8] sm:$0xff]
        %v5099 = vmul.f32 %v5097, %v5098
        %v5101 = vcombine.high %v5099, %v5099
        %v5103 = vadd.f32 %v5094, %v5099
        %v5104 = vadd.f32 %v5095, %v5101
        %s5105 = scalar_lea.vmem %s13, 200
        %v5106 = vld [vmem:[%s5105] sm:$0xff]
        %v5107 = vld [vmem:[#allocation2 + $0x10] sm:$0xf]
        %5110 = vrot.lane.b32.xlu0 %v5098, 127
        %v5111 = vpop.permute.xlu0 %5110
        %5112 = vrot.lane.b32.xlu0 %v5107, 127
        %v5113 = vpop.permute.xlu0 %5112
        %v5114 = vrot.slane %v5111, 4
        %v5115 = vrot.slane %v5113, 4
        %v5116 = vsel %vm1839, %v5114, %v5115
        %v5117 = vsel %vm2471, %v5111, %v5116
        %v5119 = vmul.f32 %v5106, %v5117
        %v5121 = vcombine.high %v5119, %v5119
        %v5123 = vadd.f32 %v5103, %v5119
        %v5124 = vadd.f32 %v5104, %v5121
        %s5125 = scalar_lea.vmem %s13, 208
        %v5126 = vld [vmem:[%s5125] sm:$0xff]
        %5127 = vrot.lane.b32.xlu0 %v5098, 126
        %v5128 = vpop.permute.xlu0 %5127
        %5129 = vrot.lane.b32.xlu0 %v5107, 126
        %v5130 = vpop.permute.xlu0 %5129
        %v5131 = vrot.slane %v5128, 4
        %v5132 = vrot.slane %v5130, 4
        %v5133 = vsel %vm1839, %v5131, %v5132
        %v5134 = vsel %vm2617, %v5128, %v5133
        %v5136 = vmul.f32 %v5126, %v5134
        %v5138 = vcombine.high %v5136, %v5136
        %v5140 = vadd.f32 %v5123, %v5136
        %v5141 = vadd.f32 %v5124, %v5138
        %s5142 = scalar_lea.vmem %s13, 216
        %v5143 = vld [vmem:[%s5142] sm:$0xff]
        %5144 = vrot.lane.b32.xlu0 %v5098, 125
        %v5145 = vpop.permute.xlu0 %5144
        %5146 = vrot.lane.b32.xlu0 %v5107, 125
        %v5147 = vpop.permute.xlu0 %5146
        %v5148 = vrot.slane %v5145, 4
        %v5149 = vrot.slane %v5147, 4
        %v5150 = vsel %vm1839, %v5148, %v5149
        %v5151 = vsel %vm3285, %v5145, %v5150
        %v5153 = vmul.f32 %v5143, %v5151
        %v5155 = vcombine.high %v5153, %v5153
        %v5157 = vadd.f32 %v5140, %v5153
        %v5158 = vadd.f32 %v5141, %v5155
        %s5159 = scalar_lea.vmem %s13, 224
        %v5160 = vld [vmem:[%s5159] sm:$0xff]
        %5161 = vrot.lane.b32.xlu0 %v5098, 115
        %v5162 = vpop.permute.xlu0 %5161
        %5163 = vrot.lane.b32.xlu0 %v5107, 115
        %v5164 = vpop.permute.xlu0 %5163
        %v5165 = vrot.slane %v5162, 4
        %v5166 = vrot.slane %v5164, 4
        %v5167 = vsel %vm1839, %v5165, %v5166
        %vm5168 = vcmask 941056
        %v5169 = vsel %vm5168, %v5162, %v5167
        %v5171 = vmul.f32 %v5160, %v5169
        %v5173 = vcombine.high %v5171, %v5171
        %v5175 = vadd.f32 %v5157, %v5171
        %v5176 = vadd.f32 %v5158, %v5173
        %s5177 = scalar_lea.vmem %s13, 232
        %v5178 = vld [vmem:[%s5177] sm:$0xff]
        %5179 = vrot.lane.b32.xlu0 %v5098, 114
        %v5180 = vpop.permute.xlu0 %5179
        %5181 = vrot.lane.b32.xlu0 %v5107, 114
        %v5182 = vpop.permute.xlu0 %5181
        %v5183 = vrot.slane %v5180, 4
        %v5184 = vrot.slane %v5182, 4
        %v5185 = vsel %vm1839, %v5183, %v5184
        %v5186 = vsel %vm3838, %v5180, %v5185
        %v5188 = vmul.f32 %v5178, %v5186
        %v5190 = vcombine.high %v5188, %v5188
        %v5192 = vadd.f32 %v5175, %v5188
        %v5193 = vadd.f32 %v5176, %v5190
        %s5194 = scalar_lea.vmem %s13, 240
        %v5195 = vld [vmem:[%s5194] sm:$0xff]
        %5196 = vrot.lane.b32.xlu0 %v5098, 113
        %v5197 = vpop.permute.xlu0 %5196
        %5198 = vrot.lane.b32.xlu0 %v5107, 113
        %v5199 = vpop.permute.xlu0 %5198
        %v5200 = vrot.slane %v5197, 4
        %v5201 = vrot.slane %v5199, 4
        %v5202 = vsel %vm1839, %v5200, %v5201
        %v5203 = vsel %vm2954, %v5197, %v5202
        %v5205 = vmul.f32 %v5195, %v5203
        %v5207 = vcombine.high %v5205, %v5205
        %v5209 = vadd.f32 %v5192, %v5205
        %v5210 = vadd.f32 %v5193, %v5207
        %s5211 = scalar_lea.vmem %s13, 248
        %v5212 = vld [vmem:[%s5211] sm:$0xff]
        %5213 = vrot.lane.b32.xlu0 %v5098, 112
        %v5214 = vpop.permute.xlu0 %5213
        %5215 = vrot.lane.b32.xlu0 %v5107, 112
        %v5216 = vpop.permute.xlu0 %5215
        %v5217 = vrot.slane %v5214, 4
        %v5218 = vrot.slane %v5216, 4
        %v5219 = vsel %vm1839, %v5217, %v5218
        %v5220 = vsel %vm2533, %v5214, %v5219
        %v5222 = vmul.f32 %v5212, %v5220
        %v5224 = vcombine.high %v5222, %v5222
        %v5226 = vadd.f32 %v5209, %v5222
        %v5227 = vadd.f32 %v5210, %v5224
        %s5228 = scalar_lea.vmem %s13, 256
        %v5229 = vld [vmem:[%s5228] sm:$0xff]
        %5230 = vrot.lane.b32.xlu0 %v5098, 111
        %v5231 = vpop.permute.xlu0 %5230
        %5232 = vrot.lane.b32.xlu0 %v5107, 111
        %v5233 = vpop.permute.xlu0 %5232
        %v5234 = vrot.slane %v5231, 4
        %v5235 = vrot.slane %v5233, 4
        %v5236 = vsel %vm1839, %v5234, %v5235
        %v5237 = vsel %vm2989, %v5231, %v5236
        %v5239 = vmul.f32 %v5229, %v5237
        %v5241 = vcombine.high %v5239, %v5239
        %v5243 = vadd.f32 %v5226, %v5239
        %v5244 = vadd.f32 %v5227, %v5241
        %s5245 = scalar_lea.vmem %s13, 264
        %v5246 = vld [vmem:[%s5245] sm:$0xff]
        %5247 = vrot.lane.b32.xlu0 %v5098, 110
        %v5248 = vpop.permute.xlu0 %5247
        %5249 = vrot.lane.b32.xlu0 %v5107, 110
        %v5250 = vpop.permute.xlu0 %5249
        %v5251 = vrot.slane %v5248, 4
        %v5252 = vrot.slane %v5250, 4
        %v5253 = vsel %vm1839, %v5251, %v5252
        %v5254 = vsel %vm3907, %v5248, %v5253
        %v5256 = vmul.f32 %v5246, %v5254
        %v5258 = vcombine.high %v5256, %v5256
        %v5260 = vadd.f32 %v5243, %v5256
        %v5261 = vadd.f32 %v5244, %v5258
        %s5262 = scalar_lea.vmem %s13, 272
        %v5263 = vld [vmem:[%s5262] sm:$0xff]
        %5264 = vrot.lane.b32.xlu0 %v5098, 109
        %v5265 = vpop.permute.xlu0 %5264
        %5266 = vrot.lane.b32.xlu0 %v5107, 109
        %v5267 = vpop.permute.xlu0 %5266
        %v5268 = vrot.slane %v5265, 4
        %v5269 = vrot.slane %v5267, 4
        %v5270 = vsel %vm1839, %v5268, %v5269
        %vm5271 = vcmask 891904
        %v5272 = vsel %vm5271, %v5265, %v5270
        %v5274 = vmul.f32 %v5263, %v5272
        %v5276 = vcombine.high %v5274, %v5274
        %v5278 = vadd.f32 %v5260, %v5274
        %v5279 = vadd.f32 %v5261, %v5276
        %s5280 = scalar_lea.vmem %s13, 280
        %v5281 = vld [vmem:[%s5280] sm:$0xff]
        %5282 = vrot.lane.b32.xlu0 %v5098, 99
        %v5283 = vpop.permute.xlu0 %5282
        %5284 = vrot.lane.b32.xlu0 %v5107, 99
        %v5285 = vpop.permute.xlu0 %5284
        %v5286 = vrot.slane %v5283, 4
        %v5287 = vrot.slane %v5285, 4
        %v5288 = vsel %vm1839, %v5286, %v5287
        %vm5289 = vcmask 809984
        %v5290 = vsel %vm5289, %v5283, %v5288
        %v5292 = vmul.f32 %v5281, %v5290
        %v5294 = vcombine.high %v5292, %v5292
        %v5296 = vadd.f32 %v5278, %v5292
        %v5297 = vadd.f32 %v5279, %v5294
        %s5298 = scalar_lea.vmem %s13, 288
        %v5299 = vld [vmem:[%s5298] sm:$0xff]
        %5300 = vrot.lane.b32.xlu0 %v5098, 98
        %v5301 = vpop.permute.xlu0 %5300
        %5302 = vrot.lane.b32.xlu0 %v5107, 98
        %v5303 = vpop.permute.xlu0 %5302
        %v5304 = vrot.slane %v5301, 4
        %v5305 = vrot.slane %v5303, 4
        %v5306 = vsel %vm1839, %v5304, %v5305
        %v5307 = vsel %vm3925, %v5301, %v5306
        %v5309 = vmul.f32 %v5299, %v5307
        %v5311 = vcombine.high %v5309, %v5309
        %v5313 = vadd.f32 %v5296, %v5309
        %v5314 = vadd.f32 %v5297, %v5311
        %s5315 = scalar_lea.vmem %s13, 296
        %v5316 = vld [vmem:[%s5315] sm:$0xff]
        %5317 = vrot.lane.b32.xlu0 %v5098, 97
        %v5318 = vpop.permute.xlu0 %5317
        %5319 = vrot.lane.b32.xlu0 %v5107, 97
        %v5320 = vpop.permute.xlu0 %5319
        %v5321 = vrot.slane %v5318, 4
        %v5322 = vrot.slane %v5320, 4
        %v5323 = vsel %vm1839, %v5321, %v5322
        %v5324 = vsel %vm3943, %v5318, %v5323
        %v5326 = vmul.f32 %v5316, %v5324
        %v5328 = vcombine.high %v5326, %v5326
        %v5330 = vadd.f32 %v5313, %v5326
        %v5331 = vadd.f32 %v5314, %v5328
        %s5332 = scalar_lea.vmem %s13, 304
        %v5333 = vld [vmem:[%s5332] sm:$0xff]
        %5334 = vrot.lane.b32.xlu0 %v5098, 96
        %v5335 = vpop.permute.xlu0 %5334
        %5336 = vrot.lane.b32.xlu0 %v5107, 96
        %v5337 = vpop.permute.xlu0 %5336
        %v5338 = vrot.slane %v5335, 4
        %v5339 = vrot.slane %v5337, 4
        %v5340 = vsel %vm1839, %v5338, %v5339
        %v5341 = vsel %vm2719, %v5335, %v5340
        %v5343 = vmul.f32 %v5333, %v5341
        %v5345 = vcombine.high %v5343, %v5343
        %v5347 = vadd.f32 %v5330, %v5343
        %v5348 = vadd.f32 %v5331, %v5345
        %s5349 = scalar_lea.vmem %s13, 312
        %v5350 = vld [vmem:[%s5349] sm:$0xff]
        %5351 = vrot.lane.b32.xlu0 %v5098, 95
        %v5352 = vpop.permute.xlu0 %5351
        %5353 = vrot.lane.b32.xlu0 %v5107, 95
        %v5354 = vpop.permute.xlu0 %5353
        %v5355 = vrot.slane %v5352, 4
        %v5356 = vrot.slane %v5354, 4
        %v5357 = vsel %vm1839, %v5355, %v5356
        %v5358 = vsel %vm3978, %v5352, %v5357
        %v5360 = vmul.f32 %v5350, %v5358
        %v5362 = vcombine.high %v5360, %v5360
        %v5364 = vadd.f32 %v5347, %v5360
        %v5365 = vadd.f32 %v5348, %v5362
        %s5366 = scalar_lea.vmem %s13, 320
        %v5367 = vld [vmem:[%s5366] sm:$0xff]
        %5368 = vrot.lane.b32.xlu0 %v5098, 94
        %v5369 = vpop.permute.xlu0 %5368
        %5370 = vrot.lane.b32.xlu0 %v5107, 94
        %v5371 = vpop.permute.xlu0 %5370
        %v5372 = vrot.slane %v5369, 4
        %v5373 = vrot.slane %v5371, 4
        %v5374 = vsel %vm1839, %v5372, %v5373
        %v5375 = vsel %vm3996, %v5369, %v5374
        %v5377 = vmul.f32 %v5367, %v5375
        %v5379 = vcombine.high %v5377, %v5377
        %v5381 = vadd.f32 %v5364, %v5377
        %v5382 = vadd.f32 %v5365, %v5379
        %s5383 = scalar_lea.vmem %s13, 328
        %v5384 = vld [vmem:[%s5383] sm:$0xff]
        %5385 = vrot.lane.b32.xlu0 %v5098, 93
        %v5386 = vpop.permute.xlu0 %5385
        %5387 = vrot.lane.b32.xlu0 %v5107, 93
        %v5388 = vpop.permute.xlu0 %5387
        %v5389 = vrot.slane %v5386, 4
        %v5390 = vrot.slane %v5388, 4
        %v5391 = vsel %vm1839, %v5389, %v5390
        %vm5392 = vcmask 760832
        %v5393 = vsel %vm5392, %v5386, %v5391
        %v5395 = vmul.f32 %v5384, %v5393
        %v5397 = vcombine.high %v5395, %v5395
        %v5399 = vadd.f32 %v5381, %v5395
        %v5400 = vadd.f32 %v5382, %v5397
        %s5401 = scalar_lea.vmem %s13, 336
        %v5402 = vld [vmem:[%s5401] sm:$0xff]
        %5403 = vrot.lane.b32.xlu0 %v5098, 83
        %v5404 = vpop.permute.xlu0 %5403
        %5405 = vrot.lane.b32.xlu0 %v5107, 83
        %v5406 = vpop.permute.xlu0 %5405
        %v5407 = vrot.slane %v5404, 4
        %v5408 = vrot.slane %v5406, 4
        %v5409 = vsel %vm1839, %v5407, %v5408
        %vm5410 = vcmask 678912
        %v5411 = vsel %vm5410, %v5404, %v5409
        %v5413 = vmul.f32 %v5402, %v5411
        %v5415 = vcombine.high %v5413, %v5413
        %v5417 = vadd.f32 %v5399, %v5413
        %v5418 = vadd.f32 %v5400, %v5415
        %s5419 = scalar_lea.vmem %s13, 344
        %v5420 = vld [vmem:[%s5419] sm:$0xff]
        %5421 = vrot.lane.b32.xlu0 %v5098, 82
        %v5422 = vpop.permute.xlu0 %5421
        %5423 = vrot.lane.b32.xlu0 %v5107, 82
        %v5424 = vpop.permute.xlu0 %5423
        %v5425 = vrot.slane %v5422, 4
        %v5426 = vrot.slane %v5424, 4
        %v5427 = vsel %vm1839, %v5425, %v5426
        %vm5428 = vcmask 670720
        %v5429 = vsel %vm5428, %v5422, %v5427
        %v5431 = vmul.f32 %v5420, %v5429
        %v5433 = vcombine.high %v5431, %v5431
        %v5435 = vadd.f32 %v5417, %v5431
        %v5436 = vadd.f32 %v5418, %v5433
        %s5437 = scalar_lea.vmem %s13, 352
        %v5438 = vld [vmem:[%s5437] sm:$0xff]
        %5439 = vrot.lane.b32.xlu0 %v5098, 81
        %v5440 = vpop.permute.xlu0 %5439
        %5441 = vrot.lane.b32.xlu0 %v5107, 81
        %v5442 = vpop.permute.xlu0 %5441
        %v5443 = vrot.slane %v5440, 4
        %v5444 = vrot.slane %v5442, 4
        %v5445 = vsel %vm1839, %v5443, %v5444
        %vm5446 = vcmask 662528
        %v5447 = vsel %vm5446, %v5440, %v5445
        %v5449 = vmul.f32 %v5438, %v5447
        %v5451 = vcombine.high %v5449, %v5449
        %v5453 = vadd.f32 %v5435, %v5449
        %v5454 = vadd.f32 %v5436, %v5451
        %s5455 = scalar_lea.vmem %s13, 360
        %v5456 = vld [vmem:[%s5455] sm:$0xff]
        %5457 = vrot.lane.b32.xlu0 %v5098, 80
        %v5458 = vpop.permute.xlu0 %5457
        %5459 = vrot.lane.b32.xlu0 %v5107, 80
        %v5460 = vpop.permute.xlu0 %5459
        %v5461 = vrot.slane %v5458, 4
        %v5462 = vrot.slane %v5460, 4
        %v5463 = vsel %vm1839, %v5461, %v5462
        %v5464 = vsel %vm3421, %v5458, %v5463
        %v5466 = vmul.f32 %v5456, %v5464
        %v5468 = vcombine.high %v5466, %v5466
        %v5470 = vadd.f32 %v5453, %v5466
        %v5471 = vadd.f32 %v5454, %v5468
        %s5472 = scalar_lea.vmem %s13, 368
        %v5473 = vld [vmem:[%s5472] sm:$0xff]
        %5474 = vrot.lane.b32.xlu0 %v5098, 79
        %v5475 = vpop.permute.xlu0 %5474
        %5476 = vrot.lane.b32.xlu0 %v5107, 79
        %v5477 = vpop.permute.xlu0 %5476
        %v5478 = vrot.slane %v5475, 4
        %v5479 = vrot.slane %v5477, 4
        %v5480 = vsel %vm1839, %v5478, %v5479
        %vm5481 = vcmask 646144
        %v5482 = vsel %vm5481, %v5475, %v5480
        %v5484 = vmul.f32 %v5473, %v5482
        %v5486 = vcombine.high %v5484, %v5484
        %v5488 = vadd.f32 %v5470, %v5484
        %v5489 = vadd.f32 %v5471, %v5486
        %s5490 = scalar_lea.vmem %s13, 376
        %v5491 = vld [vmem:[%s5490] sm:$0xff]
        %5492 = vrot.lane.b32.xlu0 %v5098, 78
        %v5493 = vpop.permute.xlu0 %5492
        %5494 = vrot.lane.b32.xlu0 %v5107, 78
        %v5495 = vpop.permute.xlu0 %5494
        %v5496 = vrot.slane %v5493, 4
        %v5497 = vrot.slane %v5495, 4
        %v5498 = vsel %vm1839, %v5496, %v5497
        %vm5499 = vcmask 637952
        %v5500 = vsel %vm5499, %v5493, %v5498
        %v5502 = vmul.f32 %v5491, %v5500
        %v5504 = vcombine.high %v5502, %v5502
        %v5506 = vadd.f32 %v5488, %v5502
        %v5507 = vadd.f32 %v5489, %v5504
        %s5508 = scalar_lea.vmem %s13, 384
        %v5509 = vld [vmem:[%s5508] sm:$0xff]
        %5510 = vrot.lane.b32.xlu0 %v5098, 77
        %v5511 = vpop.permute.xlu0 %5510
        %5512 = vrot.lane.b32.xlu0 %v5107, 77
        %v5513 = vpop.permute.xlu0 %5512
        %v5514 = vrot.slane %v5511, 4
        %v5515 = vrot.slane %v5513, 4
        %v5516 = vsel %vm1839, %v5514, %v5515
        %vm5517 = vcmask 629760
        %v5518 = vsel %vm5517, %v5511, %v5516
        %v5520 = vmul.f32 %v5509, %v5518
        %v5522 = vcombine.high %v5520, %v5520
        %v5524 = vadd.f32 %v5506, %v5520
        %v5525 = vadd.f32 %v5507, %v5522
        %v5526 = vmul.f32 %v4656, %v5524
        %v5527 = vmul.f32 %v4658, %v5525
        %v5528 = vld [vmem:[%s103] sm:$0xff]
        %v5529 = vld [vmem:[%s103 + $0x8] sm:$0xf]
        %v5530 = vld [vmem:[%s105] sm:$0xff]
        %v5531 = vld [vmem:[%s105 + $0x8] sm:$0xf]
        %v5532 = vmul.f32 %v2252, %v2998
        %v5533 = vmul.f32 %v2254, %v2999
        %v5535 = vsel %vm2560, %v5530, 0
        %v5538 = vsel %vm2560, %v5531, 0
        %v5541 = vsel %vm1839, %v5532, 0
        %v5544 = vsel %vm1839, %v5533, 0
        %5546 = vmatprep.subr.mxu0 0.0
        %5547 = vmatpush1.msra.mxu0 0.0
        %5548 = vmatprep.subr.mxu0 0.0
        %5549 = vmatpush1.msra.mxu0 0.0
        %5550 = vmatprep.subr.mxu0 0.0
        %5551 = vmatpush1.msra.mxu0 0.0
        %5552 = vmatprep.subr.mxu0 0.0
        %5553 = vmatpush1.msra.mxu0 0.0
        %5554 = vmatprep.subr.mxu0 0.0
        %5555 = vmatpush1.msra.mxu0 0.0
        %5556 = vmatprep.subr.mxu0 0.0
        %5557 = vmatpush1.msra.mxu0 0.0
        %5558 = vmatprep.subr.mxu0 0.0
        %5559 = vmatpush1.msra.mxu0 0.0
        %5560 = vmatprep.subr.mxu0 0.0
        %5561 = vmatpush1.msra.mxu0 0.0
        %5562 = vmatprep.subr.mxu0 0.0
        %5563 = vmatpush1.msra.mxu0 0.0
        %5564 = vmatprep.subr.mxu0 0.0
        %5565 = vmatpush1.msra.mxu0 0.0
        %5566 = vmatprep.subr.mxu0 0.0
        %5567 = vmatpush1.msra.mxu0 0.0
        %5568 = vmatprep.subr.mxu0 0.0
        %5569 = vmatpush1.msra.mxu0 0.0
        %5570 = vmatprep.subr.mxu0 0.0
        %5571 = vmatpush1.msra.mxu0 0.0
        %5572 = vmatprep.subr.mxu0 0.0
        %5573 = vmatpush1.msra.mxu0 0.0
        %5574 = vmatprep.subr.mxu0 0.0
        %5575 = vmatpush1.msra.mxu0 0.0
        %5576 = vmatprep.subr.mxu0 %v5544
        %5577 = vmatpush1.msra.mxu0 %v5541
        %5578 = vmatprep.subr.mxu0 0.0
        %5579 = vmatpush2.msra.mxu0 0.0
        %5580 = vmatprep.subr.mxu0 0.0
        %5581 = vmatpush2.msra.mxu0 0.0
        %5582 = vmatprep.subr.mxu0 0.0
        %5583 = vmatpush2.msra.mxu0 0.0
        %5584 = vmatprep.subr.mxu0 0.0
        %5585 = vmatpush2.msra.mxu0 0.0
        %5586 = vmatprep.subr.mxu0 0.0
        %5587 = vmatpush2.msra.mxu0 0.0
        %5588 = vmatprep.subr.mxu0 0.0
        %5589 = vmatpush2.msra.mxu0 0.0
        %5590 = vmatprep.subr.mxu0 0.0
        %5591 = vmatpush2.msra.mxu0 0.0
        %5592 = vmatprep.subr.mxu0 0.0
        %5593 = vmatpush2.msra.mxu0 0.0
        %5594 = vmatprep.subr.mxu0 0.0
        %5595 = vmatpush2.msra.mxu0 0.0
        %5596 = vmatprep.subr.mxu0 0.0
        %5597 = vmatpush2.msra.mxu0 0.0
        %5598 = vmatprep.subr.mxu0 0.0
        %5599 = vmatpush2.msra.mxu0 0.0
        %5600 = vmatprep.subr.mxu0 0.0
        %5601 = vmatpush2.msra.mxu0 0.0
        %5602 = vmatprep.subr.mxu0 0.0
        %5603 = vmatpush2.msra.mxu0 0.0
        %5604 = vmatprep.subr.mxu0 0.0
        %5605 = vmatpush2.msra.mxu0 0.0
        %5606 = vmatprep.subr.mxu0 0.0
        %5607 = vmatpush2.msra.mxu0 0.0
        %5608 = vmatprep.subr.mxu0 0.0
        %5609 = vmatpush2.msra.mxu0 0.0
        %5610 = vmatprep.mubr.f32.mxu0 0.0
        %5611 = vmatmul.mubr.f32.gmra.mxu0 %v5535
        %v5612 = vpop.f32.mrf.mxu0
        %v5613 = vadd.f32 0.0, %v5612
        %v5614 = vpop.f32.mrf.mxu0
        %v5615 = vadd.f32 0.0, %v5614
        %5616 = vmatprep.mubr.f32.mxu0 0.0
        %5617 = vmatmul.mubr.f32.gmra.mxu0 %v5538
        %v5618 = vpop.f32.mrf.mxu0
        %v5619 = vadd.f32 0.0, %v5618
        %v5620 = vpop.f32.mrf.mxu0
        %v5621 = vadd.f32 0.0, %v5620
        %5622 = vdwg.mxu0
        %5624 = vset.pattern.permute.xlu0 0
        %5625 = vperm.xlu0 %5624, %v5528
        %v5626 = vpop.permute.xlu0 %5625
        %5629 = vset.pattern.permute.xlu0 0
        %5630 = vperm.xlu0 %5629, %v5529
        %v5631 = vpop.permute.xlu0 %5630
        %v5633 = vadd.f32 %v5626, %v5613
        %v5634 = vadd.f32 %v5626, %v5615
        %v5635 = vadd.f32 %v5631, %v5619
        %v5636 = vadd.f32 %v5631, %v5621
        %v5637 = vld [vmem:[%s107] sm:$0xff]
        %v5638 = vld [vmem:[%s107 + $0x8] sm:$0xf]
        %v5639 = vmul.f32 %v2333, %v4005
        %v5640 = vmul.f32 %v2335, %v4006
        %v5642 = vsel %vm2560, %v5637, 0
        %v5645 = vsel %vm2560, %v5638, 0
        %v5648 = vsel %vm1839, %v5639, 0
        %v5651 = vsel %vm1839, %v5640, 0
        %5653 = vmatprep.subr.mxu0 0.0
        %5654 = vmatpush1.msra.mxu0 0.0
        %5655 = vmatprep.subr.mxu0 0.0
        %5656 = vmatpush1.msra.mxu0 0.0
        %5657 = vmatprep.subr.mxu0 0.0
        %5658 = vmatpush1.msra.mxu0 0.0
        %5659 = vmatprep.subr.mxu0 0.0
        %5660 = vmatpush1.msra.mxu0 0.0
        %5661 = vmatprep.subr.mxu0 0.0
        %5662 = vmatpush1.msra.mxu0 0.0
        %5663 = vmatprep.subr.mxu0 0.0
        %5664 = vmatpush1.msra.mxu0 0.0
        %5665 = vmatprep.subr.mxu0 0.0
        %5666 = vmatpush1.msra.mxu0 0.0
        %5667 = vmatprep.subr.mxu0 0.0
        %5668 = vmatpush1.msra.mxu0 0.0
        %5669 = vmatprep.subr.mxu0 0.0
        %5670 = vmatpush1.msra.mxu0 0.0
        %5671 = vmatprep.subr.mxu0 0.0
        %5672 = vmatpush1.msra.mxu0 0.0
        %5673 = vmatprep.subr.mxu0 0.0
        %5674 = vmatpush1.msra.mxu0 0.0
        %5675 = vmatprep.subr.mxu0 0.0
        %5676 = vmatpush1.msra.mxu0 0.0
        %5677 = vmatprep.subr.mxu0 0.0
        %5678 = vmatpush1.msra.mxu0 0.0
        %5679 = vmatprep.subr.mxu0 0.0
        %5680 = vmatpush1.msra.mxu0 0.0
        %5681 = vmatprep.subr.mxu0 0.0
        %5682 = vmatpush1.msra.mxu0 0.0
        %5683 = vmatprep.subr.mxu0 %v5651
        %5684 = vmatpush1.msra.mxu0 %v5648
        %5685 = vmatprep.subr.mxu0 0.0
        %5686 = vmatpush2.msra.mxu0 0.0
        %5687 = vmatprep.subr.mxu0 0.0
        %5688 = vmatpush2.msra.mxu0 0.0
        %5689 = vmatprep.subr.mxu0 0.0
        %5690 = vmatpush2.msra.mxu0 0.0
        %5691 = vmatprep.subr.mxu0 0.0
        %5692 = vmatpush2.msra.mxu0 0.0
        %5693 = vmatprep.subr.mxu0 0.0
        %5694 = vmatpush2.msra.mxu0 0.0
        %5695 = vmatprep.subr.mxu0 0.0
        %5696 = vmatpush2.msra.mxu0 0.0
        %5697 = vmatprep.subr.mxu0 0.0
        %5698 = vmatpush2.msra.mxu0 0.0
        %5699 = vmatprep.subr.mxu0 0.0
        %5700 = vmatpush2.msra.mxu0 0.0
        %5701 = vmatprep.subr.mxu0 0.0
        %5702 = vmatpush2.msra.mxu0 0.0
        %5703 = vmatprep.subr.mxu0 0.0
        %5704 = vmatpush2.msra.mxu0 0.0
        %5705 = vmatprep.subr.mxu0 0.0
        %5706 = vmatpush2.msra.mxu0 0.0
        %5707 = vmatprep.subr.mxu0 0.0
        %5708 = vmatpush2.msra.mxu0 0.0
        %5709 = vmatprep.subr.mxu0 0.0
        %5710 = vmatpush2.msra.mxu0 0.0
        %5711 = vmatprep.subr.mxu0 0.0
        %5712 = vmatpush2.msra.mxu0 0.0
        %5713 = vmatprep.subr.mxu0 0.0
        %5714 = vmatpush2.msra.mxu0 0.0
        %5715 = vmatprep.subr.mxu0 0.0
        %5716 = vmatpush2.msra.mxu0 0.0
        %5717 = vmatprep.mubr.f32.mxu0 0.0
        %5718 = vmatmul.mubr.f32.gmra.mxu0 %v5642
        %v5719 = vpop.f32.mrf.mxu0
        %v5720 = vadd.f32 0.0, %v5719
        %v5721 = vpop.f32.mrf.mxu0
        %v5722 = vadd.f32 0.0, %v5721
        %5723 = vmatprep.mubr.f32.mxu0 0.0
        %5724 = vmatmul.mubr.f32.gmra.mxu0 %v5645
        %v5725 = vpop.f32.mrf.mxu0
        %v5726 = vadd.f32 0.0, %v5725
        %v5727 = vpop.f32.mrf.mxu0
        %v5728 = vadd.f32 0.0, %v5727
        %5729 = vdwg.mxu0
        %v5730 = vadd.f32 %v5633, %v5720
        %v5731 = vadd.f32 %v5634, %v5722
        %v5732 = vadd.f32 %v5635, %v5726
        %v5733 = vadd.f32 %v5636, %v5728
        %v5734 = vld [vmem:[%s109] sm:$0xff]
        %v5735 = vld [vmem:[%s109 + $0x8] sm:$0xf]
        %v5736 = vmul.f32 %v2414, %v5526
        %v5737 = vmul.f32 %v2416, %v5527
        %v5739 = vsel %vm2560, %v5734, 0
        %v5742 = vsel %vm2560, %v5735, 0
        %v5745 = vsel %vm1839, %v5736, 0
        %v5748 = vsel %vm1839, %v5737, 0
        %5750 = vmatprep.subr.mxu0 0.0
        %5751 = vmatpush1.msra.mxu0 0.0
        %5752 = vmatprep.subr.mxu0 0.0
        %5753 = vmatpush1.msra.mxu0 0.0
        %5754 = vmatprep.subr.mxu0 0.0
        %5755 = vmatpush1.msra.mxu0 0.0
        %5756 = vmatprep.subr.mxu0 0.0
        %5757 = vmatpush1.msra.mxu0 0.0
        %5758 = vmatprep.subr.mxu0 0.0
        %5759 = vmatpush1.msra.mxu0 0.0
        %5760 = vmatprep.subr.mxu0 0.0
        %5761 = vmatpush1.msra.mxu0 0.0
        %5762 = vmatprep.subr.mxu0 0.0
        %5763 = vmatpush1.msra.mxu0 0.0
        %5764 = vmatprep.subr.mxu0 0.0
        %5765 = vmatpush1.msra.mxu0 0.0
        %5766 = vmatprep.subr.mxu0 0.0
        %5767 = vmatpush1.msra.mxu0 0.0
        %5768 = vmatprep.subr.mxu0 0.0
        %5769 = vmatpush1.msra.mxu0 0.0
        %5770 = vmatprep.subr.mxu0 0.0
        %5771 = vmatpush1.msra.mxu0 0.0
        %5772 = vmatprep.subr.mxu0 0.0
        %5773 = vmatpush1.msra.mxu0 0.0
        %5774 = vmatprep.subr.mxu0 0.0
        %5775 = vmatpush1.msra.mxu0 0.0
        %5776 = vmatprep.subr.mxu0 0.0
        %5777 = vmatpush1.msra.mxu0 0.0
        %5778 = vmatprep.subr.mxu0 0.0
        %5779 = vmatpush1.msra.mxu0 0.0
        %5780 = vmatprep.subr.mxu0 %v5748
        %5781 = vmatpush1.msra.mxu0 %v5745
        %5782 = vmatprep.subr.mxu0 0.0
        %5783 = vmatpush2.msra.mxu0 0.0
        %5784 = vmatprep.subr.mxu0 0.0
        %5785 = vmatpush2.msra.mxu0 0.0
        %5786 = vmatprep.subr.mxu0 0.0
        %5787 = vmatpush2.msra.mxu0 0.0
        %5788 = vmatprep.subr.mxu0 0.0
        %5789 = vmatpush2.msra.mxu0 0.0
        %5790 = vmatprep.subr.mxu0 0.0
        %5791 = vmatpush2.msra.mxu0 0.0
        %5792 = vmatprep.subr.mxu0 0.0
        %5793 = vmatpush2.msra.mxu0 0.0
        %5794 = vmatprep.subr.mxu0 0.0
        %5795 = vmatpush2.msra.mxu0 0.0
        %5796 = vmatprep.subr.mxu0 0.0
        %5797 = vmatpush2.msra.mxu0 0.0
        %5798 = vmatprep.subr.mxu0 0.0
        %5799 = vmatpush2.msra.mxu0 0.0
        %5800 = vmatprep.subr.mxu0 0.0
        %5801 = vmatpush2.msra.mxu0 0.0
        %5802 = vmatprep.subr.mxu0 0.0
        %5803 = vmatpush2.msra.mxu0 0.0
        %5804 = vmatprep.subr.mxu0 0.0
        %5805 = vmatpush2.msra.mxu0 0.0
        %5806 = vmatprep.subr.mxu0 0.0
        %5807 = vmatpush2.msra.mxu0 0.0
        %5808 = vmatprep.subr.mxu0 0.0
        %5809 = vmatpush2.msra.mxu0 0.0
        %5810 = vmatprep.subr.mxu0 0.0
        %5811 = vmatpush2.msra.mxu0 0.0
        %5812 = vmatprep.subr.mxu0 0.0
        %5813 = vmatpush2.msra.mxu0 0.0
        %5814 = vmatprep.mubr.f32.mxu0 0.0
        %5815 = vmatmul.mubr.f32.gmra.mxu0 %v5739
        %v5816 = vpop.f32.mrf.mxu0
        %v5817 = vadd.f32 0.0, %v5816
        %v5818 = vpop.f32.mrf.mxu0
        %v5819 = vadd.f32 0.0, %v5818
        %5820 = vmatprep.mubr.f32.mxu0 0.0
        %5821 = vmatmul.mubr.f32.gmra.mxu0 %v5742
        %v5822 = vpop.f32.mrf.mxu0
        %v5823 = vadd.f32 0.0, %v5822
        %v5824 = vpop.f32.mrf.mxu0
        %v5825 = vadd.f32 0.0, %v5824
        %5826 = vdwg.mxu0
        %v5827 = vadd.f32 %v5730, %v5817
        %v5828 = vadd.f32 %v5731, %v5819
        %v5829 = vadd.f32 %v5732, %v5823
        %v5830 = vadd.f32 %v5733, %v5825
        %v5831 = vld [vmem:[%s111] sm:$0xff]
        %v5832 = vld [vmem:[%s111 + $0x8] sm:$0xf]
        %5834 = vset.pattern.permute.xlu0 0
        %5835 = vperm.xlu0 %5834, %v5831
        %v5836 = vpop.permute.xlu0 %5835
        %5839 = vset.pattern.permute.xlu0 0
        %5840 = vperm.xlu0 %5839, %v5832
        %v5841 = vpop.permute.xlu0 %5840
        %v5843 = vmul.f32 %v5827, %v5836
        %v5844 = vmul.f32 %v5828, %v5836
        %v5845 = vmul.f32 %v5829, %v5841
        %v5846 = vmul.f32 %v5830, %v5841
        %v5847 = vld [vmem:[%s1826] sm:$0xff]
        %v5848 = vld [vmem:[%s1826 + $0x8] sm:$0xff]
        %v5849 = vld [vmem:[%s1826 + $0x10] sm:$0xf]
        %v5850 = vld [vmem:[%s1826 + $0x18] sm:$0xf]
        %v5851 = vadd.f32 %v5843, %v5847
        %v5852 = vadd.f32 %v5844, %v5848
        %v5853 = vadd.f32 %v5845, %v5849
        %v5854 = vadd.f32 %v5846, %v5850
        %5855 = vst [vmem:[%s1831] sm:$0xff] %v5851
        %5856 = vst [vmem:[%s1831 + $0x8] sm:$0xff] %v5852
        %5857 = vst [vmem:[%s1831 + $0x10] sm:$0xf] %v5853
        %5858 = vst [vmem:[%s1831 + $0x18] sm:$0xf] %v5854
        %p5859 = scmp.lt.s32.totalorder %s131, 1
        %s5860 = scalar_select %p5859, %s131, 1
        %s5861 = smul.addr %s5860, 4
        %s5862 = smul.addr %s5861, 8
        %s5863 = scalar_lea.vmem %s113, %s5862
        // Predicated region
        $region293: #{mlda_pallas.1} parent=243 // pred_check
          %p5864 = pneg %p1330
        $region294: #{mlda_pallas.1} parent=243 // pred_check_branch
          %5866 = sbr.rel (%p5864) target = $region296
        $region295: #{mlda_pallas.1} parent=243 // pred_region
          _
        $region296: #{mlda_pallas.1} parent=243 // pred_fallthru
          _
      $region244: #{mlda_pallas.1} parent=5 // pred_fallthru
        _
      %p5867 = scmp.le.s32.totalorder 2, %s126
      // Predicated region
      $region297: #{mlda_pallas.1} parent=5 // pred_check
        %p5868 = pneg %p5867
      $region298: #{mlda_pallas.1} parent=5 // pred_check_branch
        %5870 = sbr.rel (%p5868) target = $region300
      $region299: #{mlda_pallas.1} parent=5 // pred_region
        %s5871 = ssub.s32 %s126, 2
        // Predicated region
        $region301: #{mlda_pallas.1} parent=299 // pred_check
          %p5872 = pneg %p1336
        $region302: #{mlda_pallas.1} parent=299 // pred_check_branch
          %5874 = sbr.rel (%p5872) target = $region304
        $region303: #{mlda_pallas.1} parent=299 // pred_region
          %p5875 = scmp.lt.s32.totalorder %s132, 1
          %s5876 = scalar_select %p5875, %s132, 1
          %s5877 = smul.addr %s5876, 4
          %s5878 = smul.addr %s5877, 8
          %s5879 = scalar_lea.vmem %s113, %s5878
        $region304: #{mlda_pallas.1} parent=299 // pred_fallthru
          _
      $region300: #{mlda_pallas.1} parent=5 // pred_fallthru
        _
    $region6: #{mlda_pallas.1} parent=1 // loop_footer
      %s130 = sadd.s32 1, %s126
    $region7: #{mlda_pallas.1} parent=1 // loop_footer_branch
      %125 = sbr.rel target = $region3
    $region8: #{mlda_pallas.1} parent=1 // loop_exit
      _
    %5880 = vsyncpa [#allocation4], 1
    %s5881 = scalar_lea.sflag [#allocation4], 1
    %5882 = vsyncpa %s5881, 1
    %5883 = vsyncpa [#allocation6], 1
    %5884 = vsyncpa [#allocation9], 1
    %5885 = vsyncpa [#allocation12], 1
    %5886 = vsyncpa [#allocation15], 1
    %5887 = vsyncpa [#allocation18], 1
    %5888 = vsyncpa [#allocation21], 1

</llo_original>
